<compile_context>
chip_gen: v5e
topology: v5e:2x2
jax: 0.10.0
libtpu: 0.0.40
codegen_flags: <defaults>
</compile_context>

<pallas_src>
import numpy as np

import jax
import jax.numpy as jnp
from jax.experimental import pallas as pl
from jax.experimental.pallas import tpu as pltpu


_BLOCK_CFGS = [(4, 2, 0), (5, 2, 2), (4, 2, 1), (4, 2, 1)]  # (kernel, stride, padding)
_BN_EPS = 1e-5
_LEAKY_SLOPE = 0.2


# ----------------------------------------------------------------------------
# Fused Pallas kernel: the entire generator forward pass.
#   args: a0_ref, (m_ref, g_ref, gt_ref) x 4 layers, out_ref
# ----------------------------------------------------------------------------
def _generator_kernel(a0_ref, *refs):
    out_ref = refs[-1]
    layer_refs = [refs[3 * i:3 * i + 3] for i in range(4)]
    n = a0_ref.shape[0]

    h = a0_ref[...]                                             # (N, D0) f32
    for li, (m_ref, g_ref, gt_ref) in enumerate(layer_refs):
        d_out = m_ref.shape[1]                                  # Cout * OH * OW
        c_out = g_ref.shape[1]                                  # Cout
        inv_cnt = 1.0 / float(n * (d_out // c_out))             # 1 / (N * OH * OW)

        # ConvTranspose2d as one lane-dense MXU matmul (bf16 in, f32 accumulate).
        z = jnp.dot(h.astype(jnp.bfloat16), m_ref[...],
                    preferred_element_type=jnp.float32)         # (N, D) f32

        # BatchNorm2d, training-mode batch stats, single pass (sum & sum of squares),
        # grouped per channel with the 0/1 indicator matrix G.
        zg = jnp.dot(z, g_ref[...], preferred_element_type=jnp.float32)        # (N, C)
        zzg = jnp.dot(z * z, g_ref[...], preferred_element_type=jnp.float32)   # (N, C)
        ch_sum = jnp.sum(zg, axis=0, keepdims=True)                            # (1, C)
        ch_sq = jnp.sum(zzg, axis=0, keepdims=True)                            # (1, C)
        mean = ch_sum * inv_cnt
        var = ch_sq * inv_cnt - mean * mean                                    # biased variance
        inv_std = jax.lax.rsqrt(var + _BN_EPS)
        mean_b = jnp.dot(mean, gt_ref[...], preferred_element_type=jnp.float32)    # (1, D)
        inv_b = jnp.dot(inv_std, gt_ref[...], preferred_element_type=jnp.float32)  # (1, D)
        y = (z - mean_b) * inv_b                                 # gamma=1, beta=0 (default init)

        # LeakyReLU(0.2); the last block additionally goes through Tanh.
        y = jnp.where(y > 0, y, _LEAKY_SLOPE * y)
        if li == len(layer_refs) - 1:
            y = jnp.tanh(y)
        h = y

    out_ref[...] = h.astype(out_ref.dtype)


def _fused_generator_call(a0, layer_args):
    n = a0.shape[0]
    args = [a0]
    for (m, g, gt) in layer_args:
        args += [m, g, gt]
    d_out = layer_args[-1][0].shape[1]
    in_specs = [pl.BlockSpec(a.shape, lambda i: (0, 0)) for a in args]
    return pl.pallas_call(
        _generator_kernel,
        out_shape=jax.ShapeDtypeStruct((n, d_out), jnp.float32),
        grid=(1,),
        in_specs=in_specs,
        out_specs=pl.BlockSpec((n, d_out), lambda i: (0, 0)),
        compiler_params=pltpu.CompilerParams(dimension_semantics=("arbitrary",)),
    )(*args)


# ----------------------------------------------------------------------------
# Generator forward (Pallas path).  Only glue: embedding gather + concat, final reshape.
# ----------------------------------------------------------------------------
@jax.jit
def generator_forward(prepared, x, label):
    n = x.shape[0]
    emb = prepared["embed"][label]                              # (N, E)  -- tiny XLA gather
    a0 = jnp.concatenate([x.reshape(n, -1), emb], axis=1)       # (N, z_dim + E)
    layer_args = [(prepared[f"m{i}"], prepared[f"g{i}"], prepared[f"gt{i}"])
                  for i in (1, 2, 3, 4)]
    flat = _fused_generator_call(a0, layer_args)                # (N, Cout*28*28), channel-major
    c_out = prepared["g4"].shape[1]
    hw = prepared["m4"].shape[1] // c_out
    side = int(round(hw ** 0.5))
    return flat.reshape(n, c_out, side, side)                   # metadata-only reshape -> NCHW


# ----------------------------------------------------------------------------
# One-time parameter preparation (host side): fold each ConvTranspose2d into its exact dense
# matrix (stored bf16 for the MXU / halved DMA) plus the BatchNorm channel-group matrices.
# ----------------------------------------------------------------------------
def _convT_dense_matrix(w, stride, padding, H, W):
    """Exact dense linear map of ConvTranspose2d (no bias), channel-major flattening."""
    Cin, Cout, KH, KW = w.shape
    OH = (H - 1) * stride - 2 * padding + KH
    OW = (W - 1) * stride - 2 * padding + KW
    M = np.zeros((Cin * H * W, Cout * OH * OW), np.float32)
    row_base = np.arange(Cin) * (H * W)
    col_base = np.arange(Cout) * (OH * OW)
    for ih in range(H):
        for kh in range(KH):
            oh = ih * stride - padding + kh
            if oh < 0 or oh >= OH:
                continue
            for iw in range(W):
                for kw in range(KW):
                    ow = iw * stride - padding + kw
                    if ow < 0 or ow >= OW:
                        continue
                    M[np.ix_(row_base + ih * W + iw,
                             col_base + oh * OW + ow)] = w[:, :, kh, kw]
    return M, OH, OW


def prepare_generator(params):
    prepared = {"embed": params["embed"]}
    H = W = 1
    for i, (k, s, p) in enumerate(_BLOCK_CFGS):
        w = np.asarray(jax.device_get(params[f"w{i + 1}"]), dtype=np.float32)
        M, OH, OW = _convT_dense_matrix(w, s, p, H, W)
        c_out = w.shape[1]
        G = np.kron(np.eye(c_out, dtype=np.float32), np.ones((OH * OW, 1), np.float32))
        prepared[f"m{i + 1}"] = jnp.asarray(M, dtype=jnp.bfloat16)   # MXU operand (bf16)
        prepared[f"g{i + 1}"] = jnp.asarray(G)                       # (D_out, C)  f32
        prepared[f"gt{i + 1}"] = jnp.asarray(np.ascontiguousarray(G.T))  # (C, D_out) f32
        H, W = OH, OW
    return prepared


# ----------------------------------------------------------------------------
# Pure-JAX reference (for correctness check only)
# ----------------------------------------------------------------------------
def reference_forward(params, x, label):
    emb = params["embed"][label][:, :, None, None]
    h = jnp.concatenate([x, emb], axis=1)
    for i, (k, s, p) in enumerate(_BLOCK_CFGS):
        w_t = params[f"w{i + 1}"]
        w_conv = jnp.transpose(w_t[:, :, ::-1, ::-1], (1, 0, 2, 3))  # (Cout, Cin, KH, KW)
        y = jax.lax.conv_general_dilated(
            h, w_conv,
            window_strides=(1, 1),
            padding=[(k - 1 - p, k - 1 - p)] * 2,
            lhs_dilation=(s, s),
            dimension_numbers=("NCHW", "OIHW", "NCHW"),
        )
        mean = jnp.mean(y, axis=(0, 2, 3), keepdims=True)
        var = jnp.mean(jnp.square(y - mean), axis=(0, 2, 3), keepdims=True)
        y = (y - mean) * jax.lax.rsqrt(var + _BN_EPS)
        y = jnp.where(y > 0, y, _LEAKY_SLOPE * y)
        if i == len(_BLOCK_CFGS) - 1:
            y = jnp.tanh(y)
        h = y
    return h


# ----------------------------------------------------------------------------
# Deterministic parameter init (shapes follow the module __init__)
# ----------------------------------------------------------------------------
def init_params(key, z_dim, out_channels, num_classes, embed_size, img_size):
    c_in0 = z_dim + embed_size
    chans = [c_in0, img_size * 4, img_size * 2, img_size, out_channels]
    kernels = [4, 5, 4, 4]
    keys = jax.random.split(key, 5)
    params = {}
    for i in range(4):
        cin, cout, k = chans[i], chans[i + 1], kernels[i]
        # PyTorch ConvTranspose2d weight layout: (in_channels, out_channels, kH, kW)
        params[f"w{i + 1}"] = 0.1 * jax.random.normal(keys[i], (cin, cout, k, k), jnp.float32)
    params["embed"] = jax.random.normal(keys[4], (num_classes, embed_size), jnp.float32)
    # BatchNorm gamma=1 / beta=0 (default init) are implicit in the fused kernel.
    return params


if __name__ == "__main__":
    # Small config: z_dim=8, out_channels=3, num_classes=10, img_dim=28, embed_size=8, img_size=4
    z_dim, out_channels, num_classes, embed_size, img_size = 8, 3, 10, 8, 4
    batch = 2

    root = jax.random.PRNGKey(0)
    k_p, k_x, k_l = jax.random.split(root, 3)

    params = init_params(k_p, z_dim, out_channels, num_classes, embed_size, img_size)
    prepared = prepare_generator(params)

    x = jax.random.normal(k_x, (batch, z_dim, 1, 1), jnp.float32)   # noise, NCHW
    label = jax.random.randint(k_l, (batch,), 0, num_classes)

    out = generator_forward(prepared, x, label)
    out = jax.block_until_ready(out)
    assert out.shape == (batch, out_channels, 28, 28), out.shape

    ref = jax.jit(reference_forward)(params, x, label)
    ref = jax.block_until_ready(ref)
    max_diff = float(jnp.max(jnp.abs(out - ref)))
    # bf16 MXU operands (f32 accumulate) across 4 BN-normalized layers -> allow a few 1e-2 abs.
    assert max_diff < 5e-2, f"Pallas vs reference mismatch: max abs diff = {max_diff}"

    print("KERNEL_OK")
</pallas_src>

<mosaic_0001>
module attributes {stable_mosaic.version = 11 : i64} {
  func.func @_generator_kernel(%arg0: i32, %arg1: memref<2x16xf32, #tpu.memory_space<vmem>>, %arg2: memref<16x256xbf16, #tpu.memory_space<vmem>>, %arg3: memref<256x16xf32, #tpu.memory_space<vmem>>, %arg4: memref<16x256xf32, #tpu.memory_space<vmem>>, %arg5: memref<256x392xbf16, #tpu.memory_space<vmem>>, %arg6: memref<392x8xf32, #tpu.memory_space<vmem>>, %arg7: memref<8x392xf32, #tpu.memory_space<vmem>>, %arg8: memref<392x784xbf16, #tpu.memory_space<vmem>>, %arg9: memref<784x4xf32, #tpu.memory_space<vmem>>, %arg10: memref<4x784xf32, #tpu.memory_space<vmem>>, %arg11: memref<784x2352xbf16, #tpu.memory_space<vmem>>, %arg12: memref<2352x3xf32, #tpu.memory_space<vmem>>, %arg13: memref<3x2352xf32, #tpu.memory_space<vmem>>, %arg14: memref<2x2352xf32, #tpu.memory_space<vmem>>) attributes {dimension_semantics = [#tpu.dimension_semantics<arbitrary>], iteration_bounds = array<i64: 1>, scalar_prefetch = 0 : i64, scratch_operands = 0 : i64, tpu.core_type = #tpu.core_type<tc>, window_params = [{pipeline_mode = #tpu.pipeline_mode<synchronous>, transform_indices = @transform_0, window_bounds = array<i64: 2, 16>}, {pipeline_mode = #tpu.pipeline_mode<synchronous>, transform_indices = @transform_1, window_bounds = array<i64: 16, 256>}, {pipeline_mode = #tpu.pipeline_mode<synchronous>, transform_indices = @transform_2, window_bounds = array<i64: 256, 16>}, {pipeline_mode = #tpu.pipeline_mode<synchronous>, transform_indices = @transform_3, window_bounds = array<i64: 16, 256>}, {pipeline_mode = #tpu.pipeline_mode<synchronous>, transform_indices = @transform_4, window_bounds = array<i64: 256, 392>}, {pipeline_mode = #tpu.pipeline_mode<synchronous>, transform_indices = @transform_5, window_bounds = array<i64: 392, 8>}, {pipeline_mode = #tpu.pipeline_mode<synchronous>, transform_indices = @transform_6, window_bounds = array<i64: 8, 392>}, {pipeline_mode = #tpu.pipeline_mode<synchronous>, transform_indices = @transform_7, window_bounds = array<i64: 392, 784>}, {pipeline_mode = #tpu.pipeline_mode<synchronous>, transform_indices = @transform_8, window_bounds = array<i64: 784, 4>}, {pipeline_mode = #tpu.pipeline_mode<synchronous>, transform_indices = @transform_9, window_bounds = array<i64: 4, 784>}, {pipeline_mode = #tpu.pipeline_mode<synchronous>, transform_indices = @transform_10, window_bounds = array<i64: 784, 2352>}, {pipeline_mode = #tpu.pipeline_mode<synchronous>, transform_indices = @transform_11, window_bounds = array<i64: 2352, 3>}, {pipeline_mode = #tpu.pipeline_mode<synchronous>, transform_indices = @transform_12, window_bounds = array<i64: 3, 2352>}, {pipeline_mode = #tpu.pipeline_mode<synchronous>, transform_indices = @transform_13, window_bounds = array<i64: 2, 2352>}]} {
    %c0 = arith.constant 0 : index
    %c0_0 = arith.constant 0 : index
    %0 = vector.load %arg1[%c0, %c0_0] : memref<2x16xf32, #tpu.memory_space<vmem>>, vector<2x16xf32>
    %1 = arith.truncf %0 : vector<2x16xf32> to vector<2x16xbf16>
    %c0_1 = arith.constant 0 : index
    %c0_2 = arith.constant 0 : index
    %2 = vector.load %arg2[%c0_1, %c0_2] : memref<16x256xbf16, #tpu.memory_space<vmem>>, vector<16x256xbf16>
    %cst = arith.constant dense<0.000000e+00> : vector<2x256xf32>
    %3 = tpu.matmul %1, %2, %cst {dimension_numbers = #tpu.dot_dimension_numbers<[1], [0], [0], [1], [0, 0, 1, 1], [], []>} : vector<2x16xbf16>, vector<16x256xbf16>, vector<2x256xf32> -> vector<2x256xf32>
    %c0_3 = arith.constant 0 : index
    %c0_4 = arith.constant 0 : index
    %4 = vector.load %arg3[%c0_3, %c0_4] : memref<256x16xf32, #tpu.memory_space<vmem>>, vector<256x16xf32>
    %cst_5 = arith.constant dense<0.000000e+00> : vector<2x16xf32>
    %5 = tpu.matmul %3, %4, %cst_5 {dimension_numbers = #tpu.dot_dimension_numbers<[1], [0], [0], [1], [0, 0, 1, 1], [], []>} : vector<2x256xf32>, vector<256x16xf32>, vector<2x16xf32> -> vector<2x16xf32>
    %6 = arith.mulf %3, %3 : vector<2x256xf32>
    %c0_6 = arith.constant 0 : index
    %c0_7 = arith.constant 0 : index
    %7 = vector.load %arg3[%c0_6, %c0_7] : memref<256x16xf32, #tpu.memory_space<vmem>>, vector<256x16xf32>
    %cst_8 = arith.constant dense<0.000000e+00> : vector<2x16xf32>
    %8 = tpu.matmul %6, %7, %cst_8 {dimension_numbers = #tpu.dot_dimension_numbers<[1], [0], [0], [1], [0, 0, 1, 1], [], []>} : vector<2x256xf32>, vector<256x16xf32>, vector<2x16xf32> -> vector<2x16xf32>
    %cst_9 = arith.constant dense<0.000000e+00> : vector<16xf32>
    %9 = vector.multi_reduction <add>, %5, %cst_9 [0] : vector<2x16xf32> to vector<16xf32>
    %10 = vector.shape_cast %9 : vector<16xf32> to vector<1x16xf32>
    %cst_10 = arith.constant dense<0.000000e+00> : vector<16xf32>
    %11 = vector.multi_reduction <add>, %8, %cst_10 [0] : vector<2x16xf32> to vector<16xf32>
    %12 = vector.shape_cast %11 : vector<16xf32> to vector<1x16xf32>
    %cst_11 = arith.constant 3.125000e-02 : f32
    %13 = vector.broadcast %cst_11 : f32 to vector<1x16xf32>
    %14 = arith.mulf %10, %13 : vector<1x16xf32>
    %cst_12 = arith.constant 3.125000e-02 : f32
    %15 = vector.broadcast %cst_12 : f32 to vector<1x16xf32>
    %16 = arith.mulf %12, %15 : vector<1x16xf32>
    %17 = arith.mulf %14, %14 : vector<1x16xf32>
    %18 = arith.subf %16, %17 : vector<1x16xf32>
    %cst_13 = arith.constant 9.99999974E-6 : f32
    %19 = vector.broadcast %cst_13 : f32 to vector<1x16xf32>
    %20 = arith.addf %18, %19 : vector<1x16xf32>
    %21 = math.rsqrt %20 : vector<1x16xf32>
    %c0_14 = arith.constant 0 : index
    %c0_15 = arith.constant 0 : index
    %22 = vector.load %arg4[%c0_14, %c0_15] : memref<16x256xf32, #tpu.memory_space<vmem>>, vector<16x256xf32>
    %cst_16 = arith.constant dense<0.000000e+00> : vector<1x256xf32>
    %23 = tpu.matmul %14, %22, %cst_16 {dimension_numbers = #tpu.dot_dimension_numbers<[1], [0], [0], [1], [0, 0, 1, 1], [], []>} : vector<1x16xf32>, vector<16x256xf32>, vector<1x256xf32> -> vector<1x256xf32>
    %c0_17 = arith.constant 0 : index
    %c0_18 = arith.constant 0 : index
    %24 = vector.load %arg4[%c0_17, %c0_18] : memref<16x256xf32, #tpu.memory_space<vmem>>, vector<16x256xf32>
    %cst_19 = arith.constant dense<0.000000e+00> : vector<1x256xf32>
    %25 = tpu.matmul %21, %24, %cst_19 {dimension_numbers = #tpu.dot_dimension_numbers<[1], [0], [0], [1], [0, 0, 1, 1], [], []>} : vector<1x16xf32>, vector<16x256xf32>, vector<1x256xf32> -> vector<1x256xf32>
    %26 = vector.broadcast %23 : vector<1x256xf32> to vector<2x256xf32>
    %27 = arith.subf %3, %26 : vector<2x256xf32>
    %28 = vector.broadcast %25 : vector<1x256xf32> to vector<2x256xf32>
    %29 = arith.mulf %27, %28 : vector<2x256xf32>
    %cst_20 = arith.constant 0.000000e+00 : f32
    %30 = vector.broadcast %cst_20 : f32 to vector<2x256xf32>
    %31 = arith.cmpf ogt, %29, %30 : vector<2x256xf32>
    %cst_21 = arith.constant 2.000000e-01 : f32
    %32 = vector.broadcast %cst_21 : f32 to vector<2x256xf32>
    %33 = arith.mulf %32, %29 : vector<2x256xf32>
    %34 = arith.select %31, %29, %33 : vector<2x256xi1>, vector<2x256xf32>
    %35 = arith.truncf %34 : vector<2x256xf32> to vector<2x256xbf16>
    %c0_22 = arith.constant 0 : index
    %c0_23 = arith.constant 0 : index
    %36 = vector.load %arg5[%c0_22, %c0_23] : memref<256x392xbf16, #tpu.memory_space<vmem>>, vector<256x392xbf16>
    %cst_24 = arith.constant dense<0.000000e+00> : vector<2x392xf32>
    %37 = tpu.matmul %35, %36, %cst_24 {dimension_numbers = #tpu.dot_dimension_numbers<[1], [0], [0], [1], [0, 0, 1, 1], [], []>} : vector<2x256xbf16>, vector<256x392xbf16>, vector<2x392xf32> -> vector<2x392xf32>
    %c0_25 = arith.constant 0 : index
    %c0_26 = arith.constant 0 : index
    %38 = vector.load %arg6[%c0_25, %c0_26] : memref<392x8xf32, #tpu.memory_space<vmem>>, vector<392x8xf32>
    %cst_27 = arith.constant dense<0.000000e+00> : vector<2x8xf32>
    %39 = tpu.matmul %37, %38, %cst_27 {dimension_numbers = #tpu.dot_dimension_numbers<[1], [0], [0], [1], [0, 0, 1, 1], [], []>} : vector<2x392xf32>, vector<392x8xf32>, vector<2x8xf32> -> vector<2x8xf32>
    %40 = arith.mulf %37, %37 : vector<2x392xf32>
    %c0_28 = arith.constant 0 : index
    %c0_29 = arith.constant 0 : index
    %41 = vector.load %arg6[%c0_28, %c0_29] : memref<392x8xf32, #tpu.memory_space<vmem>>, vector<392x8xf32>
    %cst_30 = arith.constant dense<0.000000e+00> : vector<2x8xf32>
    %42 = tpu.matmul %40, %41, %cst_30 {dimension_numbers = #tpu.dot_dimension_numbers<[1], [0], [0], [1], [0, 0, 1, 1], [], []>} : vector<2x392xf32>, vector<392x8xf32>, vector<2x8xf32> -> vector<2x8xf32>
    %cst_31 = arith.constant dense<0.000000e+00> : vector<8xf32>
    %43 = vector.multi_reduction <add>, %39, %cst_31 [0] : vector<2x8xf32> to vector<8xf32>
    %44 = vector.shape_cast %43 : vector<8xf32> to vector<1x8xf32>
    %cst_32 = arith.constant dense<0.000000e+00> : vector<8xf32>
    %45 = vector.multi_reduction <add>, %42, %cst_32 [0] : vector<2x8xf32> to vector<8xf32>
    %46 = vector.shape_cast %45 : vector<8xf32> to vector<1x8xf32>
    %cst_33 = arith.constant 0.0102040814 : f32
    %47 = vector.broadcast %cst_33 : f32 to vector<1x8xf32>
    %48 = arith.mulf %44, %47 : vector<1x8xf32>
    %cst_34 = arith.constant 0.0102040814 : f32
    %49 = vector.broadcast %cst_34 : f32 to vector<1x8xf32>
    %50 = arith.mulf %46, %49 : vector<1x8xf32>
    %51 = arith.mulf %48, %48 : vector<1x8xf32>
    %52 = arith.subf %50, %51 : vector<1x8xf32>
    %cst_35 = arith.constant 9.99999974E-6 : f32
    %53 = vector.broadcast %cst_35 : f32 to vector<1x8xf32>
    %54 = arith.addf %52, %53 : vector<1x8xf32>
    %55 = math.rsqrt %54 : vector<1x8xf32>
    %c0_36 = arith.constant 0 : index
    %c0_37 = arith.constant 0 : index
    %56 = vector.load %arg7[%c0_36, %c0_37] : memref<8x392xf32, #tpu.memory_space<vmem>>, vector<8x392xf32>
    %cst_38 = arith.constant dense<0.000000e+00> : vector<1x392xf32>
    %57 = tpu.matmul %48, %56, %cst_38 {dimension_numbers = #tpu.dot_dimension_numbers<[1], [0], [0], [1], [0, 0, 1, 1], [], []>} : vector<1x8xf32>, vector<8x392xf32>, vector<1x392xf32> -> vector<1x392xf32>
    %c0_39 = arith.constant 0 : index
    %c0_40 = arith.constant 0 : index
    %58 = vector.load %arg7[%c0_39, %c0_40] : memref<8x392xf32, #tpu.memory_space<vmem>>, vector<8x392xf32>
    %cst_41 = arith.constant dense<0.000000e+00> : vector<1x392xf32>
    %59 = tpu.matmul %55, %58, %cst_41 {dimension_numbers = #tpu.dot_dimension_numbers<[1], [0], [0], [1], [0, 0, 1, 1], [], []>} : vector<1x8xf32>, vector<8x392xf32>, vector<1x392xf32> -> vector<1x392xf32>
    %60 = vector.broadcast %57 : vector<1x392xf32> to vector<2x392xf32>
    %61 = arith.subf %37, %60 : vector<2x392xf32>
    %62 = vector.broadcast %59 : vector<1x392xf32> to vector<2x392xf32>
    %63 = arith.mulf %61, %62 : vector<2x392xf32>
    %cst_42 = arith.constant 0.000000e+00 : f32
    %64 = vector.broadcast %cst_42 : f32 to vector<2x392xf32>
    %65 = arith.cmpf ogt, %63, %64 : vector<2x392xf32>
    %cst_43 = arith.constant 2.000000e-01 : f32
    %66 = vector.broadcast %cst_43 : f32 to vector<2x392xf32>
    %67 = arith.mulf %66, %63 : vector<2x392xf32>
    %68 = arith.select %65, %63, %67 : vector<2x392xi1>, vector<2x392xf32>
    %69 = arith.truncf %68 : vector<2x392xf32> to vector<2x392xbf16>
    %c0_44 = arith.constant 0 : index
    %c0_45 = arith.constant 0 : index
    %70 = vector.load %arg8[%c0_44, %c0_45] : memref<392x784xbf16, #tpu.memory_space<vmem>>, vector<392x784xbf16>
    %cst_46 = arith.constant dense<0.000000e+00> : vector<2x784xf32>
    %71 = tpu.matmul %69, %70, %cst_46 {dimension_numbers = #tpu.dot_dimension_numbers<[1], [0], [0], [1], [0, 0, 1, 1], [], []>} : vector<2x392xbf16>, vector<392x784xbf16>, vector<2x784xf32> -> vector<2x784xf32>
    %c0_47 = arith.constant 0 : index
    %c0_48 = arith.constant 0 : index
    %72 = vector.load %arg9[%c0_47, %c0_48] : memref<784x4xf32, #tpu.memory_space<vmem>>, vector<784x4xf32>
    %cst_49 = arith.constant dense<0.000000e+00> : vector<2x4xf32>
    %73 = tpu.matmul %71, %72, %cst_49 {dimension_numbers = #tpu.dot_dimension_numbers<[1], [0], [0], [1], [0, 0, 1, 1], [], []>} : vector<2x784xf32>, vector<784x4xf32>, vector<2x4xf32> -> vector<2x4xf32>
    %74 = arith.mulf %71, %71 : vector<2x784xf32>
    %c0_50 = arith.constant 0 : index
    %c0_51 = arith.constant 0 : index
    %75 = vector.load %arg9[%c0_50, %c0_51] : memref<784x4xf32, #tpu.memory_space<vmem>>, vector<784x4xf32>
    %cst_52 = arith.constant dense<0.000000e+00> : vector<2x4xf32>
    %76 = tpu.matmul %74, %75, %cst_52 {dimension_numbers = #tpu.dot_dimension_numbers<[1], [0], [0], [1], [0, 0, 1, 1], [], []>} : vector<2x784xf32>, vector<784x4xf32>, vector<2x4xf32> -> vector<2x4xf32>
    %cst_53 = arith.constant dense<0.000000e+00> : vector<4xf32>
    %77 = vector.multi_reduction <add>, %73, %cst_53 [0] : vector<2x4xf32> to vector<4xf32>
    %78 = vector.shape_cast %77 : vector<4xf32> to vector<1x4xf32>
    %cst_54 = arith.constant dense<0.000000e+00> : vector<4xf32>
    %79 = vector.multi_reduction <add>, %76, %cst_54 [0] : vector<2x4xf32> to vector<4xf32>
    %80 = vector.shape_cast %79 : vector<4xf32> to vector<1x4xf32>
    %cst_55 = arith.constant 0.00255102036 : f32
    %81 = vector.broadcast %cst_55 : f32 to vector<1x4xf32>
    %82 = arith.mulf %78, %81 : vector<1x4xf32>
    %cst_56 = arith.constant 0.00255102036 : f32
    %83 = vector.broadcast %cst_56 : f32 to vector<1x4xf32>
    %84 = arith.mulf %80, %83 : vector<1x4xf32>
    %85 = arith.mulf %82, %82 : vector<1x4xf32>
    %86 = arith.subf %84, %85 : vector<1x4xf32>
    %cst_57 = arith.constant 9.99999974E-6 : f32
    %87 = vector.broadcast %cst_57 : f32 to vector<1x4xf32>
    %88 = arith.addf %86, %87 : vector<1x4xf32>
    %89 = math.rsqrt %88 : vector<1x4xf32>
    %c0_58 = arith.constant 0 : index
    %c0_59 = arith.constant 0 : index
    %90 = vector.load %arg10[%c0_58, %c0_59] : memref<4x784xf32, #tpu.memory_space<vmem>>, vector<4x784xf32>
    %cst_60 = arith.constant dense<0.000000e+00> : vector<1x784xf32>
    %91 = tpu.matmul %82, %90, %cst_60 {dimension_numbers = #tpu.dot_dimension_numbers<[1], [0], [0], [1], [0, 0, 1, 1], [], []>} : vector<1x4xf32>, vector<4x784xf32>, vector<1x784xf32> -> vector<1x784xf32>
    %c0_61 = arith.constant 0 : index
    %c0_62 = arith.constant 0 : index
    %92 = vector.load %arg10[%c0_61, %c0_62] : memref<4x784xf32, #tpu.memory_space<vmem>>, vector<4x784xf32>
    %cst_63 = arith.constant dense<0.000000e+00> : vector<1x784xf32>
    %93 = tpu.matmul %89, %92, %cst_63 {dimension_numbers = #tpu.dot_dimension_numbers<[1], [0], [0], [1], [0, 0, 1, 1], [], []>} : vector<1x4xf32>, vector<4x784xf32>, vector<1x784xf32> -> vector<1x784xf32>
    %94 = vector.broadcast %91 : vector<1x784xf32> to vector<2x784xf32>
    %95 = arith.subf %71, %94 : vector<2x784xf32>
    %96 = vector.broadcast %93 : vector<1x784xf32> to vector<2x784xf32>
    %97 = arith.mulf %95, %96 : vector<2x784xf32>
    %cst_64 = arith.constant 0.000000e+00 : f32
    %98 = vector.broadcast %cst_64 : f32 to vector<2x784xf32>
    %99 = arith.cmpf ogt, %97, %98 : vector<2x784xf32>
    %cst_65 = arith.constant 2.000000e-01 : f32
    %100 = vector.broadcast %cst_65 : f32 to vector<2x784xf32>
    %101 = arith.mulf %100, %97 : vector<2x784xf32>
    %102 = arith.select %99, %97, %101 : vector<2x784xi1>, vector<2x784xf32>
    %103 = arith.truncf %102 : vector<2x784xf32> to vector<2x784xbf16>
    %c0_66 = arith.constant 0 : index
    %c0_67 = arith.constant 0 : index
    %104 = vector.load %arg11[%c0_66, %c0_67] : memref<784x2352xbf16, #tpu.memory_space<vmem>>, vector<784x2352xbf16>
    %cst_68 = arith.constant dense<0.000000e+00> : vector<2x2352xf32>
    %105 = tpu.matmul %103, %104, %cst_68 {dimension_numbers = #tpu.dot_dimension_numbers<[1], [0], [0], [1], [0, 0, 1, 1], [], []>} : vector<2x784xbf16>, vector<784x2352xbf16>, vector<2x2352xf32> -> vector<2x2352xf32>
    %c0_69 = arith.constant 0 : index
    %c0_70 = arith.constant 0 : index
    %106 = vector.load %arg12[%c0_69, %c0_70] : memref<2352x3xf32, #tpu.memory_space<vmem>>, vector<2352x3xf32>
    %cst_71 = arith.constant dense<0.000000e+00> : vector<2x3xf32>
    %107 = tpu.matmul %105, %106, %cst_71 {dimension_numbers = #tpu.dot_dimension_numbers<[1], [0], [0], [1], [0, 0, 1, 1], [], []>} : vector<2x2352xf32>, vector<2352x3xf32>, vector<2x3xf32> -> vector<2x3xf32>
    %108 = arith.mulf %105, %105 : vector<2x2352xf32>
    %c0_72 = arith.constant 0 : index
    %c0_73 = arith.constant 0 : index
    %109 = vector.load %arg12[%c0_72, %c0_73] : memref<2352x3xf32, #tpu.memory_space<vmem>>, vector<2352x3xf32>
    %cst_74 = arith.constant dense<0.000000e+00> : vector<2x3xf32>
    %110 = tpu.matmul %108, %109, %cst_74 {dimension_numbers = #tpu.dot_dimension_numbers<[1], [0], [0], [1], [0, 0, 1, 1], [], []>} : vector<2x2352xf32>, vector<2352x3xf32>, vector<2x3xf32> -> vector<2x3xf32>
    %cst_75 = arith.constant dense<0.000000e+00> : vector<3xf32>
    %111 = vector.multi_reduction <add>, %107, %cst_75 [0] : vector<2x3xf32> to vector<3xf32>
    %112 = vector.shape_cast %111 : vector<3xf32> to vector<1x3xf32>
    %cst_76 = arith.constant dense<0.000000e+00> : vector<3xf32>
    %113 = vector.multi_reduction <add>, %110, %cst_76 [0] : vector<2x3xf32> to vector<3xf32>
    %114 = vector.shape_cast %113 : vector<3xf32> to vector<1x3xf32>
    %cst_77 = arith.constant 6.37755089E-4 : f32
    %115 = vector.broadcast %cst_77 : f32 to vector<1x3xf32>
    %116 = arith.mulf %112, %115 : vector<1x3xf32>
    %cst_78 = arith.constant 6.37755089E-4 : f32
    %117 = vector.broadcast %cst_78 : f32 to vector<1x3xf32>
    %118 = arith.mulf %114, %117 : vector<1x3xf32>
    %119 = arith.mulf %116, %116 : vector<1x3xf32>
    %120 = arith.subf %118, %119 : vector<1x3xf32>
    %cst_79 = arith.constant 9.99999974E-6 : f32
    %121 = vector.broadcast %cst_79 : f32 to vector<1x3xf32>
    %122 = arith.addf %120, %121 : vector<1x3xf32>
    %123 = math.rsqrt %122 : vector<1x3xf32>
    %c0_80 = arith.constant 0 : index
    %c0_81 = arith.constant 0 : index
    %124 = vector.load %arg13[%c0_80, %c0_81] : memref<3x2352xf32, #tpu.memory_space<vmem>>, vector<3x2352xf32>
    %cst_82 = arith.constant dense<0.000000e+00> : vector<1x2352xf32>
    %125 = tpu.matmul %116, %124, %cst_82 {dimension_numbers = #tpu.dot_dimension_numbers<[1], [0], [0], [1], [0, 0, 1, 1], [], []>} : vector<1x3xf32>, vector<3x2352xf32>, vector<1x2352xf32> -> vector<1x2352xf32>
    %c0_83 = arith.constant 0 : index
    %c0_84 = arith.constant 0 : index
    %126 = vector.load %arg13[%c0_83, %c0_84] : memref<3x2352xf32, #tpu.memory_space<vmem>>, vector<3x2352xf32>
    %cst_85 = arith.constant dense<0.000000e+00> : vector<1x2352xf32>
    %127 = tpu.matmul %123, %126, %cst_85 {dimension_numbers = #tpu.dot_dimension_numbers<[1], [0], [0], [1], [0, 0, 1, 1], [], []>} : vector<1x3xf32>, vector<3x2352xf32>, vector<1x2352xf32> -> vector<1x2352xf32>
    %128 = vector.broadcast %125 : vector<1x2352xf32> to vector<2x2352xf32>
    %129 = arith.subf %105, %128 : vector<2x2352xf32>
    %130 = vector.broadcast %127 : vector<1x2352xf32> to vector<2x2352xf32>
    %131 = arith.mulf %129, %130 : vector<2x2352xf32>
    %cst_86 = arith.constant 0.000000e+00 : f32
    %132 = vector.broadcast %cst_86 : f32 to vector<2x2352xf32>
    %133 = arith.cmpf ogt, %131, %132 : vector<2x2352xf32>
    %cst_87 = arith.constant 2.000000e-01 : f32
    %134 = vector.broadcast %cst_87 : f32 to vector<2x2352xf32>
    %135 = arith.mulf %134, %131 : vector<2x2352xf32>
    %136 = arith.select %133, %131, %135 : vector<2x2352xi1>, vector<2x2352xf32>
    %137 = math.tanh %136 : vector<2x2352xf32>
    %c0_88 = arith.constant 0 : index
    %c0_89 = arith.constant 0 : index
    %138 = vector.load %arg14[%c0_88, %c0_89] : memref<2x2352xf32, #tpu.memory_space<vmem>>, vector<2x2352xf32>
    tpu.vector_store %arg14[%c0_88, %c0_89], %137 {strides = array<i32>} : memref<2x2352xf32, #tpu.memory_space<vmem>>, vector<2x2352xf32>,
    return
  }
  func.func @transform_0(%arg0: i32) -> (i32, i32) {
    %c0_i32 = arith.constant 0 : i32
    %c0_i32_0 = arith.constant 0 : i32
    %c0_i32_1 = arith.constant 0 : i32
    return %c0_i32, %c0_i32_0 : i32, i32
  }
  func.func @transform_1(%arg0: i32) -> (i32, i32) {
    %c0_i32 = arith.constant 0 : i32
    %c0_i32_0 = arith.constant 0 : i32
    %c0_i32_1 = arith.constant 0 : i32
    return %c0_i32, %c0_i32_0 : i32, i32
  }
  func.func @transform_2(%arg0: i32) -> (i32, i32) {
    %c0_i32 = arith.constant 0 : i32
    %c0_i32_0 = arith.constant 0 : i32
    %c0_i32_1 = arith.constant 0 : i32
    return %c0_i32, %c0_i32_0 : i32, i32
  }
  func.func @transform_3(%arg0: i32) -> (i32, i32) {
    %c0_i32 = arith.constant 0 : i32
    %c0_i32_0 = arith.constant 0 : i32
    %c0_i32_1 = arith.constant 0 : i32
    return %c0_i32, %c0_i32_0 : i32, i32
  }
  func.func @transform_4(%arg0: i32) -> (i32, i32) {
    %c0_i32 = arith.constant 0 : i32
    %c0_i32_0 = arith.constant 0 : i32
    %c0_i32_1 = arith.constant 0 : i32
    return %c0_i32, %c0_i32_0 : i32, i32
  }
  func.func @transform_5(%arg0: i32) -> (i32, i32) {
    %c0_i32 = arith.constant 0 : i32
    %c0_i32_0 = arith.constant 0 : i32
    %c0_i32_1 = arith.constant 0 : i32
    return %c0_i32, %c0_i32_0 : i32, i32
  }
  func.func @transform_6(%arg0: i32) -> (i32, i32) {
    %c0_i32 = arith.constant 0 : i32
    %c0_i32_0 = arith.constant 0 : i32
    %c0_i32_1 = arith.constant 0 : i32
    return %c0_i32, %c0_i32_0 : i32, i32
  }
  func.func @transform_7(%arg0: i32) -> (i32, i32) {
    %c0_i32 = arith.constant 0 : i32
    %c0_i32_0 = arith.constant 0 : i32
    %c0_i32_1 = arith.constant 0 : i32
    return %c0_i32, %c0_i32_0 : i32, i32
  }
  func.func @transform_8(%arg0: i32) -> (i32, i32) {
    %c0_i32 = arith.constant 0 : i32
    %c0_i32_0 = arith.constant 0 : i32
    %c0_i32_1 = arith.constant 0 : i32
    return %c0_i32, %c0_i32_0 : i32, i32
  }
  func.func @transform_9(%arg0: i32) -> (i32, i32) {
    %c0_i32 = arith.constant 0 : i32
    %c0_i32_0 = arith.constant 0 : i32
    %c0_i32_1 = arith.constant 0 : i32
    return %c0_i32, %c0_i32_0 : i32, i32
  }
  func.func @transform_10(%arg0: i32) -> (i32, i32) {
    %c0_i32 = arith.constant 0 : i32
    %c0_i32_0 = arith.constant 0 : i32
    %c0_i32_1 = arith.constant 0 : i32
    return %c0_i32, %c0_i32_0 : i32, i32
  }
  func.func @transform_11(%arg0: i32) -> (i32, i32) {
    %c0_i32 = arith.constant 0 : i32
    %c0_i32_0 = arith.constant 0 : i32
    %c0_i32_1 = arith.constant 0 : i32
    return %c0_i32, %c0_i32_0 : i32, i32
  }
  func.func @transform_12(%arg0: i32) -> (i32, i32) {
    %c0_i32 = arith.constant 0 : i32
    %c0_i32_0 = arith.constant 0 : i32
    %c0_i32_1 = arith.constant 0 : i32
    return %c0_i32, %c0_i32_0 : i32, i32
  }
  func.func @transform_13(%arg0: i32) -> (i32, i32) {
    %c0_i32 = arith.constant 0 : i32
    %c0_i32_0 = arith.constant 0 : i32
    %c0_i32_1 = arith.constant 0 : i32
    return %c0_i32, %c0_i32_0 : i32, i32
  }
}

</mosaic_0001>

<llo_original>
// kernel: generator_forward.1
$region0: #{generator_forward.1}
  #allocation0 [shape = 'u32[]', space=smem, size = 0x4, offset = 0x4, fixed_abs, tag = 'smem constant byte address 0x4 - core index']
  #allocation1 [shape = 'u32[72,128]{1,0:T(1,128)}', space=vmem, size = 0x9000, scoped, tag = 'internal scratch']
  %s0 = inlined_call_operand.vmem [shape: f32[2,16], index: 0, kind: input, shape index: {}]
  %s1 = inlined_call_operand.hbm [shape: bf16[16,256], index: 1, kind: input, shape index: {}]
  %s2 = inlined_call_operand.vmem [shape: f32[256,16], index: 2, kind: input, shape index: {}]
  %s3 = inlined_call_operand.hbm [shape: f32[16,256], index: 3, kind: input, shape index: {}]
  %s4 = inlined_call_operand.vmem [shape: bf16[256,392], index: 4, kind: input, shape index: {}]
  %s5 = inlined_call_operand.vmem [shape: f32[392,8], index: 5, kind: input, shape index: {}]
  %s6 = inlined_call_operand.hbm [shape: f32[8,392], index: 6, kind: input, shape index: {}]
  %s7 = inlined_call_operand.hbm [shape: bf16[392,784], index: 7, kind: input, shape index: {}]
  %s8 = inlined_call_operand.vmem [shape: f32[784,4], index: 8, kind: input, shape index: {}]
  %s9 = inlined_call_operand.hbm [shape: f32[4,784], index: 9, kind: input, shape index: {}]
  %s10 = inlined_call_operand.hbm [shape: bf16[784,2352], index: 10, kind: input, shape index: {}]
  %s11 = inlined_call_operand.vmem [shape: f32[2352,3], index: 11, kind: input, shape index: {}]
  %s12 = inlined_call_operand.hbm [shape: f32[3,2352], index: 12, kind: input, shape index: {}]
  %s13 = inlined_call_operand.vmem [shape: f32[2,2352], index: 13, kind: output, shape index: {}]
  %s14 = sld [smem:[#allocation0]]
  $region90: #{generator_forward.1} parent=0
    _
  %s16 = ssub.s32 1, %s14
  %s17 = scalar_select 0, %s16, %s14
  $region1: #{generator_forward.1} parent=0
    #allocation2 [shape = 'u8[8192]{0}', space=vmem, size = 0x2000, scoped, tag = 'input window, operand 1, single buffered']
    #allocation3 [shape = 's32[1]{0}', space=sflag, size = 0x4, scoped, tag = 'scoped memory for generator_forward.1']
    #allocation4 [shape = 'u8[16384]{0}', space=vmem, size = 0x4000, scoped, tag = 'input window, operand 3, single buffered']
    #allocation5 [shape = 's32[1]{0}', space=sflag, size = 0x4, scoped, tag = 'scoped memory for generator_forward.1']
    #allocation6 [shape = 'u8[16384]{0}', space=vmem, size = 0x4000, scoped, tag = 'input window, operand 6, single buffered']
    #allocation7 [shape = 'u8[702464]{0}', space=vmem, size = 0xab800, scoped, tag = 'input window, operand 7, single buffered']
    #allocation8 [shape = 's32[1]{0}', space=sflag, size = 0x4, scoped, tag = 'scoped memory for generator_forward.1']
    #allocation9 [shape = 'u8[14336]{0}', space=vmem, size = 0x3800, scoped, tag = 'input window, operand 9, single buffered']
    #allocation10 [shape = 'u8[3813376]{0}', space=vmem, size = 0x3a3000, scoped, tag = 'input window, operand 10, single buffered']
    #allocation11 [shape = 's32[1]{0}', space=sflag, size = 0x4, scoped, tag = 'scoped memory for generator_forward.1']
    #allocation12 [shape = 'u8[38912]{0}', space=vmem, size = 0x9800, scoped, tag = 'input window, operand 12, single buffered']
    %18 = vsyncpa [#allocation3], 0
    %19 = vsyncpa [#allocation5], 0
    %20 = vsyncpa [#allocation8], 0
    %21 = vsyncpa [#allocation11], 0
    // Predicated region
    $region2: #{generator_forward.1} parent=1 // pred_check
      _
    $region3: #{generator_forward.1} parent=1 // pred_check_branch
      %23 = sbr.rel (0) target = $region5
    $region4: #{generator_forward.1} parent=1 // pred_region
      _
    $region5: #{generator_forward.1} parent=1 // pred_fallthru
      _
    // Predicated region
    $region6: #{generator_forward.1} parent=1 // pred_check
      _
    $region7: #{generator_forward.1} parent=1 // pred_check_branch
      %25 = sbr.rel (0) target = $region9
    $region8: #{generator_forward.1} parent=1 // pred_region
      %27 = vsyncadd [#allocation3], 0
      %s28 = sshll.u32 %s1, 4
      %s29 = int_to_ptr.hbm [resolvable:$true] %s28
      %s30 = sshll.u32 [#allocation2], 4
      %s31 = int_to_ptr.vmem [resolvable:$true] %s30
      %36 = dma.hbm_to_vmem [thread:$0]  %s29, 256, %s31, [#allocation3], 128, 128, 8
    $region9: #{generator_forward.1} parent=1 // pred_fallthru
      _
    // Predicated region
    $region10: #{generator_forward.1} parent=1 // pred_check
      _
    $region11: #{generator_forward.1} parent=1 // pred_check_branch
      %38 = sbr.rel (0) target = $region13
    $region12: #{generator_forward.1} parent=1 // pred_region
      _
    $region13: #{generator_forward.1} parent=1 // pred_fallthru
      _
    // Predicated region
    $region14: #{generator_forward.1} parent=1 // pred_check
      _
    $region15: #{generator_forward.1} parent=1 // pred_check_branch
      %40 = sbr.rel (0) target = $region17
    $region16: #{generator_forward.1} parent=1 // pred_region
      %42 = vsyncadd [#allocation5], 0
      %s43 = sshll.u32 %s3, 4
      %s44 = int_to_ptr.hbm [resolvable:$true] %s43
      %s45 = sshll.u32 [#allocation4], 4
      %s46 = int_to_ptr.vmem [resolvable:$true] %s45
      %51 = dma.hbm_to_vmem [thread:$0]  %s44, 512, %s46, [#allocation5], 256, 256, 16
    $region17: #{generator_forward.1} parent=1 // pred_fallthru
      _
    // Predicated region
    $region18: #{generator_forward.1} parent=1 // pred_check
      _
    $region19: #{generator_forward.1} parent=1 // pred_check_branch
      %53 = sbr.rel (0) target = $region21
    $region20: #{generator_forward.1} parent=1 // pred_region
      _
    $region21: #{generator_forward.1} parent=1 // pred_fallthru
      _
    // Predicated region
    $region22: #{generator_forward.1} parent=1 // pred_check
      _
    $region23: #{generator_forward.1} parent=1 // pred_check_branch
      %55 = sbr.rel (0) target = $region25
    $region24: #{generator_forward.1} parent=1 // pred_region
      _
    $region25: #{generator_forward.1} parent=1 // pred_fallthru
      _
    // Predicated region
    $region26: #{generator_forward.1} parent=1 // pred_check
      _
    $region27: #{generator_forward.1} parent=1 // pred_check_branch
      %57 = sbr.rel (0) target = $region29
    $region28: #{generator_forward.1} parent=1 // pred_region
      %59 = vsyncadd [#allocation5], 0
      %s61 = sshll.u32 %s6, 4
      %s62 = int_to_ptr.hbm [resolvable:$true] %s61
      %s63 = sshll.u32 [#allocation6], 4
      %s64 = int_to_ptr.vmem [resolvable:$true] %s63
      %66 = dma.hbm_to_vmem [thread:$0]  %s62, 512, %s64, [#allocation5]
    $region29: #{generator_forward.1} parent=1 // pred_fallthru
      _
    // Predicated region
    $region30: #{generator_forward.1} parent=1 // pred_check
      _
    $region31: #{generator_forward.1} parent=1 // pred_check_branch
      %68 = sbr.rel (0) target = $region33
    $region32: #{generator_forward.1} parent=1 // pred_region
      %70 = vsyncadd [#allocation8], 0
      %s71 = sshll.u32 %s7, 4
      %s72 = int_to_ptr.hbm [resolvable:$true] %s71
      %s73 = sshll.u32 [#allocation7], 4
      %s74 = int_to_ptr.vmem [resolvable:$true] %s73
      %79 = dma.hbm_to_vmem [thread:$0]  %s72, 21952, %s74, [#allocation8], 448, 448, 28
    $region33: #{generator_forward.1} parent=1 // pred_fallthru
      _
    // Predicated region
    $region34: #{generator_forward.1} parent=1 // pred_check
      _
    $region35: #{generator_forward.1} parent=1 // pred_check_branch
      %81 = sbr.rel (0) target = $region37
    $region36: #{generator_forward.1} parent=1 // pred_region
      _
    $region37: #{generator_forward.1} parent=1 // pred_fallthru
      _
    // Predicated region
    $region38: #{generator_forward.1} parent=1 // pred_check
      _
    $region39: #{generator_forward.1} parent=1 // pred_check_branch
      %83 = sbr.rel (0) target = $region41
    $region40: #{generator_forward.1} parent=1 // pred_region
      %85 = vsyncadd [#allocation8], 0
      %s87 = sshll.u32 %s9, 4
      %s88 = int_to_ptr.hbm [resolvable:$true] %s87
      %s89 = sshll.u32 [#allocation9], 4
      %s90 = int_to_ptr.vmem [resolvable:$true] %s89
      %92 = dma.hbm_to_vmem [thread:$0]  %s88, 448, %s90, [#allocation8]
    $region41: #{generator_forward.1} parent=1 // pred_fallthru
      _
    // Predicated region
    $region42: #{generator_forward.1} parent=1 // pred_check
      _
    $region43: #{generator_forward.1} parent=1 // pred_check_branch
      %94 = sbr.rel (0) target = $region45
    $region44: #{generator_forward.1} parent=1 // pred_region
      %96 = vsyncadd [#allocation11], 0
      %s97 = sshll.u32 %s10, 4
      %s98 = int_to_ptr.hbm [resolvable:$true] %s97
      %s99 = sshll.u32 [#allocation10], 4
      %s100 = int_to_ptr.vmem [resolvable:$true] %s99
      %105 = dma.hbm_to_vmem [thread:$0]  %s98, 119168, %s100, [#allocation11], 1216, 1216, 76
    $region45: #{generator_forward.1} parent=1 // pred_fallthru
      _
    // Predicated region
    $region46: #{generator_forward.1} parent=1 // pred_check
      _
    $region47: #{generator_forward.1} parent=1 // pred_check_branch
      %107 = sbr.rel (0) target = $region49
    $region48: #{generator_forward.1} parent=1 // pred_region
      _
    $region49: #{generator_forward.1} parent=1 // pred_fallthru
      _
    // Predicated region
    $region50: #{generator_forward.1} parent=1 // pred_check
      _
    $region51: #{generator_forward.1} parent=1 // pred_check_branch
      %109 = sbr.rel (0) target = $region53
    $region52: #{generator_forward.1} parent=1 // pred_region
      %111 = vsyncadd [#allocation11], 0
      %s113 = sshll.u32 %s12, 4
      %s114 = int_to_ptr.hbm [resolvable:$true] %s113
      %s115 = sshll.u32 [#allocation12], 4
      %s116 = int_to_ptr.vmem [resolvable:$true] %s115
      %118 = dma.hbm_to_vmem [thread:$0]  %s114, 1216, %s116, [#allocation11]
    $region53: #{generator_forward.1} parent=1 // pred_fallthru
      _
    // Predicated region
    $region54: #{generator_forward.1} parent=1 // pred_check
      _
    $region55: #{generator_forward.1} parent=1 // pred_check_branch
      %120 = sbr.rel (0) target = $region57
    $region56: #{generator_forward.1} parent=1 // pred_region
      %122 = dma.done [#allocation3], 256
    $region57: #{generator_forward.1} parent=1 // pred_fallthru
      _
    // Predicated region
    $region58: #{generator_forward.1} parent=1 // pred_check
      _
    $region59: #{generator_forward.1} parent=1 // pred_check_branch
      %124 = sbr.rel (0) target = $region61
    $region60: #{generator_forward.1} parent=1 // pred_region
      %126 = dma.done [#allocation5], 512
    $region61: #{generator_forward.1} parent=1 // pred_fallthru
      _
    // Predicated region
    $region62: #{generator_forward.1} parent=1 // pred_check
      _
    $region63: #{generator_forward.1} parent=1 // pred_check_branch
      %128 = sbr.rel (0) target = $region65
    $region64: #{generator_forward.1} parent=1 // pred_region
      %130 = dma.done [#allocation5], 512
    $region65: #{generator_forward.1} parent=1 // pred_fallthru
      _
    // Predicated region
    $region66: #{generator_forward.1} parent=1 // pred_check
      _
    $region67: #{generator_forward.1} parent=1 // pred_check_branch
      %132 = sbr.rel (0) target = $region69
    $region68: #{generator_forward.1} parent=1 // pred_region
      %134 = dma.done [#allocation8], 21952
    $region69: #{generator_forward.1} parent=1 // pred_fallthru
      _
    // Predicated region
    $region70: #{generator_forward.1} parent=1 // pred_check
      _
    $region71: #{generator_forward.1} parent=1 // pred_check_branch
      %136 = sbr.rel (0) target = $region73
    $region72: #{generator_forward.1} parent=1 // pred_region
      %138 = dma.done [#allocation8], 448
    $region73: #{generator_forward.1} parent=1 // pred_fallthru
      _
    // Predicated region
    $region74: #{generator_forward.1} parent=1 // pred_check
      _
    $region75: #{generator_forward.1} parent=1 // pred_check_branch
      %140 = sbr.rel (0) target = $region77
    $region76: #{generator_forward.1} parent=1 // pred_region
      %142 = dma.done [#allocation11], 119168
    $region77: #{generator_forward.1} parent=1 // pred_fallthru
      _
    // Predicated region
    $region78: #{generator_forward.1} parent=1 // pred_check
      _
    $region79: #{generator_forward.1} parent=1 // pred_check_branch
      %144 = sbr.rel (0) target = $region81
    $region80: #{generator_forward.1} parent=1 // pred_region
      %146 = dma.done [#allocation11], 1216
    $region81: #{generator_forward.1} parent=1 // pred_fallthru
      _
    %v148 = vld [vmem:[%s0] sm:$0x3]
    %v149 = vpack.c.bf16 %v148, %v148
    %v150 = vld [vmem:[#allocation2] sm:$0xff]
    %v151 = vld [vmem:[#allocation2 + $0x8] sm:$0xff]
    %v154 = vunpack.c.l.b16 %v150
    %v155 = vunpack.c.h.b16 %v150
    %v156 = vunpack.c.l.b16 %v151
    %v157 = vunpack.c.h.b16 %v151
    %v158 = vpack.c.b16 %v156, %v154
    %v159 = vpack.c.b16 %v157, %v155
    %vm162 = vcmask 130048
    %v164 = vsel %vm162, %v149, 0
    %166 = vmatpush.bf16.msra.mxu0 0
    %167 = vmatpush.bf16.msra.mxu0 0
    %168 = vmatpush.bf16.msra.mxu0 0
    %169 = vmatpush.bf16.msra.mxu0 0
    %170 = vmatpush.bf16.msra.mxu0 0
    %171 = vmatpush.bf16.msra.mxu0 0
    %172 = vmatpush.bf16.msra.mxu0 0
    %173 = vmatpush.bf16.msra.mxu0 %v158
    %174 = vmatmul.bf16.gmra.mxu0 %v164
    %v175 = vpop.f32.mrf.mxu0
    %v176 = vadd.f32 0.0, %v175
    %v177 = vpop.f32.mrf.mxu0
    %178 = vdwg.mxu0
    %179 = vmatpush.bf16.msra.mxu0 0
    %180 = vmatpush.bf16.msra.mxu0 0
    %181 = vmatpush.bf16.msra.mxu0 0
    %182 = vmatpush.bf16.msra.mxu0 0
    %183 = vmatpush.bf16.msra.mxu0 0
    %184 = vmatpush.bf16.msra.mxu0 0
    %185 = vmatpush.bf16.msra.mxu0 0
    %186 = vmatpush.bf16.msra.mxu0 %v159
    %187 = vmatmul.bf16.gmra.mxu0 %v164
    %v188 = vpop.f32.mrf.mxu0
    %v189 = vadd.f32 0.0, %v188
    %v190 = vpop.f32.mrf.mxu0
    %191 = vdwg.mxu0
    %v192 = vld [vmem:[%s2] sm:$0xff]
    %v193 = vld [vmem:[%s2 + $0x8] sm:$0xff]
    %v194 = vld [vmem:[%s2 + $0x10] sm:$0xff]
    %v195 = vld [vmem:[%s2 + $0x18] sm:$0xff]
    %v196 = vld [vmem:[%s2 + $0x20] sm:$0xff]
    %v197 = vld [vmem:[%s2 + $0x28] sm:$0xff]
    %v198 = vld [vmem:[%s2 + $0x30] sm:$0xff]
    %v199 = vld [vmem:[%s2 + $0x38] sm:$0xff]
    %v200 = vld [vmem:[%s2 + $0x40] sm:$0xff]
    %v201 = vld [vmem:[%s2 + $0x48] sm:$0xff]
    %v202 = vld [vmem:[%s2 + $0x50] sm:$0xff]
    %v203 = vld [vmem:[%s2 + $0x58] sm:$0xff]
    %v204 = vld [vmem:[%s2 + $0x60] sm:$0xff]
    %v205 = vld [vmem:[%s2 + $0x68] sm:$0xff]
    %v206 = vld [vmem:[%s2 + $0x70] sm:$0xff]
    %v207 = vld [vmem:[%s2 + $0x78] sm:$0xff]
    %v208 = vld [vmem:[%s2 + $0x80] sm:$0xff]
    %v209 = vld [vmem:[%s2 + $0x88] sm:$0xff]
    %v210 = vld [vmem:[%s2 + $0x90] sm:$0xff]
    %v211 = vld [vmem:[%s2 + $0x98] sm:$0xff]
    %v212 = vld [vmem:[%s2 + $0xa0] sm:$0xff]
    %v213 = vld [vmem:[%s2 + $0xa8] sm:$0xff]
    %v214 = vld [vmem:[%s2 + $0xb0] sm:$0xff]
    %v215 = vld [vmem:[%s2 + $0xb8] sm:$0xff]
    %v216 = vld [vmem:[%s2 + $0xc0] sm:$0xff]
    %v217 = vld [vmem:[%s2 + $0xc8] sm:$0xff]
    %v218 = vld [vmem:[%s2 + $0xd0] sm:$0xff]
    %v219 = vld [vmem:[%s2 + $0xd8] sm:$0xff]
    %v220 = vld [vmem:[%s2 + $0xe0] sm:$0xff]
    %v221 = vld [vmem:[%s2 + $0xe8] sm:$0xff]
    %v222 = vld [vmem:[%s2 + $0xf0] sm:$0xff]
    %v223 = vld [vmem:[%s2 + $0xf8] sm:$0xff]
    %224 = vmatpush.msra.mxu0 %v207
    %225 = vmatpush.msra.mxu0 %v206
    %226 = vmatpush.msra.mxu0 %v205
    %227 = vmatpush.msra.mxu0 %v204
    %228 = vmatpush.msra.mxu0 %v203
    %229 = vmatpush.msra.mxu0 %v202
    %230 = vmatpush.msra.mxu0 %v201
    %231 = vmatpush.msra.mxu0 %v200
    %232 = vmatpush.msra.mxu0 %v199
    %233 = vmatpush.msra.mxu0 %v198
    %234 = vmatpush.msra.mxu0 %v197
    %235 = vmatpush.msra.mxu0 %v196
    %236 = vmatpush.msra.mxu0 %v195
    %237 = vmatpush.msra.mxu0 %v194
    %238 = vmatpush.msra.mxu0 %v193
    %239 = vmatpush.msra.mxu0 %v192
    %240 = vmatmul.f32.gmra.mxu0 %v176
    %v241 = vpop.f32.mrf.mxu0
    %v242 = vadd.f32 0.0, %v241
    %243 = vdwg.mxu0
    %244 = vmatpush.msra.mxu0 %v223
    %245 = vmatpush.msra.mxu0 %v222
    %246 = vmatpush.msra.mxu0 %v221
    %247 = vmatpush.msra.mxu0 %v220
    %248 = vmatpush.msra.mxu0 %v219
    %249 = vmatpush.msra.mxu0 %v218
    %250 = vmatpush.msra.mxu0 %v217
    %251 = vmatpush.msra.mxu0 %v216
    %252 = vmatpush.msra.mxu0 %v215
    %253 = vmatpush.msra.mxu0 %v214
    %254 = vmatpush.msra.mxu0 %v213
    %255 = vmatpush.msra.mxu0 %v212
    %256 = vmatpush.msra.mxu0 %v211
    %257 = vmatpush.msra.mxu0 %v210
    %258 = vmatpush.msra.mxu0 %v209
    %259 = vmatpush.msra.mxu0 %v208
    %260 = vmatmul.f32.gmra.mxu0 %v189
    %v261 = vpop.f32.mrf.mxu0
    %v262 = vadd.f32 %v242, %v261
    %263 = vdwg.mxu0
    %v264 = vmul.f32 %v176, %v176
    %v265 = vmul.f32 %v189, %v189
    %266 = vmatpush.msra.mxu0 %v207
    %267 = vmatpush.msra.mxu0 %v206
    %268 = vmatpush.msra.mxu0 %v205
    %269 = vmatpush.msra.mxu0 %v204
    %270 = vmatpush.msra.mxu0 %v203
    %271 = vmatpush.msra.mxu0 %v202
    %272 = vmatpush.msra.mxu0 %v201
    %273 = vmatpush.msra.mxu0 %v200
    %274 = vmatpush.msra.mxu0 %v199
    %275 = vmatpush.msra.mxu0 %v198
    %276 = vmatpush.msra.mxu0 %v197
    %277 = vmatpush.msra.mxu0 %v196
    %278 = vmatpush.msra.mxu0 %v195
    %279 = vmatpush.msra.mxu0 %v194
    %280 = vmatpush.msra.mxu0 %v193
    %281 = vmatpush.msra.mxu0 %v192
    %282 = vmatmul.f32.gmra.mxu0 %v264
    %v283 = vpop.f32.mrf.mxu0
    %v284 = vadd.f32 0.0, %v283
    %285 = vdwg.mxu0
    %286 = vmatpush.msra.mxu0 %v223
    %287 = vmatpush.msra.mxu0 %v222
    %288 = vmatpush.msra.mxu0 %v221
    %289 = vmatpush.msra.mxu0 %v220
    %290 = vmatpush.msra.mxu0 %v219
    %291 = vmatpush.msra.mxu0 %v218
    %292 = vmatpush.msra.mxu0 %v217
    %293 = vmatpush.msra.mxu0 %v216
    %294 = vmatpush.msra.mxu0 %v215
    %295 = vmatpush.msra.mxu0 %v214
    %296 = vmatpush.msra.mxu0 %v213
    %297 = vmatpush.msra.mxu0 %v212
    %298 = vmatpush.msra.mxu0 %v211
    %299 = vmatpush.msra.mxu0 %v210
    %300 = vmatpush.msra.mxu0 %v209
    %301 = vmatpush.msra.mxu0 %v208
    %302 = vmatmul.f32.gmra.mxu0 %v265
    %v303 = vpop.f32.mrf.mxu0
    %v304 = vadd.f32 %v284, %v303
    %305 = vdwg.mxu0
    %vm306 = vcmask 123904
    %v307 = vsel %vm306, %v262, 0.0
    %v308 = vrot.slane %v307, 4
    %v309 = vadd.f32 %v307, %v308
    %v310 = vrot.slane %v309, 2
    %v311 = vadd.f32 %v309, %v310
    %v312 = vrot.slane %v311, 1
    %v313 = vadd.f32 %v311, %v312
    %v314 = vsel %vm306, %v304, 0.0
    %v315 = vrot.slane %v314, 4
    %v316 = vadd.f32 %v314, %v315
    %v317 = vrot.slane %v316, 2
    %v318 = vadd.f32 %v316, %v317
    %v319 = vrot.slane %v318, 1
    %v320 = vadd.f32 %v318, %v319
    %v321 = vmul.f32 %v313, 0.03125
    %v322 = vmul.f32 %v320, 0.03125
    %v323 = vmul.f32 %v321, %v321
    %v324 = vsub.f32 %v322, %v323
    %v325 = vadd.f32 %v324, 1e-05
    %v326 = vrsqrt.pop %v325
    %v327 = vmul.f32 %v326, %v325
    %v328 = vmul.f32 %v327, %v326
    %v329 = vmul.f32 0.5, %v328
    %v330 = vsub.f32 1.5, %v329
    %v331 = vmul.f32 %v326, %v330
    %vm332 = vweird.f32 %v325
    %vm333 = vweird.f32 %v326
    %vm334 = vmor %vm332, %vm333
    %v335 = vsel %vm334, %v326, %v331
    %v336 = vld [vmem:[#allocation4] sm:$0xff]
    %v337 = vld [vmem:[#allocation4 + $0x8] sm:$0xff]
    %v338 = vld [vmem:[#allocation4 + $0x10] sm:$0xff]
    %v339 = vld [vmem:[#allocation4 + $0x18] sm:$0xff]
    %v341 = vsel %vm162, %v321, 0
    %343 = vmatpush.msra.mxu0 0.0
    %344 = vmatpush.msra.mxu0 0.0
    %345 = vmatpush.msra.mxu0 0.0
    %346 = vmatpush.msra.mxu0 0.0
    %347 = vmatpush.msra.mxu0 0.0
    %348 = vmatpush.msra.mxu0 0.0
    %349 = vmatpush.msra.mxu0 0.0
    %350 = vmatpush.msra.mxu0 0.0
    %351 = vmatpush.msra.mxu0 0.0
    %352 = vmatpush.msra.mxu0 0.0
    %353 = vmatpush.msra.mxu0 0.0
    %354 = vmatpush.msra.mxu0 0.0
    %355 = vmatpush.msra.mxu0 0.0
    %356 = vmatpush.msra.mxu0 0.0
    %357 = vmatpush.msra.mxu0 %v338
    %358 = vmatpush.msra.mxu0 %v336
    %359 = vmatmul.f32.gmra.mxu0 %v341
    %v360 = vpop.f32.mrf.mxu0
    %v361 = vadd.f32 0.0, %v360
    %362 = vdwg.mxu0
    %363 = vmatpush.msra.mxu0 0.0
    %364 = vmatpush.msra.mxu0 0.0
    %365 = vmatpush.msra.mxu0 0.0
    %366 = vmatpush.msra.mxu0 0.0
    %367 = vmatpush.msra.mxu0 0.0
    %368 = vmatpush.msra.mxu0 0.0
    %369 = vmatpush.msra.mxu0 0.0
    %370 = vmatpush.msra.mxu0 0.0
    %371 = vmatpush.msra.mxu0 0.0
    %372 = vmatpush.msra.mxu0 0.0
    %373 = vmatpush.msra.mxu0 0.0
    %374 = vmatpush.msra.mxu0 0.0
    %375 = vmatpush.msra.mxu0 0.0
    %376 = vmatpush.msra.mxu0 0.0
    %377 = vmatpush.msra.mxu0 %v339
    %378 = vmatpush.msra.mxu0 %v337
    %379 = vmatmul.f32.gmra.mxu0 %v341
    %v380 = vpop.f32.mrf.mxu0
    %v381 = vadd.f32 0.0, %v380
    %382 = vdwg.mxu0
    %v384 = vsel %vm162, %v335, 0
    %386 = vmatpush.msra.mxu0 0.0
    %387 = vmatpush.msra.mxu0 0.0
    %388 = vmatpush.msra.mxu0 0.0
    %389 = vmatpush.msra.mxu0 0.0
    %390 = vmatpush.msra.mxu0 0.0
    %391 = vmatpush.msra.mxu0 0.0
    %392 = vmatpush.msra.mxu0 0.0
    %393 = vmatpush.msra.mxu0 0.0
    %394 = vmatpush.msra.mxu0 0.0
    %395 = vmatpush.msra.mxu0 0.0
    %396 = vmatpush.msra.mxu0 0.0
    %397 = vmatpush.msra.mxu0 0.0
    %398 = vmatpush.msra.mxu0 0.0
    %399 = vmatpush.msra.mxu0 0.0
    %400 = vmatpush.msra.mxu0 %v338
    %401 = vmatpush.msra.mxu0 %v336
    %402 = vmatmul.f32.gmra.mxu0 %v384
    %v403 = vpop.f32.mrf.mxu0
    %v404 = vadd.f32 0.0, %v403
    %405 = vdwg.mxu0
    %406 = vmatpush.msra.mxu0 0.0
    %407 = vmatpush.msra.mxu0 0.0
    %408 = vmatpush.msra.mxu0 0.0
    %409 = vmatpush.msra.mxu0 0.0
    %410 = vmatpush.msra.mxu0 0.0
    %411 = vmatpush.msra.mxu0 0.0
    %412 = vmatpush.msra.mxu0 0.0
    %413 = vmatpush.msra.mxu0 0.0
    %414 = vmatpush.msra.mxu0 0.0
    %415 = vmatpush.msra.mxu0 0.0
    %416 = vmatpush.msra.mxu0 0.0
    %417 = vmatpush.msra.mxu0 0.0
    %418 = vmatpush.msra.mxu0 0.0
    %419 = vmatpush.msra.mxu0 0.0
    %420 = vmatpush.msra.mxu0 %v339
    %421 = vmatpush.msra.mxu0 %v337
    %422 = vmatmul.f32.gmra.mxu0 %v384
    %v423 = vpop.f32.mrf.mxu0
    %v424 = vadd.f32 0.0, %v423
    %425 = vdwg.mxu0
    %v426 = vperm.slane %v361, 0
    %v427 = vperm.slane %v381, 0
    %v428 = vsub.f32 %v176, %v426
    %v429 = vsub.f32 %v189, %v427
    %v430 = vperm.slane %v404, 0
    %v431 = vperm.slane %v424, 0
    %v432 = vmul.f32 %v428, %v430
    %v433 = vmul.f32 %v429, %v431
    %vm434 = vcmp.gt.f32.partialorder %v432, 0.0
    %vm435 = vcmp.gt.f32.partialorder %v433, 0.0
    %v436 = vmul.f32 %v432, 0.2
    %v437 = vmul.f32 %v433, 0.2
    %v438 = vsel %vm434, %v432, %v436
    %v439 = vsel %vm435, %v433, %v437
    %v440 = vpack.c.bf16 %v438, %v438
    %v441 = vpack.c.bf16 %v439, %v439
    %v442 = vld [vmem:[%s4] sm:$0xff]
    %v443 = vld [vmem:[%s4 + $0x8] sm:$0xff]
    %v444 = vld [vmem:[%s4 + $0x10] sm:$0xff]
    %v445 = vld [vmem:[%s4 + $0x18] sm:$0xff]
    %v446 = vld [vmem:[%s4 + $0x20] sm:$0xff]
    %v447 = vld [vmem:[%s4 + $0x28] sm:$0xff]
    %v448 = vld [vmem:[%s4 + $0x30] sm:$0xff]
    %v449 = vld [vmem:[%s4 + $0x38] sm:$0xff]
    %v450 = vld [vmem:[%s4 + $0x40] sm:$0xff]
    %v451 = vld [vmem:[%s4 + $0x48] sm:$0xff]
    %v452 = vld [vmem:[%s4 + $0x50] sm:$0xff]
    %v453 = vld [vmem:[%s4 + $0x58] sm:$0xff]
    %v454 = vld [vmem:[%s4 + $0x60] sm:$0xff]
    %v455 = vld [vmem:[%s4 + $0x68] sm:$0xff]
    %v456 = vld [vmem:[%s4 + $0x70] sm:$0xff]
    %v457 = vld [vmem:[%s4 + $0x78] sm:$0xff]
    %v458 = vld [vmem:[%s4 + $0x80] sm:$0xff]
    %v459 = vld [vmem:[%s4 + $0x88] sm:$0xff]
    %v460 = vld [vmem:[%s4 + $0x90] sm:$0xff]
    %v461 = vld [vmem:[%s4 + $0x98] sm:$0xff]
    %v462 = vld [vmem:[%s4 + $0xa0] sm:$0xff]
    %v463 = vld [vmem:[%s4 + $0xa8] sm:$0xff]
    %v464 = vld [vmem:[%s4 + $0xb0] sm:$0xff]
    %v465 = vld [vmem:[%s4 + $0xb8] sm:$0xff]
    %v466 = vld [vmem:[%s4 + $0xc0] sm:$0xff]
    %v467 = vld [vmem:[%s4 + $0xc8] sm:$0xff]
    %v468 = vld [vmem:[%s4 + $0xd0] sm:$0xff]
    %v469 = vld [vmem:[%s4 + $0xd8] sm:$0xff]
    %v470 = vld [vmem:[%s4 + $0xe0] sm:$0xff]
    %v471 = vld [vmem:[%s4 + $0xe8] sm:$0xff]
    %v472 = vld [vmem:[%s4 + $0xf0] sm:$0xff]
    %v473 = vld [vmem:[%s4 + $0xf8] sm:$0xff]
    %v474 = vld [vmem:[%s4 + $0x100] sm:$0xff]
    %v475 = vld [vmem:[%s4 + $0x108] sm:$0xff]
    %v476 = vld [vmem:[%s4 + $0x110] sm:$0xff]
    %v477 = vld [vmem:[%s4 + $0x118] sm:$0xff]
    %v478 = vld [vmem:[%s4 + $0x120] sm:$0xff]
    %v479 = vld [vmem:[%s4 + $0x128] sm:$0xff]
    %v480 = vld [vmem:[%s4 + $0x130] sm:$0xff]
    %v481 = vld [vmem:[%s4 + $0x138] sm:$0xff]
    %v482 = vld [vmem:[%s4 + $0x140] sm:$0xff]
    %v483 = vld [vmem:[%s4 + $0x148] sm:$0xff]
    %v484 = vld [vmem:[%s4 + $0x150] sm:$0xff]
    %v485 = vld [vmem:[%s4 + $0x158] sm:$0xff]
    %v486 = vld [vmem:[%s4 + $0x160] sm:$0xff]
    %v487 = vld [vmem:[%s4 + $0x168] sm:$0xff]
    %v488 = vld [vmem:[%s4 + $0x170] sm:$0xff]
    %v489 = vld [vmem:[%s4 + $0x178] sm:$0xff]
    %v490 = vld [vmem:[%s4 + $0x180] sm:$0xff]
    %v491 = vld [vmem:[%s4 + $0x188] sm:$0xff]
    %v492 = vld [vmem:[%s4 + $0x190] sm:$0xff]
    %v493 = vld [vmem:[%s4 + $0x198] sm:$0xff]
    %v494 = vld [vmem:[%s4 + $0x1a0] sm:$0xff]
    %v495 = vld [vmem:[%s4 + $0x1a8] sm:$0xff]
    %v496 = vld [vmem:[%s4 + $0x1b0] sm:$0xff]
    %v497 = vld [vmem:[%s4 + $0x1b8] sm:$0xff]
    %v498 = vld [vmem:[%s4 + $0x1c0] sm:$0xff]
    %v499 = vld [vmem:[%s4 + $0x1c8] sm:$0xff]
    %v500 = vld [vmem:[%s4 + $0x1d0] sm:$0xff]
    %v501 = vld [vmem:[%s4 + $0x1d8] sm:$0xff]
    %v502 = vld [vmem:[%s4 + $0x1e0] sm:$0xff]
    %v503 = vld [vmem:[%s4 + $0x1e8] sm:$0xff]
    %v504 = vld [vmem:[%s4 + $0x1f0] sm:$0xff]
    %v505 = vld [vmem:[%s4 + $0x1f8] sm:$0xff]
    %v570 = vunpack.c.l.b16 %v442
    %v571 = vunpack.c.h.b16 %v442
    %v572 = vunpack.c.l.b16 %v443
    %v573 = vunpack.c.h.b16 %v443
    %v574 = vunpack.c.l.b16 %v444
    %v575 = vunpack.c.h.b16 %v444
    %v576 = vunpack.c.l.b16 %v445
    %v577 = vunpack.c.h.b16 %v445
    %v578 = vunpack.c.l.b16 %v446
    %v579 = vunpack.c.h.b16 %v446
    %v580 = vunpack.c.l.b16 %v447
    %v581 = vunpack.c.h.b16 %v447
    %v582 = vunpack.c.l.b16 %v448
    %v583 = vunpack.c.h.b16 %v448
    %v584 = vunpack.c.l.b16 %v449
    %v585 = vunpack.c.h.b16 %v449
    %v586 = vunpack.c.l.b16 %v450
    %v587 = vunpack.c.h.b16 %v450
    %v588 = vunpack.c.l.b16 %v451
    %v589 = vunpack.c.h.b16 %v451
    %v590 = vunpack.c.l.b16 %v452
    %v591 = vunpack.c.h.b16 %v452
    %v592 = vunpack.c.l.b16 %v453
    %v593 = vunpack.c.h.b16 %v453
    %v594 = vunpack.c.l.b16 %v454
    %v595 = vunpack.c.h.b16 %v454
    %v596 = vunpack.c.l.b16 %v455
    %v597 = vunpack.c.h.b16 %v455
    %v598 = vunpack.c.l.b16 %v456
    %v599 = vunpack.c.h.b16 %v456
    %v600 = vunpack.c.l.b16 %v457
    %v601 = vunpack.c.h.b16 %v457
    %v602 = vunpack.c.l.b16 %v458
    %v603 = vunpack.c.h.b16 %v458
    %v604 = vunpack.c.l.b16 %v459
    %v605 = vunpack.c.h.b16 %v459
    %v606 = vunpack.c.l.b16 %v460
    %v607 = vunpack.c.h.b16 %v460
    %v608 = vunpack.c.l.b16 %v461
    %v609 = vunpack.c.h.b16 %v461
    %v610 = vunpack.c.l.b16 %v462
    %v611 = vunpack.c.h.b16 %v462
    %v612 = vunpack.c.l.b16 %v463
    %v613 = vunpack.c.h.b16 %v463
    %v614 = vunpack.c.l.b16 %v464
    %v615 = vunpack.c.h.b16 %v464
    %v616 = vunpack.c.l.b16 %v465
    %v617 = vunpack.c.h.b16 %v465
    %v618 = vunpack.c.l.b16 %v466
    %v619 = vunpack.c.h.b16 %v466
    %v620 = vunpack.c.l.b16 %v467
    %v621 = vunpack.c.h.b16 %v467
    %v622 = vunpack.c.l.b16 %v468
    %v623 = vunpack.c.h.b16 %v468
    %v624 = vunpack.c.l.b16 %v469
    %v625 = vunpack.c.h.b16 %v469
    %v626 = vunpack.c.l.b16 %v470
    %v627 = vunpack.c.h.b16 %v470
    %v628 = vunpack.c.l.b16 %v471
    %v629 = vunpack.c.h.b16 %v471
    %v630 = vunpack.c.l.b16 %v472
    %v631 = vunpack.c.h.b16 %v472
    %v632 = vunpack.c.l.b16 %v473
    %v633 = vunpack.c.h.b16 %v473
    %v634 = vunpack.c.l.b16 %v474
    %v635 = vunpack.c.h.b16 %v474
    %v636 = vunpack.c.l.b16 %v475
    %v637 = vunpack.c.h.b16 %v475
    %v638 = vunpack.c.l.b16 %v476
    %v639 = vunpack.c.h.b16 %v476
    %v640 = vunpack.c.l.b16 %v477
    %v641 = vunpack.c.h.b16 %v477
    %v642 = vunpack.c.l.b16 %v478
    %v643 = vunpack.c.h.b16 %v478
    %v644 = vunpack.c.l.b16 %v479
    %v645 = vunpack.c.h.b16 %v479
    %v646 = vunpack.c.l.b16 %v480
    %v647 = vunpack.c.h.b16 %v480
    %v648 = vunpack.c.l.b16 %v481
    %v649 = vunpack.c.h.b16 %v481
    %v650 = vunpack.c.l.b16 %v482
    %v651 = vunpack.c.h.b16 %v482
    %v652 = vunpack.c.l.b16 %v483
    %v653 = vunpack.c.h.b16 %v483
    %v654 = vunpack.c.l.b16 %v484
    %v655 = vunpack.c.h.b16 %v484
    %v656 = vunpack.c.l.b16 %v485
    %v657 = vunpack.c.h.b16 %v485
    %v658 = vunpack.c.l.b16 %v486
    %v659 = vunpack.c.h.b16 %v486
    %v660 = vunpack.c.l.b16 %v487
    %v661 = vunpack.c.h.b16 %v487
    %v662 = vunpack.c.l.b16 %v488
    %v663 = vunpack.c.h.b16 %v488
    %v664 = vunpack.c.l.b16 %v489
    %v665 = vunpack.c.h.b16 %v489
    %v666 = vunpack.c.l.b16 %v490
    %v667 = vunpack.c.h.b16 %v490
    %v668 = vunpack.c.l.b16 %v491
    %v669 = vunpack.c.h.b16 %v491
    %v670 = vunpack.c.l.b16 %v492
    %v671 = vunpack.c.h.b16 %v492
    %v672 = vunpack.c.l.b16 %v493
    %v673 = vunpack.c.h.b16 %v493
    %v674 = vunpack.c.l.b16 %v494
    %v675 = vunpack.c.h.b16 %v494
    %v676 = vunpack.c.l.b16 %v495
    %v677 = vunpack.c.h.b16 %v495
    %v678 = vunpack.c.l.b16 %v496
    %v679 = vunpack.c.h.b16 %v496
    %v680 = vunpack.c.l.b16 %v497
    %v681 = vunpack.c.h.b16 %v497
    %v682 = vunpack.c.l.b16 %v498
    %v683 = vunpack.c.h.b16 %v498
    %v684 = vunpack.c.l.b16 %v499
    %v685 = vunpack.c.h.b16 %v499
    %v686 = vunpack.c.l.b16 %v500
    %v687 = vunpack.c.h.b16 %v500
    %v688 = vunpack.c.l.b16 %v501
    %v689 = vunpack.c.h.b16 %v501
    %v690 = vunpack.c.l.b16 %v502
    %v691 = vunpack.c.h.b16 %v502
    %v692 = vunpack.c.l.b16 %v503
    %v693 = vunpack.c.h.b16 %v503
    %v694 = vunpack.c.l.b16 %v504
    %v695 = vunpack.c.h.b16 %v504
    %v696 = vunpack.c.l.b16 %v505
    %v697 = vunpack.c.h.b16 %v505
    %v698 = vpack.c.b16 %v574, %v570
    %v699 = vpack.c.b16 %v575, %v571
    %v700 = vpack.c.b16 %v576, %v572
    %v701 = vpack.c.b16 %v577, %v573
    %v702 = vpack.c.b16 %v582, %v578
    %v703 = vpack.c.b16 %v583, %v579
    %v704 = vpack.c.b16 %v584, %v580
    %v705 = vpack.c.b16 %v585, %v581
    %v706 = vpack.c.b16 %v590, %v586
    %v707 = vpack.c.b16 %v591, %v587
    %v708 = vpack.c.b16 %v592, %v588
    %v709 = vpack.c.b16 %v593, %v589
    %v710 = vpack.c.b16 %v598, %v594
    %v711 = vpack.c.b16 %v599, %v595
    %v712 = vpack.c.b16 %v600, %v596
    %v713 = vpack.c.b16 %v601, %v597
    %v714 = vpack.c.b16 %v606, %v602
    %v715 = vpack.c.b16 %v607, %v603
    %v716 = vpack.c.b16 %v608, %v604
    %v717 = vpack.c.b16 %v609, %v605
    %v718 = vpack.c.b16 %v614, %v610
    %v719 = vpack.c.b16 %v615, %v611
    %v720 = vpack.c.b16 %v616, %v612
    %v721 = vpack.c.b16 %v617, %v613
    %v722 = vpack.c.b16 %v622, %v618
    %v723 = vpack.c.b16 %v623, %v619
    %v724 = vpack.c.b16 %v624, %v620
    %v725 = vpack.c.b16 %v625, %v621
    %v726 = vpack.c.b16 %v630, %v626
    %v727 = vpack.c.b16 %v631, %v627
    %v728 = vpack.c.b16 %v632, %v628
    %v729 = vpack.c.b16 %v633, %v629
    %v730 = vpack.c.b16 %v638, %v634
    %v731 = vpack.c.b16 %v639, %v635
    %v732 = vpack.c.b16 %v640, %v636
    %v733 = vpack.c.b16 %v641, %v637
    %v734 = vpack.c.b16 %v646, %v642
    %v735 = vpack.c.b16 %v647, %v643
    %v736 = vpack.c.b16 %v648, %v644
    %v737 = vpack.c.b16 %v649, %v645
    %v738 = vpack.c.b16 %v654, %v650
    %v739 = vpack.c.b16 %v655, %v651
    %v740 = vpack.c.b16 %v656, %v652
    %v741 = vpack.c.b16 %v657, %v653
    %v742 = vpack.c.b16 %v662, %v658
    %v743 = vpack.c.b16 %v663, %v659
    %v744 = vpack.c.b16 %v664, %v660
    %v745 = vpack.c.b16 %v665, %v661
    %v746 = vpack.c.b16 %v670, %v666
    %v747 = vpack.c.b16 %v671, %v667
    %v748 = vpack.c.b16 %v672, %v668
    %v749 = vpack.c.b16 %v673, %v669
    %v750 = vpack.c.b16 %v678, %v674
    %v751 = vpack.c.b16 %v679, %v675
    %v752 = vpack.c.b16 %v680, %v676
    %v753 = vpack.c.b16 %v681, %v677
    %v754 = vpack.c.b16 %v686, %v682
    %v755 = vpack.c.b16 %v687, %v683
    %v756 = vpack.c.b16 %v688, %v684
    %v757 = vpack.c.b16 %v689, %v685
    %v758 = vpack.c.b16 %v694, %v690
    %v759 = vpack.c.b16 %v695, %v691
    %v760 = vpack.c.b16 %v696, %v692
    %v761 = vpack.c.b16 %v697, %v693
    %826 = vmatpush.bf16.msra.mxu0 %v726
    %827 = vmatpush.bf16.msra.mxu0 %v722
    %828 = vmatpush.bf16.msra.mxu0 %v718
    %829 = vmatpush.bf16.msra.mxu0 %v714
    %830 = vmatpush.bf16.msra.mxu0 %v710
    %831 = vmatpush.bf16.msra.mxu0 %v706
    %832 = vmatpush.bf16.msra.mxu0 %v702
    %833 = vmatpush.bf16.msra.mxu0 %v698
    %834 = vmatmul.bf16.gmra.mxu0 %v440
    %v835 = vpop.f32.mrf.mxu0
    %v836 = vadd.f32 0.0, %v835
    %v837 = vpop.f32.mrf.mxu0
    %838 = vdwg.mxu0
    %839 = vmatpush.bf16.msra.mxu0 %v758
    %840 = vmatpush.bf16.msra.mxu0 %v754
    %841 = vmatpush.bf16.msra.mxu0 %v750
    %842 = vmatpush.bf16.msra.mxu0 %v746
    %843 = vmatpush.bf16.msra.mxu0 %v742
    %844 = vmatpush.bf16.msra.mxu0 %v738
    %845 = vmatpush.bf16.msra.mxu0 %v734
    %846 = vmatpush.bf16.msra.mxu0 %v730
    %847 = vmatmul.bf16.gmra.mxu0 %v441
    %v848 = vpop.f32.mrf.mxu0
    %v849 = vadd.f32 %v836, %v848
    %v850 = vpop.f32.mrf.mxu0
    %851 = vdwg.mxu0
    %852 = vmatpush.bf16.msra.mxu0 %v727
    %853 = vmatpush.bf16.msra.mxu0 %v723
    %854 = vmatpush.bf16.msra.mxu0 %v719
    %855 = vmatpush.bf16.msra.mxu0 %v715
    %856 = vmatpush.bf16.msra.mxu0 %v711
    %857 = vmatpush.bf16.msra.mxu0 %v707
    %858 = vmatpush.bf16.msra.mxu0 %v703
    %859 = vmatpush.bf16.msra.mxu0 %v699
    %860 = vmatmul.bf16.gmra.mxu0 %v440
    %v861 = vpop.f32.mrf.mxu0
    %v862 = vadd.f32 0.0, %v861
    %v863 = vpop.f32.mrf.mxu0
    %864 = vdwg.mxu0
    %865 = vmatpush.bf16.msra.mxu0 %v759
    %866 = vmatpush.bf16.msra.mxu0 %v755
    %867 = vmatpush.bf16.msra.mxu0 %v751
    %868 = vmatpush.bf16.msra.mxu0 %v747
    %869 = vmatpush.bf16.msra.mxu0 %v743
    %870 = vmatpush.bf16.msra.mxu0 %v739
    %871 = vmatpush.bf16.msra.mxu0 %v735
    %872 = vmatpush.bf16.msra.mxu0 %v731
    %873 = vmatmul.bf16.gmra.mxu0 %v441
    %v874 = vpop.f32.mrf.mxu0
    %v875 = vadd.f32 %v862, %v874
    %v876 = vpop.f32.mrf.mxu0
    %877 = vdwg.mxu0
    %878 = vmatpush.bf16.msra.mxu0 %v728
    %879 = vmatpush.bf16.msra.mxu0 %v724
    %880 = vmatpush.bf16.msra.mxu0 %v720
    %881 = vmatpush.bf16.msra.mxu0 %v716
    %882 = vmatpush.bf16.msra.mxu0 %v712
    %883 = vmatpush.bf16.msra.mxu0 %v708
    %884 = vmatpush.bf16.msra.mxu0 %v704
    %885 = vmatpush.bf16.msra.mxu0 %v700
    %886 = vmatmul.bf16.gmra.mxu0 %v440
    %v887 = vpop.f32.mrf.mxu0
    %v888 = vadd.f32 0.0, %v887
    %v889 = vpop.f32.mrf.mxu0
    %890 = vdwg.mxu0
    %891 = vmatpush.bf16.msra.mxu0 %v760
    %892 = vmatpush.bf16.msra.mxu0 %v756
    %893 = vmatpush.bf16.msra.mxu0 %v752
    %894 = vmatpush.bf16.msra.mxu0 %v748
    %895 = vmatpush.bf16.msra.mxu0 %v744
    %896 = vmatpush.bf16.msra.mxu0 %v740
    %897 = vmatpush.bf16.msra.mxu0 %v736
    %898 = vmatpush.bf16.msra.mxu0 %v732
    %899 = vmatmul.bf16.gmra.mxu0 %v441
    %v900 = vpop.f32.mrf.mxu0
    %v901 = vadd.f32 %v888, %v900
    %v902 = vpop.f32.mrf.mxu0
    %903 = vdwg.mxu0
    %904 = vmatpush.bf16.msra.mxu0 %v729
    %905 = vmatpush.bf16.msra.mxu0 %v725
    %906 = vmatpush.bf16.msra.mxu0 %v721
    %907 = vmatpush.bf16.msra.mxu0 %v717
    %908 = vmatpush.bf16.msra.mxu0 %v713
    %909 = vmatpush.bf16.msra.mxu0 %v709
    %910 = vmatpush.bf16.msra.mxu0 %v705
    %911 = vmatpush.bf16.msra.mxu0 %v701
    %912 = vmatmul.bf16.gmra.mxu0 %v440
    %v913 = vpop.f32.mrf.mxu0
    %v914 = vadd.f32 0.0, %v913
    %v915 = vpop.f32.mrf.mxu0
    %916 = vdwg.mxu0
    %917 = vmatpush.bf16.msra.mxu0 %v761
    %918 = vmatpush.bf16.msra.mxu0 %v757
    %919 = vmatpush.bf16.msra.mxu0 %v753
    %920 = vmatpush.bf16.msra.mxu0 %v749
    %921 = vmatpush.bf16.msra.mxu0 %v745
    %922 = vmatpush.bf16.msra.mxu0 %v741
    %923 = vmatpush.bf16.msra.mxu0 %v737
    %924 = vmatpush.bf16.msra.mxu0 %v733
    %925 = vmatmul.bf16.gmra.mxu0 %v441
    %v926 = vpop.f32.mrf.mxu0
    %v927 = vadd.f32 %v914, %v926
    %v928 = vpop.f32.mrf.mxu0
    %929 = vdwg.mxu0
    %v930 = vld [vmem:[%s5] sm:$0xff]
    %v931 = vld [vmem:[%s5 + $0x8] sm:$0xff]
    %v932 = vld [vmem:[%s5 + $0x10] sm:$0xff]
    %v933 = vld [vmem:[%s5 + $0x18] sm:$0xff]
    %v934 = vld [vmem:[%s5 + $0x20] sm:$0xff]
    %v935 = vld [vmem:[%s5 + $0x28] sm:$0xff]
    %v936 = vld [vmem:[%s5 + $0x30] sm:$0xff]
    %v937 = vld [vmem:[%s5 + $0x38] sm:$0xff]
    %v938 = vld [vmem:[%s5 + $0x40] sm:$0xff]
    %v939 = vld [vmem:[%s5 + $0x48] sm:$0xff]
    %v940 = vld [vmem:[%s5 + $0x50] sm:$0xff]
    %v941 = vld [vmem:[%s5 + $0x58] sm:$0xff]
    %v942 = vld [vmem:[%s5 + $0x60] sm:$0xff]
    %v943 = vld [vmem:[%s5 + $0x68] sm:$0xff]
    %v944 = vld [vmem:[%s5 + $0x70] sm:$0xff]
    %v945 = vld [vmem:[%s5 + $0x78] sm:$0xff]
    %v946 = vld [vmem:[%s5 + $0x80] sm:$0xff]
    %v947 = vld [vmem:[%s5 + $0x88] sm:$0xff]
    %v948 = vld [vmem:[%s5 + $0x90] sm:$0xff]
    %v949 = vld [vmem:[%s5 + $0x98] sm:$0xff]
    %v950 = vld [vmem:[%s5 + $0xa0] sm:$0xff]
    %v951 = vld [vmem:[%s5 + $0xa8] sm:$0xff]
    %v952 = vld [vmem:[%s5 + $0xb0] sm:$0xff]
    %v953 = vld [vmem:[%s5 + $0xb8] sm:$0xff]
    %v954 = vld [vmem:[%s5 + $0xc0] sm:$0xff]
    %v955 = vld [vmem:[%s5 + $0xc8] sm:$0xff]
    %v956 = vld [vmem:[%s5 + $0xd0] sm:$0xff]
    %v957 = vld [vmem:[%s5 + $0xd8] sm:$0xff]
    %v958 = vld [vmem:[%s5 + $0xe0] sm:$0xff]
    %v959 = vld [vmem:[%s5 + $0xe8] sm:$0xff]
    %v960 = vld [vmem:[%s5 + $0xf0] sm:$0xff]
    %v961 = vld [vmem:[%s5 + $0xf8] sm:$0xff]
    %v962 = vld [vmem:[%s5 + $0x100] sm:$0xff]
    %v963 = vld [vmem:[%s5 + $0x108] sm:$0xff]
    %v964 = vld [vmem:[%s5 + $0x110] sm:$0xff]
    %v965 = vld [vmem:[%s5 + $0x118] sm:$0xff]
    %v966 = vld [vmem:[%s5 + $0x120] sm:$0xff]
    %v967 = vld [vmem:[%s5 + $0x128] sm:$0xff]
    %v968 = vld [vmem:[%s5 + $0x130] sm:$0xff]
    %v969 = vld [vmem:[%s5 + $0x138] sm:$0xff]
    %v970 = vld [vmem:[%s5 + $0x140] sm:$0xff]
    %v971 = vld [vmem:[%s5 + $0x148] sm:$0xff]
    %v972 = vld [vmem:[%s5 + $0x150] sm:$0xff]
    %v973 = vld [vmem:[%s5 + $0x158] sm:$0xff]
    %v974 = vld [vmem:[%s5 + $0x160] sm:$0xff]
    %v975 = vld [vmem:[%s5 + $0x168] sm:$0xff]
    %v976 = vld [vmem:[%s5 + $0x170] sm:$0xff]
    %v977 = vld [vmem:[%s5 + $0x178] sm:$0xff]
    %v978 = vld [vmem:[%s5 + $0x180] sm:$0xff]
    %vm979 = vcmask 64512
    %v981 = vsel %vm979, %v927, 0
    %983 = vmatpush.msra.mxu0 %v945
    %984 = vmatpush.msra.mxu0 %v944
    %985 = vmatpush.msra.mxu0 %v943
    %986 = vmatpush.msra.mxu0 %v942
    %987 = vmatpush.msra.mxu0 %v941
    %988 = vmatpush.msra.mxu0 %v940
    %989 = vmatpush.msra.mxu0 %v939
    %990 = vmatpush.msra.mxu0 %v938
    %991 = vmatpush.msra.mxu0 %v937
    %992 = vmatpush.msra.mxu0 %v936
    %993 = vmatpush.msra.mxu0 %v935
    %994 = vmatpush.msra.mxu0 %v934
    %995 = vmatpush.msra.mxu0 %v933
    %996 = vmatpush.msra.mxu0 %v932
    %997 = vmatpush.msra.mxu0 %v931
    %998 = vmatpush.msra.mxu0 %v930
    %999 = vmatmul.f32.gmra.mxu0 %v849
    %v1000 = vpop.f32.mrf.mxu0
    %v1001 = vadd.f32 0.0, %v1000
    %1002 = vdwg.mxu0
    %1003 = vmatpush.msra.mxu0 %v961
    %1004 = vmatpush.msra.mxu0 %v960
    %1005 = vmatpush.msra.mxu0 %v959
    %1006 = vmatpush.msra.mxu0 %v958
    %1007 = vmatpush.msra.mxu0 %v957
    %1008 = vmatpush.msra.mxu0 %v956
    %1009 = vmatpush.msra.mxu0 %v955
    %1010 = vmatpush.msra.mxu0 %v954
    %1011 = vmatpush.msra.mxu0 %v953
    %1012 = vmatpush.msra.mxu0 %v952
    %1013 = vmatpush.msra.mxu0 %v951
    %1014 = vmatpush.msra.mxu0 %v950
    %1015 = vmatpush.msra.mxu0 %v949
    %1016 = vmatpush.msra.mxu0 %v948
    %1017 = vmatpush.msra.mxu0 %v947
    %1018 = vmatpush.msra.mxu0 %v946
    %1019 = vmatmul.f32.gmra.mxu0 %v875
    %v1020 = vpop.f32.mrf.mxu0
    %v1021 = vadd.f32 %v1001, %v1020
    %1022 = vdwg.mxu0
    %1023 = vmatpush.msra.mxu0 %v977
    %1024 = vmatpush.msra.mxu0 %v976
    %1025 = vmatpush.msra.mxu0 %v975
    %1026 = vmatpush.msra.mxu0 %v974
    %1027 = vmatpush.msra.mxu0 %v973
    %1028 = vmatpush.msra.mxu0 %v972
    %1029 = vmatpush.msra.mxu0 %v971
    %1030 = vmatpush.msra.mxu0 %v970
    %1031 = vmatpush.msra.mxu0 %v969
    %1032 = vmatpush.msra.mxu0 %v968
    %1033 = vmatpush.msra.mxu0 %v967
    %1034 = vmatpush.msra.mxu0 %v966
    %1035 = vmatpush.msra.mxu0 %v965
    %1036 = vmatpush.msra.mxu0 %v964
    %1037 = vmatpush.msra.mxu0 %v963
    %1038 = vmatpush.msra.mxu0 %v962
    %1039 = vmatmul.f32.gmra.mxu0 %v901
    %v1040 = vpop.f32.mrf.mxu0
    %v1041 = vadd.f32 %v1021, %v1040
    %1042 = vdwg.mxu0
    %1043 = vmatpush.msra.mxu0 0.0
    %1044 = vmatpush.msra.mxu0 0.0
    %1045 = vmatpush.msra.mxu0 0.0
    %1046 = vmatpush.msra.mxu0 0.0
    %1047 = vmatpush.msra.mxu0 0.0
    %1048 = vmatpush.msra.mxu0 0.0
    %1049 = vmatpush.msra.mxu0 0.0
    %1050 = vmatpush.msra.mxu0 0.0
    %1051 = vmatpush.msra.mxu0 0.0
    %1052 = vmatpush.msra.mxu0 0.0
    %1053 = vmatpush.msra.mxu0 0.0
    %1054 = vmatpush.msra.mxu0 0.0
    %1055 = vmatpush.msra.mxu0 0.0
    %1056 = vmatpush.msra.mxu0 0.0
    %1057 = vmatpush.msra.mxu0 0.0
    %1058 = vmatpush.msra.mxu0 %v978
    %1059 = vmatmul.f32.gmra.mxu0 %v981
    %v1060 = vpop.f32.mrf.mxu0
    %v1061 = vadd.f32 %v1041, %v1060
    %1062 = vdwg.mxu0
    %v1063 = vmul.f32 %v849, %v849
    %v1064 = vmul.f32 %v875, %v875
    %v1065 = vmul.f32 %v901, %v901
    %v1066 = vmul.f32 %v927, %v927
    %v1068 = vsel %vm979, %v1066, 0
    %1070 = vmatpush.msra.mxu0 %v945
    %1071 = vmatpush.msra.mxu0 %v944
    %1072 = vmatpush.msra.mxu0 %v943
    %1073 = vmatpush.msra.mxu0 %v942
    %1074 = vmatpush.msra.mxu0 %v941
    %1075 = vmatpush.msra.mxu0 %v940
    %1076 = vmatpush.msra.mxu0 %v939
    %1077 = vmatpush.msra.mxu0 %v938
    %1078 = vmatpush.msra.mxu0 %v937
    %1079 = vmatpush.msra.mxu0 %v936
    %1080 = vmatpush.msra.mxu0 %v935
    %1081 = vmatpush.msra.mxu0 %v934
    %1082 = vmatpush.msra.mxu0 %v933
    %1083 = vmatpush.msra.mxu0 %v932
    %1084 = vmatpush.msra.mxu0 %v931
    %1085 = vmatpush.msra.mxu0 %v930
    %1086 = vmatmul.f32.gmra.mxu0 %v1063
    %v1087 = vpop.f32.mrf.mxu0
    %v1088 = vadd.f32 0.0, %v1087
    %1089 = vdwg.mxu0
    %1090 = vmatpush.msra.mxu0 %v961
    %1091 = vmatpush.msra.mxu0 %v960
    %1092 = vmatpush.msra.mxu0 %v959
    %1093 = vmatpush.msra.mxu0 %v958
    %1094 = vmatpush.msra.mxu0 %v957
    %1095 = vmatpush.msra.mxu0 %v956
    %1096 = vmatpush.msra.mxu0 %v955
    %1097 = vmatpush.msra.mxu0 %v954
    %1098 = vmatpush.msra.mxu0 %v953
    %1099 = vmatpush.msra.mxu0 %v952
    %1100 = vmatpush.msra.mxu0 %v951
    %1101 = vmatpush.msra.mxu0 %v950
    %1102 = vmatpush.msra.mxu0 %v949
    %1103 = vmatpush.msra.mxu0 %v948
    %1104 = vmatpush.msra.mxu0 %v947
    %1105 = vmatpush.msra.mxu0 %v946
    %1106 = vmatmul.f32.gmra.mxu0 %v1064
    %v1107 = vpop.f32.mrf.mxu0
    %v1108 = vadd.f32 %v1088, %v1107
    %1109 = vdwg.mxu0
    %1110 = vmatpush.msra.mxu0 %v977
    %1111 = vmatpush.msra.mxu0 %v976
    %1112 = vmatpush.msra.mxu0 %v975
    %1113 = vmatpush.msra.mxu0 %v974
    %1114 = vmatpush.msra.mxu0 %v973
    %1115 = vmatpush.msra.mxu0 %v972
    %1116 = vmatpush.msra.mxu0 %v971
    %1117 = vmatpush.msra.mxu0 %v970
    %1118 = vmatpush.msra.mxu0 %v969
    %1119 = vmatpush.msra.mxu0 %v968
    %1120 = vmatpush.msra.mxu0 %v967
    %1121 = vmatpush.msra.mxu0 %v966
    %1122 = vmatpush.msra.mxu0 %v965
    %1123 = vmatpush.msra.mxu0 %v964
    %1124 = vmatpush.msra.mxu0 %v963
    %1125 = vmatpush.msra.mxu0 %v962
    %1126 = vmatmul.f32.gmra.mxu0 %v1065
    %v1127 = vpop.f32.mrf.mxu0
    %v1128 = vadd.f32 %v1108, %v1127
    %1129 = vdwg.mxu0
    %1130 = vmatpush.msra.mxu0 0.0
    %1131 = vmatpush.msra.mxu0 0.0
    %1132 = vmatpush.msra.mxu0 0.0
    %1133 = vmatpush.msra.mxu0 0.0
    %1134 = vmatpush.msra.mxu0 0.0
    %1135 = vmatpush.msra.mxu0 0.0
    %1136 = vmatpush.msra.mxu0 0.0
    %1137 = vmatpush.msra.mxu0 0.0
    %1138 = vmatpush.msra.mxu0 0.0
    %1139 = vmatpush.msra.mxu0 0.0
    %1140 = vmatpush.msra.mxu0 0.0
    %1141 = vmatpush.msra.mxu0 0.0
    %1142 = vmatpush.msra.mxu0 0.0
    %1143 = vmatpush.msra.mxu0 0.0
    %1144 = vmatpush.msra.mxu0 0.0
    %1145 = vmatpush.msra.mxu0 %v978
    %1146 = vmatmul.f32.gmra.mxu0 %v1068
    %v1147 = vpop.f32.mrf.mxu0
    %v1148 = vadd.f32 %v1128, %v1147
    %1149 = vdwg.mxu0
    %vm1150 = vcmask 58368
    %v1151 = vsel %vm1150, %v1061, 0.0
    %v1152 = vrot.slane %v1151, 4
    %v1153 = vadd.f32 %v1151, %v1152
    %v1154 = vrot.slane %v1153, 2
    %v1155 = vadd.f32 %v1153, %v1154
    %v1156 = vrot.slane %v1155, 1
    %v1157 = vadd.f32 %v1155, %v1156
    %v1158 = vsel %vm1150, %v1148, 0.0
    %v1159 = vrot.slane %v1158, 4
    %v1160 = vadd.f32 %v1158, %v1159
    %v1161 = vrot.slane %v1160, 2
    %v1162 = vadd.f32 %v1160, %v1161
    %v1163 = vrot.slane %v1162, 1
    %v1164 = vadd.f32 %v1162, %v1163
    %v1165 = vmul.f32 %v1157, 0.010204081
    %v1166 = vmul.f32 %v1164, 0.010204081
    %v1167 = vmul.f32 %v1165, %v1165
    %v1168 = vsub.f32 %v1166, %v1167
    %v1169 = vadd.f32 %v1168, 1e-05
    %v1170 = vrsqrt.pop %v1169
    %v1171 = vmul.f32 %v1170, %v1169
    %v1172 = vmul.f32 %v1171, %v1170
    %v1173 = vmul.f32 0.5, %v1172
    %v1174 = vsub.f32 1.5, %v1173
    %v1175 = vmul.f32 %v1170, %v1174
    %vm1176 = vweird.f32 %v1169
    %vm1177 = vweird.f32 %v1170
    %vm1178 = vmor %vm1176, %vm1177
    %v1179 = vsel %vm1178, %v1170, %v1175
    %v1180 = vld [vmem:[#allocation6] sm:$0xff]
    %v1181 = vld [vmem:[#allocation6 + $0x8] sm:$0xff]
    %v1182 = vld [vmem:[#allocation6 + $0x10] sm:$0xff]
    %v1183 = vld [vmem:[#allocation6 + $0x18] sm:$0xff]
    %v1185 = vsel %vm979, %v1165, 0
    %1187 = vmatpush.msra.mxu0 0.0
    %1188 = vmatpush.msra.mxu0 0.0
    %1189 = vmatpush.msra.mxu0 0.0
    %1190 = vmatpush.msra.mxu0 0.0
    %1191 = vmatpush.msra.mxu0 0.0
    %1192 = vmatpush.msra.mxu0 0.0
    %1193 = vmatpush.msra.mxu0 0.0
    %1194 = vmatpush.msra.mxu0 0.0
    %1195 = vmatpush.msra.mxu0 0.0
    %1196 = vmatpush.msra.mxu0 0.0
    %1197 = vmatpush.msra.mxu0 0.0
    %1198 = vmatpush.msra.mxu0 0.0
    %1199 = vmatpush.msra.mxu0 0.0
    %1200 = vmatpush.msra.mxu0 0.0
    %1201 = vmatpush.msra.mxu0 0.0
    %1202 = vmatpush.msra.mxu0 %v1180
    %1203 = vmatmul.f32.gmra.mxu0 %v1185
    %v1204 = vpop.f32.mrf.mxu0
    %v1205 = vadd.f32 0.0, %v1204
    %1206 = vdwg.mxu0
    %1207 = vmatpush.msra.mxu0 0.0
    %1208 = vmatpush.msra.mxu0 0.0
    %1209 = vmatpush.msra.mxu0 0.0
    %1210 = vmatpush.msra.mxu0 0.0
    %1211 = vmatpush.msra.mxu0 0.0
    %1212 = vmatpush.msra.mxu0 0.0
    %1213 = vmatpush.msra.mxu0 0.0
    %1214 = vmatpush.msra.mxu0 0.0
    %1215 = vmatpush.msra.mxu0 0.0
    %1216 = vmatpush.msra.mxu0 0.0
    %1217 = vmatpush.msra.mxu0 0.0
    %1218 = vmatpush.msra.mxu0 0.0
    %1219 = vmatpush.msra.mxu0 0.0
    %1220 = vmatpush.msra.mxu0 0.0
    %1221 = vmatpush.msra.mxu0 0.0
    %1222 = vmatpush.msra.mxu0 %v1181
    %1223 = vmatmul.f32.gmra.mxu0 %v1185
    %v1224 = vpop.f32.mrf.mxu0
    %v1225 = vadd.f32 0.0, %v1224
    %1226 = vdwg.mxu0
    %1227 = vmatpush.msra.mxu0 0.0
    %1228 = vmatpush.msra.mxu0 0.0
    %1229 = vmatpush.msra.mxu0 0.0
    %1230 = vmatpush.msra.mxu0 0.0
    %1231 = vmatpush.msra.mxu0 0.0
    %1232 = vmatpush.msra.mxu0 0.0
    %1233 = vmatpush.msra.mxu0 0.0
    %1234 = vmatpush.msra.mxu0 0.0
    %1235 = vmatpush.msra.mxu0 0.0
    %1236 = vmatpush.msra.mxu0 0.0
    %1237 = vmatpush.msra.mxu0 0.0
    %1238 = vmatpush.msra.mxu0 0.0
    %1239 = vmatpush.msra.mxu0 0.0
    %1240 = vmatpush.msra.mxu0 0.0
    %1241 = vmatpush.msra.mxu0 0.0
    %1242 = vmatpush.msra.mxu0 %v1182
    %1243 = vmatmul.f32.gmra.mxu0 %v1185
    %v1244 = vpop.f32.mrf.mxu0
    %v1245 = vadd.f32 0.0, %v1244
    %1246 = vdwg.mxu0
    %1247 = vmatpush.msra.mxu0 0.0
    %1248 = vmatpush.msra.mxu0 0.0
    %1249 = vmatpush.msra.mxu0 0.0
    %1250 = vmatpush.msra.mxu0 0.0
    %1251 = vmatpush.msra.mxu0 0.0
    %1252 = vmatpush.msra.mxu0 0.0
    %1253 = vmatpush.msra.mxu0 0.0
    %1254 = vmatpush.msra.mxu0 0.0
    %1255 = vmatpush.msra.mxu0 0.0
    %1256 = vmatpush.msra.mxu0 0.0
    %1257 = vmatpush.msra.mxu0 0.0
    %1258 = vmatpush.msra.mxu0 0.0
    %1259 = vmatpush.msra.mxu0 0.0
    %1260 = vmatpush.msra.mxu0 0.0
    %1261 = vmatpush.msra.mxu0 0.0
    %1262 = vmatpush.msra.mxu0 %v1183
    %1263 = vmatmul.f32.gmra.mxu0 %v1185
    %v1264 = vpop.f32.mrf.mxu0
    %v1265 = vadd.f32 0.0, %v1264
    %1266 = vdwg.mxu0
    %v1268 = vsel %vm979, %v1179, 0
    %1270 = vmatpush.msra.mxu0 0.0
    %1271 = vmatpush.msra.mxu0 0.0
    %1272 = vmatpush.msra.mxu0 0.0
    %1273 = vmatpush.msra.mxu0 0.0
    %1274 = vmatpush.msra.mxu0 0.0
    %1275 = vmatpush.msra.mxu0 0.0
    %1276 = vmatpush.msra.mxu0 0.0
    %1277 = vmatpush.msra.mxu0 0.0
    %1278 = vmatpush.msra.mxu0 0.0
    %1279 = vmatpush.msra.mxu0 0.0
    %1280 = vmatpush.msra.mxu0 0.0
    %1281 = vmatpush.msra.mxu0 0.0
    %1282 = vmatpush.msra.mxu0 0.0
    %1283 = vmatpush.msra.mxu0 0.0
    %1284 = vmatpush.msra.mxu0 0.0
    %1285 = vmatpush.msra.mxu0 %v1180
    %1286 = vmatmul.f32.gmra.mxu0 %v1268
    %v1287 = vpop.f32.mrf.mxu0
    %v1288 = vadd.f32 0.0, %v1287
    %1289 = vdwg.mxu0
    %1290 = vmatpush.msra.mxu0 0.0
    %1291 = vmatpush.msra.mxu0 0.0
    %1292 = vmatpush.msra.mxu0 0.0
    %1293 = vmatpush.msra.mxu0 0.0
    %1294 = vmatpush.msra.mxu0 0.0
    %1295 = vmatpush.msra.mxu0 0.0
    %1296 = vmatpush.msra.mxu0 0.0
    %1297 = vmatpush.msra.mxu0 0.0
    %1298 = vmatpush.msra.mxu0 0.0
    %1299 = vmatpush.msra.mxu0 0.0
    %1300 = vmatpush.msra.mxu0 0.0
    %1301 = vmatpush.msra.mxu0 0.0
    %1302 = vmatpush.msra.mxu0 0.0
    %1303 = vmatpush.msra.mxu0 0.0
    %1304 = vmatpush.msra.mxu0 0.0
    %1305 = vmatpush.msra.mxu0 %v1181
    %1306 = vmatmul.f32.gmra.mxu0 %v1268
    %v1307 = vpop.f32.mrf.mxu0
    %v1308 = vadd.f32 0.0, %v1307
    %1309 = vdwg.mxu0
    %1310 = vmatpush.msra.mxu0 0.0
    %1311 = vmatpush.msra.mxu0 0.0
    %1312 = vmatpush.msra.mxu0 0.0
    %1313 = vmatpush.msra.mxu0 0.0
    %1314 = vmatpush.msra.mxu0 0.0
    %1315 = vmatpush.msra.mxu0 0.0
    %1316 = vmatpush.msra.mxu0 0.0
    %1317 = vmatpush.msra.mxu0 0.0
    %1318 = vmatpush.msra.mxu0 0.0
    %1319 = vmatpush.msra.mxu0 0.0
    %1320 = vmatpush.msra.mxu0 0.0
    %1321 = vmatpush.msra.mxu0 0.0
    %1322 = vmatpush.msra.mxu0 0.0
    %1323 = vmatpush.msra.mxu0 0.0
    %1324 = vmatpush.msra.mxu0 0.0
    %1325 = vmatpush.msra.mxu0 %v1182
    %1326 = vmatmul.f32.gmra.mxu0 %v1268
    %v1327 = vpop.f32.mrf.mxu0
    %v1328 = vadd.f32 0.0, %v1327
    %1329 = vdwg.mxu0
    %1330 = vmatpush.msra.mxu0 0.0
    %1331 = vmatpush.msra.mxu0 0.0
    %1332 = vmatpush.msra.mxu0 0.0
    %1333 = vmatpush.msra.mxu0 0.0
    %1334 = vmatpush.msra.mxu0 0.0
    %1335 = vmatpush.msra.mxu0 0.0
    %1336 = vmatpush.msra.mxu0 0.0
    %1337 = vmatpush.msra.mxu0 0.0
    %1338 = vmatpush.msra.mxu0 0.0
    %1339 = vmatpush.msra.mxu0 0.0
    %1340 = vmatpush.msra.mxu0 0.0
    %1341 = vmatpush.msra.mxu0 0.0
    %1342 = vmatpush.msra.mxu0 0.0
    %1343 = vmatpush.msra.mxu0 0.0
    %1344 = vmatpush.msra.mxu0 0.0
    %1345 = vmatpush.msra.mxu0 %v1183
    %1346 = vmatmul.f32.gmra.mxu0 %v1268
    %v1347 = vpop.f32.mrf.mxu0
    %v1348 = vadd.f32 0.0, %v1347
    %1349 = vdwg.mxu0
    %v1350 = vperm.slane %v1205, 0
    %v1351 = vperm.slane %v1225, 0
    %v1352 = vperm.slane %v1245, 0
    %v1353 = vperm.slane %v1265, 0
    %v1354 = vsub.f32 %v849, %v1350
    %v1355 = vsub.f32 %v875, %v1351
    %v1356 = vsub.f32 %v901, %v1352
    %v1357 = vsub.f32 %v927, %v1353
    %v1358 = vperm.slane %v1288, 0
    %v1359 = vperm.slane %v1308, 0
    %v1360 = vperm.slane %v1328, 0
    %v1361 = vperm.slane %v1348, 0
    %v1362 = vmul.f32 %v1354, %v1358
    %v1363 = vmul.f32 %v1355, %v1359
    %v1364 = vmul.f32 %v1356, %v1360
    %v1365 = vmul.f32 %v1357, %v1361
    %vm1366 = vcmp.gt.f32.partialorder %v1362, 0.0
    %vm1367 = vcmp.gt.f32.partialorder %v1363, 0.0
    %vm1368 = vcmp.gt.f32.partialorder %v1364, 0.0
    %vm1369 = vcmp.gt.f32.partialorder %v1365, 0.0
    %v1370 = vmul.f32 %v1362, 0.2
    %v1371 = vmul.f32 %v1363, 0.2
    %v1372 = vmul.f32 %v1364, 0.2
    %v1373 = vmul.f32 %v1365, 0.2
    %v1374 = vsel %vm1366, %v1362, %v1370
    %v1375 = vsel %vm1367, %v1363, %v1371
    %v1376 = vsel %vm1368, %v1364, %v1372
    %v1377 = vsel %vm1369, %v1365, %v1373
    %v1378 = vpack.c.bf16 %v1374, %v1374
    %v1379 = vpack.c.bf16 %v1375, %v1375
    %v1380 = vpack.c.bf16 %v1376, %v1376
    %v1381 = vpack.c.bf16 %v1377, %v1377
    %v1382 = vld [vmem:[#allocation7] sm:$0xff]
    %v1383 = vld [vmem:[#allocation7 + $0x8] sm:$0xff]
    %v1384 = vld [vmem:[#allocation7 + $0x10] sm:$0xff]
    %v1385 = vld [vmem:[#allocation7 + $0x18] sm:$0xf]
    %v1386 = vld [vmem:[#allocation7 + $0x1c] sm:$0xff]
    %v1387 = vld [vmem:[#allocation7 + $0x24] sm:$0xff]
    %v1388 = vld [vmem:[#allocation7 + $0x2c] sm:$0xff]
    %v1389 = vld [vmem:[#allocation7 + $0x34] sm:$0xf]
    %v1390 = vld [vmem:[#allocation7 + $0x38] sm:$0xff]
    %v1391 = vld [vmem:[#allocation7 + $0x40] sm:$0xff]
    %v1392 = vld [vmem:[#allocation7 + $0x48] sm:$0xff]
    %v1393 = vld [vmem:[#allocation7 + $0x50] sm:$0xf]
    %v1394 = vld [vmem:[#allocation7 + $0x54] sm:$0xff]
    %v1395 = vld [vmem:[#allocation7 + $0x5c] sm:$0xff]
    %v1396 = vld [vmem:[#allocation7 + $0x64] sm:$0xff]
    %v1397 = vld [vmem:[#allocation7 + $0x6c] sm:$0xf]
    %v1398 = vld [vmem:[#allocation7 + $0x70] sm:$0xff]
    %v1399 = vld [vmem:[#allocation7 + $0x78] sm:$0xff]
    %v1400 = vld [vmem:[#allocation7 + $0x80] sm:$0xff]
    %v1401 = vld [vmem:[#allocation7 + $0x88] sm:$0xf]
    %v1402 = vld [vmem:[#allocation7 + $0x8c] sm:$0xff]
    %v1403 = vld [vmem:[#allocation7 + $0x94] sm:$0xff]
    %v1404 = vld [vmem:[#allocation7 + $0x9c] sm:$0xff]
    %v1405 = vld [vmem:[#allocation7 + $0xa4] sm:$0xf]
    %v1406 = vld [vmem:[#allocation7 + $0xa8] sm:$0xff]
    %v1407 = vld [vmem:[#allocation7 + $0xb0] sm:$0xff]
    %v1408 = vld [vmem:[#allocation7 + $0xb8] sm:$0xff]
    %v1409 = vld [vmem:[#allocation7 + $0xc0] sm:$0xf]
    %v1410 = vld [vmem:[#allocation7 + $0xc4] sm:$0xff]
    %v1411 = vld [vmem:[#allocation7 + $0xcc] sm:$0xff]
    %v1412 = vld [vmem:[#allocation7 + $0xd4] sm:$0xff]
    %v1413 = vld [vmem:[#allocation7 + $0xdc] sm:$0xf]
    %v1414 = vld [vmem:[#allocation7 + $0xe0] sm:$0xff]
    %v1415 = vld [vmem:[#allocation7 + $0xe8] sm:$0xff]
    %v1416 = vld [vmem:[#allocation7 + $0xf0] sm:$0xff]
    %v1417 = vld [vmem:[#allocation7 + $0xf8] sm:$0xf]
    %v1418 = vld [vmem:[#allocation7 + $0xfc] sm:$0xff]
    %v1419 = vld [vmem:[#allocation7 + $0x104] sm:$0xff]
    %v1420 = vld [vmem:[#allocation7 + $0x10c] sm:$0xff]
    %v1421 = vld [vmem:[#allocation7 + $0x114] sm:$0xf]
    %v1422 = vld [vmem:[#allocation7 + $0x118] sm:$0xff]
    %v1423 = vld [vmem:[#allocation7 + $0x120] sm:$0xff]
    %v1424 = vld [vmem:[#allocation7 + $0x128] sm:$0xff]
    %v1425 = vld [vmem:[#allocation7 + $0x130] sm:$0xf]
    %v1426 = vld [vmem:[#allocation7 + $0x134] sm:$0xff]
    %v1427 = vld [vmem:[#allocation7 + $0x13c] sm:$0xff]
    %v1428 = vld [vmem:[#allocation7 + $0x144] sm:$0xff]
    %v1429 = vld [vmem:[#allocation7 + $0x14c] sm:$0xf]
    %v1430 = vld [vmem:[#allocation7 + $0x150] sm:$0xff]
    %v1431 = vld [vmem:[#allocation7 + $0x158] sm:$0xff]
    %v1432 = vld [vmem:[#allocation7 + $0x160] sm:$0xff]
    %v1433 = vld [vmem:[#allocation7 + $0x168] sm:$0xf]
    %v1434 = vld [vmem:[#allocation7 + $0x16c] sm:$0xff]
    %v1435 = vld [vmem:[#allocation7 + $0x174] sm:$0xff]
    %v1436 = vld [vmem:[#allocation7 + $0x17c] sm:$0xff]
    %v1437 = vld [vmem:[#allocation7 + $0x184] sm:$0xf]
    %v1438 = vld [vmem:[#allocation7 + $0x188] sm:$0xff]
    %v1439 = vld [vmem:[#allocation7 + $0x190] sm:$0xff]
    %v1440 = vld [vmem:[#allocation7 + $0x198] sm:$0xff]
    %v1441 = vld [vmem:[#allocation7 + $0x1a0] sm:$0xf]
    %v1442 = vld [vmem:[#allocation7 + $0x1a4] sm:$0xff]
    %v1443 = vld [vmem:[#allocation7 + $0x1ac] sm:$0xff]
    %v1444 = vld [vmem:[#allocation7 + $0x1b4] sm:$0xff]
    %v1445 = vld [vmem:[#allocation7 + $0x1bc] sm:$0xf]
    %v1446 = vld [vmem:[#allocation7 + $0x1c0] sm:$0xff]
    %v1447 = vld [vmem:[#allocation7 + $0x1c8] sm:$0xff]
    %v1448 = vld [vmem:[#allocation7 + $0x1d0] sm:$0xff]
    %v1449 = vld [vmem:[#allocation7 + $0x1d8] sm:$0xf]
    %v1450 = vld [vmem:[#allocation7 + $0x1dc] sm:$0xff]
    %v1451 = vld [vmem:[#allocation7 + $0x1e4] sm:$0xff]
    %v1452 = vld [vmem:[#allocation7 + $0x1ec] sm:$0xff]
    %v1453 = vld [vmem:[#allocation7 + $0x1f4] sm:$0xf]
    %v1454 = vld [vmem:[#allocation7 + $0x1f8] sm:$0xff]
    %v1455 = vld [vmem:[#allocation7 + $0x200] sm:$0xff]
    %v1456 = vld [vmem:[#allocation7 + $0x208] sm:$0xff]
    %v1457 = vld [vmem:[#allocation7 + $0x210] sm:$0xf]
    %v1458 = vld [vmem:[#allocation7 + $0x214] sm:$0xff]
    %v1459 = vld [vmem:[#allocation7 + $0x21c] sm:$0xff]
    %v1460 = vld [vmem:[#allocation7 + $0x224] sm:$0xff]
    %v1461 = vld [vmem:[#allocation7 + $0x22c] sm:$0xf]
    %v1462 = vld [vmem:[#allocation7 + $0x230] sm:$0xff]
    %v1463 = vld [vmem:[#allocation7 + $0x238] sm:$0xff]
    %v1464 = vld [vmem:[#allocation7 + $0x240] sm:$0xff]
    %v1465 = vld [vmem:[#allocation7 + $0x248] sm:$0xf]
    %v1466 = vld [vmem:[#allocation7 + $0x24c] sm:$0xff]
    %v1467 = vld [vmem:[#allocation7 + $0x254] sm:$0xff]
    %v1468 = vld [vmem:[#allocation7 + $0x25c] sm:$0xff]
    %v1469 = vld [vmem:[#allocation7 + $0x264] sm:$0xf]
    %v1470 = vld [vmem:[#allocation7 + $0x268] sm:$0xff]
    %v1471 = vld [vmem:[#allocation7 + $0x270] sm:$0xff]
    %v1472 = vld [vmem:[#allocation7 + $0x278] sm:$0xff]
    %v1473 = vld [vmem:[#allocation7 + $0x280] sm:$0xf]
    %v1474 = vld [vmem:[#allocation7 + $0x284] sm:$0xff]
    %v1475 = vld [vmem:[#allocation7 + $0x28c] sm:$0xff]
    %v1476 = vld [vmem:[#allocation7 + $0x294] sm:$0xff]
    %v1477 = vld [vmem:[#allocation7 + $0x29c] sm:$0xf]
    %v1478 = vld [vmem:[#allocation7 + $0x2a0] sm:$0xff]
    %v1479 = vld [vmem:[#allocation7 + $0x2a8] sm:$0xff]
    %v1480 = vld [vmem:[#allocation7 + $0x2b0] sm:$0xff]
    %v1481 = vld [vmem:[#allocation7 + $0x2b8] sm:$0xf]
    %v1482 = vld [vmem:[#allocation7 + $0x2bc] sm:$0xff]
    %v1483 = vld [vmem:[#allocation7 + $0x2c4] sm:$0xff]
    %v1484 = vld [vmem:[#allocation7 + $0x2cc] sm:$0xff]
    %v1485 = vld [vmem:[#allocation7 + $0x2d4] sm:$0xf]
    %v1486 = vld [vmem:[#allocation7 + $0x2d8] sm:$0xff]
    %v1487 = vld [vmem:[#allocation7 + $0x2e0] sm:$0xff]
    %v1488 = vld [vmem:[#allocation7 + $0x2e8] sm:$0xff]
    %v1489 = vld [vmem:[#allocation7 + $0x2f0] sm:$0xf]
    %v1490 = vld [vmem:[#allocation7 + $0x2f4] sm:$0xff]
    %v1491 = vld [vmem:[#allocation7 + $0x2fc] sm:$0xff]
    %v1492 = vld [vmem:[#allocation7 + $0x304] sm:$0xff]
    %v1493 = vld [vmem:[#allocation7 + $0x30c] sm:$0xf]
    %v1494 = vld [vmem:[#allocation7 + $0x310] sm:$0xff]
    %v1495 = vld [vmem:[#allocation7 + $0x318] sm:$0xff]
    %v1496 = vld [vmem:[#allocation7 + $0x320] sm:$0xff]
    %v1497 = vld [vmem:[#allocation7 + $0x328] sm:$0xf]
    %v1498 = vld [vmem:[#allocation7 + $0x32c] sm:$0xff]
    %v1499 = vld [vmem:[#allocation7 + $0x334] sm:$0xff]
    %v1500 = vld [vmem:[#allocation7 + $0x33c] sm:$0xff]
    %v1501 = vld [vmem:[#allocation7 + $0x344] sm:$0xf]
    %v1502 = vld [vmem:[#allocation7 + $0x348] sm:$0xff]
    %v1503 = vld [vmem:[#allocation7 + $0x350] sm:$0xff]
    %v1504 = vld [vmem:[#allocation7 + $0x358] sm:$0xff]
    %v1505 = vld [vmem:[#allocation7 + $0x360] sm:$0xf]
    %v1506 = vld [vmem:[#allocation7 + $0x364] sm:$0xff]
    %v1507 = vld [vmem:[#allocation7 + $0x36c] sm:$0xff]
    %v1508 = vld [vmem:[#allocation7 + $0x374] sm:$0xff]
    %v1509 = vld [vmem:[#allocation7 + $0x37c] sm:$0xf]
    %v1510 = vld [vmem:[#allocation7 + $0x380] sm:$0xff]
    %v1511 = vld [vmem:[#allocation7 + $0x388] sm:$0xff]
    %v1512 = vld [vmem:[#allocation7 + $0x390] sm:$0xff]
    %v1513 = vld [vmem:[#allocation7 + $0x398] sm:$0xf]
    %v1514 = vld [vmem:[#allocation7 + $0x39c] sm:$0xff]
    %v1515 = vld [vmem:[#allocation7 + $0x3a4] sm:$0xff]
    %v1516 = vld [vmem:[#allocation7 + $0x3ac] sm:$0xff]
    %v1517 = vld [vmem:[#allocation7 + $0x3b4] sm:$0xf]
    %v1518 = vld [vmem:[#allocation7 + $0x3b8] sm:$0xff]
    %v1519 = vld [vmem:[#allocation7 + $0x3c0] sm:$0xff]
    %v1520 = vld [vmem:[#allocation7 + $0x3c8] sm:$0xff]
    %v1521 = vld [vmem:[#allocation7 + $0x3d0] sm:$0xf]
    %v1522 = vld [vmem:[#allocation7 + $0x3d4] sm:$0xff]
    %v1523 = vld [vmem:[#allocation7 + $0x3dc] sm:$0xff]
    %v1524 = vld [vmem:[#allocation7 + $0x3e4] sm:$0xff]
    %v1525 = vld [vmem:[#allocation7 + $0x3ec] sm:$0xf]
    %v1526 = vld [vmem:[#allocation7 + $0x3f0] sm:$0xff]
    %v1527 = vld [vmem:[#allocation7 + $0x3f8] sm:$0xff]
    %v1528 = vld [vmem:[#allocation7 + $0x400] sm:$0xff]
    %v1529 = vld [vmem:[#allocation7 + $0x408] sm:$0xf]
    %v1530 = vld [vmem:[#allocation7 + $0x40c] sm:$0xff]
    %v1531 = vld [vmem:[#allocation7 + $0x414] sm:$0xff]
    %v1532 = vld [vmem:[#allocation7 + $0x41c] sm:$0xff]
    %v1533 = vld [vmem:[#allocation7 + $0x424] sm:$0xf]
    %v1534 = vld [vmem:[#allocation7 + $0x428] sm:$0xff]
    %v1535 = vld [vmem:[#allocation7 + $0x430] sm:$0xff]
    %v1536 = vld [vmem:[#allocation7 + $0x438] sm:$0xff]
    %v1537 = vld [vmem:[#allocation7 + $0x440] sm:$0xf]
    %v1538 = vld [vmem:[#allocation7 + $0x444] sm:$0xff]
    %v1539 = vld [vmem:[#allocation7 + $0x44c] sm:$0xff]
    %v1540 = vld [vmem:[#allocation7 + $0x454] sm:$0xff]
    %v1541 = vld [vmem:[#allocation7 + $0x45c] sm:$0xf]
    %v1542 = vld [vmem:[#allocation7 + $0x460] sm:$0xff]
    %v1543 = vld [vmem:[#allocation7 + $0x468] sm:$0xff]
    %v1544 = vld [vmem:[#allocation7 + $0x470] sm:$0xff]
    %v1545 = vld [vmem:[#allocation7 + $0x478] sm:$0xf]
    %v1546 = vld [vmem:[#allocation7 + $0x47c] sm:$0xff]
    %v1547 = vld [vmem:[#allocation7 + $0x484] sm:$0xff]
    %v1548 = vld [vmem:[#allocation7 + $0x48c] sm:$0xff]
    %v1549 = vld [vmem:[#allocation7 + $0x494] sm:$0xf]
    %v1550 = vld [vmem:[#allocation7 + $0x498] sm:$0xff]
    %v1551 = vld [vmem:[#allocation7 + $0x4a0] sm:$0xff]
    %v1552 = vld [vmem:[#allocation7 + $0x4a8] sm:$0xff]
    %v1553 = vld [vmem:[#allocation7 + $0x4b0] sm:$0xf]
    %v1554 = vld [vmem:[#allocation7 + $0x4b4] sm:$0xff]
    %v1555 = vld [vmem:[#allocation7 + $0x4bc] sm:$0xff]
    %v1556 = vld [vmem:[#allocation7 + $0x4c4] sm:$0xff]
    %v1557 = vld [vmem:[#allocation7 + $0x4cc] sm:$0xf]
    %v1558 = vld [vmem:[#allocation7 + $0x4d0] sm:$0xff]
    %v1559 = vld [vmem:[#allocation7 + $0x4d8] sm:$0xff]
    %v1560 = vld [vmem:[#allocation7 + $0x4e0] sm:$0xff]
    %v1561 = vld [vmem:[#allocation7 + $0x4e8] sm:$0xf]
    %v1562 = vld [vmem:[#allocation7 + $0x4ec] sm:$0xff]
    %v1563 = vld [vmem:[#allocation7 + $0x4f4] sm:$0xff]
    %v1564 = vld [vmem:[#allocation7 + $0x4fc] sm:$0xff]
    %v1565 = vld [vmem:[#allocation7 + $0x504] sm:$0xf]
    %v1566 = vld [vmem:[#allocation7 + $0x508] sm:$0xff]
    %v1567 = vld [vmem:[#allocation7 + $0x510] sm:$0xff]
    %v1568 = vld [vmem:[#allocation7 + $0x518] sm:$0xff]
    %v1569 = vld [vmem:[#allocation7 + $0x520] sm:$0xf]
    %v1570 = vld [vmem:[#allocation7 + $0x524] sm:$0xff]
    %v1571 = vld [vmem:[#allocation7 + $0x52c] sm:$0xff]
    %v1572 = vld [vmem:[#allocation7 + $0x534] sm:$0xff]
    %v1573 = vld [vmem:[#allocation7 + $0x53c] sm:$0xf]
    %v1574 = vld [vmem:[#allocation7 + $0x540] sm:$0xff]
    %v1575 = vld [vmem:[#allocation7 + $0x548] sm:$0xff]
    %v1576 = vld [vmem:[#allocation7 + $0x550] sm:$0xff]
    %v1577 = vld [vmem:[#allocation7 + $0x558] sm:$0xf]
    %v1774 = vunpack.c.l.b16 %v1382
    %v1775 = vunpack.c.h.b16 %v1382
    %v1776 = vunpack.c.l.b16 %v1383
    %v1777 = vunpack.c.h.b16 %v1383
    %v1778 = vunpack.c.l.b16 %v1384
    %v1779 = vunpack.c.h.b16 %v1384
    %v1780 = vunpack.c.l.b16 %v1385
    %v1781 = vunpack.c.l.b16 %v1386
    %v1782 = vunpack.c.h.b16 %v1386
    %v1783 = vunpack.c.l.b16 %v1387
    %v1784 = vunpack.c.h.b16 %v1387
    %v1785 = vunpack.c.l.b16 %v1388
    %v1786 = vunpack.c.h.b16 %v1388
    %v1787 = vunpack.c.l.b16 %v1389
    %v1788 = vunpack.c.l.b16 %v1390
    %v1789 = vunpack.c.h.b16 %v1390
    %v1790 = vunpack.c.l.b16 %v1391
    %v1791 = vunpack.c.h.b16 %v1391
    %v1792 = vunpack.c.l.b16 %v1392
    %v1793 = vunpack.c.h.b16 %v1392
    %v1794 = vunpack.c.l.b16 %v1393
    %v1795 = vunpack.c.l.b16 %v1394
    %v1796 = vunpack.c.h.b16 %v1394
    %v1797 = vunpack.c.l.b16 %v1395
    %v1798 = vunpack.c.h.b16 %v1395
    %v1799 = vunpack.c.l.b16 %v1396
    %v1800 = vunpack.c.h.b16 %v1396
    %v1801 = vunpack.c.l.b16 %v1397
    %v1802 = vunpack.c.l.b16 %v1398
    %v1803 = vunpack.c.h.b16 %v1398
    %v1804 = vunpack.c.l.b16 %v1399
    %v1805 = vunpack.c.h.b16 %v1399
    %v1806 = vunpack.c.l.b16 %v1400
    %v1807 = vunpack.c.h.b16 %v1400
    %v1808 = vunpack.c.l.b16 %v1401
    %v1809 = vunpack.c.l.b16 %v1402
    %v1810 = vunpack.c.h.b16 %v1402
    %v1811 = vunpack.c.l.b16 %v1403
    %v1812 = vunpack.c.h.b16 %v1403
    %v1813 = vunpack.c.l.b16 %v1404
    %v1814 = vunpack.c.h.b16 %v1404
    %v1815 = vunpack.c.l.b16 %v1405
    %v1816 = vunpack.c.l.b16 %v1406
    %v1817 = vunpack.c.h.b16 %v1406
    %v1818 = vunpack.c.l.b16 %v1407
    %v1819 = vunpack.c.h.b16 %v1407
    %v1820 = vunpack.c.l.b16 %v1408
    %v1821 = vunpack.c.h.b16 %v1408
    %v1822 = vunpack.c.l.b16 %v1409
    %v1823 = vunpack.c.l.b16 %v1410
    %v1824 = vunpack.c.h.b16 %v1410
    %v1825 = vunpack.c.l.b16 %v1411
    %v1826 = vunpack.c.h.b16 %v1411
    %v1827 = vunpack.c.l.b16 %v1412
    %v1828 = vunpack.c.h.b16 %v1412
    %v1829 = vunpack.c.l.b16 %v1413
    %v1830 = vunpack.c.l.b16 %v1414
    %v1831 = vunpack.c.h.b16 %v1414
    %v1832 = vunpack.c.l.b16 %v1415
    %v1833 = vunpack.c.h.b16 %v1415
    %v1834 = vunpack.c.l.b16 %v1416
    %v1835 = vunpack.c.h.b16 %v1416
    %v1836 = vunpack.c.l.b16 %v1417
    %v1837 = vunpack.c.l.b16 %v1418
    %v1838 = vunpack.c.h.b16 %v1418
    %v1839 = vunpack.c.l.b16 %v1419
    %v1840 = vunpack.c.h.b16 %v1419
    %v1841 = vunpack.c.l.b16 %v1420
    %v1842 = vunpack.c.h.b16 %v1420
    %v1843 = vunpack.c.l.b16 %v1421
    %v1844 = vunpack.c.l.b16 %v1422
    %v1845 = vunpack.c.h.b16 %v1422
    %v1846 = vunpack.c.l.b16 %v1423
    %v1847 = vunpack.c.h.b16 %v1423
    %v1848 = vunpack.c.l.b16 %v1424
    %v1849 = vunpack.c.h.b16 %v1424
    %v1850 = vunpack.c.l.b16 %v1425
    %v1851 = vunpack.c.l.b16 %v1426
    %v1852 = vunpack.c.h.b16 %v1426
    %v1853 = vunpack.c.l.b16 %v1427
    %v1854 = vunpack.c.h.b16 %v1427
    %v1855 = vunpack.c.l.b16 %v1428
    %v1856 = vunpack.c.h.b16 %v1428
    %v1857 = vunpack.c.l.b16 %v1429
    %v1858 = vunpack.c.l.b16 %v1430
    %v1859 = vunpack.c.h.b16 %v1430
    %v1860 = vunpack.c.l.b16 %v1431
    %v1861 = vunpack.c.h.b16 %v1431
    %v1862 = vunpack.c.l.b16 %v1432
    %v1863 = vunpack.c.h.b16 %v1432
    %v1864 = vunpack.c.l.b16 %v1433
    %v1865 = vunpack.c.l.b16 %v1434
    %v1866 = vunpack.c.h.b16 %v1434
    %v1867 = vunpack.c.l.b16 %v1435
    %v1868 = vunpack.c.h.b16 %v1435
    %v1869 = vunpack.c.l.b16 %v1436
    %v1870 = vunpack.c.h.b16 %v1436
    %v1871 = vunpack.c.l.b16 %v1437
    %v1872 = vunpack.c.l.b16 %v1438
    %v1873 = vunpack.c.h.b16 %v1438
    %v1874 = vunpack.c.l.b16 %v1439
    %v1875 = vunpack.c.h.b16 %v1439
    %v1876 = vunpack.c.l.b16 %v1440
    %v1877 = vunpack.c.h.b16 %v1440
    %v1878 = vunpack.c.l.b16 %v1441
    %v1879 = vunpack.c.l.b16 %v1442
    %v1880 = vunpack.c.h.b16 %v1442
    %v1881 = vunpack.c.l.b16 %v1443
    %v1882 = vunpack.c.h.b16 %v1443
    %v1883 = vunpack.c.l.b16 %v1444
    %v1884 = vunpack.c.h.b16 %v1444
    %v1885 = vunpack.c.l.b16 %v1445
    %v1886 = vunpack.c.l.b16 %v1446
    %v1887 = vunpack.c.h.b16 %v1446
    %v1888 = vunpack.c.l.b16 %v1447
    %v1889 = vunpack.c.h.b16 %v1447
    %v1890 = vunpack.c.l.b16 %v1448
    %v1891 = vunpack.c.h.b16 %v1448
    %v1892 = vunpack.c.l.b16 %v1449
    %v1893 = vunpack.c.l.b16 %v1450
    %v1894 = vunpack.c.h.b16 %v1450
    %v1895 = vunpack.c.l.b16 %v1451
    %v1896 = vunpack.c.h.b16 %v1451
    %v1897 = vunpack.c.l.b16 %v1452
    %v1898 = vunpack.c.h.b16 %v1452
    %v1899 = vunpack.c.l.b16 %v1453
    %v1900 = vunpack.c.l.b16 %v1454
    %v1901 = vunpack.c.h.b16 %v1454
    %v1902 = vunpack.c.l.b16 %v1455
    %v1903 = vunpack.c.h.b16 %v1455
    %v1904 = vunpack.c.l.b16 %v1456
    %v1905 = vunpack.c.h.b16 %v1456
    %v1906 = vunpack.c.l.b16 %v1457
    %v1907 = vunpack.c.l.b16 %v1458
    %v1908 = vunpack.c.h.b16 %v1458
    %v1909 = vunpack.c.l.b16 %v1459
    %v1910 = vunpack.c.h.b16 %v1459
    %v1911 = vunpack.c.l.b16 %v1460
    %v1912 = vunpack.c.h.b16 %v1460
    %v1913 = vunpack.c.l.b16 %v1461
    %v1914 = vunpack.c.l.b16 %v1462
    %v1915 = vunpack.c.h.b16 %v1462
    %v1916 = vunpack.c.l.b16 %v1463
    %v1917 = vunpack.c.h.b16 %v1463
    %v1918 = vunpack.c.l.b16 %v1464
    %v1919 = vunpack.c.h.b16 %v1464
    %v1920 = vunpack.c.l.b16 %v1465
    %v1921 = vunpack.c.l.b16 %v1466
    %v1922 = vunpack.c.h.b16 %v1466
    %v1923 = vunpack.c.l.b16 %v1467
    %v1924 = vunpack.c.h.b16 %v1467
    %v1925 = vunpack.c.l.b16 %v1468
    %v1926 = vunpack.c.h.b16 %v1468
    %v1927 = vunpack.c.l.b16 %v1469
    %v1928 = vunpack.c.l.b16 %v1470
    %v1929 = vunpack.c.h.b16 %v1470
    %v1930 = vunpack.c.l.b16 %v1471
    %v1931 = vunpack.c.h.b16 %v1471
    %v1932 = vunpack.c.l.b16 %v1472
    %v1933 = vunpack.c.h.b16 %v1472
    %v1934 = vunpack.c.l.b16 %v1473
    %v1935 = vunpack.c.l.b16 %v1474
    %v1936 = vunpack.c.h.b16 %v1474
    %v1937 = vunpack.c.l.b16 %v1475
    %v1938 = vunpack.c.h.b16 %v1475
    %v1939 = vunpack.c.l.b16 %v1476
    %v1940 = vunpack.c.h.b16 %v1476
    %v1941 = vunpack.c.l.b16 %v1477
    %v1942 = vunpack.c.l.b16 %v1478
    %v1943 = vunpack.c.h.b16 %v1478
    %v1944 = vunpack.c.l.b16 %v1479
    %v1945 = vunpack.c.h.b16 %v1479
    %v1946 = vunpack.c.l.b16 %v1480
    %v1947 = vunpack.c.h.b16 %v1480
    %v1948 = vunpack.c.l.b16 %v1481
    %v1949 = vunpack.c.l.b16 %v1482
    %v1950 = vunpack.c.h.b16 %v1482
    %v1951 = vunpack.c.l.b16 %v1483
    %v1952 = vunpack.c.h.b16 %v1483
    %v1953 = vunpack.c.l.b16 %v1484
    %v1954 = vunpack.c.h.b16 %v1484
    %v1955 = vunpack.c.l.b16 %v1485
    %v1956 = vunpack.c.l.b16 %v1486
    %v1957 = vunpack.c.h.b16 %v1486
    %v1958 = vunpack.c.l.b16 %v1487
    %v1959 = vunpack.c.h.b16 %v1487
    %v1960 = vunpack.c.l.b16 %v1488
    %v1961 = vunpack.c.h.b16 %v1488
    %v1962 = vunpack.c.l.b16 %v1489
    %v1963 = vunpack.c.l.b16 %v1490
    %v1964 = vunpack.c.h.b16 %v1490
    %v1965 = vunpack.c.l.b16 %v1491
    %v1966 = vunpack.c.h.b16 %v1491
    %v1967 = vunpack.c.l.b16 %v1492
    %v1968 = vunpack.c.h.b16 %v1492
    %v1969 = vunpack.c.l.b16 %v1493
    %v1970 = vunpack.c.l.b16 %v1494
    %v1971 = vunpack.c.h.b16 %v1494
    %v1972 = vunpack.c.l.b16 %v1495
    %v1973 = vunpack.c.h.b16 %v1495
    %v1974 = vunpack.c.l.b16 %v1496
    %v1975 = vunpack.c.h.b16 %v1496
    %v1976 = vunpack.c.l.b16 %v1497
    %v1977 = vunpack.c.l.b16 %v1498
    %v1978 = vunpack.c.h.b16 %v1498
    %v1979 = vunpack.c.l.b16 %v1499
    %v1980 = vunpack.c.h.b16 %v1499
    %v1981 = vunpack.c.l.b16 %v1500
    %v1982 = vunpack.c.h.b16 %v1500
    %v1983 = vunpack.c.l.b16 %v1501
    %v1984 = vunpack.c.l.b16 %v1502
    %v1985 = vunpack.c.h.b16 %v1502
    %v1986 = vunpack.c.l.b16 %v1503
    %v1987 = vunpack.c.h.b16 %v1503
    %v1988 = vunpack.c.l.b16 %v1504
    %v1989 = vunpack.c.h.b16 %v1504
    %v1990 = vunpack.c.l.b16 %v1505
    %v1991 = vunpack.c.l.b16 %v1506
    %v1992 = vunpack.c.h.b16 %v1506
    %v1993 = vunpack.c.l.b16 %v1507
    %v1994 = vunpack.c.h.b16 %v1507
    %v1995 = vunpack.c.l.b16 %v1508
    %v1996 = vunpack.c.h.b16 %v1508
    %v1997 = vunpack.c.l.b16 %v1509
    %v1998 = vunpack.c.l.b16 %v1510
    %v1999 = vunpack.c.h.b16 %v1510
    %v2000 = vunpack.c.l.b16 %v1511
    %v2001 = vunpack.c.h.b16 %v1511
    %v2002 = vunpack.c.l.b16 %v1512
    %v2003 = vunpack.c.h.b16 %v1512
    %v2004 = vunpack.c.l.b16 %v1513
    %v2005 = vunpack.c.l.b16 %v1514
    %v2006 = vunpack.c.h.b16 %v1514
    %v2007 = vunpack.c.l.b16 %v1515
    %v2008 = vunpack.c.h.b16 %v1515
    %v2009 = vunpack.c.l.b16 %v1516
    %v2010 = vunpack.c.h.b16 %v1516
    %v2011 = vunpack.c.l.b16 %v1517
    %v2012 = vunpack.c.l.b16 %v1518
    %v2013 = vunpack.c.h.b16 %v1518
    %v2014 = vunpack.c.l.b16 %v1519
    %v2015 = vunpack.c.h.b16 %v1519
    %v2016 = vunpack.c.l.b16 %v1520
    %v2017 = vunpack.c.h.b16 %v1520
    %v2018 = vunpack.c.l.b16 %v1521
    %v2019 = vunpack.c.l.b16 %v1522
    %v2020 = vunpack.c.h.b16 %v1522
    %v2021 = vunpack.c.l.b16 %v1523
    %v2022 = vunpack.c.h.b16 %v1523
    %v2023 = vunpack.c.l.b16 %v1524
    %v2024 = vunpack.c.h.b16 %v1524
    %v2025 = vunpack.c.l.b16 %v1525
    %v2026 = vunpack.c.l.b16 %v1526
    %v2027 = vunpack.c.h.b16 %v1526
    %v2028 = vunpack.c.l.b16 %v1527
    %v2029 = vunpack.c.h.b16 %v1527
    %v2030 = vunpack.c.l.b16 %v1528
    %v2031 = vunpack.c.h.b16 %v1528
    %v2032 = vunpack.c.l.b16 %v1529
    %v2033 = vunpack.c.l.b16 %v1530
    %v2034 = vunpack.c.h.b16 %v1530
    %v2035 = vunpack.c.l.b16 %v1531
    %v2036 = vunpack.c.h.b16 %v1531
    %v2037 = vunpack.c.l.b16 %v1532
    %v2038 = vunpack.c.h.b16 %v1532
    %v2039 = vunpack.c.l.b16 %v1533
    %v2040 = vunpack.c.l.b16 %v1534
    %v2041 = vunpack.c.h.b16 %v1534
    %v2042 = vunpack.c.l.b16 %v1535
    %v2043 = vunpack.c.h.b16 %v1535
    %v2044 = vunpack.c.l.b16 %v1536
    %v2045 = vunpack.c.h.b16 %v1536
    %v2046 = vunpack.c.l.b16 %v1537
    %v2047 = vunpack.c.l.b16 %v1538
    %v2048 = vunpack.c.h.b16 %v1538
    %v2049 = vunpack.c.l.b16 %v1539
    %v2050 = vunpack.c.h.b16 %v1539
    %v2051 = vunpack.c.l.b16 %v1540
    %v2052 = vunpack.c.h.b16 %v1540
    %v2053 = vunpack.c.l.b16 %v1541
    %v2054 = vunpack.c.l.b16 %v1542
    %v2055 = vunpack.c.h.b16 %v1542
    %v2056 = vunpack.c.l.b16 %v1543
    %v2057 = vunpack.c.h.b16 %v1543
    %v2058 = vunpack.c.l.b16 %v1544
    %v2059 = vunpack.c.h.b16 %v1544
    %v2060 = vunpack.c.l.b16 %v1545
    %v2061 = vunpack.c.l.b16 %v1546
    %v2062 = vunpack.c.h.b16 %v1546
    %v2063 = vunpack.c.l.b16 %v1547
    %v2064 = vunpack.c.h.b16 %v1547
    %v2065 = vunpack.c.l.b16 %v1548
    %v2066 = vunpack.c.h.b16 %v1548
    %v2067 = vunpack.c.l.b16 %v1549
    %v2068 = vunpack.c.l.b16 %v1550
    %v2069 = vunpack.c.h.b16 %v1550
    %v2070 = vunpack.c.l.b16 %v1551
    %v2071 = vunpack.c.h.b16 %v1551
    %v2072 = vunpack.c.l.b16 %v1552
    %v2073 = vunpack.c.h.b16 %v1552
    %v2074 = vunpack.c.l.b16 %v1553
    %v2075 = vunpack.c.l.b16 %v1554
    %v2076 = vunpack.c.h.b16 %v1554
    %v2077 = vunpack.c.l.b16 %v1555
    %v2078 = vunpack.c.h.b16 %v1555
    %v2079 = vunpack.c.l.b16 %v1556
    %v2080 = vunpack.c.h.b16 %v1556
    %v2081 = vunpack.c.l.b16 %v1557
    %v2082 = vunpack.c.l.b16 %v1558
    %v2083 = vunpack.c.h.b16 %v1558
    %v2084 = vunpack.c.l.b16 %v1559
    %v2085 = vunpack.c.h.b16 %v1559
    %v2086 = vunpack.c.l.b16 %v1560
    %v2087 = vunpack.c.h.b16 %v1560
    %v2088 = vunpack.c.l.b16 %v1561
    %v2089 = vunpack.c.l.b16 %v1562
    %v2090 = vunpack.c.h.b16 %v1562
    %v2091 = vunpack.c.l.b16 %v1563
    %v2092 = vunpack.c.h.b16 %v1563
    %v2093 = vunpack.c.l.b16 %v1564
    %v2094 = vunpack.c.h.b16 %v1564
    %v2095 = vunpack.c.l.b16 %v1565
    %v2096 = vunpack.c.l.b16 %v1566
    %v2097 = vunpack.c.h.b16 %v1566
    %v2098 = vunpack.c.l.b16 %v1567
    %v2099 = vunpack.c.h.b16 %v1567
    %v2100 = vunpack.c.l.b16 %v1568
    %v2101 = vunpack.c.h.b16 %v1568
    %v2102 = vunpack.c.l.b16 %v1569
    %v2103 = vunpack.c.l.b16 %v1570
    %v2104 = vunpack.c.h.b16 %v1570
    %v2105 = vunpack.c.l.b16 %v1571
    %v2106 = vunpack.c.h.b16 %v1571
    %v2107 = vunpack.c.l.b16 %v1572
    %v2108 = vunpack.c.h.b16 %v1572
    %v2109 = vunpack.c.l.b16 %v1573
    %v2110 = vunpack.c.l.b16 %v1574
    %v2111 = vunpack.c.h.b16 %v1574
    %v2112 = vunpack.c.l.b16 %v1575
    %v2113 = vunpack.c.h.b16 %v1575
    %v2114 = vunpack.c.l.b16 %v1576
    %v2115 = vunpack.c.h.b16 %v1576
    %v2116 = vunpack.c.l.b16 %v1577
    %v2117 = vpack.c.b16 %v1781, %v1774
    %v2118 = vpack.c.b16 %v1782, %v1775
    %v2119 = vpack.c.b16 %v1783, %v1776
    %v2120 = vpack.c.b16 %v1784, %v1777
    %v2121 = vpack.c.b16 %v1785, %v1778
    %v2122 = vpack.c.b16 %v1786, %v1779
    %v2123 = vpack.c.b16 %v1787, %v1780
    %v2124 = vpack.c.b16 %v1795, %v1788
    %v2125 = vpack.c.b16 %v1796, %v1789
    %v2126 = vpack.c.b16 %v1797, %v1790
    %v2127 = vpack.c.b16 %v1798, %v1791
    %v2128 = vpack.c.b16 %v1799, %v1792
    %v2129 = vpack.c.b16 %v1800, %v1793
    %v2130 = vpack.c.b16 %v1801, %v1794
    %v2131 = vpack.c.b16 %v1809, %v1802
    %v2132 = vpack.c.b16 %v1810, %v1803
    %v2133 = vpack.c.b16 %v1811, %v1804
    %v2134 = vpack.c.b16 %v1812, %v1805
    %v2135 = vpack.c.b16 %v1813, %v1806
    %v2136 = vpack.c.b16 %v1814, %v1807
    %v2137 = vpack.c.b16 %v1815, %v1808
    %v2138 = vpack.c.b16 %v1823, %v1816
    %v2139 = vpack.c.b16 %v1824, %v1817
    %v2140 = vpack.c.b16 %v1825, %v1818
    %v2141 = vpack.c.b16 %v1826, %v1819
    %v2142 = vpack.c.b16 %v1827, %v1820
    %v2143 = vpack.c.b16 %v1828, %v1821
    %v2144 = vpack.c.b16 %v1829, %v1822
    %v2145 = vpack.c.b16 %v1837, %v1830
    %v2146 = vpack.c.b16 %v1838, %v1831
    %v2147 = vpack.c.b16 %v1839, %v1832
    %v2148 = vpack.c.b16 %v1840, %v1833
    %v2149 = vpack.c.b16 %v1841, %v1834
    %v2150 = vpack.c.b16 %v1842, %v1835
    %v2151 = vpack.c.b16 %v1843, %v1836
    %v2152 = vpack.c.b16 %v1851, %v1844
    %v2153 = vpack.c.b16 %v1852, %v1845
    %v2154 = vpack.c.b16 %v1853, %v1846
    %v2155 = vpack.c.b16 %v1854, %v1847
    %v2156 = vpack.c.b16 %v1855, %v1848
    %v2157 = vpack.c.b16 %v1856, %v1849
    %v2158 = vpack.c.b16 %v1857, %v1850
    %v2159 = vpack.c.b16 %v1865, %v1858
    %v2160 = vpack.c.b16 %v1866, %v1859
    %v2161 = vpack.c.b16 %v1867, %v1860
    %v2162 = vpack.c.b16 %v1868, %v1861
    %v2163 = vpack.c.b16 %v1869, %v1862
    %v2164 = vpack.c.b16 %v1870, %v1863
    %v2165 = vpack.c.b16 %v1871, %v1864
    %v2166 = vpack.c.b16 %v1879, %v1872
    %v2167 = vpack.c.b16 %v1880, %v1873
    %v2168 = vpack.c.b16 %v1881, %v1874
    %v2169 = vpack.c.b16 %v1882, %v1875
    %v2170 = vpack.c.b16 %v1883, %v1876
    %v2171 = vpack.c.b16 %v1884, %v1877
    %v2172 = vpack.c.b16 %v1885, %v1878
    %v2173 = vpack.c.b16 %v1893, %v1886
    %v2174 = vpack.c.b16 %v1894, %v1887
    %v2175 = vpack.c.b16 %v1895, %v1888
    %v2176 = vpack.c.b16 %v1896, %v1889
    %v2177 = vpack.c.b16 %v1897, %v1890
    %v2178 = vpack.c.b16 %v1898, %v1891
    %v2179 = vpack.c.b16 %v1899, %v1892
    %v2180 = vpack.c.b16 %v1907, %v1900
    %v2181 = vpack.c.b16 %v1908, %v1901
    %v2182 = vpack.c.b16 %v1909, %v1902
    %v2183 = vpack.c.b16 %v1910, %v1903
    %v2184 = vpack.c.b16 %v1911, %v1904
    %v2185 = vpack.c.b16 %v1912, %v1905
    %v2186 = vpack.c.b16 %v1913, %v1906
    %v2187 = vpack.c.b16 %v1921, %v1914
    %v2188 = vpack.c.b16 %v1922, %v1915
    %v2189 = vpack.c.b16 %v1923, %v1916
    %v2190 = vpack.c.b16 %v1924, %v1917
    %v2191 = vpack.c.b16 %v1925, %v1918
    %v2192 = vpack.c.b16 %v1926, %v1919
    %v2193 = vpack.c.b16 %v1927, %v1920
    %v2194 = vpack.c.b16 %v1935, %v1928
    %v2195 = vpack.c.b16 %v1936, %v1929
    %v2196 = vpack.c.b16 %v1937, %v1930
    %v2197 = vpack.c.b16 %v1938, %v1931
    %v2198 = vpack.c.b16 %v1939, %v1932
    %v2199 = vpack.c.b16 %v1940, %v1933
    %v2200 = vpack.c.b16 %v1941, %v1934
    %v2201 = vpack.c.b16 %v1949, %v1942
    %v2202 = vpack.c.b16 %v1950, %v1943
    %v2203 = vpack.c.b16 %v1951, %v1944
    %v2204 = vpack.c.b16 %v1952, %v1945
    %v2205 = vpack.c.b16 %v1953, %v1946
    %v2206 = vpack.c.b16 %v1954, %v1947
    %v2207 = vpack.c.b16 %v1955, %v1948
    %v2208 = vpack.c.b16 %v1963, %v1956
    %v2209 = vpack.c.b16 %v1964, %v1957
    %v2210 = vpack.c.b16 %v1965, %v1958
    %v2211 = vpack.c.b16 %v1966, %v1959
    %v2212 = vpack.c.b16 %v1967, %v1960
    %v2213 = vpack.c.b16 %v1968, %v1961
    %v2214 = vpack.c.b16 %v1969, %v1962
    %v2215 = vpack.c.b16 %v1977, %v1970
    %v2216 = vpack.c.b16 %v1978, %v1971
    %v2217 = vpack.c.b16 %v1979, %v1972
    %v2218 = vpack.c.b16 %v1980, %v1973
    %v2219 = vpack.c.b16 %v1981, %v1974
    %v2220 = vpack.c.b16 %v1982, %v1975
    %v2221 = vpack.c.b16 %v1983, %v1976
    %v2222 = vpack.c.b16 %v1991, %v1984
    %v2223 = vpack.c.b16 %v1992, %v1985
    %v2224 = vpack.c.b16 %v1993, %v1986
    %v2225 = vpack.c.b16 %v1994, %v1987
    %v2226 = vpack.c.b16 %v1995, %v1988
    %v2227 = vpack.c.b16 %v1996, %v1989
    %v2228 = vpack.c.b16 %v1997, %v1990
    %v2229 = vpack.c.b16 %v2005, %v1998
    %v2230 = vpack.c.b16 %v2006, %v1999
    %v2231 = vpack.c.b16 %v2007, %v2000
    %v2232 = vpack.c.b16 %v2008, %v2001
    %v2233 = vpack.c.b16 %v2009, %v2002
    %v2234 = vpack.c.b16 %v2010, %v2003
    %v2235 = vpack.c.b16 %v2011, %v2004
    %v2236 = vpack.c.b16 %v2019, %v2012
    %v2237 = vpack.c.b16 %v2020, %v2013
    %v2238 = vpack.c.b16 %v2021, %v2014
    %v2239 = vpack.c.b16 %v2022, %v2015
    %v2240 = vpack.c.b16 %v2023, %v2016
    %v2241 = vpack.c.b16 %v2024, %v2017
    %v2242 = vpack.c.b16 %v2025, %v2018
    %v2243 = vpack.c.b16 %v2033, %v2026
    %v2244 = vpack.c.b16 %v2034, %v2027
    %v2245 = vpack.c.b16 %v2035, %v2028
    %v2246 = vpack.c.b16 %v2036, %v2029
    %v2247 = vpack.c.b16 %v2037, %v2030
    %v2248 = vpack.c.b16 %v2038, %v2031
    %v2249 = vpack.c.b16 %v2039, %v2032
    %v2250 = vpack.c.b16 %v2047, %v2040
    %v2251 = vpack.c.b16 %v2048, %v2041
    %v2252 = vpack.c.b16 %v2049, %v2042
    %v2253 = vpack.c.b16 %v2050, %v2043
    %v2254 = vpack.c.b16 %v2051, %v2044
    %v2255 = vpack.c.b16 %v2052, %v2045
    %v2256 = vpack.c.b16 %v2053, %v2046
    %v2257 = vpack.c.b16 %v2061, %v2054
    %v2258 = vpack.c.b16 %v2062, %v2055
    %v2259 = vpack.c.b16 %v2063, %v2056
    %v2260 = vpack.c.b16 %v2064, %v2057
    %v2261 = vpack.c.b16 %v2065, %v2058
    %v2262 = vpack.c.b16 %v2066, %v2059
    %v2263 = vpack.c.b16 %v2067, %v2060
    %v2264 = vpack.c.b16 %v2075, %v2068
    %v2265 = vpack.c.b16 %v2076, %v2069
    %v2266 = vpack.c.b16 %v2077, %v2070
    %v2267 = vpack.c.b16 %v2078, %v2071
    %v2268 = vpack.c.b16 %v2079, %v2072
    %v2269 = vpack.c.b16 %v2080, %v2073
    %v2270 = vpack.c.b16 %v2081, %v2074
    %v2271 = vpack.c.b16 %v2089, %v2082
    %v2272 = vpack.c.b16 %v2090, %v2083
    %v2273 = vpack.c.b16 %v2091, %v2084
    %v2274 = vpack.c.b16 %v2092, %v2085
    %v2275 = vpack.c.b16 %v2093, %v2086
    %v2276 = vpack.c.b16 %v2094, %v2087
    %v2277 = vpack.c.b16 %v2095, %v2088
    %v2278 = vpack.c.b16 %v2103, %v2096
    %v2279 = vpack.c.b16 %v2104, %v2097
    %v2280 = vpack.c.b16 %v2105, %v2098
    %v2281 = vpack.c.b16 %v2106, %v2099
    %v2282 = vpack.c.b16 %v2107, %v2100
    %v2283 = vpack.c.b16 %v2108, %v2101
    %v2284 = vpack.c.b16 %v2109, %v2102
    %v2285 = vpack.c.b16 %v2110, %v2110
    %v2286 = vpack.c.b16 %v2111, %v2111
    %v2287 = vpack.c.b16 %v2112, %v2112
    %v2288 = vpack.c.b16 %v2113, %v2113
    %v2289 = vpack.c.b16 %v2114, %v2114
    %v2290 = vpack.c.b16 %v2115, %v2115
    %v2291 = vpack.c.b16 %v2116, %v2116
    %v2461 = vsel %vm979, %v1381, 0
    %vm2463 = vcmask 1043456
    %v2465 = vsel %vm2463, %v2285, 0
    %v2468 = vsel %vm2463, %v2286, 0
    %v2471 = vsel %vm2463, %v2287, 0
    %v2474 = vsel %vm2463, %v2288, 0
    %v2477 = vsel %vm2463, %v2289, 0
    %v2480 = vsel %vm2463, %v2290, 0
    %v2483 = vsel %vm2463, %v2291, 0
    %2485 = vmatpush.bf16.msra.mxu0 %v2166
    %2486 = vmatpush.bf16.msra.mxu0 %v2159
    %2487 = vmatpush.bf16.msra.mxu0 %v2152
    %2488 = vmatpush.bf16.msra.mxu0 %v2145
    %2489 = vmatpush.bf16.msra.mxu0 %v2138
    %2490 = vmatpush.bf16.msra.mxu0 %v2131
    %2491 = vmatpush.bf16.msra.mxu0 %v2124
    %2492 = vmatpush.bf16.msra.mxu0 %v2117
    %2493 = vmatmul.bf16.gmra.mxu0 %v1378
    %v2494 = vpop.f32.mrf.mxu0
    %v2495 = vadd.f32 0.0, %v2494
    %v2496 = vpop.f32.mrf.mxu0
    %2497 = vdwg.mxu0
    %2498 = vmatpush.bf16.msra.mxu0 %v2222
    %2499 = vmatpush.bf16.msra.mxu0 %v2215
    %2500 = vmatpush.bf16.msra.mxu0 %v2208
    %2501 = vmatpush.bf16.msra.mxu0 %v2201
    %2502 = vmatpush.bf16.msra.mxu0 %v2194
    %2503 = vmatpush.bf16.msra.mxu0 %v2187
    %2504 = vmatpush.bf16.msra.mxu0 %v2180
    %2505 = vmatpush.bf16.msra.mxu0 %v2173
    %2506 = vmatmul.bf16.gmra.mxu0 %v1379
    %v2507 = vpop.f32.mrf.mxu0
    %v2508 = vadd.f32 %v2495, %v2507
    %v2509 = vpop.f32.mrf.mxu0
    %2510 = vdwg.mxu0
    %2511 = vmatpush.bf16.msra.mxu0 %v2278
    %2512 = vmatpush.bf16.msra.mxu0 %v2271
    %2513 = vmatpush.bf16.msra.mxu0 %v2264
    %2514 = vmatpush.bf16.msra.mxu0 %v2257
    %2515 = vmatpush.bf16.msra.mxu0 %v2250
    %2516 = vmatpush.bf16.msra.mxu0 %v2243
    %2517 = vmatpush.bf16.msra.mxu0 %v2236
    %2518 = vmatpush.bf16.msra.mxu0 %v2229
    %2519 = vmatmul.bf16.gmra.mxu0 %v1380
    %v2520 = vpop.f32.mrf.mxu0
    %v2521 = vadd.f32 %v2508, %v2520
    %v2522 = vpop.f32.mrf.mxu0
    %2523 = vdwg.mxu0
    %2524 = vmatpush.bf16.msra.mxu0 0
    %2525 = vmatpush.bf16.msra.mxu0 0
    %2526 = vmatpush.bf16.msra.mxu0 0
    %2527 = vmatpush.bf16.msra.mxu0 0
    %2528 = vmatpush.bf16.msra.mxu0 0
    %2529 = vmatpush.bf16.msra.mxu0 0
    %2530 = vmatpush.bf16.msra.mxu0 0
    %2531 = vmatpush.bf16.msra.mxu0 %v2465
    %2532 = vmatmul.bf16.gmra.mxu0 %v2461
    %v2533 = vpop.f32.mrf.mxu0
    %v2534 = vadd.f32 %v2521, %v2533
    %v2535 = vpop.f32.mrf.mxu0
    %2536 = vdwg.mxu0
    %2537 = vmatpush.bf16.msra.mxu0 %v2167
    %2538 = vmatpush.bf16.msra.mxu0 %v2160
    %2539 = vmatpush.bf16.msra.mxu0 %v2153
    %2540 = vmatpush.bf16.msra.mxu0 %v2146
    %2541 = vmatpush.bf16.msra.mxu0 %v2139
    %2542 = vmatpush.bf16.msra.mxu0 %v2132
    %2543 = vmatpush.bf16.msra.mxu0 %v2125
    %2544 = vmatpush.bf16.msra.mxu0 %v2118
    %2545 = vmatmul.bf16.gmra.mxu0 %v1378
    %v2546 = vpop.f32.mrf.mxu0
    %v2547 = vadd.f32 0.0, %v2546
    %v2548 = vpop.f32.mrf.mxu0
    %2549 = vdwg.mxu0
    %2550 = vmatpush.bf16.msra.mxu0 %v2223
    %2551 = vmatpush.bf16.msra.mxu0 %v2216
    %2552 = vmatpush.bf16.msra.mxu0 %v2209
    %2553 = vmatpush.bf16.msra.mxu0 %v2202
    %2554 = vmatpush.bf16.msra.mxu0 %v2195
    %2555 = vmatpush.bf16.msra.mxu0 %v2188
    %2556 = vmatpush.bf16.msra.mxu0 %v2181
    %2557 = vmatpush.bf16.msra.mxu0 %v2174
    %2558 = vmatmul.bf16.gmra.mxu0 %v1379
    %v2559 = vpop.f32.mrf.mxu0
    %v2560 = vadd.f32 %v2547, %v2559
    %v2561 = vpop.f32.mrf.mxu0
    %2562 = vdwg.mxu0
    %2563 = vmatpush.bf16.msra.mxu0 %v2279
    %2564 = vmatpush.bf16.msra.mxu0 %v2272
    %2565 = vmatpush.bf16.msra.mxu0 %v2265
    %2566 = vmatpush.bf16.msra.mxu0 %v2258
    %2567 = vmatpush.bf16.msra.mxu0 %v2251
    %2568 = vmatpush.bf16.msra.mxu0 %v2244
    %2569 = vmatpush.bf16.msra.mxu0 %v2237
    %2570 = vmatpush.bf16.msra.mxu0 %v2230
    %2571 = vmatmul.bf16.gmra.mxu0 %v1380
    %v2572 = vpop.f32.mrf.mxu0
    %v2573 = vadd.f32 %v2560, %v2572
    %v2574 = vpop.f32.mrf.mxu0
    %2575 = vdwg.mxu0
    %2576 = vmatpush.bf16.msra.mxu0 0
    %2577 = vmatpush.bf16.msra.mxu0 0
    %2578 = vmatpush.bf16.msra.mxu0 0
    %2579 = vmatpush.bf16.msra.mxu0 0
    %2580 = vmatpush.bf16.msra.mxu0 0
    %2581 = vmatpush.bf16.msra.mxu0 0
    %2582 = vmatpush.bf16.msra.mxu0 0
    %2583 = vmatpush.bf16.msra.mxu0 %v2468
    %2584 = vmatmul.bf16.gmra.mxu0 %v2461
    %v2585 = vpop.f32.mrf.mxu0
    %v2586 = vadd.f32 %v2573, %v2585
    %v2587 = vpop.f32.mrf.mxu0
    %2588 = vdwg.mxu0
    %2589 = vmatpush.bf16.msra.mxu0 %v2168
    %2590 = vmatpush.bf16.msra.mxu0 %v2161
    %2591 = vmatpush.bf16.msra.mxu0 %v2154
    %2592 = vmatpush.bf16.msra.mxu0 %v2147
    %2593 = vmatpush.bf16.msra.mxu0 %v2140
    %2594 = vmatpush.bf16.msra.mxu0 %v2133
    %2595 = vmatpush.bf16.msra.mxu0 %v2126
    %2596 = vmatpush.bf16.msra.mxu0 %v2119
    %2597 = vmatmul.bf16.gmra.mxu0 %v1378
    %v2598 = vpop.f32.mrf.mxu0
    %v2599 = vadd.f32 0.0, %v2598
    %v2600 = vpop.f32.mrf.mxu0
    %2601 = vdwg.mxu0
    %2602 = vmatpush.bf16.msra.mxu0 %v2224
    %2603 = vmatpush.bf16.msra.mxu0 %v2217
    %2604 = vmatpush.bf16.msra.mxu0 %v2210
    %2605 = vmatpush.bf16.msra.mxu0 %v2203
    %2606 = vmatpush.bf16.msra.mxu0 %v2196
    %2607 = vmatpush.bf16.msra.mxu0 %v2189
    %2608 = vmatpush.bf16.msra.mxu0 %v2182
    %2609 = vmatpush.bf16.msra.mxu0 %v2175
    %2610 = vmatmul.bf16.gmra.mxu0 %v1379
    %v2611 = vpop.f32.mrf.mxu0
    %v2612 = vadd.f32 %v2599, %v2611
    %v2613 = vpop.f32.mrf.mxu0
    %2614 = vdwg.mxu0
    %2615 = vmatpush.bf16.msra.mxu0 %v2280
    %2616 = vmatpush.bf16.msra.mxu0 %v2273
    %2617 = vmatpush.bf16.msra.mxu0 %v2266
    %2618 = vmatpush.bf16.msra.mxu0 %v2259
    %2619 = vmatpush.bf16.msra.mxu0 %v2252
    %2620 = vmatpush.bf16.msra.mxu0 %v2245
    %2621 = vmatpush.bf16.msra.mxu0 %v2238
    %2622 = vmatpush.bf16.msra.mxu0 %v2231
    %2623 = vmatmul.bf16.gmra.mxu0 %v1380
    %v2624 = vpop.f32.mrf.mxu0
    %v2625 = vadd.f32 %v2612, %v2624
    %v2626 = vpop.f32.mrf.mxu0
    %2627 = vdwg.mxu0
    %2628 = vmatpush.bf16.msra.mxu0 0
    %2629 = vmatpush.bf16.msra.mxu0 0
    %2630 = vmatpush.bf16.msra.mxu0 0
    %2631 = vmatpush.bf16.msra.mxu0 0
    %2632 = vmatpush.bf16.msra.mxu0 0
    %2633 = vmatpush.bf16.msra.mxu0 0
    %2634 = vmatpush.bf16.msra.mxu0 0
    %2635 = vmatpush.bf16.msra.mxu0 %v2471
    %2636 = vmatmul.bf16.gmra.mxu0 %v2461
    %v2637 = vpop.f32.mrf.mxu0
    %v2638 = vadd.f32 %v2625, %v2637
    %v2639 = vpop.f32.mrf.mxu0
    %2640 = vdwg.mxu0
    %2641 = vmatpush.bf16.msra.mxu0 %v2169
    %2642 = vmatpush.bf16.msra.mxu0 %v2162
    %2643 = vmatpush.bf16.msra.mxu0 %v2155
    %2644 = vmatpush.bf16.msra.mxu0 %v2148
    %2645 = vmatpush.bf16.msra.mxu0 %v2141
    %2646 = vmatpush.bf16.msra.mxu0 %v2134
    %2647 = vmatpush.bf16.msra.mxu0 %v2127
    %2648 = vmatpush.bf16.msra.mxu0 %v2120
    %2649 = vmatmul.bf16.gmra.mxu0 %v1378
    %v2650 = vpop.f32.mrf.mxu0
    %v2651 = vadd.f32 0.0, %v2650
    %v2652 = vpop.f32.mrf.mxu0
    %2653 = vdwg.mxu0
    %2654 = vmatpush.bf16.msra.mxu0 %v2225
    %2655 = vmatpush.bf16.msra.mxu0 %v2218
    %2656 = vmatpush.bf16.msra.mxu0 %v2211
    %2657 = vmatpush.bf16.msra.mxu0 %v2204
    %2658 = vmatpush.bf16.msra.mxu0 %v2197
    %2659 = vmatpush.bf16.msra.mxu0 %v2190
    %2660 = vmatpush.bf16.msra.mxu0 %v2183
    %2661 = vmatpush.bf16.msra.mxu0 %v2176
    %2662 = vmatmul.bf16.gmra.mxu0 %v1379
    %v2663 = vpop.f32.mrf.mxu0
    %v2664 = vadd.f32 %v2651, %v2663
    %v2665 = vpop.f32.mrf.mxu0
    %2666 = vdwg.mxu0
    %2667 = vmatpush.bf16.msra.mxu0 %v2281
    %2668 = vmatpush.bf16.msra.mxu0 %v2274
    %2669 = vmatpush.bf16.msra.mxu0 %v2267
    %2670 = vmatpush.bf16.msra.mxu0 %v2260
    %2671 = vmatpush.bf16.msra.mxu0 %v2253
    %2672 = vmatpush.bf16.msra.mxu0 %v2246
    %2673 = vmatpush.bf16.msra.mxu0 %v2239
    %2674 = vmatpush.bf16.msra.mxu0 %v2232
    %2675 = vmatmul.bf16.gmra.mxu0 %v1380
    %v2676 = vpop.f32.mrf.mxu0
    %v2677 = vadd.f32 %v2664, %v2676
    %v2678 = vpop.f32.mrf.mxu0
    %2679 = vdwg.mxu0
    %2680 = vmatpush.bf16.msra.mxu0 0
    %2681 = vmatpush.bf16.msra.mxu0 0
    %2682 = vmatpush.bf16.msra.mxu0 0
    %2683 = vmatpush.bf16.msra.mxu0 0
    %2684 = vmatpush.bf16.msra.mxu0 0
    %2685 = vmatpush.bf16.msra.mxu0 0
    %2686 = vmatpush.bf16.msra.mxu0 0
    %2687 = vmatpush.bf16.msra.mxu0 %v2474
    %2688 = vmatmul.bf16.gmra.mxu0 %v2461
    %v2689 = vpop.f32.mrf.mxu0
    %v2690 = vadd.f32 %v2677, %v2689
    %v2691 = vpop.f32.mrf.mxu0
    %2692 = vdwg.mxu0
    %2693 = vmatpush.bf16.msra.mxu0 %v2170
    %2694 = vmatpush.bf16.msra.mxu0 %v2163
    %2695 = vmatpush.bf16.msra.mxu0 %v2156
    %2696 = vmatpush.bf16.msra.mxu0 %v2149
    %2697 = vmatpush.bf16.msra.mxu0 %v2142
    %2698 = vmatpush.bf16.msra.mxu0 %v2135
    %2699 = vmatpush.bf16.msra.mxu0 %v2128
    %2700 = vmatpush.bf16.msra.mxu0 %v2121
    %2701 = vmatmul.bf16.gmra.mxu0 %v1378
    %v2702 = vpop.f32.mrf.mxu0
    %v2703 = vadd.f32 0.0, %v2702
    %v2704 = vpop.f32.mrf.mxu0
    %2705 = vdwg.mxu0
    %2706 = vmatpush.bf16.msra.mxu0 %v2226
    %2707 = vmatpush.bf16.msra.mxu0 %v2219
    %2708 = vmatpush.bf16.msra.mxu0 %v2212
    %2709 = vmatpush.bf16.msra.mxu0 %v2205
    %2710 = vmatpush.bf16.msra.mxu0 %v2198
    %2711 = vmatpush.bf16.msra.mxu0 %v2191
    %2712 = vmatpush.bf16.msra.mxu0 %v2184
    %2713 = vmatpush.bf16.msra.mxu0 %v2177
    %2714 = vmatmul.bf16.gmra.mxu0 %v1379
    %v2715 = vpop.f32.mrf.mxu0
    %v2716 = vadd.f32 %v2703, %v2715
    %v2717 = vpop.f32.mrf.mxu0
    %2718 = vdwg.mxu0
    %2719 = vmatpush.bf16.msra.mxu0 %v2282
    %2720 = vmatpush.bf16.msra.mxu0 %v2275
    %2721 = vmatpush.bf16.msra.mxu0 %v2268
    %2722 = vmatpush.bf16.msra.mxu0 %v2261
    %2723 = vmatpush.bf16.msra.mxu0 %v2254
    %2724 = vmatpush.bf16.msra.mxu0 %v2247
    %2725 = vmatpush.bf16.msra.mxu0 %v2240
    %2726 = vmatpush.bf16.msra.mxu0 %v2233
    %2727 = vmatmul.bf16.gmra.mxu0 %v1380
    %v2728 = vpop.f32.mrf.mxu0
    %v2729 = vadd.f32 %v2716, %v2728
    %v2730 = vpop.f32.mrf.mxu0
    %2731 = vdwg.mxu0
    %2732 = vmatpush.bf16.msra.mxu0 0
    %2733 = vmatpush.bf16.msra.mxu0 0
    %2734 = vmatpush.bf16.msra.mxu0 0
    %2735 = vmatpush.bf16.msra.mxu0 0
    %2736 = vmatpush.bf16.msra.mxu0 0
    %2737 = vmatpush.bf16.msra.mxu0 0
    %2738 = vmatpush.bf16.msra.mxu0 0
    %2739 = vmatpush.bf16.msra.mxu0 %v2477
    %2740 = vmatmul.bf16.gmra.mxu0 %v2461
    %v2741 = vpop.f32.mrf.mxu0
    %v2742 = vadd.f32 %v2729, %v2741
    %v2743 = vpop.f32.mrf.mxu0
    %2744 = vdwg.mxu0
    %2745 = vmatpush.bf16.msra.mxu0 %v2171
    %2746 = vmatpush.bf16.msra.mxu0 %v2164
    %2747 = vmatpush.bf16.msra.mxu0 %v2157
    %2748 = vmatpush.bf16.msra.mxu0 %v2150
    %2749 = vmatpush.bf16.msra.mxu0 %v2143
    %2750 = vmatpush.bf16.msra.mxu0 %v2136
    %2751 = vmatpush.bf16.msra.mxu0 %v2129
    %2752 = vmatpush.bf16.msra.mxu0 %v2122
    %2753 = vmatmul.bf16.gmra.mxu0 %v1378
    %v2754 = vpop.f32.mrf.mxu0
    %v2755 = vadd.f32 0.0, %v2754
    %v2756 = vpop.f32.mrf.mxu0
    %2757 = vdwg.mxu0
    %2758 = vmatpush.bf16.msra.mxu0 %v2227
    %2759 = vmatpush.bf16.msra.mxu0 %v2220
    %2760 = vmatpush.bf16.msra.mxu0 %v2213
    %2761 = vmatpush.bf16.msra.mxu0 %v2206
    %2762 = vmatpush.bf16.msra.mxu0 %v2199
    %2763 = vmatpush.bf16.msra.mxu0 %v2192
    %2764 = vmatpush.bf16.msra.mxu0 %v2185
    %2765 = vmatpush.bf16.msra.mxu0 %v2178
    %2766 = vmatmul.bf16.gmra.mxu0 %v1379
    %v2767 = vpop.f32.mrf.mxu0
    %v2768 = vadd.f32 %v2755, %v2767
    %v2769 = vpop.f32.mrf.mxu0
    %2770 = vdwg.mxu0
    %2771 = vmatpush.bf16.msra.mxu0 %v2283
    %2772 = vmatpush.bf16.msra.mxu0 %v2276
    %2773 = vmatpush.bf16.msra.mxu0 %v2269
    %2774 = vmatpush.bf16.msra.mxu0 %v2262
    %2775 = vmatpush.bf16.msra.mxu0 %v2255
    %2776 = vmatpush.bf16.msra.mxu0 %v2248
    %2777 = vmatpush.bf16.msra.mxu0 %v2241
    %2778 = vmatpush.bf16.msra.mxu0 %v2234
    %2779 = vmatmul.bf16.gmra.mxu0 %v1380
    %v2780 = vpop.f32.mrf.mxu0
    %v2781 = vadd.f32 %v2768, %v2780
    %v2782 = vpop.f32.mrf.mxu0
    %2783 = vdwg.mxu0
    %2784 = vmatpush.bf16.msra.mxu0 0
    %2785 = vmatpush.bf16.msra.mxu0 0
    %2786 = vmatpush.bf16.msra.mxu0 0
    %2787 = vmatpush.bf16.msra.mxu0 0
    %2788 = vmatpush.bf16.msra.mxu0 0
    %2789 = vmatpush.bf16.msra.mxu0 0
    %2790 = vmatpush.bf16.msra.mxu0 0
    %2791 = vmatpush.bf16.msra.mxu0 %v2480
    %2792 = vmatmul.bf16.gmra.mxu0 %v2461
    %v2793 = vpop.f32.mrf.mxu0
    %v2794 = vadd.f32 %v2781, %v2793
    %v2795 = vpop.f32.mrf.mxu0
    %2796 = vdwg.mxu0
    %2797 = vmatpush.bf16.msra.mxu0 %v2172
    %2798 = vmatpush.bf16.msra.mxu0 %v2165
    %2799 = vmatpush.bf16.msra.mxu0 %v2158
    %2800 = vmatpush.bf16.msra.mxu0 %v2151
    %2801 = vmatpush.bf16.msra.mxu0 %v2144
    %2802 = vmatpush.bf16.msra.mxu0 %v2137
    %2803 = vmatpush.bf16.msra.mxu0 %v2130
    %2804 = vmatpush.bf16.msra.mxu0 %v2123
    %2805 = vmatmul.bf16.gmra.mxu0 %v1378
    %v2806 = vpop.f32.mrf.mxu0
    %v2807 = vadd.f32 0.0, %v2806
    %v2808 = vpop.f32.mrf.mxu0
    %2809 = vdwg.mxu0
    %2810 = vmatpush.bf16.msra.mxu0 %v2228
    %2811 = vmatpush.bf16.msra.mxu0 %v2221
    %2812 = vmatpush.bf16.msra.mxu0 %v2214
    %2813 = vmatpush.bf16.msra.mxu0 %v2207
    %2814 = vmatpush.bf16.msra.mxu0 %v2200
    %2815 = vmatpush.bf16.msra.mxu0 %v2193
    %2816 = vmatpush.bf16.msra.mxu0 %v2186
    %2817 = vmatpush.bf16.msra.mxu0 %v2179
    %2818 = vmatmul.bf16.gmra.mxu0 %v1379
    %v2819 = vpop.f32.mrf.mxu0
    %v2820 = vadd.f32 %v2807, %v2819
    %v2821 = vpop.f32.mrf.mxu0
    %2822 = vdwg.mxu0
    %2823 = vmatpush.bf16.msra.mxu0 %v2284
    %2824 = vmatpush.bf16.msra.mxu0 %v2277
    %2825 = vmatpush.bf16.msra.mxu0 %v2270
    %2826 = vmatpush.bf16.msra.mxu0 %v2263
    %2827 = vmatpush.bf16.msra.mxu0 %v2256
    %2828 = vmatpush.bf16.msra.mxu0 %v2249
    %2829 = vmatpush.bf16.msra.mxu0 %v2242
    %2830 = vmatpush.bf16.msra.mxu0 %v2235
    %2831 = vmatmul.bf16.gmra.mxu0 %v1380
    %v2832 = vpop.f32.mrf.mxu0
    %v2833 = vadd.f32 %v2820, %v2832
    %v2834 = vpop.f32.mrf.mxu0
    %2835 = vdwg.mxu0
    %2836 = vmatpush.bf16.msra.mxu0 0
    %2837 = vmatpush.bf16.msra.mxu0 0
    %2838 = vmatpush.bf16.msra.mxu0 0
    %2839 = vmatpush.bf16.msra.mxu0 0
    %2840 = vmatpush.bf16.msra.mxu0 0
    %2841 = vmatpush.bf16.msra.mxu0 0
    %2842 = vmatpush.bf16.msra.mxu0 0
    %2843 = vmatpush.bf16.msra.mxu0 %v2483
    %2844 = vmatmul.bf16.gmra.mxu0 %v2461
    %v2845 = vpop.f32.mrf.mxu0
    %v2846 = vadd.f32 %v2833, %v2845
    %v2847 = vpop.f32.mrf.mxu0
    %2848 = vdwg.mxu0
    %v2849 = vld [vmem:[%s8] sm:$0xff]
    %v2850 = vld [vmem:[%s8 + $0x8] sm:$0xff]
    %v2851 = vld [vmem:[%s8 + $0x10] sm:$0xff]
    %v2852 = vld [vmem:[%s8 + $0x18] sm:$0xff]
    %v2853 = vld [vmem:[%s8 + $0x20] sm:$0xff]
    %v2854 = vld [vmem:[%s8 + $0x28] sm:$0xff]
    %v2855 = vld [vmem:[%s8 + $0x30] sm:$0xff]
    %v2856 = vld [vmem:[%s8 + $0x38] sm:$0xff]
    %v2857 = vld [vmem:[%s8 + $0x40] sm:$0xff]
    %v2858 = vld [vmem:[%s8 + $0x48] sm:$0xff]
    %v2859 = vld [vmem:[%s8 + $0x50] sm:$0xff]
    %v2860 = vld [vmem:[%s8 + $0x58] sm:$0xff]
    %v2861 = vld [vmem:[%s8 + $0x60] sm:$0xff]
    %v2862 = vld [vmem:[%s8 + $0x68] sm:$0xff]
    %v2863 = vld [vmem:[%s8 + $0x70] sm:$0xff]
    %v2864 = vld [vmem:[%s8 + $0x78] sm:$0xff]
    %v2865 = vld [vmem:[%s8 + $0x80] sm:$0xff]
    %v2866 = vld [vmem:[%s8 + $0x88] sm:$0xff]
    %v2867 = vld [vmem:[%s8 + $0x90] sm:$0xff]
    %v2868 = vld [vmem:[%s8 + $0x98] sm:$0xff]
    %v2869 = vld [vmem:[%s8 + $0xa0] sm:$0xff]
    %v2870 = vld [vmem:[%s8 + $0xa8] sm:$0xff]
    %v2871 = vld [vmem:[%s8 + $0xb0] sm:$0xff]
    %v2872 = vld [vmem:[%s8 + $0xb8] sm:$0xff]
    %v2873 = vld [vmem:[%s8 + $0xc0] sm:$0xff]
    %v2874 = vld [vmem:[%s8 + $0xc8] sm:$0xff]
    %v2875 = vld [vmem:[%s8 + $0xd0] sm:$0xff]
    %v2876 = vld [vmem:[%s8 + $0xd8] sm:$0xff]
    %v2877 = vld [vmem:[%s8 + $0xe0] sm:$0xff]
    %v2878 = vld [vmem:[%s8 + $0xe8] sm:$0xff]
    %v2879 = vld [vmem:[%s8 + $0xf0] sm:$0xff]
    %v2880 = vld [vmem:[%s8 + $0xf8] sm:$0xff]
    %v2881 = vld [vmem:[%s8 + $0x100] sm:$0xff]
    %v2882 = vld [vmem:[%s8 + $0x108] sm:$0xff]
    %v2883 = vld [vmem:[%s8 + $0x110] sm:$0xff]
    %v2884 = vld [vmem:[%s8 + $0x118] sm:$0xff]
    %v2885 = vld [vmem:[%s8 + $0x120] sm:$0xff]
    %v2886 = vld [vmem:[%s8 + $0x128] sm:$0xff]
    %v2887 = vld [vmem:[%s8 + $0x130] sm:$0xff]
    %v2888 = vld [vmem:[%s8 + $0x138] sm:$0xff]
    %v2889 = vld [vmem:[%s8 + $0x140] sm:$0xff]
    %v2890 = vld [vmem:[%s8 + $0x148] sm:$0xff]
    %v2891 = vld [vmem:[%s8 + $0x150] sm:$0xff]
    %v2892 = vld [vmem:[%s8 + $0x158] sm:$0xff]
    %v2893 = vld [vmem:[%s8 + $0x160] sm:$0xff]
    %v2894 = vld [vmem:[%s8 + $0x168] sm:$0xff]
    %v2895 = vld [vmem:[%s8 + $0x170] sm:$0xff]
    %v2896 = vld [vmem:[%s8 + $0x178] sm:$0xff]
    %v2897 = vld [vmem:[%s8 + $0x180] sm:$0xff]
    %v2898 = vld [vmem:[%s8 + $0x188] sm:$0xff]
    %v2899 = vld [vmem:[%s8 + $0x190] sm:$0xff]
    %v2900 = vld [vmem:[%s8 + $0x198] sm:$0xff]
    %v2901 = vld [vmem:[%s8 + $0x1a0] sm:$0xff]
    %v2902 = vld [vmem:[%s8 + $0x1a8] sm:$0xff]
    %v2903 = vld [vmem:[%s8 + $0x1b0] sm:$0xff]
    %v2904 = vld [vmem:[%s8 + $0x1b8] sm:$0xff]
    %v2905 = vld [vmem:[%s8 + $0x1c0] sm:$0xff]
    %v2906 = vld [vmem:[%s8 + $0x1c8] sm:$0xff]
    %v2907 = vld [vmem:[%s8 + $0x1d0] sm:$0xff]
    %v2908 = vld [vmem:[%s8 + $0x1d8] sm:$0xff]
    %v2909 = vld [vmem:[%s8 + $0x1e0] sm:$0xff]
    %v2910 = vld [vmem:[%s8 + $0x1e8] sm:$0xff]
    %v2911 = vld [vmem:[%s8 + $0x1f0] sm:$0xff]
    %v2912 = vld [vmem:[%s8 + $0x1f8] sm:$0xff]
    %v2913 = vld [vmem:[%s8 + $0x200] sm:$0xff]
    %v2914 = vld [vmem:[%s8 + $0x208] sm:$0xff]
    %v2915 = vld [vmem:[%s8 + $0x210] sm:$0xff]
    %v2916 = vld [vmem:[%s8 + $0x218] sm:$0xff]
    %v2917 = vld [vmem:[%s8 + $0x220] sm:$0xff]
    %v2918 = vld [vmem:[%s8 + $0x228] sm:$0xff]
    %v2919 = vld [vmem:[%s8 + $0x230] sm:$0xff]
    %v2920 = vld [vmem:[%s8 + $0x238] sm:$0xff]
    %v2921 = vld [vmem:[%s8 + $0x240] sm:$0xff]
    %v2922 = vld [vmem:[%s8 + $0x248] sm:$0xff]
    %v2923 = vld [vmem:[%s8 + $0x250] sm:$0xff]
    %v2924 = vld [vmem:[%s8 + $0x258] sm:$0xff]
    %v2925 = vld [vmem:[%s8 + $0x260] sm:$0xff]
    %v2926 = vld [vmem:[%s8 + $0x268] sm:$0xff]
    %v2927 = vld [vmem:[%s8 + $0x270] sm:$0xff]
    %v2928 = vld [vmem:[%s8 + $0x278] sm:$0xff]
    %v2929 = vld [vmem:[%s8 + $0x280] sm:$0xff]
    %v2930 = vld [vmem:[%s8 + $0x288] sm:$0xff]
    %v2931 = vld [vmem:[%s8 + $0x290] sm:$0xff]
    %v2932 = vld [vmem:[%s8 + $0x298] sm:$0xff]
    %v2933 = vld [vmem:[%s8 + $0x2a0] sm:$0xff]
    %v2934 = vld [vmem:[%s8 + $0x2a8] sm:$0xff]
    %v2935 = vld [vmem:[%s8 + $0x2b0] sm:$0xff]
    %v2936 = vld [vmem:[%s8 + $0x2b8] sm:$0xff]
    %v2937 = vld [vmem:[%s8 + $0x2c0] sm:$0xff]
    %v2938 = vld [vmem:[%s8 + $0x2c8] sm:$0xff]
    %v2939 = vld [vmem:[%s8 + $0x2d0] sm:$0xff]
    %v2940 = vld [vmem:[%s8 + $0x2d8] sm:$0xff]
    %v2941 = vld [vmem:[%s8 + $0x2e0] sm:$0xff]
    %v2942 = vld [vmem:[%s8 + $0x2e8] sm:$0xff]
    %v2943 = vld [vmem:[%s8 + $0x2f0] sm:$0xff]
    %v2944 = vld [vmem:[%s8 + $0x2f8] sm:$0xff]
    %v2945 = vld [vmem:[%s8 + $0x300] sm:$0xff]
    %v2946 = vld [vmem:[%s8 + $0x308] sm:$0xff]
    %v2948 = vsel %vm162, %v2846, 0
    %2950 = vmatpush.msra.mxu0 %v2864
    %2951 = vmatpush.msra.mxu0 %v2863
    %2952 = vmatpush.msra.mxu0 %v2862
    %2953 = vmatpush.msra.mxu0 %v2861
    %2954 = vmatpush.msra.mxu0 %v2860
    %2955 = vmatpush.msra.mxu0 %v2859
    %2956 = vmatpush.msra.mxu0 %v2858
    %2957 = vmatpush.msra.mxu0 %v2857
    %2958 = vmatpush.msra.mxu0 %v2856
    %2959 = vmatpush.msra.mxu0 %v2855
    %2960 = vmatpush.msra.mxu0 %v2854
    %2961 = vmatpush.msra.mxu0 %v2853
    %2962 = vmatpush.msra.mxu0 %v2852
    %2963 = vmatpush.msra.mxu0 %v2851
    %2964 = vmatpush.msra.mxu0 %v2850
    %2965 = vmatpush.msra.mxu0 %v2849
    %2966 = vmatmul.f32.gmra.mxu0 %v2534
    %v2967 = vpop.f32.mrf.mxu0
    %v2968 = vadd.f32 0.0, %v2967
    %2969 = vdwg.mxu0
    %2970 = vmatpush.msra.mxu0 %v2880
    %2971 = vmatpush.msra.mxu0 %v2879
    %2972 = vmatpush.msra.mxu0 %v2878
    %2973 = vmatpush.msra.mxu0 %v2877
    %2974 = vmatpush.msra.mxu0 %v2876
    %2975 = vmatpush.msra.mxu0 %v2875
    %2976 = vmatpush.msra.mxu0 %v2874
    %2977 = vmatpush.msra.mxu0 %v2873
    %2978 = vmatpush.msra.mxu0 %v2872
    %2979 = vmatpush.msra.mxu0 %v2871
    %2980 = vmatpush.msra.mxu0 %v2870
    %2981 = vmatpush.msra.mxu0 %v2869
    %2982 = vmatpush.msra.mxu0 %v2868
    %2983 = vmatpush.msra.mxu0 %v2867
    %2984 = vmatpush.msra.mxu0 %v2866
    %2985 = vmatpush.msra.mxu0 %v2865
    %2986 = vmatmul.f32.gmra.mxu0 %v2586
    %v2987 = vpop.f32.mrf.mxu0
    %v2988 = vadd.f32 %v2968, %v2987
    %2989 = vdwg.mxu0
    %2990 = vmatpush.msra.mxu0 %v2896
    %2991 = vmatpush.msra.mxu0 %v2895
    %2992 = vmatpush.msra.mxu0 %v2894
    %2993 = vmatpush.msra.mxu0 %v2893
    %2994 = vmatpush.msra.mxu0 %v2892
    %2995 = vmatpush.msra.mxu0 %v2891
    %2996 = vmatpush.msra.mxu0 %v2890
    %2997 = vmatpush.msra.mxu0 %v2889
    %2998 = vmatpush.msra.mxu0 %v2888
    %2999 = vmatpush.msra.mxu0 %v2887
    %3000 = vmatpush.msra.mxu0 %v2886
    %3001 = vmatpush.msra.mxu0 %v2885
    %3002 = vmatpush.msra.mxu0 %v2884
    %3003 = vmatpush.msra.mxu0 %v2883
    %3004 = vmatpush.msra.mxu0 %v2882
    %3005 = vmatpush.msra.mxu0 %v2881
    %3006 = vmatmul.f32.gmra.mxu0 %v2638
    %v3007 = vpop.f32.mrf.mxu0
    %v3008 = vadd.f32 %v2988, %v3007
    %3009 = vdwg.mxu0
    %3010 = vmatpush.msra.mxu0 %v2912
    %3011 = vmatpush.msra.mxu0 %v2911
    %3012 = vmatpush.msra.mxu0 %v2910
    %3013 = vmatpush.msra.mxu0 %v2909
    %3014 = vmatpush.msra.mxu0 %v2908
    %3015 = vmatpush.msra.mxu0 %v2907
    %3016 = vmatpush.msra.mxu0 %v2906
    %3017 = vmatpush.msra.mxu0 %v2905
    %3018 = vmatpush.msra.mxu0 %v2904
    %3019 = vmatpush.msra.mxu0 %v2903
    %3020 = vmatpush.msra.mxu0 %v2902
    %3021 = vmatpush.msra.mxu0 %v2901
    %3022 = vmatpush.msra.mxu0 %v2900
    %3023 = vmatpush.msra.mxu0 %v2899
    %3024 = vmatpush.msra.mxu0 %v2898
    %3025 = vmatpush.msra.mxu0 %v2897
    %3026 = vmatmul.f32.gmra.mxu0 %v2690
    %v3027 = vpop.f32.mrf.mxu0
    %v3028 = vadd.f32 %v3008, %v3027
    %3029 = vdwg.mxu0
    %3030 = vmatpush.msra.mxu0 %v2928
    %3031 = vmatpush.msra.mxu0 %v2927
    %3032 = vmatpush.msra.mxu0 %v2926
    %3033 = vmatpush.msra.mxu0 %v2925
    %3034 = vmatpush.msra.mxu0 %v2924
    %3035 = vmatpush.msra.mxu0 %v2923
    %3036 = vmatpush.msra.mxu0 %v2922
    %3037 = vmatpush.msra.mxu0 %v2921
    %3038 = vmatpush.msra.mxu0 %v2920
    %3039 = vmatpush.msra.mxu0 %v2919
    %3040 = vmatpush.msra.mxu0 %v2918
    %3041 = vmatpush.msra.mxu0 %v2917
    %3042 = vmatpush.msra.mxu0 %v2916
    %3043 = vmatpush.msra.mxu0 %v2915
    %3044 = vmatpush.msra.mxu0 %v2914
    %3045 = vmatpush.msra.mxu0 %v2913
    %3046 = vmatmul.f32.gmra.mxu0 %v2742
    %v3047 = vpop.f32.mrf.mxu0
    %v3048 = vadd.f32 %v3028, %v3047
    %3049 = vdwg.mxu0
    %3050 = vmatpush.msra.mxu0 %v2944
    %3051 = vmatpush.msra.mxu0 %v2943
    %3052 = vmatpush.msra.mxu0 %v2942
    %3053 = vmatpush.msra.mxu0 %v2941
    %3054 = vmatpush.msra.mxu0 %v2940
    %3055 = vmatpush.msra.mxu0 %v2939
    %3056 = vmatpush.msra.mxu0 %v2938
    %3057 = vmatpush.msra.mxu0 %v2937
    %3058 = vmatpush.msra.mxu0 %v2936
    %3059 = vmatpush.msra.mxu0 %v2935
    %3060 = vmatpush.msra.mxu0 %v2934
    %3061 = vmatpush.msra.mxu0 %v2933
    %3062 = vmatpush.msra.mxu0 %v2932
    %3063 = vmatpush.msra.mxu0 %v2931
    %3064 = vmatpush.msra.mxu0 %v2930
    %3065 = vmatpush.msra.mxu0 %v2929
    %3066 = vmatmul.f32.gmra.mxu0 %v2794
    %v3067 = vpop.f32.mrf.mxu0
    %v3068 = vadd.f32 %v3048, %v3067
    %3069 = vdwg.mxu0
    %3070 = vmatpush.msra.mxu0 0.0
    %3071 = vmatpush.msra.mxu0 0.0
    %3072 = vmatpush.msra.mxu0 0.0
    %3073 = vmatpush.msra.mxu0 0.0
    %3074 = vmatpush.msra.mxu0 0.0
    %3075 = vmatpush.msra.mxu0 0.0
    %3076 = vmatpush.msra.mxu0 0.0
    %3077 = vmatpush.msra.mxu0 0.0
    %3078 = vmatpush.msra.mxu0 0.0
    %3079 = vmatpush.msra.mxu0 0.0
    %3080 = vmatpush.msra.mxu0 0.0
    %3081 = vmatpush.msra.mxu0 0.0
    %3082 = vmatpush.msra.mxu0 0.0
    %3083 = vmatpush.msra.mxu0 0.0
    %3084 = vmatpush.msra.mxu0 %v2946
    %3085 = vmatpush.msra.mxu0 %v2945
    %3086 = vmatmul.f32.gmra.mxu0 %v2948
    %v3087 = vpop.f32.mrf.mxu0
    %v3088 = vadd.f32 %v3068, %v3087
    %3089 = vdwg.mxu0
    %v3090 = vmul.f32 %v2534, %v2534
    %v3091 = vmul.f32 %v2586, %v2586
    %v3092 = vmul.f32 %v2638, %v2638
    %v3093 = vmul.f32 %v2690, %v2690
    %v3094 = vmul.f32 %v2742, %v2742
    %v3095 = vmul.f32 %v2794, %v2794
    %v3096 = vmul.f32 %v2846, %v2846
    %v3098 = vsel %vm162, %v3096, 0
    %3100 = vmatpush.msra.mxu0 %v2864
    %3101 = vmatpush.msra.mxu0 %v2863
    %3102 = vmatpush.msra.mxu0 %v2862
    %3103 = vmatpush.msra.mxu0 %v2861
    %3104 = vmatpush.msra.mxu0 %v2860
    %3105 = vmatpush.msra.mxu0 %v2859
    %3106 = vmatpush.msra.mxu0 %v2858
    %3107 = vmatpush.msra.mxu0 %v2857
    %3108 = vmatpush.msra.mxu0 %v2856
    %3109 = vmatpush.msra.mxu0 %v2855
    %3110 = vmatpush.msra.mxu0 %v2854
    %3111 = vmatpush.msra.mxu0 %v2853
    %3112 = vmatpush.msra.mxu0 %v2852
    %3113 = vmatpush.msra.mxu0 %v2851
    %3114 = vmatpush.msra.mxu0 %v2850
    %3115 = vmatpush.msra.mxu0 %v2849
    %3116 = vmatmul.f32.gmra.mxu0 %v3090
    %v3117 = vpop.f32.mrf.mxu0
    %v3118 = vadd.f32 0.0, %v3117
    %3119 = vdwg.mxu0
    %3120 = vmatpush.msra.mxu0 %v2880
    %3121 = vmatpush.msra.mxu0 %v2879
    %3122 = vmatpush.msra.mxu0 %v2878
    %3123 = vmatpush.msra.mxu0 %v2877
    %3124 = vmatpush.msra.mxu0 %v2876
    %3125 = vmatpush.msra.mxu0 %v2875
    %3126 = vmatpush.msra.mxu0 %v2874
    %3127 = vmatpush.msra.mxu0 %v2873
    %3128 = vmatpush.msra.mxu0 %v2872
    %3129 = vmatpush.msra.mxu0 %v2871
    %3130 = vmatpush.msra.mxu0 %v2870
    %3131 = vmatpush.msra.mxu0 %v2869
    %3132 = vmatpush.msra.mxu0 %v2868
    %3133 = vmatpush.msra.mxu0 %v2867
    %3134 = vmatpush.msra.mxu0 %v2866
    %3135 = vmatpush.msra.mxu0 %v2865
    %3136 = vmatmul.f32.gmra.mxu0 %v3091
    %v3137 = vpop.f32.mrf.mxu0
    %v3138 = vadd.f32 %v3118, %v3137
    %3139 = vdwg.mxu0
    %3140 = vmatpush.msra.mxu0 %v2896
    %3141 = vmatpush.msra.mxu0 %v2895
    %3142 = vmatpush.msra.mxu0 %v2894
    %3143 = vmatpush.msra.mxu0 %v2893
    %3144 = vmatpush.msra.mxu0 %v2892
    %3145 = vmatpush.msra.mxu0 %v2891
    %3146 = vmatpush.msra.mxu0 %v2890
    %3147 = vmatpush.msra.mxu0 %v2889
    %3148 = vmatpush.msra.mxu0 %v2888
    %3149 = vmatpush.msra.mxu0 %v2887
    %3150 = vmatpush.msra.mxu0 %v2886
    %3151 = vmatpush.msra.mxu0 %v2885
    %3152 = vmatpush.msra.mxu0 %v2884
    %3153 = vmatpush.msra.mxu0 %v2883
    %3154 = vmatpush.msra.mxu0 %v2882
    %3155 = vmatpush.msra.mxu0 %v2881
    %3156 = vmatmul.f32.gmra.mxu0 %v3092
    %v3157 = vpop.f32.mrf.mxu0
    %v3158 = vadd.f32 %v3138, %v3157
    %3159 = vdwg.mxu0
    %3160 = vmatpush.msra.mxu0 %v2912
    %3161 = vmatpush.msra.mxu0 %v2911
    %3162 = vmatpush.msra.mxu0 %v2910
    %3163 = vmatpush.msra.mxu0 %v2909
    %3164 = vmatpush.msra.mxu0 %v2908
    %3165 = vmatpush.msra.mxu0 %v2907
    %3166 = vmatpush.msra.mxu0 %v2906
    %3167 = vmatpush.msra.mxu0 %v2905
    %3168 = vmatpush.msra.mxu0 %v2904
    %3169 = vmatpush.msra.mxu0 %v2903
    %3170 = vmatpush.msra.mxu0 %v2902
    %3171 = vmatpush.msra.mxu0 %v2901
    %3172 = vmatpush.msra.mxu0 %v2900
    %3173 = vmatpush.msra.mxu0 %v2899
    %3174 = vmatpush.msra.mxu0 %v2898
    %3175 = vmatpush.msra.mxu0 %v2897
    %3176 = vmatmul.f32.gmra.mxu0 %v3093
    %v3177 = vpop.f32.mrf.mxu0
    %v3178 = vadd.f32 %v3158, %v3177
    %3179 = vdwg.mxu0
    %3180 = vmatpush.msra.mxu0 %v2928
    %3181 = vmatpush.msra.mxu0 %v2927
    %3182 = vmatpush.msra.mxu0 %v2926
    %3183 = vmatpush.msra.mxu0 %v2925
    %3184 = vmatpush.msra.mxu0 %v2924
    %3185 = vmatpush.msra.mxu0 %v2923
    %3186 = vmatpush.msra.mxu0 %v2922
    %3187 = vmatpush.msra.mxu0 %v2921
    %3188 = vmatpush.msra.mxu0 %v2920
    %3189 = vmatpush.msra.mxu0 %v2919
    %3190 = vmatpush.msra.mxu0 %v2918
    %3191 = vmatpush.msra.mxu0 %v2917
    %3192 = vmatpush.msra.mxu0 %v2916
    %3193 = vmatpush.msra.mxu0 %v2915
    %3194 = vmatpush.msra.mxu0 %v2914
    %3195 = vmatpush.msra.mxu0 %v2913
    %3196 = vmatmul.f32.gmra.mxu0 %v3094
    %v3197 = vpop.f32.mrf.mxu0
    %v3198 = vadd.f32 %v3178, %v3197
    %3199 = vdwg.mxu0
    %3200 = vmatpush.msra.mxu0 %v2944
    %3201 = vmatpush.msra.mxu0 %v2943
    %3202 = vmatpush.msra.mxu0 %v2942
    %3203 = vmatpush.msra.mxu0 %v2941
    %3204 = vmatpush.msra.mxu0 %v2940
    %3205 = vmatpush.msra.mxu0 %v2939
    %3206 = vmatpush.msra.mxu0 %v2938
    %3207 = vmatpush.msra.mxu0 %v2937
    %3208 = vmatpush.msra.mxu0 %v2936
    %3209 = vmatpush.msra.mxu0 %v2935
    %3210 = vmatpush.msra.mxu0 %v2934
    %3211 = vmatpush.msra.mxu0 %v2933
    %3212 = vmatpush.msra.mxu0 %v2932
    %3213 = vmatpush.msra.mxu0 %v2931
    %3214 = vmatpush.msra.mxu0 %v2930
    %3215 = vmatpush.msra.mxu0 %v2929
    %3216 = vmatmul.f32.gmra.mxu0 %v3095
    %v3217 = vpop.f32.mrf.mxu0
    %v3218 = vadd.f32 %v3198, %v3217
    %3219 = vdwg.mxu0
    %3220 = vmatpush.msra.mxu0 0.0
    %3221 = vmatpush.msra.mxu0 0.0
    %3222 = vmatpush.msra.mxu0 0.0
    %3223 = vmatpush.msra.mxu0 0.0
    %3224 = vmatpush.msra.mxu0 0.0
    %3225 = vmatpush.msra.mxu0 0.0
    %3226 = vmatpush.msra.mxu0 0.0
    %3227 = vmatpush.msra.mxu0 0.0
    %3228 = vmatpush.msra.mxu0 0.0
    %3229 = vmatpush.msra.mxu0 0.0
    %3230 = vmatpush.msra.mxu0 0.0
    %3231 = vmatpush.msra.mxu0 0.0
    %3232 = vmatpush.msra.mxu0 0.0
    %3233 = vmatpush.msra.mxu0 0.0
    %3234 = vmatpush.msra.mxu0 %v2946
    %3235 = vmatpush.msra.mxu0 %v2945
    %3236 = vmatmul.f32.gmra.mxu0 %v3098
    %v3237 = vpop.f32.mrf.mxu0
    %v3238 = vadd.f32 %v3218, %v3237
    %3239 = vdwg.mxu0
    %vm3240 = vcmask 25600
    %v3241 = vsel %vm3240, %v3088, 0.0
    %v3242 = vrot.slane %v3241, 4
    %v3243 = vadd.f32 %v3241, %v3242
    %v3244 = vrot.slane %v3243, 2
    %v3245 = vadd.f32 %v3243, %v3244
    %v3246 = vrot.slane %v3245, 1
    %v3247 = vadd.f32 %v3245, %v3246
    %v3248 = vsel %vm3240, %v3238, 0.0
    %v3249 = vrot.slane %v3248, 4
    %v3250 = vadd.f32 %v3248, %v3249
    %v3251 = vrot.slane %v3250, 2
    %v3252 = vadd.f32 %v3250, %v3251
    %v3253 = vrot.slane %v3252, 1
    %v3254 = vadd.f32 %v3252, %v3253
    %v3255 = vmul.f32 %v3247, 0.0025510204
    %v3256 = vmul.f32 %v3254, 0.0025510204
    %v3257 = vmul.f32 %v3255, %v3255
    %v3258 = vsub.f32 %v3256, %v3257
    %v3259 = vadd.f32 %v3258, 1e-05
    %v3260 = vrsqrt.pop %v3259
    %v3261 = vmul.f32 %v3260, %v3259
    %v3262 = vmul.f32 %v3261, %v3260
    %v3263 = vmul.f32 0.5, %v3262
    %v3264 = vsub.f32 1.5, %v3263
    %v3265 = vmul.f32 %v3260, %v3264
    %vm3266 = vweird.f32 %v3259
    %vm3267 = vweird.f32 %v3260
    %vm3268 = vmor %vm3266, %vm3267
    %v3269 = vsel %vm3268, %v3260, %v3265
    %v3270 = vld [vmem:[#allocation9] sm:$0xff]
    %v3271 = vld [vmem:[#allocation9 + $0x8] sm:$0xff]
    %v3272 = vld [vmem:[#allocation9 + $0x10] sm:$0xff]
    %v3273 = vld [vmem:[#allocation9 + $0x18] sm:$0xf]
    %3278 = vst [vmem:[#allocation1] ss:$2 sm:$0xff] %v3270
    %s3279 = scalar_lea.vmem [#allocation1], 16
    %3280 = vst [vmem:[%s3279] ss:$2 sm:$0xff] %v3271
    %s3281 = scalar_lea.vmem [#allocation1], 32
    %3282 = vst [vmem:[%s3281] ss:$2 sm:$0xff] %v3272
    %s3283 = scalar_lea.vmem [#allocation1], 48
    %3284 = vst [vmem:[%s3283] ss:$2 sm:$0xff] %v3273
    %v3285 = vld.sshfl [vmem:[#allocation1] sm:$0xff pattern:$0x75316420]
    %v3286 = vld.sshfl [vmem:[#allocation1 + $0x8] sm:$0xff pattern:$0x75316420]
    %v3287 = vld.sshfl [vmem:[#allocation1 + $0x10] sm:$0xff pattern:$0x75316420]
    %v3288 = vld.sshfl [vmem:[#allocation1 + $0x18] sm:$0xff pattern:$0x75316420]
    %v3289 = vld.sshfl [vmem:[#allocation1 + $0x20] sm:$0xff pattern:$0x75316420]
    %v3290 = vld.sshfl [vmem:[#allocation1 + $0x28] sm:$0xff pattern:$0x75316420]
    %v3291 = vld.sshfl [vmem:[#allocation1 + $0x30] sm:$0xff pattern:$0x75316420]
    %vm3292 = vcmask 31744
    %v3294 = vsel %vm3292, %v3255, 0
    %v3296 = vsel %vm2463, %v3285, 0
    %v3298 = vsel %vm2463, %v3286, 0
    %v3300 = vsel %vm2463, %v3287, 0
    %v3302 = vsel %vm2463, %v3288, 0
    %v3304 = vsel %vm2463, %v3289, 0
    %v3306 = vsel %vm2463, %v3290, 0
    %v3308 = vsel %vm2463, %v3291, 0
    %3310 = vmatpush.msra.mxu0 0.0
    %3311 = vmatpush.msra.mxu0 0.0
    %3312 = vmatpush.msra.mxu0 0.0
    %3313 = vmatpush.msra.mxu0 0.0
    %3314 = vmatpush.msra.mxu0 0.0
    %3315 = vmatpush.msra.mxu0 0.0
    %3316 = vmatpush.msra.mxu0 0.0
    %3317 = vmatpush.msra.mxu0 0.0
    %3318 = vmatpush.msra.mxu0 0.0
    %3319 = vmatpush.msra.mxu0 0.0
    %3320 = vmatpush.msra.mxu0 0.0
    %3321 = vmatpush.msra.mxu0 0.0
    %3322 = vmatpush.msra.mxu0 0.0
    %3323 = vmatpush.msra.mxu0 0.0
    %3324 = vmatpush.msra.mxu0 0.0
    %3325 = vmatpush.msra.mxu0 %v3296
    %3326 = vmatmul.f32.gmra.mxu0 %v3294
    %v3327 = vpop.f32.mrf.mxu0
    %v3328 = vadd.f32 0.0, %v3327
    %3329 = vdwg.mxu0
    %3330 = vmatpush.msra.mxu0 0.0
    %3331 = vmatpush.msra.mxu0 0.0
    %3332 = vmatpush.msra.mxu0 0.0
    %3333 = vmatpush.msra.mxu0 0.0
    %3334 = vmatpush.msra.mxu0 0.0
    %3335 = vmatpush.msra.mxu0 0.0
    %3336 = vmatpush.msra.mxu0 0.0
    %3337 = vmatpush.msra.mxu0 0.0
    %3338 = vmatpush.msra.mxu0 0.0
    %3339 = vmatpush.msra.mxu0 0.0
    %3340 = vmatpush.msra.mxu0 0.0
    %3341 = vmatpush.msra.mxu0 0.0
    %3342 = vmatpush.msra.mxu0 0.0
    %3343 = vmatpush.msra.mxu0 0.0
    %3344 = vmatpush.msra.mxu0 0.0
    %3345 = vmatpush.msra.mxu0 %v3298
    %3346 = vmatmul.f32.gmra.mxu0 %v3294
    %v3347 = vpop.f32.mrf.mxu0
    %v3348 = vadd.f32 0.0, %v3347
    %3349 = vdwg.mxu0
    %3350 = vmatpush.msra.mxu0 0.0
    %3351 = vmatpush.msra.mxu0 0.0
    %3352 = vmatpush.msra.mxu0 0.0
    %3353 = vmatpush.msra.mxu0 0.0
    %3354 = vmatpush.msra.mxu0 0.0
    %3355 = vmatpush.msra.mxu0 0.0
    %3356 = vmatpush.msra.mxu0 0.0
    %3357 = vmatpush.msra.mxu0 0.0
    %3358 = vmatpush.msra.mxu0 0.0
    %3359 = vmatpush.msra.mxu0 0.0
    %3360 = vmatpush.msra.mxu0 0.0
    %3361 = vmatpush.msra.mxu0 0.0
    %3362 = vmatpush.msra.mxu0 0.0
    %3363 = vmatpush.msra.mxu0 0.0
    %3364 = vmatpush.msra.mxu0 0.0
    %3365 = vmatpush.msra.mxu0 %v3300
    %3366 = vmatmul.f32.gmra.mxu0 %v3294
    %v3367 = vpop.f32.mrf.mxu0
    %v3368 = vadd.f32 0.0, %v3367
    %3369 = vdwg.mxu0
    %3370 = vmatpush.msra.mxu0 0.0
    %3371 = vmatpush.msra.mxu0 0.0
    %3372 = vmatpush.msra.mxu0 0.0
    %3373 = vmatpush.msra.mxu0 0.0
    %3374 = vmatpush.msra.mxu0 0.0
    %3375 = vmatpush.msra.mxu0 0.0
    %3376 = vmatpush.msra.mxu0 0.0
    %3377 = vmatpush.msra.mxu0 0.0
    %3378 = vmatpush.msra.mxu0 0.0
    %3379 = vmatpush.msra.mxu0 0.0
    %3380 = vmatpush.msra.mxu0 0.0
    %3381 = vmatpush.msra.mxu0 0.0
    %3382 = vmatpush.msra.mxu0 0.0
    %3383 = vmatpush.msra.mxu0 0.0
    %3384 = vmatpush.msra.mxu0 0.0
    %3385 = vmatpush.msra.mxu0 %v3302
    %3386 = vmatmul.f32.gmra.mxu0 %v3294
    %v3387 = vpop.f32.mrf.mxu0
    %v3388 = vadd.f32 0.0, %v3387
    %3389 = vdwg.mxu0
    %3390 = vmatpush.msra.mxu0 0.0
    %3391 = vmatpush.msra.mxu0 0.0
    %3392 = vmatpush.msra.mxu0 0.0
    %3393 = vmatpush.msra.mxu0 0.0
    %3394 = vmatpush.msra.mxu0 0.0
    %3395 = vmatpush.msra.mxu0 0.0
    %3396 = vmatpush.msra.mxu0 0.0
    %3397 = vmatpush.msra.mxu0 0.0
    %3398 = vmatpush.msra.mxu0 0.0
    %3399 = vmatpush.msra.mxu0 0.0
    %3400 = vmatpush.msra.mxu0 0.0
    %3401 = vmatpush.msra.mxu0 0.0
    %3402 = vmatpush.msra.mxu0 0.0
    %3403 = vmatpush.msra.mxu0 0.0
    %3404 = vmatpush.msra.mxu0 0.0
    %3405 = vmatpush.msra.mxu0 %v3304
    %3406 = vmatmul.f32.gmra.mxu0 %v3294
    %v3407 = vpop.f32.mrf.mxu0
    %v3408 = vadd.f32 0.0, %v3407
    %3409 = vdwg.mxu0
    %3410 = vmatpush.msra.mxu0 0.0
    %3411 = vmatpush.msra.mxu0 0.0
    %3412 = vmatpush.msra.mxu0 0.0
    %3413 = vmatpush.msra.mxu0 0.0
    %3414 = vmatpush.msra.mxu0 0.0
    %3415 = vmatpush.msra.mxu0 0.0
    %3416 = vmatpush.msra.mxu0 0.0
    %3417 = vmatpush.msra.mxu0 0.0
    %3418 = vmatpush.msra.mxu0 0.0
    %3419 = vmatpush.msra.mxu0 0.0
    %3420 = vmatpush.msra.mxu0 0.0
    %3421 = vmatpush.msra.mxu0 0.0
    %3422 = vmatpush.msra.mxu0 0.0
    %3423 = vmatpush.msra.mxu0 0.0
    %3424 = vmatpush.msra.mxu0 0.0
    %3425 = vmatpush.msra.mxu0 %v3306
    %3426 = vmatmul.f32.gmra.mxu0 %v3294
    %v3427 = vpop.f32.mrf.mxu0
    %v3428 = vadd.f32 0.0, %v3427
    %3429 = vdwg.mxu0
    %3430 = vmatpush.msra.mxu0 0.0
    %3431 = vmatpush.msra.mxu0 0.0
    %3432 = vmatpush.msra.mxu0 0.0
    %3433 = vmatpush.msra.mxu0 0.0
    %3434 = vmatpush.msra.mxu0 0.0
    %3435 = vmatpush.msra.mxu0 0.0
    %3436 = vmatpush.msra.mxu0 0.0
    %3437 = vmatpush.msra.mxu0 0.0
    %3438 = vmatpush.msra.mxu0 0.0
    %3439 = vmatpush.msra.mxu0 0.0
    %3440 = vmatpush.msra.mxu0 0.0
    %3441 = vmatpush.msra.mxu0 0.0
    %3442 = vmatpush.msra.mxu0 0.0
    %3443 = vmatpush.msra.mxu0 0.0
    %3444 = vmatpush.msra.mxu0 0.0
    %3445 = vmatpush.msra.mxu0 %v3308
    %3446 = vmatmul.f32.gmra.mxu0 %v3294
    %v3447 = vpop.f32.mrf.mxu0
    %v3448 = vadd.f32 0.0, %v3447
    %3449 = vdwg.mxu0
    %3450 = vst [vmem:[#allocation1] ss:$2 sm:$0xff] %v3270
    %s3451 = scalar_lea.vmem [#allocation1], 16
    %3452 = vst [vmem:[%s3451] ss:$2 sm:$0xff] %v3271
    %s3453 = scalar_lea.vmem [#allocation1], 32
    %3454 = vst [vmem:[%s3453] ss:$2 sm:$0xff] %v3272
    %s3455 = scalar_lea.vmem [#allocation1], 48
    %3456 = vst [vmem:[%s3455] ss:$2 sm:$0xff] %v3273
    %v3457 = vld.sshfl [vmem:[#allocation1] sm:$0xff pattern:$0x75316420]
    %v3458 = vld.sshfl [vmem:[#allocation1 + $0x8] sm:$0xff pattern:$0x75316420]
    %v3459 = vld.sshfl [vmem:[#allocation1 + $0x10] sm:$0xff pattern:$0x75316420]
    %v3460 = vld.sshfl [vmem:[#allocation1 + $0x18] sm:$0xff pattern:$0x75316420]
    %v3461 = vld.sshfl [vmem:[#allocation1 + $0x20] sm:$0xff pattern:$0x75316420]
    %v3462 = vld.sshfl [vmem:[#allocation1 + $0x28] sm:$0xff pattern:$0x75316420]
    %v3463 = vld.sshfl [vmem:[#allocation1 + $0x30] sm:$0xff pattern:$0x75316420]
    %v3465 = vsel %vm3292, %v3269, 0
    %v3467 = vsel %vm2463, %v3457, 0
    %v3469 = vsel %vm2463, %v3458, 0
    %v3471 = vsel %vm2463, %v3459, 0
    %v3473 = vsel %vm2463, %v3460, 0
    %v3475 = vsel %vm2463, %v3461, 0
    %v3477 = vsel %vm2463, %v3462, 0
    %v3479 = vsel %vm2463, %v3463, 0
    %3481 = vmatpush.msra.mxu0 0.0
    %3482 = vmatpush.msra.mxu0 0.0
    %3483 = vmatpush.msra.mxu0 0.0
    %3484 = vmatpush.msra.mxu0 0.0
    %3485 = vmatpush.msra.mxu0 0.0
    %3486 = vmatpush.msra.mxu0 0.0
    %3487 = vmatpush.msra.mxu0 0.0
    %3488 = vmatpush.msra.mxu0 0.0
    %3489 = vmatpush.msra.mxu0 0.0
    %3490 = vmatpush.msra.mxu0 0.0
    %3491 = vmatpush.msra.mxu0 0.0
    %3492 = vmatpush.msra.mxu0 0.0
    %3493 = vmatpush.msra.mxu0 0.0
    %3494 = vmatpush.msra.mxu0 0.0
    %3495 = vmatpush.msra.mxu0 0.0
    %3496 = vmatpush.msra.mxu0 %v3467
    %3497 = vmatmul.f32.gmra.mxu0 %v3465
    %v3498 = vpop.f32.mrf.mxu0
    %v3499 = vadd.f32 0.0, %v3498
    %3500 = vdwg.mxu0
    %3501 = vmatpush.msra.mxu0 0.0
    %3502 = vmatpush.msra.mxu0 0.0
    %3503 = vmatpush.msra.mxu0 0.0
    %3504 = vmatpush.msra.mxu0 0.0
    %3505 = vmatpush.msra.mxu0 0.0
    %3506 = vmatpush.msra.mxu0 0.0
    %3507 = vmatpush.msra.mxu0 0.0
    %3508 = vmatpush.msra.mxu0 0.0
    %3509 = vmatpush.msra.mxu0 0.0
    %3510 = vmatpush.msra.mxu0 0.0
    %3511 = vmatpush.msra.mxu0 0.0
    %3512 = vmatpush.msra.mxu0 0.0
    %3513 = vmatpush.msra.mxu0 0.0
    %3514 = vmatpush.msra.mxu0 0.0
    %3515 = vmatpush.msra.mxu0 0.0
    %3516 = vmatpush.msra.mxu0 %v3469
    %3517 = vmatmul.f32.gmra.mxu0 %v3465
    %v3518 = vpop.f32.mrf.mxu0
    %v3519 = vadd.f32 0.0, %v3518
    %3520 = vdwg.mxu0
    %3521 = vmatpush.msra.mxu0 0.0
    %3522 = vmatpush.msra.mxu0 0.0
    %3523 = vmatpush.msra.mxu0 0.0
    %3524 = vmatpush.msra.mxu0 0.0
    %3525 = vmatpush.msra.mxu0 0.0
    %3526 = vmatpush.msra.mxu0 0.0
    %3527 = vmatpush.msra.mxu0 0.0
    %3528 = vmatpush.msra.mxu0 0.0
    %3529 = vmatpush.msra.mxu0 0.0
    %3530 = vmatpush.msra.mxu0 0.0
    %3531 = vmatpush.msra.mxu0 0.0
    %3532 = vmatpush.msra.mxu0 0.0
    %3533 = vmatpush.msra.mxu0 0.0
    %3534 = vmatpush.msra.mxu0 0.0
    %3535 = vmatpush.msra.mxu0 0.0
    %3536 = vmatpush.msra.mxu0 %v3471
    %3537 = vmatmul.f32.gmra.mxu0 %v3465
    %v3538 = vpop.f32.mrf.mxu0
    %v3539 = vadd.f32 0.0, %v3538
    %3540 = vdwg.mxu0
    %3541 = vmatpush.msra.mxu0 0.0
    %3542 = vmatpush.msra.mxu0 0.0
    %3543 = vmatpush.msra.mxu0 0.0
    %3544 = vmatpush.msra.mxu0 0.0
    %3545 = vmatpush.msra.mxu0 0.0
    %3546 = vmatpush.msra.mxu0 0.0
    %3547 = vmatpush.msra.mxu0 0.0
    %3548 = vmatpush.msra.mxu0 0.0
    %3549 = vmatpush.msra.mxu0 0.0
    %3550 = vmatpush.msra.mxu0 0.0
    %3551 = vmatpush.msra.mxu0 0.0
    %3552 = vmatpush.msra.mxu0 0.0
    %3553 = vmatpush.msra.mxu0 0.0
    %3554 = vmatpush.msra.mxu0 0.0
    %3555 = vmatpush.msra.mxu0 0.0
    %3556 = vmatpush.msra.mxu0 %v3473
    %3557 = vmatmul.f32.gmra.mxu0 %v3465
    %v3558 = vpop.f32.mrf.mxu0
    %v3559 = vadd.f32 0.0, %v3558
    %3560 = vdwg.mxu0
    %3561 = vmatpush.msra.mxu0 0.0
    %3562 = vmatpush.msra.mxu0 0.0
    %3563 = vmatpush.msra.mxu0 0.0
    %3564 = vmatpush.msra.mxu0 0.0
    %3565 = vmatpush.msra.mxu0 0.0
    %3566 = vmatpush.msra.mxu0 0.0
    %3567 = vmatpush.msra.mxu0 0.0
    %3568 = vmatpush.msra.mxu0 0.0
    %3569 = vmatpush.msra.mxu0 0.0
    %3570 = vmatpush.msra.mxu0 0.0
    %3571 = vmatpush.msra.mxu0 0.0
    %3572 = vmatpush.msra.mxu0 0.0
    %3573 = vmatpush.msra.mxu0 0.0
    %3574 = vmatpush.msra.mxu0 0.0
    %3575 = vmatpush.msra.mxu0 0.0
    %3576 = vmatpush.msra.mxu0 %v3475
    %3577 = vmatmul.f32.gmra.mxu0 %v3465
    %v3578 = vpop.f32.mrf.mxu0
    %v3579 = vadd.f32 0.0, %v3578
    %3580 = vdwg.mxu0
    %3581 = vmatpush.msra.mxu0 0.0
    %3582 = vmatpush.msra.mxu0 0.0
    %3583 = vmatpush.msra.mxu0 0.0
    %3584 = vmatpush.msra.mxu0 0.0
    %3585 = vmatpush.msra.mxu0 0.0
    %3586 = vmatpush.msra.mxu0 0.0
    %3587 = vmatpush.msra.mxu0 0.0
    %3588 = vmatpush.msra.mxu0 0.0
    %3589 = vmatpush.msra.mxu0 0.0
    %3590 = vmatpush.msra.mxu0 0.0
    %3591 = vmatpush.msra.mxu0 0.0
    %3592 = vmatpush.msra.mxu0 0.0
    %3593 = vmatpush.msra.mxu0 0.0
    %3594 = vmatpush.msra.mxu0 0.0
    %3595 = vmatpush.msra.mxu0 0.0
    %3596 = vmatpush.msra.mxu0 %v3477
    %3597 = vmatmul.f32.gmra.mxu0 %v3465
    %v3598 = vpop.f32.mrf.mxu0
    %v3599 = vadd.f32 0.0, %v3598
    %3600 = vdwg.mxu0
    %3601 = vmatpush.msra.mxu0 0.0
    %3602 = vmatpush.msra.mxu0 0.0
    %3603 = vmatpush.msra.mxu0 0.0
    %3604 = vmatpush.msra.mxu0 0.0
    %3605 = vmatpush.msra.mxu0 0.0
    %3606 = vmatpush.msra.mxu0 0.0
    %3607 = vmatpush.msra.mxu0 0.0
    %3608 = vmatpush.msra.mxu0 0.0
    %3609 = vmatpush.msra.mxu0 0.0
    %3610 = vmatpush.msra.mxu0 0.0
    %3611 = vmatpush.msra.mxu0 0.0
    %3612 = vmatpush.msra.mxu0 0.0
    %3613 = vmatpush.msra.mxu0 0.0
    %3614 = vmatpush.msra.mxu0 0.0
    %3615 = vmatpush.msra.mxu0 0.0
    %3616 = vmatpush.msra.mxu0 %v3479
    %3617 = vmatmul.f32.gmra.mxu0 %v3465
    %v3618 = vpop.f32.mrf.mxu0
    %v3619 = vadd.f32 0.0, %v3618
    %3620 = vdwg.mxu0
    %v3621 = vperm.slane %v3328, 0
    %v3622 = vperm.slane %v3348, 0
    %v3623 = vperm.slane %v3368, 0
    %v3624 = vperm.slane %v3388, 0
    %v3625 = vperm.slane %v3408, 0
    %v3626 = vperm.slane %v3428, 0
    %v3627 = vperm.slane %v3448, 0
    %v3628 = vsub.f32 %v2534, %v3621
    %v3629 = vsub.f32 %v2586, %v3622
    %v3630 = vsub.f32 %v2638, %v3623
    %v3631 = vsub.f32 %v2690, %v3624
    %v3632 = vsub.f32 %v2742, %v3625
    %v3633 = vsub.f32 %v2794, %v3626
    %v3634 = vsub.f32 %v2846, %v3627
    %v3635 = vperm.slane %v3499, 0
    %v3636 = vperm.slane %v3519, 0
    %v3637 = vperm.slane %v3539, 0
    %v3638 = vperm.slane %v3559, 0
    %v3639 = vperm.slane %v3579, 0
    %v3640 = vperm.slane %v3599, 0
    %v3641 = vperm.slane %v3619, 0
    %v3642 = vmul.f32 %v3628, %v3635
    %v3643 = vmul.f32 %v3629, %v3636
    %v3644 = vmul.f32 %v3630, %v3637
    %v3645 = vmul.f32 %v3631, %v3638
    %v3646 = vmul.f32 %v3632, %v3639
    %v3647 = vmul.f32 %v3633, %v3640
    %v3648 = vmul.f32 %v3634, %v3641
    %vm3649 = vcmp.gt.f32.partialorder %v3642, 0.0
    %vm3650 = vcmp.gt.f32.partialorder %v3643, 0.0
    %vm3651 = vcmp.gt.f32.partialorder %v3644, 0.0
    %vm3652 = vcmp.gt.f32.partialorder %v3645, 0.0
    %vm3653 = vcmp.gt.f32.partialorder %v3646, 0.0
    %vm3654 = vcmp.gt.f32.partialorder %v3647, 0.0
    %vm3655 = vcmp.gt.f32.partialorder %v3648, 0.0
    %v3656 = vmul.f32 %v3642, 0.2
    %v3657 = vmul.f32 %v3643, 0.2
    %v3658 = vmul.f32 %v3644, 0.2
    %v3659 = vmul.f32 %v3645, 0.2
    %v3660 = vmul.f32 %v3646, 0.2
    %v3661 = vmul.f32 %v3647, 0.2
    %v3662 = vmul.f32 %v3648, 0.2
    %v3663 = vsel %vm3649, %v3642, %v3656
    %v3664 = vsel %vm3650, %v3643, %v3657
    %v3665 = vsel %vm3651, %v3644, %v3658
    %v3666 = vsel %vm3652, %v3645, %v3659
    %v3667 = vsel %vm3653, %v3646, %v3660
    %v3668 = vsel %vm3654, %v3647, %v3661
    %v3669 = vsel %vm3655, %v3648, %v3662
    %v3670 = vpack.c.bf16 %v3663, %v3663
    %v3671 = vpack.c.bf16 %v3664, %v3664
    %v3672 = vpack.c.bf16 %v3665, %v3665
    %v3673 = vpack.c.bf16 %v3666, %v3666
    %v3674 = vpack.c.bf16 %v3667, %v3667
    %v3675 = vpack.c.bf16 %v3668, %v3668
    %v3676 = vpack.c.bf16 %v3669, %v3669
    %v3677 = vld [vmem:[#allocation10] sm:$0xff]
    %v3678 = vld [vmem:[#allocation10 + $0x8] sm:$0xff]
    %v3679 = vld [vmem:[#allocation10 + $0x10] sm:$0xff]
    %v3680 = vld [vmem:[#allocation10 + $0x18] sm:$0xff]
    %v3681 = vld [vmem:[#allocation10 + $0x20] sm:$0xff]
    %v3682 = vld [vmem:[#allocation10 + $0x28] sm:$0xff]
    %v3683 = vld [vmem:[#allocation10 + $0x30] sm:$0xff]
    %v3684 = vld [vmem:[#allocation10 + $0x38] sm:$0xff]
    %v3685 = vld [vmem:[#allocation10 + $0x40] sm:$0xff]
    %v3686 = vld [vmem:[#allocation10 + $0x48] sm:$0xf]
    %v3687 = vld [vmem:[#allocation10 + $0x4c] sm:$0xff]
    %v3688 = vld [vmem:[#allocation10 + $0x54] sm:$0xff]
    %v3689 = vld [vmem:[#allocation10 + $0x5c] sm:$0xff]
    %v3690 = vld [vmem:[#allocation10 + $0x64] sm:$0xff]
    %v3691 = vld [vmem:[#allocation10 + $0x6c] sm:$0xff]
    %v3692 = vld [vmem:[#allocation10 + $0x74] sm:$0xff]
    %v3693 = vld [vmem:[#allocation10 + $0x7c] sm:$0xff]
    %v3694 = vld [vmem:[#allocation10 + $0x84] sm:$0xff]
    %v3695 = vld [vmem:[#allocation10 + $0x8c] sm:$0xff]
    %v3696 = vld [vmem:[#allocation10 + $0x94] sm:$0xf]
    %v3697 = vld [vmem:[#allocation10 + $0x98] sm:$0xff]
    %v3698 = vld [vmem:[#allocation10 + $0xa0] sm:$0xff]
    %v3699 = vld [vmem:[#allocation10 + $0xa8] sm:$0xff]
    %v3700 = vld [vmem:[#allocation10 + $0xb0] sm:$0xff]
    %v3701 = vld [vmem:[#allocation10 + $0xb8] sm:$0xff]
    %v3702 = vld [vmem:[#allocation10 + $0xc0] sm:$0xff]
    %v3703 = vld [vmem:[#allocation10 + $0xc8] sm:$0xff]
    %v3704 = vld [vmem:[#allocation10 + $0xd0] sm:$0xff]
    %v3705 = vld [vmem:[#allocation10 + $0xd8] sm:$0xff]
    %v3706 = vld [vmem:[#allocation10 + $0xe0] sm:$0xf]
    %v3707 = vld [vmem:[#allocation10 + $0xe4] sm:$0xff]
    %v3708 = vld [vmem:[#allocation10 + $0xec] sm:$0xff]
    %v3709 = vld [vmem:[#allocation10 + $0xf4] sm:$0xff]
    %v3710 = vld [vmem:[#allocation10 + $0xfc] sm:$0xff]
    %v3711 = vld [vmem:[#allocation10 + $0x104] sm:$0xff]
    %v3712 = vld [vmem:[#allocation10 + $0x10c] sm:$0xff]
    %v3713 = vld [vmem:[#allocation10 + $0x114] sm:$0xff]
    %v3714 = vld [vmem:[#allocation10 + $0x11c] sm:$0xff]
    %v3715 = vld [vmem:[#allocation10 + $0x124] sm:$0xff]
    %v3716 = vld [vmem:[#allocation10 + $0x12c] sm:$0xf]
    %v3717 = vld [vmem:[#allocation10 + $0x130] sm:$0xff]
    %v3718 = vld [vmem:[#allocation10 + $0x138] sm:$0xff]
    %v3719 = vld [vmem:[#allocation10 + $0x140] sm:$0xff]
    %v3720 = vld [vmem:[#allocation10 + $0x148] sm:$0xff]
    %v3721 = vld [vmem:[#allocation10 + $0x150] sm:$0xff]
    %v3722 = vld [vmem:[#allocation10 + $0x158] sm:$0xff]
    %v3723 = vld [vmem:[#allocation10 + $0x160] sm:$0xff]
    %v3724 = vld [vmem:[#allocation10 + $0x168] sm:$0xff]
    %v3725 = vld [vmem:[#allocation10 + $0x170] sm:$0xff]
    %v3726 = vld [vmem:[#allocation10 + $0x178] sm:$0xf]
    %v3727 = vld [vmem:[#allocation10 + $0x17c] sm:$0xff]
    %v3728 = vld [vmem:[#allocation10 + $0x184] sm:$0xff]
    %v3729 = vld [vmem:[#allocation10 + $0x18c] sm:$0xff]
    %v3730 = vld [vmem:[#allocation10 + $0x194] sm:$0xff]
    %v3731 = vld [vmem:[#allocation10 + $0x19c] sm:$0xff]
    %v3732 = vld [vmem:[#allocation10 + $0x1a4] sm:$0xff]
    %v3733 = vld [vmem:[#allocation10 + $0x1ac] sm:$0xff]
    %v3734 = vld [vmem:[#allocation10 + $0x1b4] sm:$0xff]
    %v3735 = vld [vmem:[#allocation10 + $0x1bc] sm:$0xff]
    %v3736 = vld [vmem:[#allocation10 + $0x1c4] sm:$0xf]
    %v3737 = vld [vmem:[#allocation10 + $0x1c8] sm:$0xff]
    %v3738 = vld [vmem:[#allocation10 + $0x1d0] sm:$0xff]
    %v3739 = vld [vmem:[#allocation10 + $0x1d8] sm:$0xff]
    %v3740 = vld [vmem:[#allocation10 + $0x1e0] sm:$0xff]
    %v3741 = vld [vmem:[#allocation10 + $0x1e8] sm:$0xff]
    %v3742 = vld [vmem:[#allocation10 + $0x1f0] sm:$0xff]
    %v3743 = vld [vmem:[#allocation10 + $0x1f8] sm:$0xff]
    %v3744 = vld [vmem:[#allocation10 + $0x200] sm:$0xff]
    %v3745 = vld [vmem:[#allocation10 + $0x208] sm:$0xff]
    %v3746 = vld [vmem:[#allocation10 + $0x210] sm:$0xf]
    %v3747 = vld [vmem:[#allocation10 + $0x214] sm:$0xff]
    %v3748 = vld [vmem:[#allocation10 + $0x21c] sm:$0xff]
    %v3749 = vld [vmem:[#allocation10 + $0x224] sm:$0xff]
    %v3750 = vld [vmem:[#allocation10 + $0x22c] sm:$0xff]
    %v3751 = vld [vmem:[#allocation10 + $0x234] sm:$0xff]
    %v3752 = vld [vmem:[#allocation10 + $0x23c] sm:$0xff]
    %v3753 = vld [vmem:[#allocation10 + $0x244] sm:$0xff]
    %v3754 = vld [vmem:[#allocation10 + $0x24c] sm:$0xff]
    %v3755 = vld [vmem:[#allocation10 + $0x254] sm:$0xff]
    %v3756 = vld [vmem:[#allocation10 + $0x25c] sm:$0xf]
    %v3757 = vld [vmem:[#allocation10 + $0x260] sm:$0xff]
    %v3758 = vld [vmem:[#allocation10 + $0x268] sm:$0xff]
    %v3759 = vld [vmem:[#allocation10 + $0x270] sm:$0xff]
    %v3760 = vld [vmem:[#allocation10 + $0x278] sm:$0xff]
    %v3761 = vld [vmem:[#allocation10 + $0x280] sm:$0xff]
    %v3762 = vld [vmem:[#allocation10 + $0x288] sm:$0xff]
    %v3763 = vld [vmem:[#allocation10 + $0x290] sm:$0xff]
    %v3764 = vld [vmem:[#allocation10 + $0x298] sm:$0xff]
    %v3765 = vld [vmem:[#allocation10 + $0x2a0] sm:$0xff]
    %v3766 = vld [vmem:[#allocation10 + $0x2a8] sm:$0xf]
    %v3767 = vld [vmem:[#allocation10 + $0x2ac] sm:$0xff]
    %v3768 = vld [vmem:[#allocation10 + $0x2b4] sm:$0xff]
    %v3769 = vld [vmem:[#allocation10 + $0x2bc] sm:$0xff]
    %v3770 = vld [vmem:[#allocation10 + $0x2c4] sm:$0xff]
    %v3771 = vld [vmem:[#allocation10 + $0x2cc] sm:$0xff]
    %v3772 = vld [vmem:[#allocation10 + $0x2d4] sm:$0xff]
    %v3773 = vld [vmem:[#allocation10 + $0x2dc] sm:$0xff]
    %v3774 = vld [vmem:[#allocation10 + $0x2e4] sm:$0xff]
    %v3775 = vld [vmem:[#allocation10 + $0x2ec] sm:$0xff]
    %v3776 = vld [vmem:[#allocation10 + $0x2f4] sm:$0xf]
    %v3777 = vld [vmem:[#allocation10 + $0x2f8] sm:$0xff]
    %v3778 = vld [vmem:[#allocation10 + $0x300] sm:$0xff]
    %v3779 = vld [vmem:[#allocation10 + $0x308] sm:$0xff]
    %v3780 = vld [vmem:[#allocation10 + $0x310] sm:$0xff]
    %v3781 = vld [vmem:[#allocation10 + $0x318] sm:$0xff]
    %v3782 = vld [vmem:[#allocation10 + $0x320] sm:$0xff]
    %v3783 = vld [vmem:[#allocation10 + $0x328] sm:$0xff]
    %v3784 = vld [vmem:[#allocation10 + $0x330] sm:$0xff]
    %v3785 = vld [vmem:[#allocation10 + $0x338] sm:$0xff]
    %v3786 = vld [vmem:[#allocation10 + $0x340] sm:$0xf]
    %v3787 = vld [vmem:[#allocation10 + $0x344] sm:$0xff]
    %v3788 = vld [vmem:[#allocation10 + $0x34c] sm:$0xff]
    %v3789 = vld [vmem:[#allocation10 + $0x354] sm:$0xff]
    %v3790 = vld [vmem:[#allocation10 + $0x35c] sm:$0xff]
    %v3791 = vld [vmem:[#allocation10 + $0x364] sm:$0xff]
    %v3792 = vld [vmem:[#allocation10 + $0x36c] sm:$0xff]
    %v3793 = vld [vmem:[#allocation10 + $0x374] sm:$0xff]
    %v3794 = vld [vmem:[#allocation10 + $0x37c] sm:$0xff]
    %v3795 = vld [vmem:[#allocation10 + $0x384] sm:$0xff]
    %v3796 = vld [vmem:[#allocation10 + $0x38c] sm:$0xf]
    %v3797 = vld [vmem:[#allocation10 + $0x390] sm:$0xff]
    %v3798 = vld [vmem:[#allocation10 + $0x398] sm:$0xff]
    %v3799 = vld [vmem:[#allocation10 + $0x3a0] sm:$0xff]
    %v3800 = vld [vmem:[#allocation10 + $0x3a8] sm:$0xff]
    %v3801 = vld [vmem:[#allocation10 + $0x3b0] sm:$0xff]
    %v3802 = vld [vmem:[#allocation10 + $0x3b8] sm:$0xff]
    %v3803 = vld [vmem:[#allocation10 + $0x3c0] sm:$0xff]
    %v3804 = vld [vmem:[#allocation10 + $0x3c8] sm:$0xff]
    %v3805 = vld [vmem:[#allocation10 + $0x3d0] sm:$0xff]
    %v3806 = vld [vmem:[#allocation10 + $0x3d8] sm:$0xf]
    %v3807 = vld [vmem:[#allocation10 + $0x3dc] sm:$0xff]
    %v3808 = vld [vmem:[#allocation10 + $0x3e4] sm:$0xff]
    %v3809 = vld [vmem:[#allocation10 + $0x3ec] sm:$0xff]
    %v3810 = vld [vmem:[#allocation10 + $0x3f4] sm:$0xff]
    %v3811 = vld [vmem:[#allocation10 + $0x3fc] sm:$0xff]
    %v3812 = vld [vmem:[#allocation10 + $0x404] sm:$0xff]
    %v3813 = vld [vmem:[#allocation10 + $0x40c] sm:$0xff]
    %v3814 = vld [vmem:[#allocation10 + $0x414] sm:$0xff]
    %v3815 = vld [vmem:[#allocation10 + $0x41c] sm:$0xff]
    %v3816 = vld [vmem:[#allocation10 + $0x424] sm:$0xf]
    %v3817 = vld [vmem:[#allocation10 + $0x428] sm:$0xff]
    %v3818 = vld [vmem:[#allocation10 + $0x430] sm:$0xff]
    %v3819 = vld [vmem:[#allocation10 + $0x438] sm:$0xff]
    %v3820 = vld [vmem:[#allocation10 + $0x440] sm:$0xff]
    %v3821 = vld [vmem:[#allocation10 + $0x448] sm:$0xff]
    %v3822 = vld [vmem:[#allocation10 + $0x450] sm:$0xff]
    %v3823 = vld [vmem:[#allocation10 + $0x458] sm:$0xff]
    %v3824 = vld [vmem:[#allocation10 + $0x460] sm:$0xff]
    %v3825 = vld [vmem:[#allocation10 + $0x468] sm:$0xff]
    %v3826 = vld [vmem:[#allocation10 + $0x470] sm:$0xf]
    %v3827 = vld [vmem:[#allocation10 + $0x474] sm:$0xff]
    %v3828 = vld [vmem:[#allocation10 + $0x47c] sm:$0xff]
    %v3829 = vld [vmem:[#allocation10 + $0x484] sm:$0xff]
    %v3830 = vld [vmem:[#allocation10 + $0x48c] sm:$0xff]
    %v3831 = vld [vmem:[#allocation10 + $0x494] sm:$0xff]
    %v3832 = vld [vmem:[#allocation10 + $0x49c] sm:$0xff]
    %v3833 = vld [vmem:[#allocation10 + $0x4a4] sm:$0xff]
    %v3834 = vld [vmem:[#allocation10 + $0x4ac] sm:$0xff]
    %v3835 = vld [vmem:[#allocation10 + $0x4b4] sm:$0xff]
    %v3836 = vld [vmem:[#allocation10 + $0x4bc] sm:$0xf]
    %v3837 = vld [vmem:[#allocation10 + $0x4c0] sm:$0xff]
    %v3838 = vld [vmem:[#allocation10 + $0x4c8] sm:$0xff]
    %v3839 = vld [vmem:[#allocation10 + $0x4d0] sm:$0xff]
    %v3840 = vld [vmem:[#allocation10 + $0x4d8] sm:$0xff]
    %v3841 = vld [vmem:[#allocation10 + $0x4e0] sm:$0xff]
    %v3842 = vld [vmem:[#allocation10 + $0x4e8] sm:$0xff]
    %v3843 = vld [vmem:[#allocation10 + $0x4f0] sm:$0xff]
    %v3844 = vld [vmem:[#allocation10 + $0x4f8] sm:$0xff]
    %v3845 = vld [vmem:[#allocation10 + $0x500] sm:$0xff]
    %v3846 = vld [vmem:[#allocation10 + $0x508] sm:$0xf]
    %v3847 = vld [vmem:[#allocation10 + $0x50c] sm:$0xff]
    %v3848 = vld [vmem:[#allocation10 + $0x514] sm:$0xff]
    %v3849 = vld [vmem:[#allocation10 + $0x51c] sm:$0xff]
    %v3850 = vld [vmem:[#allocation10 + $0x524] sm:$0xff]
    %v3851 = vld [vmem:[#allocation10 + $0x52c] sm:$0xff]
    %v3852 = vld [vmem:[#allocation10 + $0x534] sm:$0xff]
    %v3853 = vld [vmem:[#allocation10 + $0x53c] sm:$0xff]
    %v3854 = vld [vmem:[#allocation10 + $0x544] sm:$0xff]
    %v3855 = vld [vmem:[#allocation10 + $0x54c] sm:$0xff]
    %v3856 = vld [vmem:[#allocation10 + $0x554] sm:$0xf]
    %v3857 = vld [vmem:[#allocation10 + $0x558] sm:$0xff]
    %v3858 = vld [vmem:[#allocation10 + $0x560] sm:$0xff]
    %v3859 = vld [vmem:[#allocation10 + $0x568] sm:$0xff]
    %v3860 = vld [vmem:[#allocation10 + $0x570] sm:$0xff]
    %v3861 = vld [vmem:[#allocation10 + $0x578] sm:$0xff]
    %v3862 = vld [vmem:[#allocation10 + $0x580] sm:$0xff]
    %v3863 = vld [vmem:[#allocation10 + $0x588] sm:$0xff]
    %v3864 = vld [vmem:[#allocation10 + $0x590] sm:$0xff]
    %v3865 = vld [vmem:[#allocation10 + $0x598] sm:$0xff]
    %v3866 = vld [vmem:[#allocation10 + $0x5a0] sm:$0xf]
    %v3867 = vld [vmem:[#allocation10 + $0x5a4] sm:$0xff]
    %v3868 = vld [vmem:[#allocation10 + $0x5ac] sm:$0xff]
    %v3869 = vld [vmem:[#allocation10 + $0x5b4] sm:$0xff]
    %v3870 = vld [vmem:[#allocation10 + $0x5bc] sm:$0xff]
    %v3871 = vld [vmem:[#allocation10 + $0x5c4] sm:$0xff]
    %v3872 = vld [vmem:[#allocation10 + $0x5cc] sm:$0xff]
    %v3873 = vld [vmem:[#allocation10 + $0x5d4] sm:$0xff]
    %v3874 = vld [vmem:[#allocation10 + $0x5dc] sm:$0xff]
    %v3875 = vld [vmem:[#allocation10 + $0x5e4] sm:$0xff]
    %v3876 = vld [vmem:[#allocation10 + $0x5ec] sm:$0xf]
    %v3877 = vld [vmem:[#allocation10 + $0x5f0] sm:$0xff]
    %v3878 = vld [vmem:[#allocation10 + $0x5f8] sm:$0xff]
    %v3879 = vld [vmem:[#allocation10 + $0x600] sm:$0xff]
    %v3880 = vld [vmem:[#allocation10 + $0x608] sm:$0xff]
    %v3881 = vld [vmem:[#allocation10 + $0x610] sm:$0xff]
    %v3882 = vld [vmem:[#allocation10 + $0x618] sm:$0xff]
    %v3883 = vld [vmem:[#allocation10 + $0x620] sm:$0xff]
    %v3884 = vld [vmem:[#allocation10 + $0x628] sm:$0xff]
    %v3885 = vld [vmem:[#allocation10 + $0x630] sm:$0xff]
    %v3886 = vld [vmem:[#allocation10 + $0x638] sm:$0xf]
    %v3887 = vld [vmem:[#allocation10 + $0x63c] sm:$0xff]
    %v3888 = vld [vmem:[#allocation10 + $0x644] sm:$0xff]
    %v3889 = vld [vmem:[#allocation10 + $0x64c] sm:$0xff]
    %v3890 = vld [vmem:[#allocation10 + $0x654] sm:$0xff]
    %v3891 = vld [vmem:[#allocation10 + $0x65c] sm:$0xff]
    %v3892 = vld [vmem:[#allocation10 + $0x664] sm:$0xff]
    %v3893 = vld [vmem:[#allocation10 + $0x66c] sm:$0xff]
    %v3894 = vld [vmem:[#allocation10 + $0x674] sm:$0xff]
    %v3895 = vld [vmem:[#allocation10 + $0x67c] sm:$0xff]
    %v3896 = vld [vmem:[#allocation10 + $0x684] sm:$0xf]
    %v3897 = vld [vmem:[#allocation10 + $0x688] sm:$0xff]
    %v3898 = vld [vmem:[#allocation10 + $0x690] sm:$0xff]
    %v3899 = vld [vmem:[#allocation10 + $0x698] sm:$0xff]
    %v3900 = vld [vmem:[#allocation10 + $0x6a0] sm:$0xff]
    %v3901 = vld [vmem:[#allocation10 + $0x6a8] sm:$0xff]
    %v3902 = vld [vmem:[#allocation10 + $0x6b0] sm:$0xff]
    %v3903 = vld [vmem:[#allocation10 + $0x6b8] sm:$0xff]
    %v3904 = vld [vmem:[#allocation10 + $0x6c0] sm:$0xff]
    %v3905 = vld [vmem:[#allocation10 + $0x6c8] sm:$0xff]
    %v3906 = vld [vmem:[#allocation10 + $0x6d0] sm:$0xf]
    %v3907 = vld [vmem:[#allocation10 + $0x6d4] sm:$0xff]
    %v3908 = vld [vmem:[#allocation10 + $0x6dc] sm:$0xff]
    %v3909 = vld [vmem:[#allocation10 + $0x6e4] sm:$0xff]
    %v3910 = vld [vmem:[#allocation10 + $0x6ec] sm:$0xff]
    %v3911 = vld [vmem:[#allocation10 + $0x6f4] sm:$0xff]
    %v3912 = vld [vmem:[#allocation10 + $0x6fc] sm:$0xff]
    %v3913 = vld [vmem:[#allocation10 + $0x704] sm:$0xff]
    %v3914 = vld [vmem:[#allocation10 + $0x70c] sm:$0xff]
    %v3915 = vld [vmem:[#allocation10 + $0x714] sm:$0xff]
    %v3916 = vld [vmem:[#allocation10 + $0x71c] sm:$0xf]
    %v3917 = vld [vmem:[#allocation10 + $0x720] sm:$0xff]
    %v3918 = vld [vmem:[#allocation10 + $0x728] sm:$0xff]
    %v3919 = vld [vmem:[#allocation10 + $0x730] sm:$0xff]
    %v3920 = vld [vmem:[#allocation10 + $0x738] sm:$0xff]
    %v3921 = vld [vmem:[#allocation10 + $0x740] sm:$0xff]
    %v3922 = vld [vmem:[#allocation10 + $0x748] sm:$0xff]
    %v3923 = vld [vmem:[#allocation10 + $0x750] sm:$0xff]
    %v3924 = vld [vmem:[#allocation10 + $0x758] sm:$0xff]
    %v3925 = vld [vmem:[#allocation10 + $0x760] sm:$0xff]
    %v3926 = vld [vmem:[#allocation10 + $0x768] sm:$0xf]
    %v3927 = vld [vmem:[#allocation10 + $0x76c] sm:$0xff]
    %v3928 = vld [vmem:[#allocation10 + $0x774] sm:$0xff]
    %v3929 = vld [vmem:[#allocation10 + $0x77c] sm:$0xff]
    %v3930 = vld [vmem:[#allocation10 + $0x784] sm:$0xff]
    %v3931 = vld [vmem:[#allocation10 + $0x78c] sm:$0xff]
    %v3932 = vld [vmem:[#allocation10 + $0x794] sm:$0xff]
    %v3933 = vld [vmem:[#allocation10 + $0x79c] sm:$0xff]
    %v3934 = vld [vmem:[#allocation10 + $0x7a4] sm:$0xff]
    %v3935 = vld [vmem:[#allocation10 + $0x7ac] sm:$0xff]
    %v3936 = vld [vmem:[#allocation10 + $0x7b4] sm:$0xf]
    %v3937 = vld [vmem:[#allocation10 + $0x7b8] sm:$0xff]
    %v3938 = vld [vmem:[#allocation10 + $0x7c0] sm:$0xff]
    %v3939 = vld [vmem:[#allocation10 + $0x7c8] sm:$0xff]
    %v3940 = vld [vmem:[#allocation10 + $0x7d0] sm:$0xff]
    %v3941 = vld [vmem:[#allocation10 + $0x7d8] sm:$0xff]
    %v3942 = vld [vmem:[#allocation10 + $0x7e0] sm:$0xff]
    %v3943 = vld [vmem:[#allocation10 + $0x7e8] sm:$0xff]
    %v3944 = vld [vmem:[#allocation10 + $0x7f0] sm:$0xff]
    %v3945 = vld [vmem:[#allocation10 + $0x7f8] sm:$0xff]
    %v3946 = vld [vmem:[#allocation10 + $0x800] sm:$0xf]
    %v3947 = vld [vmem:[#allocation10 + $0x804] sm:$0xff]
    %v3948 = vld [vmem:[#allocation10 + $0x80c] sm:$0xff]
    %v3949 = vld [vmem:[#allocation10 + $0x814] sm:$0xff]
    %v3950 = vld [vmem:[#allocation10 + $0x81c] sm:$0xff]
    %v3951 = vld [vmem:[#allocation10 + $0x824] sm:$0xff]
    %v3952 = vld [vmem:[#allocation10 + $0x82c] sm:$0xff]
    %v3953 = vld [vmem:[#allocation10 + $0x834] sm:$0xff]
    %v3954 = vld [vmem:[#allocation10 + $0x83c] sm:$0xff]
    %v3955 = vld [vmem:[#allocation10 + $0x844] sm:$0xff]
    %v3956 = vld [vmem:[#allocation10 + $0x84c] sm:$0xf]
    %v3957 = vld [vmem:[#allocation10 + $0x850] sm:$0xff]
    %v3958 = vld [vmem:[#allocation10 + $0x858] sm:$0xff]
    %v3959 = vld [vmem:[#allocation10 + $0x860] sm:$0xff]
    %v3960 = vld [vmem:[#allocation10 + $0x868] sm:$0xff]
    %v3961 = vld [vmem:[#allocation10 + $0x870] sm:$0xff]
    %v3962 = vld [vmem:[#allocation10 + $0x878] sm:$0xff]
    %v3963 = vld [vmem:[#allocation10 + $0x880] sm:$0xff]
    %v3964 = vld [vmem:[#allocation10 + $0x888] sm:$0xff]
    %v3965 = vld [vmem:[#allocation10 + $0x890] sm:$0xff]
    %v3966 = vld [vmem:[#allocation10 + $0x898] sm:$0xf]
    %v3967 = vld [vmem:[#allocation10 + $0x89c] sm:$0xff]
    %v3968 = vld [vmem:[#allocation10 + $0x8a4] sm:$0xff]
    %v3969 = vld [vmem:[#allocation10 + $0x8ac] sm:$0xff]
    %v3970 = vld [vmem:[#allocation10 + $0x8b4] sm:$0xff]
    %v3971 = vld [vmem:[#allocation10 + $0x8bc] sm:$0xff]
    %v3972 = vld [vmem:[#allocation10 + $0x8c4] sm:$0xff]
    %v3973 = vld [vmem:[#allocation10 + $0x8cc] sm:$0xff]
    %v3974 = vld [vmem:[#allocation10 + $0x8d4] sm:$0xff]
    %v3975 = vld [vmem:[#allocation10 + $0x8dc] sm:$0xff]
    %v3976 = vld [vmem:[#allocation10 + $0x8e4] sm:$0xf]
    %v3977 = vld [vmem:[#allocation10 + $0x8e8] sm:$0xff]
    %v3978 = vld [vmem:[#allocation10 + $0x8f0] sm:$0xff]
    %v3979 = vld [vmem:[#allocation10 + $0x8f8] sm:$0xff]
    %v3980 = vld [vmem:[#allocation10 + $0x900] sm:$0xff]
    %v3981 = vld [vmem:[#allocation10 + $0x908] sm:$0xff]
    %v3982 = vld [vmem:[#allocation10 + $0x910] sm:$0xff]
    %v3983 = vld [vmem:[#allocation10 + $0x918] sm:$0xff]
    %v3984 = vld [vmem:[#allocation10 + $0x920] sm:$0xff]
    %v3985 = vld [vmem:[#allocation10 + $0x928] sm:$0xff]
    %v3986 = vld [vmem:[#allocation10 + $0x930] sm:$0xf]
    %v3987 = vld [vmem:[#allocation10 + $0x934] sm:$0xff]
    %v3988 = vld [vmem:[#allocation10 + $0x93c] sm:$0xff]
    %v3989 = vld [vmem:[#allocation10 + $0x944] sm:$0xff]
    %v3990 = vld [vmem:[#allocation10 + $0x94c] sm:$0xff]
    %v3991 = vld [vmem:[#allocation10 + $0x954] sm:$0xff]
    %v3992 = vld [vmem:[#allocation10 + $0x95c] sm:$0xff]
    %v3993 = vld [vmem:[#allocation10 + $0x964] sm:$0xff]
    %v3994 = vld [vmem:[#allocation10 + $0x96c] sm:$0xff]
    %v3995 = vld [vmem:[#allocation10 + $0x974] sm:$0xff]
    %v3996 = vld [vmem:[#allocation10 + $0x97c] sm:$0xf]
    %v3997 = vld [vmem:[#allocation10 + $0x980] sm:$0xff]
    %v3998 = vld [vmem:[#allocation10 + $0x988] sm:$0xff]
    %v3999 = vld [vmem:[#allocation10 + $0x990] sm:$0xff]
    %v4000 = vld [vmem:[#allocation10 + $0x998] sm:$0xff]
    %v4001 = vld [vmem:[#allocation10 + $0x9a0] sm:$0xff]
    %v4002 = vld [vmem:[#allocation10 + $0x9a8] sm:$0xff]
    %v4003 = vld [vmem:[#allocation10 + $0x9b0] sm:$0xff]
    %v4004 = vld [vmem:[#allocation10 + $0x9b8] sm:$0xff]
    %v4005 = vld [vmem:[#allocation10 + $0x9c0] sm:$0xff]
    %v4006 = vld [vmem:[#allocation10 + $0x9c8] sm:$0xf]
    %v4007 = vld [vmem:[#allocation10 + $0x9cc] sm:$0xff]
    %v4008 = vld [vmem:[#allocation10 + $0x9d4] sm:$0xff]
    %v4009 = vld [vmem:[#allocation10 + $0x9dc] sm:$0xff]
    %v4010 = vld [vmem:[#allocation10 + $0x9e4] sm:$0xff]
    %v4011 = vld [vmem:[#allocation10 + $0x9ec] sm:$0xff]
    %v4012 = vld [vmem:[#allocation10 + $0x9f4] sm:$0xff]
    %v4013 = vld [vmem:[#allocation10 + $0x9fc] sm:$0xff]
    %v4014 = vld [vmem:[#allocation10 + $0xa04] sm:$0xff]
    %v4015 = vld [vmem:[#allocation10 + $0xa0c] sm:$0xff]
    %v4016 = vld [vmem:[#allocation10 + $0xa14] sm:$0xf]
    %v4017 = vld [vmem:[#allocation10 + $0xa18] sm:$0xff]
    %v4018 = vld [vmem:[#allocation10 + $0xa20] sm:$0xff]
    %v4019 = vld [vmem:[#allocation10 + $0xa28] sm:$0xff]
    %v4020 = vld [vmem:[#allocation10 + $0xa30] sm:$0xff]
    %v4021 = vld [vmem:[#allocation10 + $0xa38] sm:$0xff]
    %v4022 = vld [vmem:[#allocation10 + $0xa40] sm:$0xff]
    %v4023 = vld [vmem:[#allocation10 + $0xa48] sm:$0xff]
    %v4024 = vld [vmem:[#allocation10 + $0xa50] sm:$0xff]
    %v4025 = vld [vmem:[#allocation10 + $0xa58] sm:$0xff]
    %v4026 = vld [vmem:[#allocation10 + $0xa60] sm:$0xf]
    %v4027 = vld [vmem:[#allocation10 + $0xa64] sm:$0xff]
    %v4028 = vld [vmem:[#allocation10 + $0xa6c] sm:$0xff]
    %v4029 = vld [vmem:[#allocation10 + $0xa74] sm:$0xff]
    %v4030 = vld [vmem:[#allocation10 + $0xa7c] sm:$0xff]
    %v4031 = vld [vmem:[#allocation10 + $0xa84] sm:$0xff]
    %v4032 = vld [vmem:[#allocation10 + $0xa8c] sm:$0xff]
    %v4033 = vld [vmem:[#allocation10 + $0xa94] sm:$0xff]
    %v4034 = vld [vmem:[#allocation10 + $0xa9c] sm:$0xff]
    %v4035 = vld [vmem:[#allocation10 + $0xaa4] sm:$0xff]
    %v4036 = vld [vmem:[#allocation10 + $0xaac] sm:$0xf]
    %v4037 = vld [vmem:[#allocation10 + $0xab0] sm:$0xff]
    %v4038 = vld [vmem:[#allocation10 + $0xab8] sm:$0xff]
    %v4039 = vld [vmem:[#allocation10 + $0xac0] sm:$0xff]
    %v4040 = vld [vmem:[#allocation10 + $0xac8] sm:$0xff]
    %v4041 = vld [vmem:[#allocation10 + $0xad0] sm:$0xff]
    %v4042 = vld [vmem:[#allocation10 + $0xad8] sm:$0xff]
    %v4043 = vld [vmem:[#allocation10 + $0xae0] sm:$0xff]
    %v4044 = vld [vmem:[#allocation10 + $0xae8] sm:$0xff]
    %v4045 = vld [vmem:[#allocation10 + $0xaf0] sm:$0xff]
    %v4046 = vld [vmem:[#allocation10 + $0xaf8] sm:$0xf]
    %v4047 = vld [vmem:[#allocation10 + $0xafc] sm:$0xff]
    %v4048 = vld [vmem:[#allocation10 + $0xb04] sm:$0xff]
    %v4049 = vld [vmem:[#allocation10 + $0xb0c] sm:$0xff]
    %v4050 = vld [vmem:[#allocation10 + $0xb14] sm:$0xff]
    %v4051 = vld [vmem:[#allocation10 + $0xb1c] sm:$0xff]
    %v4052 = vld [vmem:[#allocation10 + $0xb24] sm:$0xff]
    %v4053 = vld [vmem:[#allocation10 + $0xb2c] sm:$0xff]
    %v4054 = vld [vmem:[#allocation10 + $0xb34] sm:$0xff]
    %v4055 = vld [vmem:[#allocation10 + $0xb3c] sm:$0xff]
    %v4056 = vld [vmem:[#allocation10 + $0xb44] sm:$0xf]
    %v4057 = vld [vmem:[#allocation10 + $0xb48] sm:$0xff]
    %v4058 = vld [vmem:[#allocation10 + $0xb50] sm:$0xff]
    %v4059 = vld [vmem:[#allocation10 + $0xb58] sm:$0xff]
    %v4060 = vld [vmem:[#allocation10 + $0xb60] sm:$0xff]
    %v4061 = vld [vmem:[#allocation10 + $0xb68] sm:$0xff]
    %v4062 = vld [vmem:[#allocation10 + $0xb70] sm:$0xff]
    %v4063 = vld [vmem:[#allocation10 + $0xb78] sm:$0xff]
    %v4064 = vld [vmem:[#allocation10 + $0xb80] sm:$0xff]
    %v4065 = vld [vmem:[#allocation10 + $0xb88] sm:$0xff]
    %v4066 = vld [vmem:[#allocation10 + $0xb90] sm:$0xf]
    %v4067 = vld [vmem:[#allocation10 + $0xb94] sm:$0xff]
    %v4068 = vld [vmem:[#allocation10 + $0xb9c] sm:$0xff]
    %v4069 = vld [vmem:[#allocation10 + $0xba4] sm:$0xff]
    %v4070 = vld [vmem:[#allocation10 + $0xbac] sm:$0xff]
    %v4071 = vld [vmem:[#allocation10 + $0xbb4] sm:$0xff]
    %v4072 = vld [vmem:[#allocation10 + $0xbbc] sm:$0xff]
    %v4073 = vld [vmem:[#allocation10 + $0xbc4] sm:$0xff]
    %v4074 = vld [vmem:[#allocation10 + $0xbcc] sm:$0xff]
    %v4075 = vld [vmem:[#allocation10 + $0xbd4] sm:$0xff]
    %v4076 = vld [vmem:[#allocation10 + $0xbdc] sm:$0xf]
    %v4077 = vld [vmem:[#allocation10 + $0xbe0] sm:$0xff]
    %v4078 = vld [vmem:[#allocation10 + $0xbe8] sm:$0xff]
    %v4079 = vld [vmem:[#allocation10 + $0xbf0] sm:$0xff]
    %v4080 = vld [vmem:[#allocation10 + $0xbf8] sm:$0xff]
    %v4081 = vld [vmem:[#allocation10 + $0xc00] sm:$0xff]
    %v4082 = vld [vmem:[#allocation10 + $0xc08] sm:$0xff]
    %v4083 = vld [vmem:[#allocation10 + $0xc10] sm:$0xff]
    %v4084 = vld [vmem:[#allocation10 + $0xc18] sm:$0xff]
    %v4085 = vld [vmem:[#allocation10 + $0xc20] sm:$0xff]
    %v4086 = vld [vmem:[#allocation10 + $0xc28] sm:$0xf]
    %v4087 = vld [vmem:[#allocation10 + $0xc2c] sm:$0xff]
    %v4088 = vld [vmem:[#allocation10 + $0xc34] sm:$0xff]
    %v4089 = vld [vmem:[#allocation10 + $0xc3c] sm:$0xff]
    %v4090 = vld [vmem:[#allocation10 + $0xc44] sm:$0xff]
    %v4091 = vld [vmem:[#allocation10 + $0xc4c] sm:$0xff]
    %v4092 = vld [vmem:[#allocation10 + $0xc54] sm:$0xff]
    %v4093 = vld [vmem:[#allocation10 + $0xc5c] sm:$0xff]
    %v4094 = vld [vmem:[#allocation10 + $0xc64] sm:$0xff]
    %v4095 = vld [vmem:[#allocation10 + $0xc6c] sm:$0xff]
    %v4096 = vld [vmem:[#allocation10 + $0xc74] sm:$0xf]
    %v4097 = vld [vmem:[#allocation10 + $0xc78] sm:$0xff]
    %v4098 = vld [vmem:[#allocation10 + $0xc80] sm:$0xff]
    %v4099 = vld [vmem:[#allocation10 + $0xc88] sm:$0xff]
    %v4100 = vld [vmem:[#allocation10 + $0xc90] sm:$0xff]
    %v4101 = vld [vmem:[#allocation10 + $0xc98] sm:$0xff]
    %v4102 = vld [vmem:[#allocation10 + $0xca0] sm:$0xff]
    %v4103 = vld [vmem:[#allocation10 + $0xca8] sm:$0xff]
    %v4104 = vld [vmem:[#allocation10 + $0xcb0] sm:$0xff]
    %v4105 = vld [vmem:[#allocation10 + $0xcb8] sm:$0xff]
    %v4106 = vld [vmem:[#allocation10 + $0xcc0] sm:$0xf]
    %v4107 = vld [vmem:[#allocation10 + $0xcc4] sm:$0xff]
    %v4108 = vld [vmem:[#allocation10 + $0xccc] sm:$0xff]
    %v4109 = vld [vmem:[#allocation10 + $0xcd4] sm:$0xff]
    %v4110 = vld [vmem:[#allocation10 + $0xcdc] sm:$0xff]
    %v4111 = vld [vmem:[#allocation10 + $0xce4] sm:$0xff]
    %v4112 = vld [vmem:[#allocation10 + $0xcec] sm:$0xff]
    %v4113 = vld [vmem:[#allocation10 + $0xcf4] sm:$0xff]
    %v4114 = vld [vmem:[#allocation10 + $0xcfc] sm:$0xff]
    %v4115 = vld [vmem:[#allocation10 + $0xd04] sm:$0xff]
    %v4116 = vld [vmem:[#allocation10 + $0xd0c] sm:$0xf]
    %v4117 = vld [vmem:[#allocation10 + $0xd10] sm:$0xff]
    %v4118 = vld [vmem:[#allocation10 + $0xd18] sm:$0xff]
    %v4119 = vld [vmem:[#allocation10 + $0xd20] sm:$0xff]
    %v4120 = vld [vmem:[#allocation10 + $0xd28] sm:$0xff]
    %v4121 = vld [vmem:[#allocation10 + $0xd30] sm:$0xff]
    %v4122 = vld [vmem:[#allocation10 + $0xd38] sm:$0xff]
    %v4123 = vld [vmem:[#allocation10 + $0xd40] sm:$0xff]
    %v4124 = vld [vmem:[#allocation10 + $0xd48] sm:$0xff]
    %v4125 = vld [vmem:[#allocation10 + $0xd50] sm:$0xff]
    %v4126 = vld [vmem:[#allocation10 + $0xd58] sm:$0xf]
    %v4127 = vld [vmem:[#allocation10 + $0xd5c] sm:$0xff]
    %v4128 = vld [vmem:[#allocation10 + $0xd64] sm:$0xff]
    %v4129 = vld [vmem:[#allocation10 + $0xd6c] sm:$0xff]
    %v4130 = vld [vmem:[#allocation10 + $0xd74] sm:$0xff]
    %v4131 = vld [vmem:[#allocation10 + $0xd7c] sm:$0xff]
    %v4132 = vld [vmem:[#allocation10 + $0xd84] sm:$0xff]
    %v4133 = vld [vmem:[#allocation10 + $0xd8c] sm:$0xff]
    %v4134 = vld [vmem:[#allocation10 + $0xd94] sm:$0xff]
    %v4135 = vld [vmem:[#allocation10 + $0xd9c] sm:$0xff]
    %v4136 = vld [vmem:[#allocation10 + $0xda4] sm:$0xf]
    %v4137 = vld [vmem:[#allocation10 + $0xda8] sm:$0xff]
    %v4138 = vld [vmem:[#allocation10 + $0xdb0] sm:$0xff]
    %v4139 = vld [vmem:[#allocation10 + $0xdb8] sm:$0xff]
    %v4140 = vld [vmem:[#allocation10 + $0xdc0] sm:$0xff]
    %v4141 = vld [vmem:[#allocation10 + $0xdc8] sm:$0xff]
    %v4142 = vld [vmem:[#allocation10 + $0xdd0] sm:$0xff]
    %v4143 = vld [vmem:[#allocation10 + $0xdd8] sm:$0xff]
    %v4144 = vld [vmem:[#allocation10 + $0xde0] sm:$0xff]
    %v4145 = vld [vmem:[#allocation10 + $0xde8] sm:$0xff]
    %v4146 = vld [vmem:[#allocation10 + $0xdf0] sm:$0xf]
    %v4147 = vld [vmem:[#allocation10 + $0xdf4] sm:$0xff]
    %v4148 = vld [vmem:[#allocation10 + $0xdfc] sm:$0xff]
    %v4149 = vld [vmem:[#allocation10 + $0xe04] sm:$0xff]
    %v4150 = vld [vmem:[#allocation10 + $0xe0c] sm:$0xff]
    %v4151 = vld [vmem:[#allocation10 + $0xe14] sm:$0xff]
    %v4152 = vld [vmem:[#allocation10 + $0xe1c] sm:$0xff]
    %v4153 = vld [vmem:[#allocation10 + $0xe24] sm:$0xff]
    %v4154 = vld [vmem:[#allocation10 + $0xe2c] sm:$0xff]
    %v4155 = vld [vmem:[#allocation10 + $0xe34] sm:$0xff]
    %v4156 = vld [vmem:[#allocation10 + $0xe3c] sm:$0xf]
    %v4157 = vld [vmem:[#allocation10 + $0xe40] sm:$0xff]
    %v4158 = vld [vmem:[#allocation10 + $0xe48] sm:$0xff]
    %v4159 = vld [vmem:[#allocation10 + $0xe50] sm:$0xff]
    %v4160 = vld [vmem:[#allocation10 + $0xe58] sm:$0xff]
    %v4161 = vld [vmem:[#allocation10 + $0xe60] sm:$0xff]
    %v4162 = vld [vmem:[#allocation10 + $0xe68] sm:$0xff]
    %v4163 = vld [vmem:[#allocation10 + $0xe70] sm:$0xff]
    %v4164 = vld [vmem:[#allocation10 + $0xe78] sm:$0xff]
    %v4165 = vld [vmem:[#allocation10 + $0xe80] sm:$0xff]
    %v4166 = vld [vmem:[#allocation10 + $0xe88] sm:$0xf]
    %v4167 = vld [vmem:[#allocation10 + $0xe8c] sm:$0xff]
    %v4168 = vld [vmem:[#allocation10 + $0xe94] sm:$0xff]
    %v4169 = vld [vmem:[#allocation10 + $0xe9c] sm:$0xff]
    %v4170 = vld [vmem:[#allocation10 + $0xea4] sm:$0xff]
    %v4171 = vld [vmem:[#allocation10 + $0xeac] sm:$0xff]
    %v4172 = vld [vmem:[#allocation10 + $0xeb4] sm:$0xff]
    %v4173 = vld [vmem:[#allocation10 + $0xebc] sm:$0xff]
    %v4174 = vld [vmem:[#allocation10 + $0xec4] sm:$0xff]
    %v4175 = vld [vmem:[#allocation10 + $0xecc] sm:$0xff]
    %v4176 = vld [vmem:[#allocation10 + $0xed4] sm:$0xf]
    %v4177 = vld [vmem:[#allocation10 + $0xed8] sm:$0xff]
    %v4178 = vld [vmem:[#allocation10 + $0xee0] sm:$0xff]
    %v4179 = vld [vmem:[#allocation10 + $0xee8] sm:$0xff]
    %v4180 = vld [vmem:[#allocation10 + $0xef0] sm:$0xff]
    %v4181 = vld [vmem:[#allocation10 + $0xef8] sm:$0xff]
    %v4182 = vld [vmem:[#allocation10 + $0xf00] sm:$0xff]
    %v4183 = vld [vmem:[#allocation10 + $0xf08] sm:$0xff]
    %v4184 = vld [vmem:[#allocation10 + $0xf10] sm:$0xff]
    %v4185 = vld [vmem:[#allocation10 + $0xf18] sm:$0xff]
    %v4186 = vld [vmem:[#allocation10 + $0xf20] sm:$0xf]
    %v4187 = vld [vmem:[#allocation10 + $0xf24] sm:$0xff]
    %v4188 = vld [vmem:[#allocation10 + $0xf2c] sm:$0xff]
    %v4189 = vld [vmem:[#allocation10 + $0xf34] sm:$0xff]
    %v4190 = vld [vmem:[#allocation10 + $0xf3c] sm:$0xff]
    %v4191 = vld [vmem:[#allocation10 + $0xf44] sm:$0xff]
    %v4192 = vld [vmem:[#allocation10 + $0xf4c] sm:$0xff]
    %v4193 = vld [vmem:[#allocation10 + $0xf54] sm:$0xff]
    %v4194 = vld [vmem:[#allocation10 + $0xf5c] sm:$0xff]
    %v4195 = vld [vmem:[#allocation10 + $0xf64] sm:$0xff]
    %v4196 = vld [vmem:[#allocation10 + $0xf6c] sm:$0xf]
    %v4197 = vld [vmem:[#allocation10 + $0xf70] sm:$0xff]
    %v4198 = vld [vmem:[#allocation10 + $0xf78] sm:$0xff]
    %v4199 = vld [vmem:[#allocation10 + $0xf80] sm:$0xff]
    %v4200 = vld [vmem:[#allocation10 + $0xf88] sm:$0xff]
    %v4201 = vld [vmem:[#allocation10 + $0xf90] sm:$0xff]
    %v4202 = vld [vmem:[#allocation10 + $0xf98] sm:$0xff]
    %v4203 = vld [vmem:[#allocation10 + $0xfa0] sm:$0xff]
    %v4204 = vld [vmem:[#allocation10 + $0xfa8] sm:$0xff]
    %v4205 = vld [vmem:[#allocation10 + $0xfb0] sm:$0xff]
    %v4206 = vld [vmem:[#allocation10 + $0xfb8] sm:$0xf]
    %v4207 = vld [vmem:[#allocation10 + $0xfbc] sm:$0xff]
    %v4208 = vld [vmem:[#allocation10 + $0xfc4] sm:$0xff]
    %v4209 = vld [vmem:[#allocation10 + $0xfcc] sm:$0xff]
    %v4210 = vld [vmem:[#allocation10 + $0xfd4] sm:$0xff]
    %v4211 = vld [vmem:[#allocation10 + $0xfdc] sm:$0xff]
    %v4212 = vld [vmem:[#allocation10 + $0xfe4] sm:$0xff]
    %v4213 = vld [vmem:[#allocation10 + $0xfec] sm:$0xff]
    %v4214 = vld [vmem:[#allocation10 + $0xff4] sm:$0xff]
    %v4215 = vld [vmem:[#allocation10 + $0xffc] sm:$0xff]
    %v4216 = vld [vmem:[#allocation10 + $0x1004] sm:$0xf]
    %v4217 = vld [vmem:[#allocation10 + $0x1008] sm:$0xff]
    %v4218 = vld [vmem:[#allocation10 + $0x1010] sm:$0xff]
    %v4219 = vld [vmem:[#allocation10 + $0x1018] sm:$0xff]
    %v4220 = vld [vmem:[#allocation10 + $0x1020] sm:$0xff]
    %v4221 = vld [vmem:[#allocation10 + $0x1028] sm:$0xff]
    %v4222 = vld [vmem:[#allocation10 + $0x1030] sm:$0xff]
    %v4223 = vld [vmem:[#allocation10 + $0x1038] sm:$0xff]
    %v4224 = vld [vmem:[#allocation10 + $0x1040] sm:$0xff]
    %v4225 = vld [vmem:[#allocation10 + $0x1048] sm:$0xff]
    %v4226 = vld [vmem:[#allocation10 + $0x1050] sm:$0xf]
    %v4227 = vld [vmem:[#allocation10 + $0x1054] sm:$0xff]
    %v4228 = vld [vmem:[#allocation10 + $0x105c] sm:$0xff]
    %v4229 = vld [vmem:[#allocation10 + $0x1064] sm:$0xff]
    %v4230 = vld [vmem:[#allocation10 + $0x106c] sm:$0xff]
    %v4231 = vld [vmem:[#allocation10 + $0x1074] sm:$0xff]
    %v4232 = vld [vmem:[#allocation10 + $0x107c] sm:$0xff]
    %v4233 = vld [vmem:[#allocation10 + $0x1084] sm:$0xff]
    %v4234 = vld [vmem:[#allocation10 + $0x108c] sm:$0xff]
    %v4235 = vld [vmem:[#allocation10 + $0x1094] sm:$0xff]
    %v4236 = vld [vmem:[#allocation10 + $0x109c] sm:$0xf]
    %v4237 = vld [vmem:[#allocation10 + $0x10a0] sm:$0xff]
    %v4238 = vld [vmem:[#allocation10 + $0x10a8] sm:$0xff]
    %v4239 = vld [vmem:[#allocation10 + $0x10b0] sm:$0xff]
    %v4240 = vld [vmem:[#allocation10 + $0x10b8] sm:$0xff]
    %v4241 = vld [vmem:[#allocation10 + $0x10c0] sm:$0xff]
    %v4242 = vld [vmem:[#allocation10 + $0x10c8] sm:$0xff]
    %v4243 = vld [vmem:[#allocation10 + $0x10d0] sm:$0xff]
    %v4244 = vld [vmem:[#allocation10 + $0x10d8] sm:$0xff]
    %v4245 = vld [vmem:[#allocation10 + $0x10e0] sm:$0xff]
    %v4246 = vld [vmem:[#allocation10 + $0x10e8] sm:$0xf]
    %v4247 = vld [vmem:[#allocation10 + $0x10ec] sm:$0xff]
    %v4248 = vld [vmem:[#allocation10 + $0x10f4] sm:$0xff]
    %v4249 = vld [vmem:[#allocation10 + $0x10fc] sm:$0xff]
    %v4250 = vld [vmem:[#allocation10 + $0x1104] sm:$0xff]
    %v4251 = vld [vmem:[#allocation10 + $0x110c] sm:$0xff]
    %v4252 = vld [vmem:[#allocation10 + $0x1114] sm:$0xff]
    %v4253 = vld [vmem:[#allocation10 + $0x111c] sm:$0xff]
    %v4254 = vld [vmem:[#allocation10 + $0x1124] sm:$0xff]
    %v4255 = vld [vmem:[#allocation10 + $0x112c] sm:$0xff]
    %v4256 = vld [vmem:[#allocation10 + $0x1134] sm:$0xf]
    %v4257 = vld [vmem:[#allocation10 + $0x1138] sm:$0xff]
    %v4258 = vld [vmem:[#allocation10 + $0x1140] sm:$0xff]
    %v4259 = vld [vmem:[#allocation10 + $0x1148] sm:$0xff]
    %v4260 = vld [vmem:[#allocation10 + $0x1150] sm:$0xff]
    %v4261 = vld [vmem:[#allocation10 + $0x1158] sm:$0xff]
    %v4262 = vld [vmem:[#allocation10 + $0x1160] sm:$0xff]
    %v4263 = vld [vmem:[#allocation10 + $0x1168] sm:$0xff]
    %v4264 = vld [vmem:[#allocation10 + $0x1170] sm:$0xff]
    %v4265 = vld [vmem:[#allocation10 + $0x1178] sm:$0xff]
    %v4266 = vld [vmem:[#allocation10 + $0x1180] sm:$0xf]
    %v4267 = vld [vmem:[#allocation10 + $0x1184] sm:$0xff]
    %v4268 = vld [vmem:[#allocation10 + $0x118c] sm:$0xff]
    %v4269 = vld [vmem:[#allocation10 + $0x1194] sm:$0xff]
    %v4270 = vld [vmem:[#allocation10 + $0x119c] sm:$0xff]
    %v4271 = vld [vmem:[#allocation10 + $0x11a4] sm:$0xff]
    %v4272 = vld [vmem:[#allocation10 + $0x11ac] sm:$0xff]
    %v4273 = vld [vmem:[#allocation10 + $0x11b4] sm:$0xff]
    %v4274 = vld [vmem:[#allocation10 + $0x11bc] sm:$0xff]
    %v4275 = vld [vmem:[#allocation10 + $0x11c4] sm:$0xff]
    %v4276 = vld [vmem:[#allocation10 + $0x11cc] sm:$0xf]
    %v4277 = vld [vmem:[#allocation10 + $0x11d0] sm:$0xff]
    %v4278 = vld [vmem:[#allocation10 + $0x11d8] sm:$0xff]
    %v4279 = vld [vmem:[#allocation10 + $0x11e0] sm:$0xff]
    %v4280 = vld [vmem:[#allocation10 + $0x11e8] sm:$0xff]
    %v4281 = vld [vmem:[#allocation10 + $0x11f0] sm:$0xff]
    %v4282 = vld [vmem:[#allocation10 + $0x11f8] sm:$0xff]
    %v4283 = vld [vmem:[#allocation10 + $0x1200] sm:$0xff]
    %v4284 = vld [vmem:[#allocation10 + $0x1208] sm:$0xff]
    %v4285 = vld [vmem:[#allocation10 + $0x1210] sm:$0xff]
    %v4286 = vld [vmem:[#allocation10 + $0x1218] sm:$0xf]
    %v4287 = vld [vmem:[#allocation10 + $0x121c] sm:$0xff]
    %v4288 = vld [vmem:[#allocation10 + $0x1224] sm:$0xff]
    %v4289 = vld [vmem:[#allocation10 + $0x122c] sm:$0xff]
    %v4290 = vld [vmem:[#allocation10 + $0x1234] sm:$0xff]
    %v4291 = vld [vmem:[#allocation10 + $0x123c] sm:$0xff]
    %v4292 = vld [vmem:[#allocation10 + $0x1244] sm:$0xff]
    %v4293 = vld [vmem:[#allocation10 + $0x124c] sm:$0xff]
    %v4294 = vld [vmem:[#allocation10 + $0x1254] sm:$0xff]
    %v4295 = vld [vmem:[#allocation10 + $0x125c] sm:$0xff]
    %v4296 = vld [vmem:[#allocation10 + $0x1264] sm:$0xf]
    %v4297 = vld [vmem:[#allocation10 + $0x1268] sm:$0xff]
    %v4298 = vld [vmem:[#allocation10 + $0x1270] sm:$0xff]
    %v4299 = vld [vmem:[#allocation10 + $0x1278] sm:$0xff]
    %v4300 = vld [vmem:[#allocation10 + $0x1280] sm:$0xff]
    %v4301 = vld [vmem:[#allocation10 + $0x1288] sm:$0xff]
    %v4302 = vld [vmem:[#allocation10 + $0x1290] sm:$0xff]
    %v4303 = vld [vmem:[#allocation10 + $0x1298] sm:$0xff]
    %v4304 = vld [vmem:[#allocation10 + $0x12a0] sm:$0xff]
    %v4305 = vld [vmem:[#allocation10 + $0x12a8] sm:$0xff]
    %v4306 = vld [vmem:[#allocation10 + $0x12b0] sm:$0xf]
    %v4307 = vld [vmem:[#allocation10 + $0x12b4] sm:$0xff]
    %v4308 = vld [vmem:[#allocation10 + $0x12bc] sm:$0xff]
    %v4309 = vld [vmem:[#allocation10 + $0x12c4] sm:$0xff]
    %v4310 = vld [vmem:[#allocation10 + $0x12cc] sm:$0xff]
    %v4311 = vld [vmem:[#allocation10 + $0x12d4] sm:$0xff]
    %v4312 = vld [vmem:[#allocation10 + $0x12dc] sm:$0xff]
    %v4313 = vld [vmem:[#allocation10 + $0x12e4] sm:$0xff]
    %v4314 = vld [vmem:[#allocation10 + $0x12ec] sm:$0xff]
    %v4315 = vld [vmem:[#allocation10 + $0x12f4] sm:$0xff]
    %v4316 = vld [vmem:[#allocation10 + $0x12fc] sm:$0xf]
    %v4317 = vld [vmem:[#allocation10 + $0x1300] sm:$0xff]
    %v4318 = vld [vmem:[#allocation10 + $0x1308] sm:$0xff]
    %v4319 = vld [vmem:[#allocation10 + $0x1310] sm:$0xff]
    %v4320 = vld [vmem:[#allocation10 + $0x1318] sm:$0xff]
    %v4321 = vld [vmem:[#allocation10 + $0x1320] sm:$0xff]
    %v4322 = vld [vmem:[#allocation10 + $0x1328] sm:$0xff]
    %v4323 = vld [vmem:[#allocation10 + $0x1330] sm:$0xff]
    %v4324 = vld [vmem:[#allocation10 + $0x1338] sm:$0xff]
    %v4325 = vld [vmem:[#allocation10 + $0x1340] sm:$0xff]
    %v4326 = vld [vmem:[#allocation10 + $0x1348] sm:$0xf]
    %v4327 = vld [vmem:[#allocation10 + $0x134c] sm:$0xff]
    %v4328 = vld [vmem:[#allocation10 + $0x1354] sm:$0xff]
    %v4329 = vld [vmem:[#allocation10 + $0x135c] sm:$0xff]
    %v4330 = vld [vmem:[#allocation10 + $0x1364] sm:$0xff]
    %v4331 = vld [vmem:[#allocation10 + $0x136c] sm:$0xff]
    %v4332 = vld [vmem:[#allocation10 + $0x1374] sm:$0xff]
    %v4333 = vld [vmem:[#allocation10 + $0x137c] sm:$0xff]
    %v4334 = vld [vmem:[#allocation10 + $0x1384] sm:$0xff]
    %v4335 = vld [vmem:[#allocation10 + $0x138c] sm:$0xff]
    %v4336 = vld [vmem:[#allocation10 + $0x1394] sm:$0xf]
    %v4337 = vld [vmem:[#allocation10 + $0x1398] sm:$0xff]
    %v4338 = vld [vmem:[#allocation10 + $0x13a0] sm:$0xff]
    %v4339 = vld [vmem:[#allocation10 + $0x13a8] sm:$0xff]
    %v4340 = vld [vmem:[#allocation10 + $0x13b0] sm:$0xff]
    %v4341 = vld [vmem:[#allocation10 + $0x13b8] sm:$0xff]
    %v4342 = vld [vmem:[#allocation10 + $0x13c0] sm:$0xff]
    %v4343 = vld [vmem:[#allocation10 + $0x13c8] sm:$0xff]
    %v4344 = vld [vmem:[#allocation10 + $0x13d0] sm:$0xff]
    %v4345 = vld [vmem:[#allocation10 + $0x13d8] sm:$0xff]
    %v4346 = vld [vmem:[#allocation10 + $0x13e0] sm:$0xf]
    %v4347 = vld [vmem:[#allocation10 + $0x13e4] sm:$0xff]
    %v4348 = vld [vmem:[#allocation10 + $0x13ec] sm:$0xff]
    %v4349 = vld [vmem:[#allocation10 + $0x13f4] sm:$0xff]
    %v4350 = vld [vmem:[#allocation10 + $0x13fc] sm:$0xff]
    %v4351 = vld [vmem:[#allocation10 + $0x1404] sm:$0xff]
    %v4352 = vld [vmem:[#allocation10 + $0x140c] sm:$0xff]
    %v4353 = vld [vmem:[#allocation10 + $0x1414] sm:$0xff]
    %v4354 = vld [vmem:[#allocation10 + $0x141c] sm:$0xff]
    %v4355 = vld [vmem:[#allocation10 + $0x1424] sm:$0xff]
    %v4356 = vld [vmem:[#allocation10 + $0x142c] sm:$0xf]
    %v4357 = vld [vmem:[#allocation10 + $0x1430] sm:$0xff]
    %v4358 = vld [vmem:[#allocation10 + $0x1438] sm:$0xff]
    %v4359 = vld [vmem:[#allocation10 + $0x1440] sm:$0xff]
    %v4360 = vld [vmem:[#allocation10 + $0x1448] sm:$0xff]
    %v4361 = vld [vmem:[#allocation10 + $0x1450] sm:$0xff]
    %v4362 = vld [vmem:[#allocation10 + $0x1458] sm:$0xff]
    %v4363 = vld [vmem:[#allocation10 + $0x1460] sm:$0xff]
    %v4364 = vld [vmem:[#allocation10 + $0x1468] sm:$0xff]
    %v4365 = vld [vmem:[#allocation10 + $0x1470] sm:$0xff]
    %v4366 = vld [vmem:[#allocation10 + $0x1478] sm:$0xf]
    %v4367 = vld [vmem:[#allocation10 + $0x147c] sm:$0xff]
    %v4368 = vld [vmem:[#allocation10 + $0x1484] sm:$0xff]
    %v4369 = vld [vmem:[#allocation10 + $0x148c] sm:$0xff]
    %v4370 = vld [vmem:[#allocation10 + $0x1494] sm:$0xff]
    %v4371 = vld [vmem:[#allocation10 + $0x149c] sm:$0xff]
    %v4372 = vld [vmem:[#allocation10 + $0x14a4] sm:$0xff]
    %v4373 = vld [vmem:[#allocation10 + $0x14ac] sm:$0xff]
    %v4374 = vld [vmem:[#allocation10 + $0x14b4] sm:$0xff]
    %v4375 = vld [vmem:[#allocation10 + $0x14bc] sm:$0xff]
    %v4376 = vld [vmem:[#allocation10 + $0x14c4] sm:$0xf]
    %v4377 = vld [vmem:[#allocation10 + $0x14c8] sm:$0xff]
    %v4378 = vld [vmem:[#allocation10 + $0x14d0] sm:$0xff]
    %v4379 = vld [vmem:[#allocation10 + $0x14d8] sm:$0xff]
    %v4380 = vld [vmem:[#allocation10 + $0x14e0] sm:$0xff]
    %v4381 = vld [vmem:[#allocation10 + $0x14e8] sm:$0xff]
    %v4382 = vld [vmem:[#allocation10 + $0x14f0] sm:$0xff]
    %v4383 = vld [vmem:[#allocation10 + $0x14f8] sm:$0xff]
    %v4384 = vld [vmem:[#allocation10 + $0x1500] sm:$0xff]
    %v4385 = vld [vmem:[#allocation10 + $0x1508] sm:$0xff]
    %v4386 = vld [vmem:[#allocation10 + $0x1510] sm:$0xf]
    %v4387 = vld [vmem:[#allocation10 + $0x1514] sm:$0xff]
    %v4388 = vld [vmem:[#allocation10 + $0x151c] sm:$0xff]
    %v4389 = vld [vmem:[#allocation10 + $0x1524] sm:$0xff]
    %v4390 = vld [vmem:[#allocation10 + $0x152c] sm:$0xff]
    %v4391 = vld [vmem:[#allocation10 + $0x1534] sm:$0xff]
    %v4392 = vld [vmem:[#allocation10 + $0x153c] sm:$0xff]
    %v4393 = vld [vmem:[#allocation10 + $0x1544] sm:$0xff]
    %v4394 = vld [vmem:[#allocation10 + $0x154c] sm:$0xff]
    %v4395 = vld [vmem:[#allocation10 + $0x1554] sm:$0xff]
    %v4396 = vld [vmem:[#allocation10 + $0x155c] sm:$0xf]
    %v4397 = vld [vmem:[#allocation10 + $0x1560] sm:$0xff]
    %v4398 = vld [vmem:[#allocation10 + $0x1568] sm:$0xff]
    %v4399 = vld [vmem:[#allocation10 + $0x1570] sm:$0xff]
    %v4400 = vld [vmem:[#allocation10 + $0x1578] sm:$0xff]
    %v4401 = vld [vmem:[#allocation10 + $0x1580] sm:$0xff]
    %v4402 = vld [vmem:[#allocation10 + $0x1588] sm:$0xff]
    %v4403 = vld [vmem:[#allocation10 + $0x1590] sm:$0xff]
    %v4404 = vld [vmem:[#allocation10 + $0x1598] sm:$0xff]
    %v4405 = vld [vmem:[#allocation10 + $0x15a0] sm:$0xff]
    %v4406 = vld [vmem:[#allocation10 + $0x15a8] sm:$0xf]
    %v4407 = vld [vmem:[#allocation10 + $0x15ac] sm:$0xff]
    %v4408 = vld [vmem:[#allocation10 + $0x15b4] sm:$0xff]
    %v4409 = vld [vmem:[#allocation10 + $0x15bc] sm:$0xff]
    %v4410 = vld [vmem:[#allocation10 + $0x15c4] sm:$0xff]
    %v4411 = vld [vmem:[#allocation10 + $0x15cc] sm:$0xff]
    %v4412 = vld [vmem:[#allocation10 + $0x15d4] sm:$0xff]
    %v4413 = vld [vmem:[#allocation10 + $0x15dc] sm:$0xff]
    %v4414 = vld [vmem:[#allocation10 + $0x15e4] sm:$0xff]
    %v4415 = vld [vmem:[#allocation10 + $0x15ec] sm:$0xff]
    %v4416 = vld [vmem:[#allocation10 + $0x15f4] sm:$0xf]
    %v4417 = vld [vmem:[#allocation10 + $0x15f8] sm:$0xff]
    %v4418 = vld [vmem:[#allocation10 + $0x1600] sm:$0xff]
    %v4419 = vld [vmem:[#allocation10 + $0x1608] sm:$0xff]
    %v4420 = vld [vmem:[#allocation10 + $0x1610] sm:$0xff]
    %v4421 = vld [vmem:[#allocation10 + $0x1618] sm:$0xff]
    %v4422 = vld [vmem:[#allocation10 + $0x1620] sm:$0xff]
    %v4423 = vld [vmem:[#allocation10 + $0x1628] sm:$0xff]
    %v4424 = vld [vmem:[#allocation10 + $0x1630] sm:$0xff]
    %v4425 = vld [vmem:[#allocation10 + $0x1638] sm:$0xff]
    %v4426 = vld [vmem:[#allocation10 + $0x1640] sm:$0xf]
    %v4427 = vld [vmem:[#allocation10 + $0x1644] sm:$0xff]
    %v4428 = vld [vmem:[#allocation10 + $0x164c] sm:$0xff]
    %v4429 = vld [vmem:[#allocation10 + $0x1654] sm:$0xff]
    %v4430 = vld [vmem:[#allocation10 + $0x165c] sm:$0xff]
    %v4431 = vld [vmem:[#allocation10 + $0x1664] sm:$0xff]
    %v4432 = vld [vmem:[#allocation10 + $0x166c] sm:$0xff]
    %v4433 = vld [vmem:[#allocation10 + $0x1674] sm:$0xff]
    %v4434 = vld [vmem:[#allocation10 + $0x167c] sm:$0xff]
    %v4435 = vld [vmem:[#allocation10 + $0x1684] sm:$0xff]
    %v4436 = vld [vmem:[#allocation10 + $0x168c] sm:$0xf]
    %v4437 = vld [vmem:[#allocation10 + $0x1690] sm:$0xff]
    %v4438 = vld [vmem:[#allocation10 + $0x1698] sm:$0xff]
    %v4439 = vld [vmem:[#allocation10 + $0x16a0] sm:$0xff]
    %v4440 = vld [vmem:[#allocation10 + $0x16a8] sm:$0xff]
    %v4441 = vld [vmem:[#allocation10 + $0x16b0] sm:$0xff]
    %v4442 = vld [vmem:[#allocation10 + $0x16b8] sm:$0xff]
    %v4443 = vld [vmem:[#allocation10 + $0x16c0] sm:$0xff]
    %v4444 = vld [vmem:[#allocation10 + $0x16c8] sm:$0xff]
    %v4445 = vld [vmem:[#allocation10 + $0x16d0] sm:$0xff]
    %v4446 = vld [vmem:[#allocation10 + $0x16d8] sm:$0xf]
    %v4447 = vld [vmem:[#allocation10 + $0x16dc] sm:$0xff]
    %v4448 = vld [vmem:[#allocation10 + $0x16e4] sm:$0xff]
    %v4449 = vld [vmem:[#allocation10 + $0x16ec] sm:$0xff]
    %v4450 = vld [vmem:[#allocation10 + $0x16f4] sm:$0xff]
    %v4451 = vld [vmem:[#allocation10 + $0x16fc] sm:$0xff]
    %v4452 = vld [vmem:[#allocation10 + $0x1704] sm:$0xff]
    %v4453 = vld [vmem:[#allocation10 + $0x170c] sm:$0xff]
    %v4454 = vld [vmem:[#allocation10 + $0x1714] sm:$0xff]
    %v4455 = vld [vmem:[#allocation10 + $0x171c] sm:$0xff]
    %v4456 = vld [vmem:[#allocation10 + $0x1724] sm:$0xf]
    %v4457 = vld [vmem:[#allocation10 + $0x1728] sm:$0xff]
    %v4458 = vld [vmem:[#allocation10 + $0x1730] sm:$0xff]
    %v4459 = vld [vmem:[#allocation10 + $0x1738] sm:$0xff]
    %v4460 = vld [vmem:[#allocation10 + $0x1740] sm:$0xff]
    %v4461 = vld [vmem:[#allocation10 + $0x1748] sm:$0xff]
    %v4462 = vld [vmem:[#allocation10 + $0x1750] sm:$0xff]
    %v4463 = vld [vmem:[#allocation10 + $0x1758] sm:$0xff]
    %v4464 = vld [vmem:[#allocation10 + $0x1760] sm:$0xff]
    %v4465 = vld [vmem:[#allocation10 + $0x1768] sm:$0xff]
    %v4466 = vld [vmem:[#allocation10 + $0x1770] sm:$0xf]
    %v4467 = vld [vmem:[#allocation10 + $0x1774] sm:$0xff]
    %v4468 = vld [vmem:[#allocation10 + $0x177c] sm:$0xff]
    %v4469 = vld [vmem:[#allocation10 + $0x1784] sm:$0xff]
    %v4470 = vld [vmem:[#allocation10 + $0x178c] sm:$0xff]
    %v4471 = vld [vmem:[#allocation10 + $0x1794] sm:$0xff]
    %v4472 = vld [vmem:[#allocation10 + $0x179c] sm:$0xff]
    %v4473 = vld [vmem:[#allocation10 + $0x17a4] sm:$0xff]
    %v4474 = vld [vmem:[#allocation10 + $0x17ac] sm:$0xff]
    %v4475 = vld [vmem:[#allocation10 + $0x17b4] sm:$0xff]
    %v4476 = vld [vmem:[#allocation10 + $0x17bc] sm:$0xf]
    %v4477 = vld [vmem:[#allocation10 + $0x17c0] sm:$0xff]
    %v4478 = vld [vmem:[#allocation10 + $0x17c8] sm:$0xff]
    %v4479 = vld [vmem:[#allocation10 + $0x17d0] sm:$0xff]
    %v4480 = vld [vmem:[#allocation10 + $0x17d8] sm:$0xff]
    %v4481 = vld [vmem:[#allocation10 + $0x17e0] sm:$0xff]
    %v4482 = vld [vmem:[#allocation10 + $0x17e8] sm:$0xff]
    %v4483 = vld [vmem:[#allocation10 + $0x17f0] sm:$0xff]
    %v4484 = vld [vmem:[#allocation10 + $0x17f8] sm:$0xff]
    %v4485 = vld [vmem:[#allocation10 + $0x1800] sm:$0xff]
    %v4486 = vld [vmem:[#allocation10 + $0x1808] sm:$0xf]
    %v4487 = vld [vmem:[#allocation10 + $0x180c] sm:$0xff]
    %v4488 = vld [vmem:[#allocation10 + $0x1814] sm:$0xff]
    %v4489 = vld [vmem:[#allocation10 + $0x181c] sm:$0xff]
    %v4490 = vld [vmem:[#allocation10 + $0x1824] sm:$0xff]
    %v4491 = vld [vmem:[#allocation10 + $0x182c] sm:$0xff]
    %v4492 = vld [vmem:[#allocation10 + $0x1834] sm:$0xff]
    %v4493 = vld [vmem:[#allocation10 + $0x183c] sm:$0xff]
    %v4494 = vld [vmem:[#allocation10 + $0x1844] sm:$0xff]
    %v4495 = vld [vmem:[#allocation10 + $0x184c] sm:$0xff]
    %v4496 = vld [vmem:[#allocation10 + $0x1854] sm:$0xf]
    %v4497 = vld [vmem:[#allocation10 + $0x1858] sm:$0xff]
    %v4498 = vld [vmem:[#allocation10 + $0x1860] sm:$0xff]
    %v4499 = vld [vmem:[#allocation10 + $0x1868] sm:$0xff]
    %v4500 = vld [vmem:[#allocation10 + $0x1870] sm:$0xff]
    %v4501 = vld [vmem:[#allocation10 + $0x1878] sm:$0xff]
    %v4502 = vld [vmem:[#allocation10 + $0x1880] sm:$0xff]
    %v4503 = vld [vmem:[#allocation10 + $0x1888] sm:$0xff]
    %v4504 = vld [vmem:[#allocation10 + $0x1890] sm:$0xff]
    %v4505 = vld [vmem:[#allocation10 + $0x1898] sm:$0xff]
    %v4506 = vld [vmem:[#allocation10 + $0x18a0] sm:$0xf]
    %v4507 = vld [vmem:[#allocation10 + $0x18a4] sm:$0xff]
    %v4508 = vld [vmem:[#allocation10 + $0x18ac] sm:$0xff]
    %v4509 = vld [vmem:[#allocation10 + $0x18b4] sm:$0xff]
    %v4510 = vld [vmem:[#allocation10 + $0x18bc] sm:$0xff]
    %v4511 = vld [vmem:[#allocation10 + $0x18c4] sm:$0xff]
    %v4512 = vld [vmem:[#allocation10 + $0x18cc] sm:$0xff]
    %v4513 = vld [vmem:[#allocation10 + $0x18d4] sm:$0xff]
    %v4514 = vld [vmem:[#allocation10 + $0x18dc] sm:$0xff]
    %v4515 = vld [vmem:[#allocation10 + $0x18e4] sm:$0xff]
    %v4516 = vld [vmem:[#allocation10 + $0x18ec] sm:$0xf]
    %v4517 = vld [vmem:[#allocation10 + $0x18f0] sm:$0xff]
    %v4518 = vld [vmem:[#allocation10 + $0x18f8] sm:$0xff]
    %v4519 = vld [vmem:[#allocation10 + $0x1900] sm:$0xff]
    %v4520 = vld [vmem:[#allocation10 + $0x1908] sm:$0xff]
    %v4521 = vld [vmem:[#allocation10 + $0x1910] sm:$0xff]
    %v4522 = vld [vmem:[#allocation10 + $0x1918] sm:$0xff]
    %v4523 = vld [vmem:[#allocation10 + $0x1920] sm:$0xff]
    %v4524 = vld [vmem:[#allocation10 + $0x1928] sm:$0xff]
    %v4525 = vld [vmem:[#allocation10 + $0x1930] sm:$0xff]
    %v4526 = vld [vmem:[#allocation10 + $0x1938] sm:$0xf]
    %v4527 = vld [vmem:[#allocation10 + $0x193c] sm:$0xff]
    %v4528 = vld [vmem:[#allocation10 + $0x1944] sm:$0xff]
    %v4529 = vld [vmem:[#allocation10 + $0x194c] sm:$0xff]
    %v4530 = vld [vmem:[#allocation10 + $0x1954] sm:$0xff]
    %v4531 = vld [vmem:[#allocation10 + $0x195c] sm:$0xff]
    %v4532 = vld [vmem:[#allocation10 + $0x1964] sm:$0xff]
    %v4533 = vld [vmem:[#allocation10 + $0x196c] sm:$0xff]
    %v4534 = vld [vmem:[#allocation10 + $0x1974] sm:$0xff]
    %v4535 = vld [vmem:[#allocation10 + $0x197c] sm:$0xff]
    %v4536 = vld [vmem:[#allocation10 + $0x1984] sm:$0xf]
    %v4537 = vld [vmem:[#allocation10 + $0x1988] sm:$0xff]
    %v4538 = vld [vmem:[#allocation10 + $0x1990] sm:$0xff]
    %v4539 = vld [vmem:[#allocation10 + $0x1998] sm:$0xff]
    %v4540 = vld [vmem:[#allocation10 + $0x19a0] sm:$0xff]
    %v4541 = vld [vmem:[#allocation10 + $0x19a8] sm:$0xff]
    %v4542 = vld [vmem:[#allocation10 + $0x19b0] sm:$0xff]
    %v4543 = vld [vmem:[#allocation10 + $0x19b8] sm:$0xff]
    %v4544 = vld [vmem:[#allocation10 + $0x19c0] sm:$0xff]
    %v4545 = vld [vmem:[#allocation10 + $0x19c8] sm:$0xff]
    %v4546 = vld [vmem:[#allocation10 + $0x19d0] sm:$0xf]
    %v4547 = vld [vmem:[#allocation10 + $0x19d4] sm:$0xff]
    %v4548 = vld [vmem:[#allocation10 + $0x19dc] sm:$0xff]
    %v4549 = vld [vmem:[#allocation10 + $0x19e4] sm:$0xff]
    %v4550 = vld [vmem:[#allocation10 + $0x19ec] sm:$0xff]
    %v4551 = vld [vmem:[#allocation10 + $0x19f4] sm:$0xff]
    %v4552 = vld [vmem:[#allocation10 + $0x19fc] sm:$0xff]
    %v4553 = vld [vmem:[#allocation10 + $0x1a04] sm:$0xff]
    %v4554 = vld [vmem:[#allocation10 + $0x1a0c] sm:$0xff]
    %v4555 = vld [vmem:[#allocation10 + $0x1a14] sm:$0xff]
    %v4556 = vld [vmem:[#allocation10 + $0x1a1c] sm:$0xf]
    %v4557 = vld [vmem:[#allocation10 + $0x1a20] sm:$0xff]
    %v4558 = vld [vmem:[#allocation10 + $0x1a28] sm:$0xff]
    %v4559 = vld [vmem:[#allocation10 + $0x1a30] sm:$0xff]
    %v4560 = vld [vmem:[#allocation10 + $0x1a38] sm:$0xff]
    %v4561 = vld [vmem:[#allocation10 + $0x1a40] sm:$0xff]
    %v4562 = vld [vmem:[#allocation10 + $0x1a48] sm:$0xff]
    %v4563 = vld [vmem:[#allocation10 + $0x1a50] sm:$0xff]
    %v4564 = vld [vmem:[#allocation10 + $0x1a58] sm:$0xff]
    %v4565 = vld [vmem:[#allocation10 + $0x1a60] sm:$0xff]
    %v4566 = vld [vmem:[#allocation10 + $0x1a68] sm:$0xf]
    %v4567 = vld [vmem:[#allocation10 + $0x1a6c] sm:$0xff]
    %v4568 = vld [vmem:[#allocation10 + $0x1a74] sm:$0xff]
    %v4569 = vld [vmem:[#allocation10 + $0x1a7c] sm:$0xff]
    %v4570 = vld [vmem:[#allocation10 + $0x1a84] sm:$0xff]
    %v4571 = vld [vmem:[#allocation10 + $0x1a8c] sm:$0xff]
    %v4572 = vld [vmem:[#allocation10 + $0x1a94] sm:$0xff]
    %v4573 = vld [vmem:[#allocation10 + $0x1a9c] sm:$0xff]
    %v4574 = vld [vmem:[#allocation10 + $0x1aa4] sm:$0xff]
    %v4575 = vld [vmem:[#allocation10 + $0x1aac] sm:$0xff]
    %v4576 = vld [vmem:[#allocation10 + $0x1ab4] sm:$0xf]
    %v4577 = vld [vmem:[#allocation10 + $0x1ab8] sm:$0xff]
    %v4578 = vld [vmem:[#allocation10 + $0x1ac0] sm:$0xff]
    %v4579 = vld [vmem:[#allocation10 + $0x1ac8] sm:$0xff]
    %v4580 = vld [vmem:[#allocation10 + $0x1ad0] sm:$0xff]
    %v4581 = vld [vmem:[#allocation10 + $0x1ad8] sm:$0xff]
    %v4582 = vld [vmem:[#allocation10 + $0x1ae0] sm:$0xff]
    %v4583 = vld [vmem:[#allocation10 + $0x1ae8] sm:$0xff]
    %v4584 = vld [vmem:[#allocation10 + $0x1af0] sm:$0xff]
    %v4585 = vld [vmem:[#allocation10 + $0x1af8] sm:$0xff]
    %v4586 = vld [vmem:[#allocation10 + $0x1b00] sm:$0xf]
    %v4587 = vld [vmem:[#allocation10 + $0x1b04] sm:$0xff]
    %v4588 = vld [vmem:[#allocation10 + $0x1b0c] sm:$0xff]
    %v4589 = vld [vmem:[#allocation10 + $0x1b14] sm:$0xff]
    %v4590 = vld [vmem:[#allocation10 + $0x1b1c] sm:$0xff]
    %v4591 = vld [vmem:[#allocation10 + $0x1b24] sm:$0xff]
    %v4592 = vld [vmem:[#allocation10 + $0x1b2c] sm:$0xff]
    %v4593 = vld [vmem:[#allocation10 + $0x1b34] sm:$0xff]
    %v4594 = vld [vmem:[#allocation10 + $0x1b3c] sm:$0xff]
    %v4595 = vld [vmem:[#allocation10 + $0x1b44] sm:$0xff]
    %v4596 = vld [vmem:[#allocation10 + $0x1b4c] sm:$0xf]
    %v4597 = vld [vmem:[#allocation10 + $0x1b50] sm:$0xff]
    %v4598 = vld [vmem:[#allocation10 + $0x1b58] sm:$0xff]
    %v4599 = vld [vmem:[#allocation10 + $0x1b60] sm:$0xff]
    %v4600 = vld [vmem:[#allocation10 + $0x1b68] sm:$0xff]
    %v4601 = vld [vmem:[#allocation10 + $0x1b70] sm:$0xff]
    %v4602 = vld [vmem:[#allocation10 + $0x1b78] sm:$0xff]
    %v4603 = vld [vmem:[#allocation10 + $0x1b80] sm:$0xff]
    %v4604 = vld [vmem:[#allocation10 + $0x1b88] sm:$0xff]
    %v4605 = vld [vmem:[#allocation10 + $0x1b90] sm:$0xff]
    %v4606 = vld [vmem:[#allocation10 + $0x1b98] sm:$0xf]
    %v4607 = vld [vmem:[#allocation10 + $0x1b9c] sm:$0xff]
    %v4608 = vld [vmem:[#allocation10 + $0x1ba4] sm:$0xff]
    %v4609 = vld [vmem:[#allocation10 + $0x1bac] sm:$0xff]
    %v4610 = vld [vmem:[#allocation10 + $0x1bb4] sm:$0xff]
    %v4611 = vld [vmem:[#allocation10 + $0x1bbc] sm:$0xff]
    %v4612 = vld [vmem:[#allocation10 + $0x1bc4] sm:$0xff]
    %v4613 = vld [vmem:[#allocation10 + $0x1bcc] sm:$0xff]
    %v4614 = vld [vmem:[#allocation10 + $0x1bd4] sm:$0xff]
    %v4615 = vld [vmem:[#allocation10 + $0x1bdc] sm:$0xff]
    %v4616 = vld [vmem:[#allocation10 + $0x1be4] sm:$0xf]
    %v4617 = vld [vmem:[#allocation10 + $0x1be8] sm:$0xff]
    %v4618 = vld [vmem:[#allocation10 + $0x1bf0] sm:$0xff]
    %v4619 = vld [vmem:[#allocation10 + $0x1bf8] sm:$0xff]
    %v4620 = vld [vmem:[#allocation10 + $0x1c00] sm:$0xff]
    %v4621 = vld [vmem:[#allocation10 + $0x1c08] sm:$0xff]
    %v4622 = vld [vmem:[#allocation10 + $0x1c10] sm:$0xff]
    %v4623 = vld [vmem:[#allocation10 + $0x1c18] sm:$0xff]
    %v4624 = vld [vmem:[#allocation10 + $0x1c20] sm:$0xff]
    %v4625 = vld [vmem:[#allocation10 + $0x1c28] sm:$0xff]
    %v4626 = vld [vmem:[#allocation10 + $0x1c30] sm:$0xf]
    %v4627 = vld [vmem:[#allocation10 + $0x1c34] sm:$0xff]
    %v4628 = vld [vmem:[#allocation10 + $0x1c3c] sm:$0xff]
    %v4629 = vld [vmem:[#allocation10 + $0x1c44] sm:$0xff]
    %v4630 = vld [vmem:[#allocation10 + $0x1c4c] sm:$0xff]
    %v4631 = vld [vmem:[#allocation10 + $0x1c54] sm:$0xff]
    %v4632 = vld [vmem:[#allocation10 + $0x1c5c] sm:$0xff]
    %v4633 = vld [vmem:[#allocation10 + $0x1c64] sm:$0xff]
    %v4634 = vld [vmem:[#allocation10 + $0x1c6c] sm:$0xff]
    %v4635 = vld [vmem:[#allocation10 + $0x1c74] sm:$0xff]
    %v4636 = vld [vmem:[#allocation10 + $0x1c7c] sm:$0xf]
    %v4637 = vld [vmem:[#allocation10 + $0x1c80] sm:$0xff]
    %v4638 = vld [vmem:[#allocation10 + $0x1c88] sm:$0xff]
    %v4639 = vld [vmem:[#allocation10 + $0x1c90] sm:$0xff]
    %v4640 = vld [vmem:[#allocation10 + $0x1c98] sm:$0xff]
    %v4641 = vld [vmem:[#allocation10 + $0x1ca0] sm:$0xff]
    %v4642 = vld [vmem:[#allocation10 + $0x1ca8] sm:$0xff]
    %v4643 = vld [vmem:[#allocation10 + $0x1cb0] sm:$0xff]
    %v4644 = vld [vmem:[#allocation10 + $0x1cb8] sm:$0xff]
    %v4645 = vld [vmem:[#allocation10 + $0x1cc0] sm:$0xff]
    %v4646 = vld [vmem:[#allocation10 + $0x1cc8] sm:$0xf]
    %v4647 = vld [vmem:[#allocation10 + $0x1ccc] sm:$0xff]
    %v4648 = vld [vmem:[#allocation10 + $0x1cd4] sm:$0xff]
    %v4649 = vld [vmem:[#allocation10 + $0x1cdc] sm:$0xff]
    %v4650 = vld [vmem:[#allocation10 + $0x1ce4] sm:$0xff]
    %v4651 = vld [vmem:[#allocation10 + $0x1cec] sm:$0xff]
    %v4652 = vld [vmem:[#allocation10 + $0x1cf4] sm:$0xff]
    %v4653 = vld [vmem:[#allocation10 + $0x1cfc] sm:$0xff]
    %v4654 = vld [vmem:[#allocation10 + $0x1d04] sm:$0xff]
    %v4655 = vld [vmem:[#allocation10 + $0x1d0c] sm:$0xff]
    %v4656 = vld [vmem:[#allocation10 + $0x1d14] sm:$0xf]
    %v5637 = vunpack.c.l.b16 %v3677
    %v5638 = vunpack.c.h.b16 %v3677
    %v5639 = vunpack.c.l.b16 %v3678
    %v5640 = vunpack.c.h.b16 %v3678
    %v5641 = vunpack.c.l.b16 %v3679
    %v5642 = vunpack.c.h.b16 %v3679
    %v5643 = vunpack.c.l.b16 %v3680
    %v5644 = vunpack.c.h.b16 %v3680
    %v5645 = vunpack.c.l.b16 %v3681
    %v5646 = vunpack.c.h.b16 %v3681
    %v5647 = vunpack.c.l.b16 %v3682
    %v5648 = vunpack.c.h.b16 %v3682
    %v5649 = vunpack.c.l.b16 %v3683
    %v5650 = vunpack.c.h.b16 %v3683
    %v5651 = vunpack.c.l.b16 %v3684
    %v5652 = vunpack.c.h.b16 %v3684
    %v5653 = vunpack.c.l.b16 %v3685
    %v5654 = vunpack.c.h.b16 %v3685
    %v5655 = vunpack.c.l.b16 %v3686
    %v5656 = vunpack.c.l.b16 %v3687
    %v5657 = vunpack.c.h.b16 %v3687
    %v5658 = vunpack.c.l.b16 %v3688
    %v5659 = vunpack.c.h.b16 %v3688
    %v5660 = vunpack.c.l.b16 %v3689
    %v5661 = vunpack.c.h.b16 %v3689
    %v5662 = vunpack.c.l.b16 %v3690
    %v5663 = vunpack.c.h.b16 %v3690
    %v5664 = vunpack.c.l.b16 %v3691
    %v5665 = vunpack.c.h.b16 %v3691
    %v5666 = vunpack.c.l.b16 %v3692
    %v5667 = vunpack.c.h.b16 %v3692
    %v5668 = vunpack.c.l.b16 %v3693
    %v5669 = vunpack.c.h.b16 %v3693
    %v5670 = vunpack.c.l.b16 %v3694
    %v5671 = vunpack.c.h.b16 %v3694
    %v5672 = vunpack.c.l.b16 %v3695
    %v5673 = vunpack.c.h.b16 %v3695
    %v5674 = vunpack.c.l.b16 %v3696
    %v5675 = vunpack.c.l.b16 %v3697
    %v5676 = vunpack.c.h.b16 %v3697
    %v5677 = vunpack.c.l.b16 %v3698
    %v5678 = vunpack.c.h.b16 %v3698
    %v5679 = vunpack.c.l.b16 %v3699
    %v5680 = vunpack.c.h.b16 %v3699
    %v5681 = vunpack.c.l.b16 %v3700
    %v5682 = vunpack.c.h.b16 %v3700
    %v5683 = vunpack.c.l.b16 %v3701
    %v5684 = vunpack.c.h.b16 %v3701
    %v5685 = vunpack.c.l.b16 %v3702
    %v5686 = vunpack.c.h.b16 %v3702
    %v5687 = vunpack.c.l.b16 %v3703
    %v5688 = vunpack.c.h.b16 %v3703
    %v5689 = vunpack.c.l.b16 %v3704
    %v5690 = vunpack.c.h.b16 %v3704
    %v5691 = vunpack.c.l.b16 %v3705
    %v5692 = vunpack.c.h.b16 %v3705
    %v5693 = vunpack.c.l.b16 %v3706
    %v5694 = vunpack.c.l.b16 %v3707
    %v5695 = vunpack.c.h.b16 %v3707
    %v5696 = vunpack.c.l.b16 %v3708
    %v5697 = vunpack.c.h.b16 %v3708
    %v5698 = vunpack.c.l.b16 %v3709
    %v5699 = vunpack.c.h.b16 %v3709
    %v5700 = vunpack.c.l.b16 %v3710
    %v5701 = vunpack.c.h.b16 %v3710
    %v5702 = vunpack.c.l.b16 %v3711
    %v5703 = vunpack.c.h.b16 %v3711
    %v5704 = vunpack.c.l.b16 %v3712
    %v5705 = vunpack.c.h.b16 %v3712
    %v5706 = vunpack.c.l.b16 %v3713
    %v5707 = vunpack.c.h.b16 %v3713
    %v5708 = vunpack.c.l.b16 %v3714
    %v5709 = vunpack.c.h.b16 %v3714
    %v5710 = vunpack.c.l.b16 %v3715
    %v5711 = vunpack.c.h.b16 %v3715
    %v5712 = vunpack.c.l.b16 %v3716
    %v5713 = vunpack.c.l.b16 %v3717
    %v5714 = vunpack.c.h.b16 %v3717
    %v5715 = vunpack.c.l.b16 %v3718
    %v5716 = vunpack.c.h.b16 %v3718
    %v5717 = vunpack.c.l.b16 %v3719
    %v5718 = vunpack.c.h.b16 %v3719
    %v5719 = vunpack.c.l.b16 %v3720
    %v5720 = vunpack.c.h.b16 %v3720
    %v5721 = vunpack.c.l.b16 %v3721
    %v5722 = vunpack.c.h.b16 %v3721
    %v5723 = vunpack.c.l.b16 %v3722
    %v5724 = vunpack.c.h.b16 %v3722
    %v5725 = vunpack.c.l.b16 %v3723
    %v5726 = vunpack.c.h.b16 %v3723
    %v5727 = vunpack.c.l.b16 %v3724
    %v5728 = vunpack.c.h.b16 %v3724
    %v5729 = vunpack.c.l.b16 %v3725
    %v5730 = vunpack.c.h.b16 %v3725
    %v5731 = vunpack.c.l.b16 %v3726
    %v5732 = vunpack.c.l.b16 %v3727
    %v5733 = vunpack.c.h.b16 %v3727
    %v5734 = vunpack.c.l.b16 %v3728
    %v5735 = vunpack.c.h.b16 %v3728
    %v5736 = vunpack.c.l.b16 %v3729
    %v5737 = vunpack.c.h.b16 %v3729
    %v5738 = vunpack.c.l.b16 %v3730
    %v5739 = vunpack.c.h.b16 %v3730
    %v5740 = vunpack.c.l.b16 %v3731
    %v5741 = vunpack.c.h.b16 %v3731
    %v5742 = vunpack.c.l.b16 %v3732
    %v5743 = vunpack.c.h.b16 %v3732
    %v5744 = vunpack.c.l.b16 %v3733
    %v5745 = vunpack.c.h.b16 %v3733
    %v5746 = vunpack.c.l.b16 %v3734
    %v5747 = vunpack.c.h.b16 %v3734
    %v5748 = vunpack.c.l.b16 %v3735
    %v5749 = vunpack.c.h.b16 %v3735
    %v5750 = vunpack.c.l.b16 %v3736
    %v5751 = vunpack.c.l.b16 %v3737
    %v5752 = vunpack.c.h.b16 %v3737
    %v5753 = vunpack.c.l.b16 %v3738
    %v5754 = vunpack.c.h.b16 %v3738
    %v5755 = vunpack.c.l.b16 %v3739
    %v5756 = vunpack.c.h.b16 %v3739
    %v5757 = vunpack.c.l.b16 %v3740
    %v5758 = vunpack.c.h.b16 %v3740
    %v5759 = vunpack.c.l.b16 %v3741
    %v5760 = vunpack.c.h.b16 %v3741
    %v5761 = vunpack.c.l.b16 %v3742
    %v5762 = vunpack.c.h.b16 %v3742
    %v5763 = vunpack.c.l.b16 %v3743
    %v5764 = vunpack.c.h.b16 %v3743
    %v5765 = vunpack.c.l.b16 %v3744
    %v5766 = vunpack.c.h.b16 %v3744
    %v5767 = vunpack.c.l.b16 %v3745
    %v5768 = vunpack.c.h.b16 %v3745
    %v5769 = vunpack.c.l.b16 %v3746
    %v5770 = vunpack.c.l.b16 %v3747
    %v5771 = vunpack.c.h.b16 %v3747
    %v5772 = vunpack.c.l.b16 %v3748
    %v5773 = vunpack.c.h.b16 %v3748
    %v5774 = vunpack.c.l.b16 %v3749
    %v5775 = vunpack.c.h.b16 %v3749
    %v5776 = vunpack.c.l.b16 %v3750
    %v5777 = vunpack.c.h.b16 %v3750
    %v5778 = vunpack.c.l.b16 %v3751
    %v5779 = vunpack.c.h.b16 %v3751
    %v5780 = vunpack.c.l.b16 %v3752
    %v5781 = vunpack.c.h.b16 %v3752
    %v5782 = vunpack.c.l.b16 %v3753
    %v5783 = vunpack.c.h.b16 %v3753
    %v5784 = vunpack.c.l.b16 %v3754
    %v5785 = vunpack.c.h.b16 %v3754
    %v5786 = vunpack.c.l.b16 %v3755
    %v5787 = vunpack.c.h.b16 %v3755
    %v5788 = vunpack.c.l.b16 %v3756
    %v5789 = vunpack.c.l.b16 %v3757
    %v5790 = vunpack.c.h.b16 %v3757
    %v5791 = vunpack.c.l.b16 %v3758
    %v5792 = vunpack.c.h.b16 %v3758
    %v5793 = vunpack.c.l.b16 %v3759
    %v5794 = vunpack.c.h.b16 %v3759
    %v5795 = vunpack.c.l.b16 %v3760
    %v5796 = vunpack.c.h.b16 %v3760
    %v5797 = vunpack.c.l.b16 %v3761
    %v5798 = vunpack.c.h.b16 %v3761
    %v5799 = vunpack.c.l.b16 %v3762
    %v5800 = vunpack.c.h.b16 %v3762
    %v5801 = vunpack.c.l.b16 %v3763
    %v5802 = vunpack.c.h.b16 %v3763
    %v5803 = vunpack.c.l.b16 %v3764
    %v5804 = vunpack.c.h.b16 %v3764
    %v5805 = vunpack.c.l.b16 %v3765
    %v5806 = vunpack.c.h.b16 %v3765
    %v5807 = vunpack.c.l.b16 %v3766
    %v5808 = vunpack.c.l.b16 %v3767
    %v5809 = vunpack.c.h.b16 %v3767
    %v5810 = vunpack.c.l.b16 %v3768
    %v5811 = vunpack.c.h.b16 %v3768
    %v5812 = vunpack.c.l.b16 %v3769
    %v5813 = vunpack.c.h.b16 %v3769
    %v5814 = vunpack.c.l.b16 %v3770
    %v5815 = vunpack.c.h.b16 %v3770
    %v5816 = vunpack.c.l.b16 %v3771
    %v5817 = vunpack.c.h.b16 %v3771
    %v5818 = vunpack.c.l.b16 %v3772
    %v5819 = vunpack.c.h.b16 %v3772
    %v5820 = vunpack.c.l.b16 %v3773
    %v5821 = vunpack.c.h.b16 %v3773
    %v5822 = vunpack.c.l.b16 %v3774
    %v5823 = vunpack.c.h.b16 %v3774
    %v5824 = vunpack.c.l.b16 %v3775
    %v5825 = vunpack.c.h.b16 %v3775
    %v5826 = vunpack.c.l.b16 %v3776
    %v5827 = vunpack.c.l.b16 %v3777
    %v5828 = vunpack.c.h.b16 %v3777
    %v5829 = vunpack.c.l.b16 %v3778
    %v5830 = vunpack.c.h.b16 %v3778
    %v5831 = vunpack.c.l.b16 %v3779
    %v5832 = vunpack.c.h.b16 %v3779
    %v5833 = vunpack.c.l.b16 %v3780
    %v5834 = vunpack.c.h.b16 %v3780
    %v5835 = vunpack.c.l.b16 %v3781
    %v5836 = vunpack.c.h.b16 %v3781
    %v5837 = vunpack.c.l.b16 %v3782
    %v5838 = vunpack.c.h.b16 %v3782
    %v5839 = vunpack.c.l.b16 %v3783
    %v5840 = vunpack.c.h.b16 %v3783
    %v5841 = vunpack.c.l.b16 %v3784
    %v5842 = vunpack.c.h.b16 %v3784
    %v5843 = vunpack.c.l.b16 %v3785
    %v5844 = vunpack.c.h.b16 %v3785
    %v5845 = vunpack.c.l.b16 %v3786
    %v5846 = vunpack.c.l.b16 %v3787
    %v5847 = vunpack.c.h.b16 %v3787
    %v5848 = vunpack.c.l.b16 %v3788
    %v5849 = vunpack.c.h.b16 %v3788
    %v5850 = vunpack.c.l.b16 %v3789
    %v5851 = vunpack.c.h.b16 %v3789
    %v5852 = vunpack.c.l.b16 %v3790
    %v5853 = vunpack.c.h.b16 %v3790
    %v5854 = vunpack.c.l.b16 %v3791
    %v5855 = vunpack.c.h.b16 %v3791
    %v5856 = vunpack.c.l.b16 %v3792
    %v5857 = vunpack.c.h.b16 %v3792
    %v5858 = vunpack.c.l.b16 %v3793
    %v5859 = vunpack.c.h.b16 %v3793
    %v5860 = vunpack.c.l.b16 %v3794
    %v5861 = vunpack.c.h.b16 %v3794
    %v5862 = vunpack.c.l.b16 %v3795
    %v5863 = vunpack.c.h.b16 %v3795
    %v5864 = vunpack.c.l.b16 %v3796
    %v5865 = vunpack.c.l.b16 %v3797
    %v5866 = vunpack.c.h.b16 %v3797
    %v5867 = vunpack.c.l.b16 %v3798
    %v5868 = vunpack.c.h.b16 %v3798
    %v5869 = vunpack.c.l.b16 %v3799
    %v5870 = vunpack.c.h.b16 %v3799
    %v5871 = vunpack.c.l.b16 %v3800
    %v5872 = vunpack.c.h.b16 %v3800
    %v5873 = vunpack.c.l.b16 %v3801
    %v5874 = vunpack.c.h.b16 %v3801
    %v5875 = vunpack.c.l.b16 %v3802
    %v5876 = vunpack.c.h.b16 %v3802
    %v5877 = vunpack.c.l.b16 %v3803
    %v5878 = vunpack.c.h.b16 %v3803
    %v5879 = vunpack.c.l.b16 %v3804
    %v5880 = vunpack.c.h.b16 %v3804
    %v5881 = vunpack.c.l.b16 %v3805
    %v5882 = vunpack.c.h.b16 %v3805
    %v5883 = vunpack.c.l.b16 %v3806
    %v5884 = vunpack.c.l.b16 %v3807
    %v5885 = vunpack.c.h.b16 %v3807
    %v5886 = vunpack.c.l.b16 %v3808
    %v5887 = vunpack.c.h.b16 %v3808
    %v5888 = vunpack.c.l.b16 %v3809
    %v5889 = vunpack.c.h.b16 %v3809
    %v5890 = vunpack.c.l.b16 %v3810
    %v5891 = vunpack.c.h.b16 %v3810
    %v5892 = vunpack.c.l.b16 %v3811
    %v5893 = vunpack.c.h.b16 %v3811
    %v5894 = vunpack.c.l.b16 %v3812
    %v5895 = vunpack.c.h.b16 %v3812
    %v5896 = vunpack.c.l.b16 %v3813
    %v5897 = vunpack.c.h.b16 %v3813
    %v5898 = vunpack.c.l.b16 %v3814
    %v5899 = vunpack.c.h.b16 %v3814
    %v5900 = vunpack.c.l.b16 %v3815
    %v5901 = vunpack.c.h.b16 %v3815
    %v5902 = vunpack.c.l.b16 %v3816
    %v5903 = vunpack.c.l.b16 %v3817
    %v5904 = vunpack.c.h.b16 %v3817
    %v5905 = vunpack.c.l.b16 %v3818
    %v5906 = vunpack.c.h.b16 %v3818
    %v5907 = vunpack.c.l.b16 %v3819
    %v5908 = vunpack.c.h.b16 %v3819
    %v5909 = vunpack.c.l.b16 %v3820
    %v5910 = vunpack.c.h.b16 %v3820
    %v5911 = vunpack.c.l.b16 %v3821
    %v5912 = vunpack.c.h.b16 %v3821
    %v5913 = vunpack.c.l.b16 %v3822
    %v5914 = vunpack.c.h.b16 %v3822
    %v5915 = vunpack.c.l.b16 %v3823
    %v5916 = vunpack.c.h.b16 %v3823
    %v5917 = vunpack.c.l.b16 %v3824
    %v5918 = vunpack.c.h.b16 %v3824
    %v5919 = vunpack.c.l.b16 %v3825
    %v5920 = vunpack.c.h.b16 %v3825
    %v5921 = vunpack.c.l.b16 %v3826
    %v5922 = vunpack.c.l.b16 %v3827
    %v5923 = vunpack.c.h.b16 %v3827
    %v5924 = vunpack.c.l.b16 %v3828
    %v5925 = vunpack.c.h.b16 %v3828
    %v5926 = vunpack.c.l.b16 %v3829
    %v5927 = vunpack.c.h.b16 %v3829
    %v5928 = vunpack.c.l.b16 %v3830
    %v5929 = vunpack.c.h.b16 %v3830
    %v5930 = vunpack.c.l.b16 %v3831
    %v5931 = vunpack.c.h.b16 %v3831
    %v5932 = vunpack.c.l.b16 %v3832
    %v5933 = vunpack.c.h.b16 %v3832
    %v5934 = vunpack.c.l.b16 %v3833
    %v5935 = vunpack.c.h.b16 %v3833
    %v5936 = vunpack.c.l.b16 %v3834
    %v5937 = vunpack.c.h.b16 %v3834
    %v5938 = vunpack.c.l.b16 %v3835
    %v5939 = vunpack.c.h.b16 %v3835
    %v5940 = vunpack.c.l.b16 %v3836
    %v5941 = vunpack.c.l.b16 %v3837
    %v5942 = vunpack.c.h.b16 %v3837
    %v5943 = vunpack.c.l.b16 %v3838
    %v5944 = vunpack.c.h.b16 %v3838
    %v5945 = vunpack.c.l.b16 %v3839
    %v5946 = vunpack.c.h.b16 %v3839
    %v5947 = vunpack.c.l.b16 %v3840
    %v5948 = vunpack.c.h.b16 %v3840
    %v5949 = vunpack.c.l.b16 %v3841
    %v5950 = vunpack.c.h.b16 %v3841
    %v5951 = vunpack.c.l.b16 %v3842
    %v5952 = vunpack.c.h.b16 %v3842
    %v5953 = vunpack.c.l.b16 %v3843
    %v5954 = vunpack.c.h.b16 %v3843
    %v5955 = vunpack.c.l.b16 %v3844
    %v5956 = vunpack.c.h.b16 %v3844
    %v5957 = vunpack.c.l.b16 %v3845
    %v5958 = vunpack.c.h.b16 %v3845
    %v5959 = vunpack.c.l.b16 %v3846
    %v5960 = vunpack.c.l.b16 %v3847
    %v5961 = vunpack.c.h.b16 %v3847
    %v5962 = vunpack.c.l.b16 %v3848
    %v5963 = vunpack.c.h.b16 %v3848
    %v5964 = vunpack.c.l.b16 %v3849
    %v5965 = vunpack.c.h.b16 %v3849
    %v5966 = vunpack.c.l.b16 %v3850
    %v5967 = vunpack.c.h.b16 %v3850
    %v5968 = vunpack.c.l.b16 %v3851
    %v5969 = vunpack.c.h.b16 %v3851
    %v5970 = vunpack.c.l.b16 %v3852
    %v5971 = vunpack.c.h.b16 %v3852
    %v5972 = vunpack.c.l.b16 %v3853
    %v5973 = vunpack.c.h.b16 %v3853
    %v5974 = vunpack.c.l.b16 %v3854
    %v5975 = vunpack.c.h.b16 %v3854
    %v5976 = vunpack.c.l.b16 %v3855
    %v5977 = vunpack.c.h.b16 %v3855
    %v5978 = vunpack.c.l.b16 %v3856
    %v5979 = vunpack.c.l.b16 %v3857
    %v5980 = vunpack.c.h.b16 %v3857
    %v5981 = vunpack.c.l.b16 %v3858
    %v5982 = vunpack.c.h.b16 %v3858
    %v5983 = vunpack.c.l.b16 %v3859
    %v5984 = vunpack.c.h.b16 %v3859
    %v5985 = vunpack.c.l.b16 %v3860
    %v5986 = vunpack.c.h.b16 %v3860
    %v5987 = vunpack.c.l.b16 %v3861
    %v5988 = vunpack.c.h.b16 %v3861
    %v5989 = vunpack.c.l.b16 %v3862
    %v5990 = vunpack.c.h.b16 %v3862
    %v5991 = vunpack.c.l.b16 %v3863
    %v5992 = vunpack.c.h.b16 %v3863
    %v5993 = vunpack.c.l.b16 %v3864
    %v5994 = vunpack.c.h.b16 %v3864
    %v5995 = vunpack.c.l.b16 %v3865
    %v5996 = vunpack.c.h.b16 %v3865
    %v5997 = vunpack.c.l.b16 %v3866
    %v5998 = vunpack.c.l.b16 %v3867
    %v5999 = vunpack.c.h.b16 %v3867
    %v6000 = vunpack.c.l.b16 %v3868
    %v6001 = vunpack.c.h.b16 %v3868
    %v6002 = vunpack.c.l.b16 %v3869
    %v6003 = vunpack.c.h.b16 %v3869
    %v6004 = vunpack.c.l.b16 %v3870
    %v6005 = vunpack.c.h.b16 %v3870
    %v6006 = vunpack.c.l.b16 %v3871
    %v6007 = vunpack.c.h.b16 %v3871
    %v6008 = vunpack.c.l.b16 %v3872
    %v6009 = vunpack.c.h.b16 %v3872
    %v6010 = vunpack.c.l.b16 %v3873
    %v6011 = vunpack.c.h.b16 %v3873
    %v6012 = vunpack.c.l.b16 %v3874
    %v6013 = vunpack.c.h.b16 %v3874
    %v6014 = vunpack.c.l.b16 %v3875
    %v6015 = vunpack.c.h.b16 %v3875
    %v6016 = vunpack.c.l.b16 %v3876
    %v6017 = vunpack.c.l.b16 %v3877
    %v6018 = vunpack.c.h.b16 %v3877
    %v6019 = vunpack.c.l.b16 %v3878
    %v6020 = vunpack.c.h.b16 %v3878
    %v6021 = vunpack.c.l.b16 %v3879
    %v6022 = vunpack.c.h.b16 %v3879
    %v6023 = vunpack.c.l.b16 %v3880
    %v6024 = vunpack.c.h.b16 %v3880
    %v6025 = vunpack.c.l.b16 %v3881
    %v6026 = vunpack.c.h.b16 %v3881
    %v6027 = vunpack.c.l.b16 %v3882
    %v6028 = vunpack.c.h.b16 %v3882
    %v6029 = vunpack.c.l.b16 %v3883
    %v6030 = vunpack.c.h.b16 %v3883
    %v6031 = vunpack.c.l.b16 %v3884
    %v6032 = vunpack.c.h.b16 %v3884
    %v6033 = vunpack.c.l.b16 %v3885
    %v6034 = vunpack.c.h.b16 %v3885
    %v6035 = vunpack.c.l.b16 %v3886
    %v6036 = vunpack.c.l.b16 %v3887
    %v6037 = vunpack.c.h.b16 %v3887
    %v6038 = vunpack.c.l.b16 %v3888
    %v6039 = vunpack.c.h.b16 %v3888
    %v6040 = vunpack.c.l.b16 %v3889
    %v6041 = vunpack.c.h.b16 %v3889
    %v6042 = vunpack.c.l.b16 %v3890
    %v6043 = vunpack.c.h.b16 %v3890
    %v6044 = vunpack.c.l.b16 %v3891
    %v6045 = vunpack.c.h.b16 %v3891
    %v6046 = vunpack.c.l.b16 %v3892
    %v6047 = vunpack.c.h.b16 %v3892
    %v6048 = vunpack.c.l.b16 %v3893
    %v6049 = vunpack.c.h.b16 %v3893
    %v6050 = vunpack.c.l.b16 %v3894
    %v6051 = vunpack.c.h.b16 %v3894
    %v6052 = vunpack.c.l.b16 %v3895
    %v6053 = vunpack.c.h.b16 %v3895
    %v6054 = vunpack.c.l.b16 %v3896
    %v6055 = vunpack.c.l.b16 %v3897
    %v6056 = vunpack.c.h.b16 %v3897
    %v6057 = vunpack.c.l.b16 %v3898
    %v6058 = vunpack.c.h.b16 %v3898
    %v6059 = vunpack.c.l.b16 %v3899
    %v6060 = vunpack.c.h.b16 %v3899
    %v6061 = vunpack.c.l.b16 %v3900
    %v6062 = vunpack.c.h.b16 %v3900
    %v6063 = vunpack.c.l.b16 %v3901
    %v6064 = vunpack.c.h.b16 %v3901
    %v6065 = vunpack.c.l.b16 %v3902
    %v6066 = vunpack.c.h.b16 %v3902
    %v6067 = vunpack.c.l.b16 %v3903
    %v6068 = vunpack.c.h.b16 %v3903
    %v6069 = vunpack.c.l.b16 %v3904
    %v6070 = vunpack.c.h.b16 %v3904
    %v6071 = vunpack.c.l.b16 %v3905
    %v6072 = vunpack.c.h.b16 %v3905
    %v6073 = vunpack.c.l.b16 %v3906
    %v6074 = vunpack.c.l.b16 %v3907
    %v6075 = vunpack.c.h.b16 %v3907
    %v6076 = vunpack.c.l.b16 %v3908
    %v6077 = vunpack.c.h.b16 %v3908
    %v6078 = vunpack.c.l.b16 %v3909
    %v6079 = vunpack.c.h.b16 %v3909
    %v6080 = vunpack.c.l.b16 %v3910
    %v6081 = vunpack.c.h.b16 %v3910
    %v6082 = vunpack.c.l.b16 %v3911
    %v6083 = vunpack.c.h.b16 %v3911
    %v6084 = vunpack.c.l.b16 %v3912
    %v6085 = vunpack.c.h.b16 %v3912
    %v6086 = vunpack.c.l.b16 %v3913
    %v6087 = vunpack.c.h.b16 %v3913
    %v6088 = vunpack.c.l.b16 %v3914
    %v6089 = vunpack.c.h.b16 %v3914
    %v6090 = vunpack.c.l.b16 %v3915
    %v6091 = vunpack.c.h.b16 %v3915
    %v6092 = vunpack.c.l.b16 %v3916
    %v6093 = vunpack.c.l.b16 %v3917
    %v6094 = vunpack.c.h.b16 %v3917
    %v6095 = vunpack.c.l.b16 %v3918
    %v6096 = vunpack.c.h.b16 %v3918
    %v6097 = vunpack.c.l.b16 %v3919
    %v6098 = vunpack.c.h.b16 %v3919
    %v6099 = vunpack.c.l.b16 %v3920
    %v6100 = vunpack.c.h.b16 %v3920
    %v6101 = vunpack.c.l.b16 %v3921
    %v6102 = vunpack.c.h.b16 %v3921
    %v6103 = vunpack.c.l.b16 %v3922
    %v6104 = vunpack.c.h.b16 %v3922
    %v6105 = vunpack.c.l.b16 %v3923
    %v6106 = vunpack.c.h.b16 %v3923
    %v6107 = vunpack.c.l.b16 %v3924
    %v6108 = vunpack.c.h.b16 %v3924
    %v6109 = vunpack.c.l.b16 %v3925
    %v6110 = vunpack.c.h.b16 %v3925
    %v6111 = vunpack.c.l.b16 %v3926
    %v6112 = vunpack.c.l.b16 %v3927
    %v6113 = vunpack.c.h.b16 %v3927
    %v6114 = vunpack.c.l.b16 %v3928
    %v6115 = vunpack.c.h.b16 %v3928
    %v6116 = vunpack.c.l.b16 %v3929
    %v6117 = vunpack.c.h.b16 %v3929
    %v6118 = vunpack.c.l.b16 %v3930
    %v6119 = vunpack.c.h.b16 %v3930
    %v6120 = vunpack.c.l.b16 %v3931
    %v6121 = vunpack.c.h.b16 %v3931
    %v6122 = vunpack.c.l.b16 %v3932
    %v6123 = vunpack.c.h.b16 %v3932
    %v6124 = vunpack.c.l.b16 %v3933
    %v6125 = vunpack.c.h.b16 %v3933
    %v6126 = vunpack.c.l.b16 %v3934
    %v6127 = vunpack.c.h.b16 %v3934
    %v6128 = vunpack.c.l.b16 %v3935
    %v6129 = vunpack.c.h.b16 %v3935
    %v6130 = vunpack.c.l.b16 %v3936
    %v6131 = vunpack.c.l.b16 %v3937
    %v6132 = vunpack.c.h.b16 %v3937
    %v6133 = vunpack.c.l.b16 %v3938
    %v6134 = vunpack.c.h.b16 %v3938
    %v6135 = vunpack.c.l.b16 %v3939
    %v6136 = vunpack.c.h.b16 %v3939
    %v6137 = vunpack.c.l.b16 %v3940
    %v6138 = vunpack.c.h.b16 %v3940
    %v6139 = vunpack.c.l.b16 %v3941
    %v6140 = vunpack.c.h.b16 %v3941
    %v6141 = vunpack.c.l.b16 %v3942
    %v6142 = vunpack.c.h.b16 %v3942
    %v6143 = vunpack.c.l.b16 %v3943
    %v6144 = vunpack.c.h.b16 %v3943
    %v6145 = vunpack.c.l.b16 %v3944
    %v6146 = vunpack.c.h.b16 %v3944
    %v6147 = vunpack.c.l.b16 %v3945
    %v6148 = vunpack.c.h.b16 %v3945
    %v6149 = vunpack.c.l.b16 %v3946
    %v6150 = vunpack.c.l.b16 %v3947
    %v6151 = vunpack.c.h.b16 %v3947
    %v6152 = vunpack.c.l.b16 %v3948
    %v6153 = vunpack.c.h.b16 %v3948
    %v6154 = vunpack.c.l.b16 %v3949
    %v6155 = vunpack.c.h.b16 %v3949
    %v6156 = vunpack.c.l.b16 %v3950
    %v6157 = vunpack.c.h.b16 %v3950
    %v6158 = vunpack.c.l.b16 %v3951
    %v6159 = vunpack.c.h.b16 %v3951
    %v6160 = vunpack.c.l.b16 %v3952
    %v6161 = vunpack.c.h.b16 %v3952
    %v6162 = vunpack.c.l.b16 %v3953
    %v6163 = vunpack.c.h.b16 %v3953
    %v6164 = vunpack.c.l.b16 %v3954
    %v6165 = vunpack.c.h.b16 %v3954
    %v6166 = vunpack.c.l.b16 %v3955
    %v6167 = vunpack.c.h.b16 %v3955
    %v6168 = vunpack.c.l.b16 %v3956
    %v6169 = vunpack.c.l.b16 %v3957
    %v6170 = vunpack.c.h.b16 %v3957
    %v6171 = vunpack.c.l.b16 %v3958
    %v6172 = vunpack.c.h.b16 %v3958
    %v6173 = vunpack.c.l.b16 %v3959
    %v6174 = vunpack.c.h.b16 %v3959
    %v6175 = vunpack.c.l.b16 %v3960
    %v6176 = vunpack.c.h.b16 %v3960
    %v6177 = vunpack.c.l.b16 %v3961
    %v6178 = vunpack.c.h.b16 %v3961
    %v6179 = vunpack.c.l.b16 %v3962
    %v6180 = vunpack.c.h.b16 %v3962
    %v6181 = vunpack.c.l.b16 %v3963
    %v6182 = vunpack.c.h.b16 %v3963
    %v6183 = vunpack.c.l.b16 %v3964
    %v6184 = vunpack.c.h.b16 %v3964
    %v6185 = vunpack.c.l.b16 %v3965
    %v6186 = vunpack.c.h.b16 %v3965
    %v6187 = vunpack.c.l.b16 %v3966
    %v6188 = vunpack.c.l.b16 %v3967
    %v6189 = vunpack.c.h.b16 %v3967
    %v6190 = vunpack.c.l.b16 %v3968
    %v6191 = vunpack.c.h.b16 %v3968
    %v6192 = vunpack.c.l.b16 %v3969
    %v6193 = vunpack.c.h.b16 %v3969
    %v6194 = vunpack.c.l.b16 %v3970
    %v6195 = vunpack.c.h.b16 %v3970
    %v6196 = vunpack.c.l.b16 %v3971
    %v6197 = vunpack.c.h.b16 %v3971
    %v6198 = vunpack.c.l.b16 %v3972
    %v6199 = vunpack.c.h.b16 %v3972
    %v6200 = vunpack.c.l.b16 %v3973
    %v6201 = vunpack.c.h.b16 %v3973
    %v6202 = vunpack.c.l.b16 %v3974
    %v6203 = vunpack.c.h.b16 %v3974
    %v6204 = vunpack.c.l.b16 %v3975
    %v6205 = vunpack.c.h.b16 %v3975
    %v6206 = vunpack.c.l.b16 %v3976
    %v6207 = vunpack.c.l.b16 %v3977
    %v6208 = vunpack.c.h.b16 %v3977
    %v6209 = vunpack.c.l.b16 %v3978
    %v6210 = vunpack.c.h.b16 %v3978
    %v6211 = vunpack.c.l.b16 %v3979
    %v6212 = vunpack.c.h.b16 %v3979
    %v6213 = vunpack.c.l.b16 %v3980
    %v6214 = vunpack.c.h.b16 %v3980
    %v6215 = vunpack.c.l.b16 %v3981
    %v6216 = vunpack.c.h.b16 %v3981
    %v6217 = vunpack.c.l.b16 %v3982
    %v6218 = vunpack.c.h.b16 %v3982
    %v6219 = vunpack.c.l.b16 %v3983
    %v6220 = vunpack.c.h.b16 %v3983
    %v6221 = vunpack.c.l.b16 %v3984
    %v6222 = vunpack.c.h.b16 %v3984
    %v6223 = vunpack.c.l.b16 %v3985
    %v6224 = vunpack.c.h.b16 %v3985
    %v6225 = vunpack.c.l.b16 %v3986
    %v6226 = vunpack.c.l.b16 %v3987
    %v6227 = vunpack.c.h.b16 %v3987
    %v6228 = vunpack.c.l.b16 %v3988
    %v6229 = vunpack.c.h.b16 %v3988
    %v6230 = vunpack.c.l.b16 %v3989
    %v6231 = vunpack.c.h.b16 %v3989
    %v6232 = vunpack.c.l.b16 %v3990
    %v6233 = vunpack.c.h.b16 %v3990
    %v6234 = vunpack.c.l.b16 %v3991
    %v6235 = vunpack.c.h.b16 %v3991
    %v6236 = vunpack.c.l.b16 %v3992
    %v6237 = vunpack.c.h.b16 %v3992
    %v6238 = vunpack.c.l.b16 %v3993
    %v6239 = vunpack.c.h.b16 %v3993
    %v6240 = vunpack.c.l.b16 %v3994
    %v6241 = vunpack.c.h.b16 %v3994
    %v6242 = vunpack.c.l.b16 %v3995
    %v6243 = vunpack.c.h.b16 %v3995
    %v6244 = vunpack.c.l.b16 %v3996
    %v6245 = vunpack.c.l.b16 %v3997
    %v6246 = vunpack.c.h.b16 %v3997
    %v6247 = vunpack.c.l.b16 %v3998
    %v6248 = vunpack.c.h.b16 %v3998
    %v6249 = vunpack.c.l.b16 %v3999
    %v6250 = vunpack.c.h.b16 %v3999
    %v6251 = vunpack.c.l.b16 %v4000
    %v6252 = vunpack.c.h.b16 %v4000
    %v6253 = vunpack.c.l.b16 %v4001
    %v6254 = vunpack.c.h.b16 %v4001
    %v6255 = vunpack.c.l.b16 %v4002
    %v6256 = vunpack.c.h.b16 %v4002
    %v6257 = vunpack.c.l.b16 %v4003
    %v6258 = vunpack.c.h.b16 %v4003
    %v6259 = vunpack.c.l.b16 %v4004
    %v6260 = vunpack.c.h.b16 %v4004
    %v6261 = vunpack.c.l.b16 %v4005
    %v6262 = vunpack.c.h.b16 %v4005
    %v6263 = vunpack.c.l.b16 %v4006
    %v6264 = vunpack.c.l.b16 %v4007
    %v6265 = vunpack.c.h.b16 %v4007
    %v6266 = vunpack.c.l.b16 %v4008
    %v6267 = vunpack.c.h.b16 %v4008
    %v6268 = vunpack.c.l.b16 %v4009
    %v6269 = vunpack.c.h.b16 %v4009
    %v6270 = vunpack.c.l.b16 %v4010
    %v6271 = vunpack.c.h.b16 %v4010
    %v6272 = vunpack.c.l.b16 %v4011
    %v6273 = vunpack.c.h.b16 %v4011
    %v6274 = vunpack.c.l.b16 %v4012
    %v6275 = vunpack.c.h.b16 %v4012
    %v6276 = vunpack.c.l.b16 %v4013
    %v6277 = vunpack.c.h.b16 %v4013
    %v6278 = vunpack.c.l.b16 %v4014
    %v6279 = vunpack.c.h.b16 %v4014
    %v6280 = vunpack.c.l.b16 %v4015
    %v6281 = vunpack.c.h.b16 %v4015
    %v6282 = vunpack.c.l.b16 %v4016
    %v6283 = vunpack.c.l.b16 %v4017
    %v6284 = vunpack.c.h.b16 %v4017
    %v6285 = vunpack.c.l.b16 %v4018
    %v6286 = vunpack.c.h.b16 %v4018
    %v6287 = vunpack.c.l.b16 %v4019
    %v6288 = vunpack.c.h.b16 %v4019
    %v6289 = vunpack.c.l.b16 %v4020
    %v6290 = vunpack.c.h.b16 %v4020
    %v6291 = vunpack.c.l.b16 %v4021
    %v6292 = vunpack.c.h.b16 %v4021
    %v6293 = vunpack.c.l.b16 %v4022
    %v6294 = vunpack.c.h.b16 %v4022
    %v6295 = vunpack.c.l.b16 %v4023
    %v6296 = vunpack.c.h.b16 %v4023
    %v6297 = vunpack.c.l.b16 %v4024
    %v6298 = vunpack.c.h.b16 %v4024
    %v6299 = vunpack.c.l.b16 %v4025
    %v6300 = vunpack.c.h.b16 %v4025
    %v6301 = vunpack.c.l.b16 %v4026
    %v6302 = vunpack.c.l.b16 %v4027
    %v6303 = vunpack.c.h.b16 %v4027
    %v6304 = vunpack.c.l.b16 %v4028
    %v6305 = vunpack.c.h.b16 %v4028
    %v6306 = vunpack.c.l.b16 %v4029
    %v6307 = vunpack.c.h.b16 %v4029
    %v6308 = vunpack.c.l.b16 %v4030
    %v6309 = vunpack.c.h.b16 %v4030
    %v6310 = vunpack.c.l.b16 %v4031
    %v6311 = vunpack.c.h.b16 %v4031
    %v6312 = vunpack.c.l.b16 %v4032
    %v6313 = vunpack.c.h.b16 %v4032
    %v6314 = vunpack.c.l.b16 %v4033
    %v6315 = vunpack.c.h.b16 %v4033
    %v6316 = vunpack.c.l.b16 %v4034
    %v6317 = vunpack.c.h.b16 %v4034
    %v6318 = vunpack.c.l.b16 %v4035
    %v6319 = vunpack.c.h.b16 %v4035
    %v6320 = vunpack.c.l.b16 %v4036
    %v6321 = vunpack.c.l.b16 %v4037
    %v6322 = vunpack.c.h.b16 %v4037
    %v6323 = vunpack.c.l.b16 %v4038
    %v6324 = vunpack.c.h.b16 %v4038
    %v6325 = vunpack.c.l.b16 %v4039
    %v6326 = vunpack.c.h.b16 %v4039
    %v6327 = vunpack.c.l.b16 %v4040
    %v6328 = vunpack.c.h.b16 %v4040
    %v6329 = vunpack.c.l.b16 %v4041
    %v6330 = vunpack.c.h.b16 %v4041
    %v6331 = vunpack.c.l.b16 %v4042
    %v6332 = vunpack.c.h.b16 %v4042
    %v6333 = vunpack.c.l.b16 %v4043
    %v6334 = vunpack.c.h.b16 %v4043
    %v6335 = vunpack.c.l.b16 %v4044
    %v6336 = vunpack.c.h.b16 %v4044
    %v6337 = vunpack.c.l.b16 %v4045
    %v6338 = vunpack.c.h.b16 %v4045
    %v6339 = vunpack.c.l.b16 %v4046
    %v6340 = vunpack.c.l.b16 %v4047
    %v6341 = vunpack.c.h.b16 %v4047
    %v6342 = vunpack.c.l.b16 %v4048
    %v6343 = vunpack.c.h.b16 %v4048
    %v6344 = vunpack.c.l.b16 %v4049
    %v6345 = vunpack.c.h.b16 %v4049
    %v6346 = vunpack.c.l.b16 %v4050
    %v6347 = vunpack.c.h.b16 %v4050
    %v6348 = vunpack.c.l.b16 %v4051
    %v6349 = vunpack.c.h.b16 %v4051
    %v6350 = vunpack.c.l.b16 %v4052
    %v6351 = vunpack.c.h.b16 %v4052
    %v6352 = vunpack.c.l.b16 %v4053
    %v6353 = vunpack.c.h.b16 %v4053
    %v6354 = vunpack.c.l.b16 %v4054
    %v6355 = vunpack.c.h.b16 %v4054
    %v6356 = vunpack.c.l.b16 %v4055
    %v6357 = vunpack.c.h.b16 %v4055
    %v6358 = vunpack.c.l.b16 %v4056
    %v6359 = vunpack.c.l.b16 %v4057
    %v6360 = vunpack.c.h.b16 %v4057
    %v6361 = vunpack.c.l.b16 %v4058
    %v6362 = vunpack.c.h.b16 %v4058
    %v6363 = vunpack.c.l.b16 %v4059
    %v6364 = vunpack.c.h.b16 %v4059
    %v6365 = vunpack.c.l.b16 %v4060
    %v6366 = vunpack.c.h.b16 %v4060
    %v6367 = vunpack.c.l.b16 %v4061
    %v6368 = vunpack.c.h.b16 %v4061
    %v6369 = vunpack.c.l.b16 %v4062
    %v6370 = vunpack.c.h.b16 %v4062
    %v6371 = vunpack.c.l.b16 %v4063
    %v6372 = vunpack.c.h.b16 %v4063
    %v6373 = vunpack.c.l.b16 %v4064
    %v6374 = vunpack.c.h.b16 %v4064
    %v6375 = vunpack.c.l.b16 %v4065
    %v6376 = vunpack.c.h.b16 %v4065
    %v6377 = vunpack.c.l.b16 %v4066
    %v6378 = vunpack.c.l.b16 %v4067
    %v6379 = vunpack.c.h.b16 %v4067
    %v6380 = vunpack.c.l.b16 %v4068
    %v6381 = vunpack.c.h.b16 %v4068
    %v6382 = vunpack.c.l.b16 %v4069
    %v6383 = vunpack.c.h.b16 %v4069
    %v6384 = vunpack.c.l.b16 %v4070
    %v6385 = vunpack.c.h.b16 %v4070
    %v6386 = vunpack.c.l.b16 %v4071
    %v6387 = vunpack.c.h.b16 %v4071
    %v6388 = vunpack.c.l.b16 %v4072
    %v6389 = vunpack.c.h.b16 %v4072
    %v6390 = vunpack.c.l.b16 %v4073
    %v6391 = vunpack.c.h.b16 %v4073
    %v6392 = vunpack.c.l.b16 %v4074
    %v6393 = vunpack.c.h.b16 %v4074
    %v6394 = vunpack.c.l.b16 %v4075
    %v6395 = vunpack.c.h.b16 %v4075
    %v6396 = vunpack.c.l.b16 %v4076
    %v6397 = vunpack.c.l.b16 %v4077
    %v6398 = vunpack.c.h.b16 %v4077
    %v6399 = vunpack.c.l.b16 %v4078
    %v6400 = vunpack.c.h.b16 %v4078
    %v6401 = vunpack.c.l.b16 %v4079
    %v6402 = vunpack.c.h.b16 %v4079
    %v6403 = vunpack.c.l.b16 %v4080
    %v6404 = vunpack.c.h.b16 %v4080
    %v6405 = vunpack.c.l.b16 %v4081
    %v6406 = vunpack.c.h.b16 %v4081
    %v6407 = vunpack.c.l.b16 %v4082
    %v6408 = vunpack.c.h.b16 %v4082
    %v6409 = vunpack.c.l.b16 %v4083
    %v6410 = vunpack.c.h.b16 %v4083
    %v6411 = vunpack.c.l.b16 %v4084
    %v6412 = vunpack.c.h.b16 %v4084
    %v6413 = vunpack.c.l.b16 %v4085
    %v6414 = vunpack.c.h.b16 %v4085
    %v6415 = vunpack.c.l.b16 %v4086
    %v6416 = vunpack.c.l.b16 %v4087
    %v6417 = vunpack.c.h.b16 %v4087
    %v6418 = vunpack.c.l.b16 %v4088
    %v6419 = vunpack.c.h.b16 %v4088
    %v6420 = vunpack.c.l.b16 %v4089
    %v6421 = vunpack.c.h.b16 %v4089
    %v6422 = vunpack.c.l.b16 %v4090
    %v6423 = vunpack.c.h.b16 %v4090
    %v6424 = vunpack.c.l.b16 %v4091
    %v6425 = vunpack.c.h.b16 %v4091
    %v6426 = vunpack.c.l.b16 %v4092
    %v6427 = vunpack.c.h.b16 %v4092
    %v6428 = vunpack.c.l.b16 %v4093
    %v6429 = vunpack.c.h.b16 %v4093
    %v6430 = vunpack.c.l.b16 %v4094
    %v6431 = vunpack.c.h.b16 %v4094
    %v6432 = vunpack.c.l.b16 %v4095
    %v6433 = vunpack.c.h.b16 %v4095
    %v6434 = vunpack.c.l.b16 %v4096
    %v6435 = vunpack.c.l.b16 %v4097
    %v6436 = vunpack.c.h.b16 %v4097
    %v6437 = vunpack.c.l.b16 %v4098
    %v6438 = vunpack.c.h.b16 %v4098
    %v6439 = vunpack.c.l.b16 %v4099
    %v6440 = vunpack.c.h.b16 %v4099
    %v6441 = vunpack.c.l.b16 %v4100
    %v6442 = vunpack.c.h.b16 %v4100
    %v6443 = vunpack.c.l.b16 %v4101
    %v6444 = vunpack.c.h.b16 %v4101
    %v6445 = vunpack.c.l.b16 %v4102
    %v6446 = vunpack.c.h.b16 %v4102
    %v6447 = vunpack.c.l.b16 %v4103
    %v6448 = vunpack.c.h.b16 %v4103
    %v6449 = vunpack.c.l.b16 %v4104
    %v6450 = vunpack.c.h.b16 %v4104
    %v6451 = vunpack.c.l.b16 %v4105
    %v6452 = vunpack.c.h.b16 %v4105
    %v6453 = vunpack.c.l.b16 %v4106
    %v6454 = vunpack.c.l.b16 %v4107
    %v6455 = vunpack.c.h.b16 %v4107
    %v6456 = vunpack.c.l.b16 %v4108
    %v6457 = vunpack.c.h.b16 %v4108
    %v6458 = vunpack.c.l.b16 %v4109
    %v6459 = vunpack.c.h.b16 %v4109
    %v6460 = vunpack.c.l.b16 %v4110
    %v6461 = vunpack.c.h.b16 %v4110
    %v6462 = vunpack.c.l.b16 %v4111
    %v6463 = vunpack.c.h.b16 %v4111
    %v6464 = vunpack.c.l.b16 %v4112
    %v6465 = vunpack.c.h.b16 %v4112
    %v6466 = vunpack.c.l.b16 %v4113
    %v6467 = vunpack.c.h.b16 %v4113
    %v6468 = vunpack.c.l.b16 %v4114
    %v6469 = vunpack.c.h.b16 %v4114
    %v6470 = vunpack.c.l.b16 %v4115
    %v6471 = vunpack.c.h.b16 %v4115
    %v6472 = vunpack.c.l.b16 %v4116
    %v6473 = vunpack.c.l.b16 %v4117
    %v6474 = vunpack.c.h.b16 %v4117
    %v6475 = vunpack.c.l.b16 %v4118
    %v6476 = vunpack.c.h.b16 %v4118
    %v6477 = vunpack.c.l.b16 %v4119
    %v6478 = vunpack.c.h.b16 %v4119
    %v6479 = vunpack.c.l.b16 %v4120
    %v6480 = vunpack.c.h.b16 %v4120
    %v6481 = vunpack.c.l.b16 %v4121
    %v6482 = vunpack.c.h.b16 %v4121
    %v6483 = vunpack.c.l.b16 %v4122
    %v6484 = vunpack.c.h.b16 %v4122
    %v6485 = vunpack.c.l.b16 %v4123
    %v6486 = vunpack.c.h.b16 %v4123
    %v6487 = vunpack.c.l.b16 %v4124
    %v6488 = vunpack.c.h.b16 %v4124
    %v6489 = vunpack.c.l.b16 %v4125
    %v6490 = vunpack.c.h.b16 %v4125
    %v6491 = vunpack.c.l.b16 %v4126
    %v6492 = vunpack.c.l.b16 %v4127
    %v6493 = vunpack.c.h.b16 %v4127
    %v6494 = vunpack.c.l.b16 %v4128
    %v6495 = vunpack.c.h.b16 %v4128
    %v6496 = vunpack.c.l.b16 %v4129
    %v6497 = vunpack.c.h.b16 %v4129
    %v6498 = vunpack.c.l.b16 %v4130
    %v6499 = vunpack.c.h.b16 %v4130
    %v6500 = vunpack.c.l.b16 %v4131
    %v6501 = vunpack.c.h.b16 %v4131
    %v6502 = vunpack.c.l.b16 %v4132
    %v6503 = vunpack.c.h.b16 %v4132
    %v6504 = vunpack.c.l.b16 %v4133
    %v6505 = vunpack.c.h.b16 %v4133
    %v6506 = vunpack.c.l.b16 %v4134
    %v6507 = vunpack.c.h.b16 %v4134
    %v6508 = vunpack.c.l.b16 %v4135
    %v6509 = vunpack.c.h.b16 %v4135
    %v6510 = vunpack.c.l.b16 %v4136
    %v6511 = vunpack.c.l.b16 %v4137
    %v6512 = vunpack.c.h.b16 %v4137
    %v6513 = vunpack.c.l.b16 %v4138
    %v6514 = vunpack.c.h.b16 %v4138
    %v6515 = vunpack.c.l.b16 %v4139
    %v6516 = vunpack.c.h.b16 %v4139
    %v6517 = vunpack.c.l.b16 %v4140
    %v6518 = vunpack.c.h.b16 %v4140
    %v6519 = vunpack.c.l.b16 %v4141
    %v6520 = vunpack.c.h.b16 %v4141
    %v6521 = vunpack.c.l.b16 %v4142
    %v6522 = vunpack.c.h.b16 %v4142
    %v6523 = vunpack.c.l.b16 %v4143
    %v6524 = vunpack.c.h.b16 %v4143
    %v6525 = vunpack.c.l.b16 %v4144
    %v6526 = vunpack.c.h.b16 %v4144
    %v6527 = vunpack.c.l.b16 %v4145
    %v6528 = vunpack.c.h.b16 %v4145
    %v6529 = vunpack.c.l.b16 %v4146
    %v6530 = vunpack.c.l.b16 %v4147
    %v6531 = vunpack.c.h.b16 %v4147
    %v6532 = vunpack.c.l.b16 %v4148
    %v6533 = vunpack.c.h.b16 %v4148
    %v6534 = vunpack.c.l.b16 %v4149
    %v6535 = vunpack.c.h.b16 %v4149
    %v6536 = vunpack.c.l.b16 %v4150
    %v6537 = vunpack.c.h.b16 %v4150
    %v6538 = vunpack.c.l.b16 %v4151
    %v6539 = vunpack.c.h.b16 %v4151
    %v6540 = vunpack.c.l.b16 %v4152
    %v6541 = vunpack.c.h.b16 %v4152
    %v6542 = vunpack.c.l.b16 %v4153
    %v6543 = vunpack.c.h.b16 %v4153
    %v6544 = vunpack.c.l.b16 %v4154
    %v6545 = vunpack.c.h.b16 %v4154
    %v6546 = vunpack.c.l.b16 %v4155
    %v6547 = vunpack.c.h.b16 %v4155
    %v6548 = vunpack.c.l.b16 %v4156
    %v6549 = vunpack.c.l.b16 %v4157
    %v6550 = vunpack.c.h.b16 %v4157
    %v6551 = vunpack.c.l.b16 %v4158
    %v6552 = vunpack.c.h.b16 %v4158
    %v6553 = vunpack.c.l.b16 %v4159
    %v6554 = vunpack.c.h.b16 %v4159
    %v6555 = vunpack.c.l.b16 %v4160
    %v6556 = vunpack.c.h.b16 %v4160
    %v6557 = vunpack.c.l.b16 %v4161
    %v6558 = vunpack.c.h.b16 %v4161
    %v6559 = vunpack.c.l.b16 %v4162
    %v6560 = vunpack.c.h.b16 %v4162
    %v6561 = vunpack.c.l.b16 %v4163
    %v6562 = vunpack.c.h.b16 %v4163
    %v6563 = vunpack.c.l.b16 %v4164
    %v6564 = vunpack.c.h.b16 %v4164
    %v6565 = vunpack.c.l.b16 %v4165
    %v6566 = vunpack.c.h.b16 %v4165
    %v6567 = vunpack.c.l.b16 %v4166
    %v6568 = vunpack.c.l.b16 %v4167
    %v6569 = vunpack.c.h.b16 %v4167
    %v6570 = vunpack.c.l.b16 %v4168
    %v6571 = vunpack.c.h.b16 %v4168
    %v6572 = vunpack.c.l.b16 %v4169
    %v6573 = vunpack.c.h.b16 %v4169
    %v6574 = vunpack.c.l.b16 %v4170
    %v6575 = vunpack.c.h.b16 %v4170
    %v6576 = vunpack.c.l.b16 %v4171
    %v6577 = vunpack.c.h.b16 %v4171
    %v6578 = vunpack.c.l.b16 %v4172
    %v6579 = vunpack.c.h.b16 %v4172
    %v6580 = vunpack.c.l.b16 %v4173
    %v6581 = vunpack.c.h.b16 %v4173
    %v6582 = vunpack.c.l.b16 %v4174
    %v6583 = vunpack.c.h.b16 %v4174
    %v6584 = vunpack.c.l.b16 %v4175
    %v6585 = vunpack.c.h.b16 %v4175
    %v6586 = vunpack.c.l.b16 %v4176
    %v6587 = vunpack.c.l.b16 %v4177
    %v6588 = vunpack.c.h.b16 %v4177
    %v6589 = vunpack.c.l.b16 %v4178
    %v6590 = vunpack.c.h.b16 %v4178
    %v6591 = vunpack.c.l.b16 %v4179
    %v6592 = vunpack.c.h.b16 %v4179
    %v6593 = vunpack.c.l.b16 %v4180
    %v6594 = vunpack.c.h.b16 %v4180
    %v6595 = vunpack.c.l.b16 %v4181
    %v6596 = vunpack.c.h.b16 %v4181
    %v6597 = vunpack.c.l.b16 %v4182
    %v6598 = vunpack.c.h.b16 %v4182
    %v6599 = vunpack.c.l.b16 %v4183
    %v6600 = vunpack.c.h.b16 %v4183
    %v6601 = vunpack.c.l.b16 %v4184
    %v6602 = vunpack.c.h.b16 %v4184
    %v6603 = vunpack.c.l.b16 %v4185
    %v6604 = vunpack.c.h.b16 %v4185
    %v6605 = vunpack.c.l.b16 %v4186
    %v6606 = vunpack.c.l.b16 %v4187
    %v6607 = vunpack.c.h.b16 %v4187
    %v6608 = vunpack.c.l.b16 %v4188
    %v6609 = vunpack.c.h.b16 %v4188
    %v6610 = vunpack.c.l.b16 %v4189
    %v6611 = vunpack.c.h.b16 %v4189
    %v6612 = vunpack.c.l.b16 %v4190
    %v6613 = vunpack.c.h.b16 %v4190
    %v6614 = vunpack.c.l.b16 %v4191
    %v6615 = vunpack.c.h.b16 %v4191
    %v6616 = vunpack.c.l.b16 %v4192
    %v6617 = vunpack.c.h.b16 %v4192
    %v6618 = vunpack.c.l.b16 %v4193
    %v6619 = vunpack.c.h.b16 %v4193
    %v6620 = vunpack.c.l.b16 %v4194
    %v6621 = vunpack.c.h.b16 %v4194
    %v6622 = vunpack.c.l.b16 %v4195
    %v6623 = vunpack.c.h.b16 %v4195
    %v6624 = vunpack.c.l.b16 %v4196
    %v6625 = vunpack.c.l.b16 %v4197
    %v6626 = vunpack.c.h.b16 %v4197
    %v6627 = vunpack.c.l.b16 %v4198
    %v6628 = vunpack.c.h.b16 %v4198
    %v6629 = vunpack.c.l.b16 %v4199
    %v6630 = vunpack.c.h.b16 %v4199
    %v6631 = vunpack.c.l.b16 %v4200
    %v6632 = vunpack.c.h.b16 %v4200
    %v6633 = vunpack.c.l.b16 %v4201
    %v6634 = vunpack.c.h.b16 %v4201
    %v6635 = vunpack.c.l.b16 %v4202
    %v6636 = vunpack.c.h.b16 %v4202
    %v6637 = vunpack.c.l.b16 %v4203
    %v6638 = vunpack.c.h.b16 %v4203
    %v6639 = vunpack.c.l.b16 %v4204
    %v6640 = vunpack.c.h.b16 %v4204
    %v6641 = vunpack.c.l.b16 %v4205
    %v6642 = vunpack.c.h.b16 %v4205
    %v6643 = vunpack.c.l.b16 %v4206
    %v6644 = vunpack.c.l.b16 %v4207
    %v6645 = vunpack.c.h.b16 %v4207
    %v6646 = vunpack.c.l.b16 %v4208
    %v6647 = vunpack.c.h.b16 %v4208
    %v6648 = vunpack.c.l.b16 %v4209
    %v6649 = vunpack.c.h.b16 %v4209
    %v6650 = vunpack.c.l.b16 %v4210
    %v6651 = vunpack.c.h.b16 %v4210
    %v6652 = vunpack.c.l.b16 %v4211
    %v6653 = vunpack.c.h.b16 %v4211
    %v6654 = vunpack.c.l.b16 %v4212
    %v6655 = vunpack.c.h.b16 %v4212
    %v6656 = vunpack.c.l.b16 %v4213
    %v6657 = vunpack.c.h.b16 %v4213
    %v6658 = vunpack.c.l.b16 %v4214
    %v6659 = vunpack.c.h.b16 %v4214
    %v6660 = vunpack.c.l.b16 %v4215
    %v6661 = vunpack.c.h.b16 %v4215
    %v6662 = vunpack.c.l.b16 %v4216
    %v6663 = vunpack.c.l.b16 %v4217
    %v6664 = vunpack.c.h.b16 %v4217
    %v6665 = vunpack.c.l.b16 %v4218
    %v6666 = vunpack.c.h.b16 %v4218
    %v6667 = vunpack.c.l.b16 %v4219
    %v6668 = vunpack.c.h.b16 %v4219
    %v6669 = vunpack.c.l.b16 %v4220
    %v6670 = vunpack.c.h.b16 %v4220
    %v6671 = vunpack.c.l.b16 %v4221
    %v6672 = vunpack.c.h.b16 %v4221
    %v6673 = vunpack.c.l.b16 %v4222
    %v6674 = vunpack.c.h.b16 %v4222
    %v6675 = vunpack.c.l.b16 %v4223
    %v6676 = vunpack.c.h.b16 %v4223
    %v6677 = vunpack.c.l.b16 %v4224
    %v6678 = vunpack.c.h.b16 %v4224
    %v6679 = vunpack.c.l.b16 %v4225
    %v6680 = vunpack.c.h.b16 %v4225
    %v6681 = vunpack.c.l.b16 %v4226
    %v6682 = vunpack.c.l.b16 %v4227
    %v6683 = vunpack.c.h.b16 %v4227
    %v6684 = vunpack.c.l.b16 %v4228
    %v6685 = vunpack.c.h.b16 %v4228
    %v6686 = vunpack.c.l.b16 %v4229
    %v6687 = vunpack.c.h.b16 %v4229
    %v6688 = vunpack.c.l.b16 %v4230
    %v6689 = vunpack.c.h.b16 %v4230
    %v6690 = vunpack.c.l.b16 %v4231
    %v6691 = vunpack.c.h.b16 %v4231
    %v6692 = vunpack.c.l.b16 %v4232
    %v6693 = vunpack.c.h.b16 %v4232
    %v6694 = vunpack.c.l.b16 %v4233
    %v6695 = vunpack.c.h.b16 %v4233
    %v6696 = vunpack.c.l.b16 %v4234
    %v6697 = vunpack.c.h.b16 %v4234
    %v6698 = vunpack.c.l.b16 %v4235
    %v6699 = vunpack.c.h.b16 %v4235
    %v6700 = vunpack.c.l.b16 %v4236
    %v6701 = vunpack.c.l.b16 %v4237
    %v6702 = vunpack.c.h.b16 %v4237
    %v6703 = vunpack.c.l.b16 %v4238
    %v6704 = vunpack.c.h.b16 %v4238
    %v6705 = vunpack.c.l.b16 %v4239
    %v6706 = vunpack.c.h.b16 %v4239
    %v6707 = vunpack.c.l.b16 %v4240
    %v6708 = vunpack.c.h.b16 %v4240
    %v6709 = vunpack.c.l.b16 %v4241
    %v6710 = vunpack.c.h.b16 %v4241
    %v6711 = vunpack.c.l.b16 %v4242
    %v6712 = vunpack.c.h.b16 %v4242
    %v6713 = vunpack.c.l.b16 %v4243
    %v6714 = vunpack.c.h.b16 %v4243
    %v6715 = vunpack.c.l.b16 %v4244
    %v6716 = vunpack.c.h.b16 %v4244
    %v6717 = vunpack.c.l.b16 %v4245
    %v6718 = vunpack.c.h.b16 %v4245
    %v6719 = vunpack.c.l.b16 %v4246
    %v6720 = vunpack.c.l.b16 %v4247
    %v6721 = vunpack.c.h.b16 %v4247
    %v6722 = vunpack.c.l.b16 %v4248
    %v6723 = vunpack.c.h.b16 %v4248
    %v6724 = vunpack.c.l.b16 %v4249
    %v6725 = vunpack.c.h.b16 %v4249
    %v6726 = vunpack.c.l.b16 %v4250
    %v6727 = vunpack.c.h.b16 %v4250
    %v6728 = vunpack.c.l.b16 %v4251
    %v6729 = vunpack.c.h.b16 %v4251
    %v6730 = vunpack.c.l.b16 %v4252
    %v6731 = vunpack.c.h.b16 %v4252
    %v6732 = vunpack.c.l.b16 %v4253
    %v6733 = vunpack.c.h.b16 %v4253
    %v6734 = vunpack.c.l.b16 %v4254
    %v6735 = vunpack.c.h.b16 %v4254
    %v6736 = vunpack.c.l.b16 %v4255
    %v6737 = vunpack.c.h.b16 %v4255
    %v6738 = vunpack.c.l.b16 %v4256
    %v6739 = vunpack.c.l.b16 %v4257
    %v6740 = vunpack.c.h.b16 %v4257
    %v6741 = vunpack.c.l.b16 %v4258
    %v6742 = vunpack.c.h.b16 %v4258
    %v6743 = vunpack.c.l.b16 %v4259
    %v6744 = vunpack.c.h.b16 %v4259
    %v6745 = vunpack.c.l.b16 %v4260
    %v6746 = vunpack.c.h.b16 %v4260
    %v6747 = vunpack.c.l.b16 %v4261
    %v6748 = vunpack.c.h.b16 %v4261
    %v6749 = vunpack.c.l.b16 %v4262
    %v6750 = vunpack.c.h.b16 %v4262
    %v6751 = vunpack.c.l.b16 %v4263
    %v6752 = vunpack.c.h.b16 %v4263
    %v6753 = vunpack.c.l.b16 %v4264
    %v6754 = vunpack.c.h.b16 %v4264
    %v6755 = vunpack.c.l.b16 %v4265
    %v6756 = vunpack.c.h.b16 %v4265
    %v6757 = vunpack.c.l.b16 %v4266
    %v6758 = vunpack.c.l.b16 %v4267
    %v6759 = vunpack.c.h.b16 %v4267
    %v6760 = vunpack.c.l.b16 %v4268
    %v6761 = vunpack.c.h.b16 %v4268
    %v6762 = vunpack.c.l.b16 %v4269
    %v6763 = vunpack.c.h.b16 %v4269
    %v6764 = vunpack.c.l.b16 %v4270
    %v6765 = vunpack.c.h.b16 %v4270
    %v6766 = vunpack.c.l.b16 %v4271
    %v6767 = vunpack.c.h.b16 %v4271
    %v6768 = vunpack.c.l.b16 %v4272
    %v6769 = vunpack.c.h.b16 %v4272
    %v6770 = vunpack.c.l.b16 %v4273
    %v6771 = vunpack.c.h.b16 %v4273
    %v6772 = vunpack.c.l.b16 %v4274
    %v6773 = vunpack.c.h.b16 %v4274
    %v6774 = vunpack.c.l.b16 %v4275
    %v6775 = vunpack.c.h.b16 %v4275
    %v6776 = vunpack.c.l.b16 %v4276
    %v6777 = vunpack.c.l.b16 %v4277
    %v6778 = vunpack.c.h.b16 %v4277
    %v6779 = vunpack.c.l.b16 %v4278
    %v6780 = vunpack.c.h.b16 %v4278
    %v6781 = vunpack.c.l.b16 %v4279
    %v6782 = vunpack.c.h.b16 %v4279
    %v6783 = vunpack.c.l.b16 %v4280
    %v6784 = vunpack.c.h.b16 %v4280
    %v6785 = vunpack.c.l.b16 %v4281
    %v6786 = vunpack.c.h.b16 %v4281
    %v6787 = vunpack.c.l.b16 %v4282
    %v6788 = vunpack.c.h.b16 %v4282
    %v6789 = vunpack.c.l.b16 %v4283
    %v6790 = vunpack.c.h.b16 %v4283
    %v6791 = vunpack.c.l.b16 %v4284
    %v6792 = vunpack.c.h.b16 %v4284
    %v6793 = vunpack.c.l.b16 %v4285
    %v6794 = vunpack.c.h.b16 %v4285
    %v6795 = vunpack.c.l.b16 %v4286
    %v6796 = vunpack.c.l.b16 %v4287
    %v6797 = vunpack.c.h.b16 %v4287
    %v6798 = vunpack.c.l.b16 %v4288
    %v6799 = vunpack.c.h.b16 %v4288
    %v6800 = vunpack.c.l.b16 %v4289
    %v6801 = vunpack.c.h.b16 %v4289
    %v6802 = vunpack.c.l.b16 %v4290
    %v6803 = vunpack.c.h.b16 %v4290
    %v6804 = vunpack.c.l.b16 %v4291
    %v6805 = vunpack.c.h.b16 %v4291
    %v6806 = vunpack.c.l.b16 %v4292
    %v6807 = vunpack.c.h.b16 %v4292
    %v6808 = vunpack.c.l.b16 %v4293
    %v6809 = vunpack.c.h.b16 %v4293
    %v6810 = vunpack.c.l.b16 %v4294
    %v6811 = vunpack.c.h.b16 %v4294
    %v6812 = vunpack.c.l.b16 %v4295
    %v6813 = vunpack.c.h.b16 %v4295
    %v6814 = vunpack.c.l.b16 %v4296
    %v6815 = vunpack.c.l.b16 %v4297
    %v6816 = vunpack.c.h.b16 %v4297
    %v6817 = vunpack.c.l.b16 %v4298
    %v6818 = vunpack.c.h.b16 %v4298
    %v6819 = vunpack.c.l.b16 %v4299
    %v6820 = vunpack.c.h.b16 %v4299
    %v6821 = vunpack.c.l.b16 %v4300
    %v6822 = vunpack.c.h.b16 %v4300
    %v6823 = vunpack.c.l.b16 %v4301
    %v6824 = vunpack.c.h.b16 %v4301
    %v6825 = vunpack.c.l.b16 %v4302
    %v6826 = vunpack.c.h.b16 %v4302
    %v6827 = vunpack.c.l.b16 %v4303
    %v6828 = vunpack.c.h.b16 %v4303
    %v6829 = vunpack.c.l.b16 %v4304
    %v6830 = vunpack.c.h.b16 %v4304
    %v6831 = vunpack.c.l.b16 %v4305
    %v6832 = vunpack.c.h.b16 %v4305
    %v6833 = vunpack.c.l.b16 %v4306
    %v6834 = vunpack.c.l.b16 %v4307
    %v6835 = vunpack.c.h.b16 %v4307
    %v6836 = vunpack.c.l.b16 %v4308
    %v6837 = vunpack.c.h.b16 %v4308
    %v6838 = vunpack.c.l.b16 %v4309
    %v6839 = vunpack.c.h.b16 %v4309
    %v6840 = vunpack.c.l.b16 %v4310
    %v6841 = vunpack.c.h.b16 %v4310
    %v6842 = vunpack.c.l.b16 %v4311
    %v6843 = vunpack.c.h.b16 %v4311
    %v6844 = vunpack.c.l.b16 %v4312
    %v6845 = vunpack.c.h.b16 %v4312
    %v6846 = vunpack.c.l.b16 %v4313
    %v6847 = vunpack.c.h.b16 %v4313
    %v6848 = vunpack.c.l.b16 %v4314
    %v6849 = vunpack.c.h.b16 %v4314
    %v6850 = vunpack.c.l.b16 %v4315
    %v6851 = vunpack.c.h.b16 %v4315
    %v6852 = vunpack.c.l.b16 %v4316
    %v6853 = vunpack.c.l.b16 %v4317
    %v6854 = vunpack.c.h.b16 %v4317
    %v6855 = vunpack.c.l.b16 %v4318
    %v6856 = vunpack.c.h.b16 %v4318
    %v6857 = vunpack.c.l.b16 %v4319
    %v6858 = vunpack.c.h.b16 %v4319
    %v6859 = vunpack.c.l.b16 %v4320
    %v6860 = vunpack.c.h.b16 %v4320
    %v6861 = vunpack.c.l.b16 %v4321
    %v6862 = vunpack.c.h.b16 %v4321
    %v6863 = vunpack.c.l.b16 %v4322
    %v6864 = vunpack.c.h.b16 %v4322
    %v6865 = vunpack.c.l.b16 %v4323
    %v6866 = vunpack.c.h.b16 %v4323
    %v6867 = vunpack.c.l.b16 %v4324
    %v6868 = vunpack.c.h.b16 %v4324
    %v6869 = vunpack.c.l.b16 %v4325
    %v6870 = vunpack.c.h.b16 %v4325
    %v6871 = vunpack.c.l.b16 %v4326
    %v6872 = vunpack.c.l.b16 %v4327
    %v6873 = vunpack.c.h.b16 %v4327
    %v6874 = vunpack.c.l.b16 %v4328
    %v6875 = vunpack.c.h.b16 %v4328
    %v6876 = vunpack.c.l.b16 %v4329
    %v6877 = vunpack.c.h.b16 %v4329
    %v6878 = vunpack.c.l.b16 %v4330
    %v6879 = vunpack.c.h.b16 %v4330
    %v6880 = vunpack.c.l.b16 %v4331
    %v6881 = vunpack.c.h.b16 %v4331
    %v6882 = vunpack.c.l.b16 %v4332
    %v6883 = vunpack.c.h.b16 %v4332
    %v6884 = vunpack.c.l.b16 %v4333
    %v6885 = vunpack.c.h.b16 %v4333
    %v6886 = vunpack.c.l.b16 %v4334
    %v6887 = vunpack.c.h.b16 %v4334
    %v6888 = vunpack.c.l.b16 %v4335
    %v6889 = vunpack.c.h.b16 %v4335
    %v6890 = vunpack.c.l.b16 %v4336
    %v6891 = vunpack.c.l.b16 %v4337
    %v6892 = vunpack.c.h.b16 %v4337
    %v6893 = vunpack.c.l.b16 %v4338
    %v6894 = vunpack.c.h.b16 %v4338
    %v6895 = vunpack.c.l.b16 %v4339
    %v6896 = vunpack.c.h.b16 %v4339
    %v6897 = vunpack.c.l.b16 %v4340
    %v6898 = vunpack.c.h.b16 %v4340
    %v6899 = vunpack.c.l.b16 %v4341
    %v6900 = vunpack.c.h.b16 %v4341
    %v6901 = vunpack.c.l.b16 %v4342
    %v6902 = vunpack.c.h.b16 %v4342
    %v6903 = vunpack.c.l.b16 %v4343
    %v6904 = vunpack.c.h.b16 %v4343
    %v6905 = vunpack.c.l.b16 %v4344
    %v6906 = vunpack.c.h.b16 %v4344
    %v6907 = vunpack.c.l.b16 %v4345
    %v6908 = vunpack.c.h.b16 %v4345
    %v6909 = vunpack.c.l.b16 %v4346
    %v6910 = vunpack.c.l.b16 %v4347
    %v6911 = vunpack.c.h.b16 %v4347
    %v6912 = vunpack.c.l.b16 %v4348
    %v6913 = vunpack.c.h.b16 %v4348
    %v6914 = vunpack.c.l.b16 %v4349
    %v6915 = vunpack.c.h.b16 %v4349
    %v6916 = vunpack.c.l.b16 %v4350
    %v6917 = vunpack.c.h.b16 %v4350
    %v6918 = vunpack.c.l.b16 %v4351
    %v6919 = vunpack.c.h.b16 %v4351
    %v6920 = vunpack.c.l.b16 %v4352
    %v6921 = vunpack.c.h.b16 %v4352
    %v6922 = vunpack.c.l.b16 %v4353
    %v6923 = vunpack.c.h.b16 %v4353
    %v6924 = vunpack.c.l.b16 %v4354
    %v6925 = vunpack.c.h.b16 %v4354
    %v6926 = vunpack.c.l.b16 %v4355
    %v6927 = vunpack.c.h.b16 %v4355
    %v6928 = vunpack.c.l.b16 %v4356
    %v6929 = vunpack.c.l.b16 %v4357
    %v6930 = vunpack.c.h.b16 %v4357
    %v6931 = vunpack.c.l.b16 %v4358
    %v6932 = vunpack.c.h.b16 %v4358
    %v6933 = vunpack.c.l.b16 %v4359
    %v6934 = vunpack.c.h.b16 %v4359
    %v6935 = vunpack.c.l.b16 %v4360
    %v6936 = vunpack.c.h.b16 %v4360
    %v6937 = vunpack.c.l.b16 %v4361
    %v6938 = vunpack.c.h.b16 %v4361
    %v6939 = vunpack.c.l.b16 %v4362
    %v6940 = vunpack.c.h.b16 %v4362
    %v6941 = vunpack.c.l.b16 %v4363
    %v6942 = vunpack.c.h.b16 %v4363
    %v6943 = vunpack.c.l.b16 %v4364
    %v6944 = vunpack.c.h.b16 %v4364
    %v6945 = vunpack.c.l.b16 %v4365
    %v6946 = vunpack.c.h.b16 %v4365
    %v6947 = vunpack.c.l.b16 %v4366
    %v6948 = vunpack.c.l.b16 %v4367
    %v6949 = vunpack.c.h.b16 %v4367
    %v6950 = vunpack.c.l.b16 %v4368
    %v6951 = vunpack.c.h.b16 %v4368
    %v6952 = vunpack.c.l.b16 %v4369
    %v6953 = vunpack.c.h.b16 %v4369
    %v6954 = vunpack.c.l.b16 %v4370
    %v6955 = vunpack.c.h.b16 %v4370
    %v6956 = vunpack.c.l.b16 %v4371
    %v6957 = vunpack.c.h.b16 %v4371
    %v6958 = vunpack.c.l.b16 %v4372
    %v6959 = vunpack.c.h.b16 %v4372
    %v6960 = vunpack.c.l.b16 %v4373
    %v6961 = vunpack.c.h.b16 %v4373
    %v6962 = vunpack.c.l.b16 %v4374
    %v6963 = vunpack.c.h.b16 %v4374
    %v6964 = vunpack.c.l.b16 %v4375
    %v6965 = vunpack.c.h.b16 %v4375
    %v6966 = vunpack.c.l.b16 %v4376
    %v6967 = vunpack.c.l.b16 %v4377
    %v6968 = vunpack.c.h.b16 %v4377
    %v6969 = vunpack.c.l.b16 %v4378
    %v6970 = vunpack.c.h.b16 %v4378
    %v6971 = vunpack.c.l.b16 %v4379
    %v6972 = vunpack.c.h.b16 %v4379
    %v6973 = vunpack.c.l.b16 %v4380
    %v6974 = vunpack.c.h.b16 %v4380
    %v6975 = vunpack.c.l.b16 %v4381
    %v6976 = vunpack.c.h.b16 %v4381
    %v6977 = vunpack.c.l.b16 %v4382
    %v6978 = vunpack.c.h.b16 %v4382
    %v6979 = vunpack.c.l.b16 %v4383
    %v6980 = vunpack.c.h.b16 %v4383
    %v6981 = vunpack.c.l.b16 %v4384
    %v6982 = vunpack.c.h.b16 %v4384
    %v6983 = vunpack.c.l.b16 %v4385
    %v6984 = vunpack.c.h.b16 %v4385
    %v6985 = vunpack.c.l.b16 %v4386
    %v6986 = vunpack.c.l.b16 %v4387
    %v6987 = vunpack.c.h.b16 %v4387
    %v6988 = vunpack.c.l.b16 %v4388
    %v6989 = vunpack.c.h.b16 %v4388
    %v6990 = vunpack.c.l.b16 %v4389
    %v6991 = vunpack.c.h.b16 %v4389
    %v6992 = vunpack.c.l.b16 %v4390
    %v6993 = vunpack.c.h.b16 %v4390
    %v6994 = vunpack.c.l.b16 %v4391
    %v6995 = vunpack.c.h.b16 %v4391
    %v6996 = vunpack.c.l.b16 %v4392
    %v6997 = vunpack.c.h.b16 %v4392
    %v6998 = vunpack.c.l.b16 %v4393
    %v6999 = vunpack.c.h.b16 %v4393
    %v7000 = vunpack.c.l.b16 %v4394
    %v7001 = vunpack.c.h.b16 %v4394
    %v7002 = vunpack.c.l.b16 %v4395
    %v7003 = vunpack.c.h.b16 %v4395
    %v7004 = vunpack.c.l.b16 %v4396
    %v7005 = vunpack.c.l.b16 %v4397
    %v7006 = vunpack.c.h.b16 %v4397
    %v7007 = vunpack.c.l.b16 %v4398
    %v7008 = vunpack.c.h.b16 %v4398
    %v7009 = vunpack.c.l.b16 %v4399
    %v7010 = vunpack.c.h.b16 %v4399
    %v7011 = vunpack.c.l.b16 %v4400
    %v7012 = vunpack.c.h.b16 %v4400
    %v7013 = vunpack.c.l.b16 %v4401
    %v7014 = vunpack.c.h.b16 %v4401
    %v7015 = vunpack.c.l.b16 %v4402
    %v7016 = vunpack.c.h.b16 %v4402
    %v7017 = vunpack.c.l.b16 %v4403
    %v7018 = vunpack.c.h.b16 %v4403
    %v7019 = vunpack.c.l.b16 %v4404
    %v7020 = vunpack.c.h.b16 %v4404
    %v7021 = vunpack.c.l.b16 %v4405
    %v7022 = vunpack.c.h.b16 %v4405
    %v7023 = vunpack.c.l.b16 %v4406
    %v7024 = vunpack.c.l.b16 %v4407
    %v7025 = vunpack.c.h.b16 %v4407
    %v7026 = vunpack.c.l.b16 %v4408
    %v7027 = vunpack.c.h.b16 %v4408
    %v7028 = vunpack.c.l.b16 %v4409
    %v7029 = vunpack.c.h.b16 %v4409
    %v7030 = vunpack.c.l.b16 %v4410
    %v7031 = vunpack.c.h.b16 %v4410
    %v7032 = vunpack.c.l.b16 %v4411
    %v7033 = vunpack.c.h.b16 %v4411
    %v7034 = vunpack.c.l.b16 %v4412
    %v7035 = vunpack.c.h.b16 %v4412
    %v7036 = vunpack.c.l.b16 %v4413
    %v7037 = vunpack.c.h.b16 %v4413
    %v7038 = vunpack.c.l.b16 %v4414
    %v7039 = vunpack.c.h.b16 %v4414
    %v7040 = vunpack.c.l.b16 %v4415
    %v7041 = vunpack.c.h.b16 %v4415
    %v7042 = vunpack.c.l.b16 %v4416
    %v7043 = vunpack.c.l.b16 %v4417
    %v7044 = vunpack.c.h.b16 %v4417
    %v7045 = vunpack.c.l.b16 %v4418
    %v7046 = vunpack.c.h.b16 %v4418
    %v7047 = vunpack.c.l.b16 %v4419
    %v7048 = vunpack.c.h.b16 %v4419
    %v7049 = vunpack.c.l.b16 %v4420
    %v7050 = vunpack.c.h.b16 %v4420
    %v7051 = vunpack.c.l.b16 %v4421
    %v7052 = vunpack.c.h.b16 %v4421
    %v7053 = vunpack.c.l.b16 %v4422
    %v7054 = vunpack.c.h.b16 %v4422
    %v7055 = vunpack.c.l.b16 %v4423
    %v7056 = vunpack.c.h.b16 %v4423
    %v7057 = vunpack.c.l.b16 %v4424
    %v7058 = vunpack.c.h.b16 %v4424
    %v7059 = vunpack.c.l.b16 %v4425
    %v7060 = vunpack.c.h.b16 %v4425
    %v7061 = vunpack.c.l.b16 %v4426
    %v7062 = vunpack.c.l.b16 %v4427
    %v7063 = vunpack.c.h.b16 %v4427
    %v7064 = vunpack.c.l.b16 %v4428
    %v7065 = vunpack.c.h.b16 %v4428
    %v7066 = vunpack.c.l.b16 %v4429
    %v7067 = vunpack.c.h.b16 %v4429
    %v7068 = vunpack.c.l.b16 %v4430
    %v7069 = vunpack.c.h.b16 %v4430
    %v7070 = vunpack.c.l.b16 %v4431
    %v7071 = vunpack.c.h.b16 %v4431
    %v7072 = vunpack.c.l.b16 %v4432
    %v7073 = vunpack.c.h.b16 %v4432
    %v7074 = vunpack.c.l.b16 %v4433
    %v7075 = vunpack.c.h.b16 %v4433
    %v7076 = vunpack.c.l.b16 %v4434
    %v7077 = vunpack.c.h.b16 %v4434
    %v7078 = vunpack.c.l.b16 %v4435
    %v7079 = vunpack.c.h.b16 %v4435
    %v7080 = vunpack.c.l.b16 %v4436
    %v7081 = vunpack.c.l.b16 %v4437
    %v7082 = vunpack.c.h.b16 %v4437
    %v7083 = vunpack.c.l.b16 %v4438
    %v7084 = vunpack.c.h.b16 %v4438
    %v7085 = vunpack.c.l.b16 %v4439
    %v7086 = vunpack.c.h.b16 %v4439
    %v7087 = vunpack.c.l.b16 %v4440
    %v7088 = vunpack.c.h.b16 %v4440
    %v7089 = vunpack.c.l.b16 %v4441
    %v7090 = vunpack.c.h.b16 %v4441
    %v7091 = vunpack.c.l.b16 %v4442
    %v7092 = vunpack.c.h.b16 %v4442
    %v7093 = vunpack.c.l.b16 %v4443
    %v7094 = vunpack.c.h.b16 %v4443
    %v7095 = vunpack.c.l.b16 %v4444
    %v7096 = vunpack.c.h.b16 %v4444
    %v7097 = vunpack.c.l.b16 %v4445
    %v7098 = vunpack.c.h.b16 %v4445
    %v7099 = vunpack.c.l.b16 %v4446
    %v7100 = vunpack.c.l.b16 %v4447
    %v7101 = vunpack.c.h.b16 %v4447
    %v7102 = vunpack.c.l.b16 %v4448
    %v7103 = vunpack.c.h.b16 %v4448
    %v7104 = vunpack.c.l.b16 %v4449
    %v7105 = vunpack.c.h.b16 %v4449
    %v7106 = vunpack.c.l.b16 %v4450
    %v7107 = vunpack.c.h.b16 %v4450
    %v7108 = vunpack.c.l.b16 %v4451
    %v7109 = vunpack.c.h.b16 %v4451
    %v7110 = vunpack.c.l.b16 %v4452
    %v7111 = vunpack.c.h.b16 %v4452
    %v7112 = vunpack.c.l.b16 %v4453
    %v7113 = vunpack.c.h.b16 %v4453
    %v7114 = vunpack.c.l.b16 %v4454
    %v7115 = vunpack.c.h.b16 %v4454
    %v7116 = vunpack.c.l.b16 %v4455
    %v7117 = vunpack.c.h.b16 %v4455
    %v7118 = vunpack.c.l.b16 %v4456
    %v7119 = vunpack.c.l.b16 %v4457
    %v7120 = vunpack.c.h.b16 %v4457
    %v7121 = vunpack.c.l.b16 %v4458
    %v7122 = vunpack.c.h.b16 %v4458
    %v7123 = vunpack.c.l.b16 %v4459
    %v7124 = vunpack.c.h.b16 %v4459
    %v7125 = vunpack.c.l.b16 %v4460
    %v7126 = vunpack.c.h.b16 %v4460
    %v7127 = vunpack.c.l.b16 %v4461
    %v7128 = vunpack.c.h.b16 %v4461
    %v7129 = vunpack.c.l.b16 %v4462
    %v7130 = vunpack.c.h.b16 %v4462
    %v7131 = vunpack.c.l.b16 %v4463
    %v7132 = vunpack.c.h.b16 %v4463
    %v7133 = vunpack.c.l.b16 %v4464
    %v7134 = vunpack.c.h.b16 %v4464
    %v7135 = vunpack.c.l.b16 %v4465
    %v7136 = vunpack.c.h.b16 %v4465
    %v7137 = vunpack.c.l.b16 %v4466
    %v7138 = vunpack.c.l.b16 %v4467
    %v7139 = vunpack.c.h.b16 %v4467
    %v7140 = vunpack.c.l.b16 %v4468
    %v7141 = vunpack.c.h.b16 %v4468
    %v7142 = vunpack.c.l.b16 %v4469
    %v7143 = vunpack.c.h.b16 %v4469
    %v7144 = vunpack.c.l.b16 %v4470
    %v7145 = vunpack.c.h.b16 %v4470
    %v7146 = vunpack.c.l.b16 %v4471
    %v7147 = vunpack.c.h.b16 %v4471
    %v7148 = vunpack.c.l.b16 %v4472
    %v7149 = vunpack.c.h.b16 %v4472
    %v7150 = vunpack.c.l.b16 %v4473
    %v7151 = vunpack.c.h.b16 %v4473
    %v7152 = vunpack.c.l.b16 %v4474
    %v7153 = vunpack.c.h.b16 %v4474
    %v7154 = vunpack.c.l.b16 %v4475
    %v7155 = vunpack.c.h.b16 %v4475
    %v7156 = vunpack.c.l.b16 %v4476
    %v7157 = vunpack.c.l.b16 %v4477
    %v7158 = vunpack.c.h.b16 %v4477
    %v7159 = vunpack.c.l.b16 %v4478
    %v7160 = vunpack.c.h.b16 %v4478
    %v7161 = vunpack.c.l.b16 %v4479
    %v7162 = vunpack.c.h.b16 %v4479
    %v7163 = vunpack.c.l.b16 %v4480
    %v7164 = vunpack.c.h.b16 %v4480
    %v7165 = vunpack.c.l.b16 %v4481
    %v7166 = vunpack.c.h.b16 %v4481
    %v7167 = vunpack.c.l.b16 %v4482
    %v7168 = vunpack.c.h.b16 %v4482
    %v7169 = vunpack.c.l.b16 %v4483
    %v7170 = vunpack.c.h.b16 %v4483
    %v7171 = vunpack.c.l.b16 %v4484
    %v7172 = vunpack.c.h.b16 %v4484
    %v7173 = vunpack.c.l.b16 %v4485
    %v7174 = vunpack.c.h.b16 %v4485
    %v7175 = vunpack.c.l.b16 %v4486
    %v7176 = vunpack.c.l.b16 %v4487
    %v7177 = vunpack.c.h.b16 %v4487
    %v7178 = vunpack.c.l.b16 %v4488
    %v7179 = vunpack.c.h.b16 %v4488
    %v7180 = vunpack.c.l.b16 %v4489
    %v7181 = vunpack.c.h.b16 %v4489
    %v7182 = vunpack.c.l.b16 %v4490
    %v7183 = vunpack.c.h.b16 %v4490
    %v7184 = vunpack.c.l.b16 %v4491
    %v7185 = vunpack.c.h.b16 %v4491
    %v7186 = vunpack.c.l.b16 %v4492
    %v7187 = vunpack.c.h.b16 %v4492
    %v7188 = vunpack.c.l.b16 %v4493
    %v7189 = vunpack.c.h.b16 %v4493
    %v7190 = vunpack.c.l.b16 %v4494
    %v7191 = vunpack.c.h.b16 %v4494
    %v7192 = vunpack.c.l.b16 %v4495
    %v7193 = vunpack.c.h.b16 %v4495
    %v7194 = vunpack.c.l.b16 %v4496
    %v7195 = vunpack.c.l.b16 %v4497
    %v7196 = vunpack.c.h.b16 %v4497
    %v7197 = vunpack.c.l.b16 %v4498
    %v7198 = vunpack.c.h.b16 %v4498
    %v7199 = vunpack.c.l.b16 %v4499
    %v7200 = vunpack.c.h.b16 %v4499
    %v7201 = vunpack.c.l.b16 %v4500
    %v7202 = vunpack.c.h.b16 %v4500
    %v7203 = vunpack.c.l.b16 %v4501
    %v7204 = vunpack.c.h.b16 %v4501
    %v7205 = vunpack.c.l.b16 %v4502
    %v7206 = vunpack.c.h.b16 %v4502
    %v7207 = vunpack.c.l.b16 %v4503
    %v7208 = vunpack.c.h.b16 %v4503
    %v7209 = vunpack.c.l.b16 %v4504
    %v7210 = vunpack.c.h.b16 %v4504
    %v7211 = vunpack.c.l.b16 %v4505
    %v7212 = vunpack.c.h.b16 %v4505
    %v7213 = vunpack.c.l.b16 %v4506
    %v7214 = vunpack.c.l.b16 %v4507
    %v7215 = vunpack.c.h.b16 %v4507
    %v7216 = vunpack.c.l.b16 %v4508
    %v7217 = vunpack.c.h.b16 %v4508
    %v7218 = vunpack.c.l.b16 %v4509
    %v7219 = vunpack.c.h.b16 %v4509
    %v7220 = vunpack.c.l.b16 %v4510
    %v7221 = vunpack.c.h.b16 %v4510
    %v7222 = vunpack.c.l.b16 %v4511
    %v7223 = vunpack.c.h.b16 %v4511
    %v7224 = vunpack.c.l.b16 %v4512
    %v7225 = vunpack.c.h.b16 %v4512
    %v7226 = vunpack.c.l.b16 %v4513
    %v7227 = vunpack.c.h.b16 %v4513
    %v7228 = vunpack.c.l.b16 %v4514
    %v7229 = vunpack.c.h.b16 %v4514
    %v7230 = vunpack.c.l.b16 %v4515
    %v7231 = vunpack.c.h.b16 %v4515
    %v7232 = vunpack.c.l.b16 %v4516
    %v7233 = vunpack.c.l.b16 %v4517
    %v7234 = vunpack.c.h.b16 %v4517
    %v7235 = vunpack.c.l.b16 %v4518
    %v7236 = vunpack.c.h.b16 %v4518
    %v7237 = vunpack.c.l.b16 %v4519
    %v7238 = vunpack.c.h.b16 %v4519
    %v7239 = vunpack.c.l.b16 %v4520
    %v7240 = vunpack.c.h.b16 %v4520
    %v7241 = vunpack.c.l.b16 %v4521
    %v7242 = vunpack.c.h.b16 %v4521
    %v7243 = vunpack.c.l.b16 %v4522
    %v7244 = vunpack.c.h.b16 %v4522
    %v7245 = vunpack.c.l.b16 %v4523
    %v7246 = vunpack.c.h.b16 %v4523
    %v7247 = vunpack.c.l.b16 %v4524
    %v7248 = vunpack.c.h.b16 %v4524
    %v7249 = vunpack.c.l.b16 %v4525
    %v7250 = vunpack.c.h.b16 %v4525
    %v7251 = vunpack.c.l.b16 %v4526
    %v7252 = vunpack.c.l.b16 %v4527
    %v7253 = vunpack.c.h.b16 %v4527
    %v7254 = vunpack.c.l.b16 %v4528
    %v7255 = vunpack.c.h.b16 %v4528
    %v7256 = vunpack.c.l.b16 %v4529
    %v7257 = vunpack.c.h.b16 %v4529
    %v7258 = vunpack.c.l.b16 %v4530
    %v7259 = vunpack.c.h.b16 %v4530
    %v7260 = vunpack.c.l.b16 %v4531
    %v7261 = vunpack.c.h.b16 %v4531
    %v7262 = vunpack.c.l.b16 %v4532
    %v7263 = vunpack.c.h.b16 %v4532
    %v7264 = vunpack.c.l.b16 %v4533
    %v7265 = vunpack.c.h.b16 %v4533
    %v7266 = vunpack.c.l.b16 %v4534
    %v7267 = vunpack.c.h.b16 %v4534
    %v7268 = vunpack.c.l.b16 %v4535
    %v7269 = vunpack.c.h.b16 %v4535
    %v7270 = vunpack.c.l.b16 %v4536
    %v7271 = vunpack.c.l.b16 %v4537
    %v7272 = vunpack.c.h.b16 %v4537
    %v7273 = vunpack.c.l.b16 %v4538
    %v7274 = vunpack.c.h.b16 %v4538
    %v7275 = vunpack.c.l.b16 %v4539
    %v7276 = vunpack.c.h.b16 %v4539
    %v7277 = vunpack.c.l.b16 %v4540
    %v7278 = vunpack.c.h.b16 %v4540
    %v7279 = vunpack.c.l.b16 %v4541
    %v7280 = vunpack.c.h.b16 %v4541
    %v7281 = vunpack.c.l.b16 %v4542
    %v7282 = vunpack.c.h.b16 %v4542
    %v7283 = vunpack.c.l.b16 %v4543
    %v7284 = vunpack.c.h.b16 %v4543
    %v7285 = vunpack.c.l.b16 %v4544
    %v7286 = vunpack.c.h.b16 %v4544
    %v7287 = vunpack.c.l.b16 %v4545
    %v7288 = vunpack.c.h.b16 %v4545
    %v7289 = vunpack.c.l.b16 %v4546
    %v7290 = vunpack.c.l.b16 %v4547
    %v7291 = vunpack.c.h.b16 %v4547
    %v7292 = vunpack.c.l.b16 %v4548
    %v7293 = vunpack.c.h.b16 %v4548
    %v7294 = vunpack.c.l.b16 %v4549
    %v7295 = vunpack.c.h.b16 %v4549
    %v7296 = vunpack.c.l.b16 %v4550
    %v7297 = vunpack.c.h.b16 %v4550
    %v7298 = vunpack.c.l.b16 %v4551
    %v7299 = vunpack.c.h.b16 %v4551
    %v7300 = vunpack.c.l.b16 %v4552
    %v7301 = vunpack.c.h.b16 %v4552
    %v7302 = vunpack.c.l.b16 %v4553
    %v7303 = vunpack.c.h.b16 %v4553
    %v7304 = vunpack.c.l.b16 %v4554
    %v7305 = vunpack.c.h.b16 %v4554
    %v7306 = vunpack.c.l.b16 %v4555
    %v7307 = vunpack.c.h.b16 %v4555
    %v7308 = vunpack.c.l.b16 %v4556
    %v7309 = vunpack.c.l.b16 %v4557
    %v7310 = vunpack.c.h.b16 %v4557
    %v7311 = vunpack.c.l.b16 %v4558
    %v7312 = vunpack.c.h.b16 %v4558
    %v7313 = vunpack.c.l.b16 %v4559
    %v7314 = vunpack.c.h.b16 %v4559
    %v7315 = vunpack.c.l.b16 %v4560
    %v7316 = vunpack.c.h.b16 %v4560
    %v7317 = vunpack.c.l.b16 %v4561
    %v7318 = vunpack.c.h.b16 %v4561
    %v7319 = vunpack.c.l.b16 %v4562
    %v7320 = vunpack.c.h.b16 %v4562
    %v7321 = vunpack.c.l.b16 %v4563
    %v7322 = vunpack.c.h.b16 %v4563
    %v7323 = vunpack.c.l.b16 %v4564
    %v7324 = vunpack.c.h.b16 %v4564
    %v7325 = vunpack.c.l.b16 %v4565
    %v7326 = vunpack.c.h.b16 %v4565
    %v7327 = vunpack.c.l.b16 %v4566
    %v7328 = vunpack.c.l.b16 %v4567
    %v7329 = vunpack.c.h.b16 %v4567
    %v7330 = vunpack.c.l.b16 %v4568
    %v7331 = vunpack.c.h.b16 %v4568
    %v7332 = vunpack.c.l.b16 %v4569
    %v7333 = vunpack.c.h.b16 %v4569
    %v7334 = vunpack.c.l.b16 %v4570
    %v7335 = vunpack.c.h.b16 %v4570
    %v7336 = vunpack.c.l.b16 %v4571
    %v7337 = vunpack.c.h.b16 %v4571
    %v7338 = vunpack.c.l.b16 %v4572
    %v7339 = vunpack.c.h.b16 %v4572
    %v7340 = vunpack.c.l.b16 %v4573
    %v7341 = vunpack.c.h.b16 %v4573
    %v7342 = vunpack.c.l.b16 %v4574
    %v7343 = vunpack.c.h.b16 %v4574
    %v7344 = vunpack.c.l.b16 %v4575
    %v7345 = vunpack.c.h.b16 %v4575
    %v7346 = vunpack.c.l.b16 %v4576
    %v7347 = vunpack.c.l.b16 %v4577
    %v7348 = vunpack.c.h.b16 %v4577
    %v7349 = vunpack.c.l.b16 %v4578
    %v7350 = vunpack.c.h.b16 %v4578
    %v7351 = vunpack.c.l.b16 %v4579
    %v7352 = vunpack.c.h.b16 %v4579
    %v7353 = vunpack.c.l.b16 %v4580
    %v7354 = vunpack.c.h.b16 %v4580
    %v7355 = vunpack.c.l.b16 %v4581
    %v7356 = vunpack.c.h.b16 %v4581
    %v7357 = vunpack.c.l.b16 %v4582
    %v7358 = vunpack.c.h.b16 %v4582
    %v7359 = vunpack.c.l.b16 %v4583
    %v7360 = vunpack.c.h.b16 %v4583
    %v7361 = vunpack.c.l.b16 %v4584
    %v7362 = vunpack.c.h.b16 %v4584
    %v7363 = vunpack.c.l.b16 %v4585
    %v7364 = vunpack.c.h.b16 %v4585
    %v7365 = vunpack.c.l.b16 %v4586
    %v7366 = vunpack.c.l.b16 %v4587
    %v7367 = vunpack.c.h.b16 %v4587
    %v7368 = vunpack.c.l.b16 %v4588
    %v7369 = vunpack.c.h.b16 %v4588
    %v7370 = vunpack.c.l.b16 %v4589
    %v7371 = vunpack.c.h.b16 %v4589
    %v7372 = vunpack.c.l.b16 %v4590
    %v7373 = vunpack.c.h.b16 %v4590
    %v7374 = vunpack.c.l.b16 %v4591
    %v7375 = vunpack.c.h.b16 %v4591
    %v7376 = vunpack.c.l.b16 %v4592
    %v7377 = vunpack.c.h.b16 %v4592
    %v7378 = vunpack.c.l.b16 %v4593
    %v7379 = vunpack.c.h.b16 %v4593
    %v7380 = vunpack.c.l.b16 %v4594
    %v7381 = vunpack.c.h.b16 %v4594
    %v7382 = vunpack.c.l.b16 %v4595
    %v7383 = vunpack.c.h.b16 %v4595
    %v7384 = vunpack.c.l.b16 %v4596
    %v7385 = vunpack.c.l.b16 %v4597
    %v7386 = vunpack.c.h.b16 %v4597
    %v7387 = vunpack.c.l.b16 %v4598
    %v7388 = vunpack.c.h.b16 %v4598
    %v7389 = vunpack.c.l.b16 %v4599
    %v7390 = vunpack.c.h.b16 %v4599
    %v7391 = vunpack.c.l.b16 %v4600
    %v7392 = vunpack.c.h.b16 %v4600
    %v7393 = vunpack.c.l.b16 %v4601
    %v7394 = vunpack.c.h.b16 %v4601
    %v7395 = vunpack.c.l.b16 %v4602
    %v7396 = vunpack.c.h.b16 %v4602
    %v7397 = vunpack.c.l.b16 %v4603
    %v7398 = vunpack.c.h.b16 %v4603
    %v7399 = vunpack.c.l.b16 %v4604
    %v7400 = vunpack.c.h.b16 %v4604
    %v7401 = vunpack.c.l.b16 %v4605
    %v7402 = vunpack.c.h.b16 %v4605
    %v7403 = vunpack.c.l.b16 %v4606
    %v7404 = vunpack.c.l.b16 %v4607
    %v7405 = vunpack.c.h.b16 %v4607
    %v7406 = vunpack.c.l.b16 %v4608
    %v7407 = vunpack.c.h.b16 %v4608
    %v7408 = vunpack.c.l.b16 %v4609
    %v7409 = vunpack.c.h.b16 %v4609
    %v7410 = vunpack.c.l.b16 %v4610
    %v7411 = vunpack.c.h.b16 %v4610
    %v7412 = vunpack.c.l.b16 %v4611
    %v7413 = vunpack.c.h.b16 %v4611
    %v7414 = vunpack.c.l.b16 %v4612
    %v7415 = vunpack.c.h.b16 %v4612
    %v7416 = vunpack.c.l.b16 %v4613
    %v7417 = vunpack.c.h.b16 %v4613
    %v7418 = vunpack.c.l.b16 %v4614
    %v7419 = vunpack.c.h.b16 %v4614
    %v7420 = vunpack.c.l.b16 %v4615
    %v7421 = vunpack.c.h.b16 %v4615
    %v7422 = vunpack.c.l.b16 %v4616
    %v7423 = vunpack.c.l.b16 %v4617
    %v7424 = vunpack.c.h.b16 %v4617
    %v7425 = vunpack.c.l.b16 %v4618
    %v7426 = vunpack.c.h.b16 %v4618
    %v7427 = vunpack.c.l.b16 %v4619
    %v7428 = vunpack.c.h.b16 %v4619
    %v7429 = vunpack.c.l.b16 %v4620
    %v7430 = vunpack.c.h.b16 %v4620
    %v7431 = vunpack.c.l.b16 %v4621
    %v7432 = vunpack.c.h.b16 %v4621
    %v7433 = vunpack.c.l.b16 %v4622
    %v7434 = vunpack.c.h.b16 %v4622
    %v7435 = vunpack.c.l.b16 %v4623
    %v7436 = vunpack.c.h.b16 %v4623
    %v7437 = vunpack.c.l.b16 %v4624
    %v7438 = vunpack.c.h.b16 %v4624
    %v7439 = vunpack.c.l.b16 %v4625
    %v7440 = vunpack.c.h.b16 %v4625
    %v7441 = vunpack.c.l.b16 %v4626
    %v7442 = vunpack.c.l.b16 %v4627
    %v7443 = vunpack.c.h.b16 %v4627
    %v7444 = vunpack.c.l.b16 %v4628
    %v7445 = vunpack.c.h.b16 %v4628
    %v7446 = vunpack.c.l.b16 %v4629
    %v7447 = vunpack.c.h.b16 %v4629
    %v7448 = vunpack.c.l.b16 %v4630
    %v7449 = vunpack.c.h.b16 %v4630
    %v7450 = vunpack.c.l.b16 %v4631
    %v7451 = vunpack.c.h.b16 %v4631
    %v7452 = vunpack.c.l.b16 %v4632
    %v7453 = vunpack.c.h.b16 %v4632
    %v7454 = vunpack.c.l.b16 %v4633
    %v7455 = vunpack.c.h.b16 %v4633
    %v7456 = vunpack.c.l.b16 %v4634
    %v7457 = vunpack.c.h.b16 %v4634
    %v7458 = vunpack.c.l.b16 %v4635
    %v7459 = vunpack.c.h.b16 %v4635
    %v7460 = vunpack.c.l.b16 %v4636
    %v7461 = vunpack.c.l.b16 %v4637
    %v7462 = vunpack.c.h.b16 %v4637
    %v7463 = vunpack.c.l.b16 %v4638
    %v7464 = vunpack.c.h.b16 %v4638
    %v7465 = vunpack.c.l.b16 %v4639
    %v7466 = vunpack.c.h.b16 %v4639
    %v7467 = vunpack.c.l.b16 %v4640
    %v7468 = vunpack.c.h.b16 %v4640
    %v7469 = vunpack.c.l.b16 %v4641
    %v7470 = vunpack.c.h.b16 %v4641
    %v7471 = vunpack.c.l.b16 %v4642
    %v7472 = vunpack.c.h.b16 %v4642
    %v7473 = vunpack.c.l.b16 %v4643
    %v7474 = vunpack.c.h.b16 %v4643
    %v7475 = vunpack.c.l.b16 %v4644
    %v7476 = vunpack.c.h.b16 %v4644
    %v7477 = vunpack.c.l.b16 %v4645
    %v7478 = vunpack.c.h.b16 %v4645
    %v7479 = vunpack.c.l.b16 %v4646
    %v7480 = vunpack.c.l.b16 %v4647
    %v7481 = vunpack.c.h.b16 %v4647
    %v7482 = vunpack.c.l.b16 %v4648
    %v7483 = vunpack.c.h.b16 %v4648
    %v7484 = vunpack.c.l.b16 %v4649
    %v7485 = vunpack.c.h.b16 %v4649
    %v7486 = vunpack.c.l.b16 %v4650
    %v7487 = vunpack.c.h.b16 %v4650
    %v7488 = vunpack.c.l.b16 %v4651
    %v7489 = vunpack.c.h.b16 %v4651
    %v7490 = vunpack.c.l.b16 %v4652
    %v7491 = vunpack.c.h.b16 %v4652
    %v7492 = vunpack.c.l.b16 %v4653
    %v7493 = vunpack.c.h.b16 %v4653
    %v7494 = vunpack.c.l.b16 %v4654
    %v7495 = vunpack.c.h.b16 %v4654
    %v7496 = vunpack.c.l.b16 %v4655
    %v7497 = vunpack.c.h.b16 %v4655
    %v7498 = vunpack.c.l.b16 %v4656
    %v7499 = vpack.c.b16 %v5656, %v5637
    %v7500 = vpack.c.b16 %v5657, %v5638
    %v7501 = vpack.c.b16 %v5658, %v5639
    %v7502 = vpack.c.b16 %v5659, %v5640
    %v7503 = vpack.c.b16 %v5660, %v5641
    %v7504 = vpack.c.b16 %v5661, %v5642
    %v7505 = vpack.c.b16 %v5662, %v5643
    %v7506 = vpack.c.b16 %v5663, %v5644
    %v7507 = vpack.c.b16 %v5664, %v5645
    %v7508 = vpack.c.b16 %v5665, %v5646
    %v7509 = vpack.c.b16 %v5666, %v5647
    %v7510 = vpack.c.b16 %v5667, %v5648
    %v7511 = vpack.c.b16 %v5668, %v5649
    %v7512 = vpack.c.b16 %v5669, %v5650
    %v7513 = vpack.c.b16 %v5670, %v5651
    %v7514 = vpack.c.b16 %v5671, %v5652
    %v7515 = vpack.c.b16 %v5672, %v5653
    %v7516 = vpack.c.b16 %v5673, %v5654
    %v7517 = vpack.c.b16 %v5674, %v5655
    %v7518 = vpack.c.b16 %v5694, %v5675
    %v7519 = vpack.c.b16 %v5695, %v5676
    %v7520 = vpack.c.b16 %v5696, %v5677
    %v7521 = vpack.c.b16 %v5697, %v5678
    %v7522 = vpack.c.b16 %v5698, %v5679
    %v7523 = vpack.c.b16 %v5699, %v5680
    %v7524 = vpack.c.b16 %v5700, %v5681
    %v7525 = vpack.c.b16 %v5701, %v5682
    %v7526 = vpack.c.b16 %v5702, %v5683
    %v7527 = vpack.c.b16 %v5703, %v5684
    %v7528 = vpack.c.b16 %v5704, %v5685
    %v7529 = vpack.c.b16 %v5705, %v5686
    %v7530 = vpack.c.b16 %v5706, %v5687
    %v7531 = vpack.c.b16 %v5707, %v5688
    %v7532 = vpack.c.b16 %v5708, %v5689
    %v7533 = vpack.c.b16 %v5709, %v5690
    %v7534 = vpack.c.b16 %v5710, %v5691
    %v7535 = vpack.c.b16 %v5711, %v5692
    %v7536 = vpack.c.b16 %v5712, %v5693
    %v7537 = vpack.c.b16 %v5732, %v5713
    %v7538 = vpack.c.b16 %v5733, %v5714
    %v7539 = vpack.c.b16 %v5734, %v5715
    %v7540 = vpack.c.b16 %v5735, %v5716
    %v7541 = vpack.c.b16 %v5736, %v5717
    %v7542 = vpack.c.b16 %v5737, %v5718
    %v7543 = vpack.c.b16 %v5738, %v5719
    %v7544 = vpack.c.b16 %v5739, %v5720
    %v7545 = vpack.c.b16 %v5740, %v5721
    %v7546 = vpack.c.b16 %v5741, %v5722
    %v7547 = vpack.c.b16 %v5742, %v5723
    %v7548 = vpack.c.b16 %v5743, %v5724
    %v7549 = vpack.c.b16 %v5744, %v5725
    %v7550 = vpack.c.b16 %v5745, %v5726
    %v7551 = vpack.c.b16 %v5746, %v5727
    %v7552 = vpack.c.b16 %v5747, %v5728
    %v7553 = vpack.c.b16 %v5748, %v5729
    %v7554 = vpack.c.b16 %v5749, %v5730
    %v7555 = vpack.c.b16 %v5750, %v5731
    %v7556 = vpack.c.b16 %v5770, %v5751
    %v7557 = vpack.c.b16 %v5771, %v5752
    %v7558 = vpack.c.b16 %v5772, %v5753
    %v7559 = vpack.c.b16 %v5773, %v5754
    %v7560 = vpack.c.b16 %v5774, %v5755
    %v7561 = vpack.c.b16 %v5775, %v5756
    %v7562 = vpack.c.b16 %v5776, %v5757
    %v7563 = vpack.c.b16 %v5777, %v5758
    %v7564 = vpack.c.b16 %v5778, %v5759
    %v7565 = vpack.c.b16 %v5779, %v5760
    %v7566 = vpack.c.b16 %v5780, %v5761
    %v7567 = vpack.c.b16 %v5781, %v5762
    %v7568 = vpack.c.b16 %v5782, %v5763
    %v7569 = vpack.c.b16 %v5783, %v5764
    %v7570 = vpack.c.b16 %v5784, %v5765
    %v7571 = vpack.c.b16 %v5785, %v5766
    %v7572 = vpack.c.b16 %v5786, %v5767
    %v7573 = vpack.c.b16 %v5787, %v5768
    %v7574 = vpack.c.b16 %v5788, %v5769
    %v7575 = vpack.c.b16 %v5808, %v5789
    %v7576 = vpack.c.b16 %v5809, %v5790
    %v7577 = vpack.c.b16 %v5810, %v5791
    %v7578 = vpack.c.b16 %v5811, %v5792
    %v7579 = vpack.c.b16 %v5812, %v5793
    %v7580 = vpack.c.b16 %v5813, %v5794
    %v7581 = vpack.c.b16 %v5814, %v5795
    %v7582 = vpack.c.b16 %v5815, %v5796
    %v7583 = vpack.c.b16 %v5816, %v5797
    %v7584 = vpack.c.b16 %v5817, %v5798
    %v7585 = vpack.c.b16 %v5818, %v5799
    %v7586 = vpack.c.b16 %v5819, %v5800
    %v7587 = vpack.c.b16 %v5820, %v5801
    %v7588 = vpack.c.b16 %v5821, %v5802
    %v7589 = vpack.c.b16 %v5822, %v5803
    %v7590 = vpack.c.b16 %v5823, %v5804
    %v7591 = vpack.c.b16 %v5824, %v5805
    %v7592 = vpack.c.b16 %v5825, %v5806
    %v7593 = vpack.c.b16 %v5826, %v5807
    %v7594 = vpack.c.b16 %v5846, %v5827
    %v7595 = vpack.c.b16 %v5847, %v5828
    %v7596 = vpack.c.b16 %v5848, %v5829
    %v7597 = vpack.c.b16 %v5849, %v5830
    %v7598 = vpack.c.b16 %v5850, %v5831
    %v7599 = vpack.c.b16 %v5851, %v5832
    %v7600 = vpack.c.b16 %v5852, %v5833
    %v7601 = vpack.c.b16 %v5853, %v5834
    %v7602 = vpack.c.b16 %v5854, %v5835
    %v7603 = vpack.c.b16 %v5855, %v5836
    %v7604 = vpack.c.b16 %v5856, %v5837
    %v7605 = vpack.c.b16 %v5857, %v5838
    %v7606 = vpack.c.b16 %v5858, %v5839
    %v7607 = vpack.c.b16 %v5859, %v5840
    %v7608 = vpack.c.b16 %v5860, %v5841
    %v7609 = vpack.c.b16 %v5861, %v5842
    %v7610 = vpack.c.b16 %v5862, %v5843
    %v7611 = vpack.c.b16 %v5863, %v5844
    %v7612 = vpack.c.b16 %v5864, %v5845
    %v7613 = vpack.c.b16 %v5884, %v5865
    %v7614 = vpack.c.b16 %v5885, %v5866
    %v7615 = vpack.c.b16 %v5886, %v5867
    %v7616 = vpack.c.b16 %v5887, %v5868
    %v7617 = vpack.c.b16 %v5888, %v5869
    %v7618 = vpack.c.b16 %v5889, %v5870
    %v7619 = vpack.c.b16 %v5890, %v5871
    %v7620 = vpack.c.b16 %v5891, %v5872
    %v7621 = vpack.c.b16 %v5892, %v5873
    %v7622 = vpack.c.b16 %v5893, %v5874
    %v7623 = vpack.c.b16 %v5894, %v5875
    %v7624 = vpack.c.b16 %v5895, %v5876
    %v7625 = vpack.c.b16 %v5896, %v5877
    %v7626 = vpack.c.b16 %v5897, %v5878
    %v7627 = vpack.c.b16 %v5898, %v5879
    %v7628 = vpack.c.b16 %v5899, %v5880
    %v7629 = vpack.c.b16 %v5900, %v5881
    %v7630 = vpack.c.b16 %v5901, %v5882
    %v7631 = vpack.c.b16 %v5902, %v5883
    %v7632 = vpack.c.b16 %v5922, %v5903
    %v7633 = vpack.c.b16 %v5923, %v5904
    %v7634 = vpack.c.b16 %v5924, %v5905
    %v7635 = vpack.c.b16 %v5925, %v5906
    %v7636 = vpack.c.b16 %v5926, %v5907
    %v7637 = vpack.c.b16 %v5927, %v5908
    %v7638 = vpack.c.b16 %v5928, %v5909
    %v7639 = vpack.c.b16 %v5929, %v5910
    %v7640 = vpack.c.b16 %v5930, %v5911
    %v7641 = vpack.c.b16 %v5931, %v5912
    %v7642 = vpack.c.b16 %v5932, %v5913
    %v7643 = vpack.c.b16 %v5933, %v5914
    %v7644 = vpack.c.b16 %v5934, %v5915
    %v7645 = vpack.c.b16 %v5935, %v5916
    %v7646 = vpack.c.b16 %v5936, %v5917
    %v7647 = vpack.c.b16 %v5937, %v5918
    %v7648 = vpack.c.b16 %v5938, %v5919
    %v7649 = vpack.c.b16 %v5939, %v5920
    %v7650 = vpack.c.b16 %v5940, %v5921
    %v7651 = vpack.c.b16 %v5960, %v5941
    %v7652 = vpack.c.b16 %v5961, %v5942
    %v7653 = vpack.c.b16 %v5962, %v5943
    %v7654 = vpack.c.b16 %v5963, %v5944
    %v7655 = vpack.c.b16 %v5964, %v5945
    %v7656 = vpack.c.b16 %v5965, %v5946
    %v7657 = vpack.c.b16 %v5966, %v5947
    %v7658 = vpack.c.b16 %v5967, %v5948
    %v7659 = vpack.c.b16 %v5968, %v5949
    %v7660 = vpack.c.b16 %v5969, %v5950
    %v7661 = vpack.c.b16 %v5970, %v5951
    %v7662 = vpack.c.b16 %v5971, %v5952
    %v7663 = vpack.c.b16 %v5972, %v5953
    %v7664 = vpack.c.b16 %v5973, %v5954
    %v7665 = vpack.c.b16 %v5974, %v5955
    %v7666 = vpack.c.b16 %v5975, %v5956
    %v7667 = vpack.c.b16 %v5976, %v5957
    %v7668 = vpack.c.b16 %v5977, %v5958
    %v7669 = vpack.c.b16 %v5978, %v5959
    %v7670 = vpack.c.b16 %v5998, %v5979
    %v7671 = vpack.c.b16 %v5999, %v5980
    %v7672 = vpack.c.b16 %v6000, %v5981
    %v7673 = vpack.c.b16 %v6001, %v5982
    %v7674 = vpack.c.b16 %v6002, %v5983
    %v7675 = vpack.c.b16 %v6003, %v5984
    %v7676 = vpack.c.b16 %v6004, %v5985
    %v7677 = vpack.c.b16 %v6005, %v5986
    %v7678 = vpack.c.b16 %v6006, %v5987
    %v7679 = vpack.c.b16 %v6007, %v5988
    %v7680 = vpack.c.b16 %v6008, %v5989
    %v7681 = vpack.c.b16 %v6009, %v5990
    %v7682 = vpack.c.b16 %v6010, %v5991
    %v7683 = vpack.c.b16 %v6011, %v5992
    %v7684 = vpack.c.b16 %v6012, %v5993
    %v7685 = vpack.c.b16 %v6013, %v5994
    %v7686 = vpack.c.b16 %v6014, %v5995
    %v7687 = vpack.c.b16 %v6015, %v5996
    %v7688 = vpack.c.b16 %v6016, %v5997
    %v7689 = vpack.c.b16 %v6036, %v6017
    %v7690 = vpack.c.b16 %v6037, %v6018
    %v7691 = vpack.c.b16 %v6038, %v6019
    %v7692 = vpack.c.b16 %v6039, %v6020
    %v7693 = vpack.c.b16 %v6040, %v6021
    %v7694 = vpack.c.b16 %v6041, %v6022
    %v7695 = vpack.c.b16 %v6042, %v6023
    %v7696 = vpack.c.b16 %v6043, %v6024
    %v7697 = vpack.c.b16 %v6044, %v6025
    %v7698 = vpack.c.b16 %v6045, %v6026
    %v7699 = vpack.c.b16 %v6046, %v6027
    %v7700 = vpack.c.b16 %v6047, %v6028
    %v7701 = vpack.c.b16 %v6048, %v6029
    %v7702 = vpack.c.b16 %v6049, %v6030
    %v7703 = vpack.c.b16 %v6050, %v6031
    %v7704 = vpack.c.b16 %v6051, %v6032
    %v7705 = vpack.c.b16 %v6052, %v6033
    %v7706 = vpack.c.b16 %v6053, %v6034
    %v7707 = vpack.c.b16 %v6054, %v6035
    %v7708 = vpack.c.b16 %v6074, %v6055
    %v7709 = vpack.c.b16 %v6075, %v6056
    %v7710 = vpack.c.b16 %v6076, %v6057
    %v7711 = vpack.c.b16 %v6077, %v6058
    %v7712 = vpack.c.b16 %v6078, %v6059
    %v7713 = vpack.c.b16 %v6079, %v6060
    %v7714 = vpack.c.b16 %v6080, %v6061
    %v7715 = vpack.c.b16 %v6081, %v6062
    %v7716 = vpack.c.b16 %v6082, %v6063
    %v7717 = vpack.c.b16 %v6083, %v6064
    %v7718 = vpack.c.b16 %v6084, %v6065
    %v7719 = vpack.c.b16 %v6085, %v6066
    %v7720 = vpack.c.b16 %v6086, %v6067
    %v7721 = vpack.c.b16 %v6087, %v6068
    %v7722 = vpack.c.b16 %v6088, %v6069
    %v7723 = vpack.c.b16 %v6089, %v6070
    %v7724 = vpack.c.b16 %v6090, %v6071
    %v7725 = vpack.c.b16 %v6091, %v6072
    %v7726 = vpack.c.b16 %v6092, %v6073
    %v7727 = vpack.c.b16 %v6112, %v6093
    %v7728 = vpack.c.b16 %v6113, %v6094
    %v7729 = vpack.c.b16 %v6114, %v6095
    %v7730 = vpack.c.b16 %v6115, %v6096
    %v7731 = vpack.c.b16 %v6116, %v6097
    %v7732 = vpack.c.b16 %v6117, %v6098
    %v7733 = vpack.c.b16 %v6118, %v6099
    %v7734 = vpack.c.b16 %v6119, %v6100
    %v7735 = vpack.c.b16 %v6120, %v6101
    %v7736 = vpack.c.b16 %v6121, %v6102
    %v7737 = vpack.c.b16 %v6122, %v6103
    %v7738 = vpack.c.b16 %v6123, %v6104
    %v7739 = vpack.c.b16 %v6124, %v6105
    %v7740 = vpack.c.b16 %v6125, %v6106
    %v7741 = vpack.c.b16 %v6126, %v6107
    %v7742 = vpack.c.b16 %v6127, %v6108
    %v7743 = vpack.c.b16 %v6128, %v6109
    %v7744 = vpack.c.b16 %v6129, %v6110
    %v7745 = vpack.c.b16 %v6130, %v6111
    %v7746 = vpack.c.b16 %v6150, %v6131
    %v7747 = vpack.c.b16 %v6151, %v6132
    %v7748 = vpack.c.b16 %v6152, %v6133
    %v7749 = vpack.c.b16 %v6153, %v6134
    %v7750 = vpack.c.b16 %v6154, %v6135
    %v7751 = vpack.c.b16 %v6155, %v6136
    %v7752 = vpack.c.b16 %v6156, %v6137
    %v7753 = vpack.c.b16 %v6157, %v6138
    %v7754 = vpack.c.b16 %v6158, %v6139
    %v7755 = vpack.c.b16 %v6159, %v6140
    %v7756 = vpack.c.b16 %v6160, %v6141
    %v7757 = vpack.c.b16 %v6161, %v6142
    %v7758 = vpack.c.b16 %v6162, %v6143
    %v7759 = vpack.c.b16 %v6163, %v6144
    %v7760 = vpack.c.b16 %v6164, %v6145
    %v7761 = vpack.c.b16 %v6165, %v6146
    %v7762 = vpack.c.b16 %v6166, %v6147
    %v7763 = vpack.c.b16 %v6167, %v6148
    %v7764 = vpack.c.b16 %v6168, %v6149
    %v7765 = vpack.c.b16 %v6188, %v6169
    %v7766 = vpack.c.b16 %v6189, %v6170
    %v7767 = vpack.c.b16 %v6190, %v6171
    %v7768 = vpack.c.b16 %v6191, %v6172
    %v7769 = vpack.c.b16 %v6192, %v6173
    %v7770 = vpack.c.b16 %v6193, %v6174
    %v7771 = vpack.c.b16 %v6194, %v6175
    %v7772 = vpack.c.b16 %v6195, %v6176
    %v7773 = vpack.c.b16 %v6196, %v6177
    %v7774 = vpack.c.b16 %v6197, %v6178
    %v7775 = vpack.c.b16 %v6198, %v6179
    %v7776 = vpack.c.b16 %v6199, %v6180
    %v7777 = vpack.c.b16 %v6200, %v6181
    %v7778 = vpack.c.b16 %v6201, %v6182
    %v7779 = vpack.c.b16 %v6202, %v6183
    %v7780 = vpack.c.b16 %v6203, %v6184
    %v7781 = vpack.c.b16 %v6204, %v6185
    %v7782 = vpack.c.b16 %v6205, %v6186
    %v7783 = vpack.c.b16 %v6206, %v6187
    %v7784 = vpack.c.b16 %v6226, %v6207
    %v7785 = vpack.c.b16 %v6227, %v6208
    %v7786 = vpack.c.b16 %v6228, %v6209
    %v7787 = vpack.c.b16 %v6229, %v6210
    %v7788 = vpack.c.b16 %v6230, %v6211
    %v7789 = vpack.c.b16 %v6231, %v6212
    %v7790 = vpack.c.b16 %v6232, %v6213
    %v7791 = vpack.c.b16 %v6233, %v6214
    %v7792 = vpack.c.b16 %v6234, %v6215
    %v7793 = vpack.c.b16 %v6235, %v6216
    %v7794 = vpack.c.b16 %v6236, %v6217
    %v7795 = vpack.c.b16 %v6237, %v6218
    %v7796 = vpack.c.b16 %v6238, %v6219
    %v7797 = vpack.c.b16 %v6239, %v6220
    %v7798 = vpack.c.b16 %v6240, %v6221
    %v7799 = vpack.c.b16 %v6241, %v6222
    %v7800 = vpack.c.b16 %v6242, %v6223
    %v7801 = vpack.c.b16 %v6243, %v6224
    %v7802 = vpack.c.b16 %v6244, %v6225
    %v7803 = vpack.c.b16 %v6264, %v6245
    %v7804 = vpack.c.b16 %v6265, %v6246
    %v7805 = vpack.c.b16 %v6266, %v6247
    %v7806 = vpack.c.b16 %v6267, %v6248
    %v7807 = vpack.c.b16 %v6268, %v6249
    %v7808 = vpack.c.b16 %v6269, %v6250
    %v7809 = vpack.c.b16 %v6270, %v6251
    %v7810 = vpack.c.b16 %v6271, %v6252
    %v7811 = vpack.c.b16 %v6272, %v6253
    %v7812 = vpack.c.b16 %v6273, %v6254
    %v7813 = vpack.c.b16 %v6274, %v6255
    %v7814 = vpack.c.b16 %v6275, %v6256
    %v7815 = vpack.c.b16 %v6276, %v6257
    %v7816 = vpack.c.b16 %v6277, %v6258
    %v7817 = vpack.c.b16 %v6278, %v6259
    %v7818 = vpack.c.b16 %v6279, %v6260
    %v7819 = vpack.c.b16 %v6280, %v6261
    %v7820 = vpack.c.b16 %v6281, %v6262
    %v7821 = vpack.c.b16 %v6282, %v6263
    %v7822 = vpack.c.b16 %v6302, %v6283
    %v7823 = vpack.c.b16 %v6303, %v6284
    %v7824 = vpack.c.b16 %v6304, %v6285
    %v7825 = vpack.c.b16 %v6305, %v6286
    %v7826 = vpack.c.b16 %v6306, %v6287
    %v7827 = vpack.c.b16 %v6307, %v6288
    %v7828 = vpack.c.b16 %v6308, %v6289
    %v7829 = vpack.c.b16 %v6309, %v6290
    %v7830 = vpack.c.b16 %v6310, %v6291
    %v7831 = vpack.c.b16 %v6311, %v6292
    %v7832 = vpack.c.b16 %v6312, %v6293
    %v7833 = vpack.c.b16 %v6313, %v6294
    %v7834 = vpack.c.b16 %v6314, %v6295
    %v7835 = vpack.c.b16 %v6315, %v6296
    %v7836 = vpack.c.b16 %v6316, %v6297
    %v7837 = vpack.c.b16 %v6317, %v6298
    %v7838 = vpack.c.b16 %v6318, %v6299
    %v7839 = vpack.c.b16 %v6319, %v6300
    %v7840 = vpack.c.b16 %v6320, %v6301
    %v7841 = vpack.c.b16 %v6340, %v6321
    %v7842 = vpack.c.b16 %v6341, %v6322
    %v7843 = vpack.c.b16 %v6342, %v6323
    %v7844 = vpack.c.b16 %v6343, %v6324
    %v7845 = vpack.c.b16 %v6344, %v6325
    %v7846 = vpack.c.b16 %v6345, %v6326
    %v7847 = vpack.c.b16 %v6346, %v6327
    %v7848 = vpack.c.b16 %v6347, %v6328
    %v7849 = vpack.c.b16 %v6348, %v6329
    %v7850 = vpack.c.b16 %v6349, %v6330
    %v7851 = vpack.c.b16 %v6350, %v6331
    %v7852 = vpack.c.b16 %v6351, %v6332
    %v7853 = vpack.c.b16 %v6352, %v6333
    %v7854 = vpack.c.b16 %v6353, %v6334
    %v7855 = vpack.c.b16 %v6354, %v6335
    %v7856 = vpack.c.b16 %v6355, %v6336
    %v7857 = vpack.c.b16 %v6356, %v6337
    %v7858 = vpack.c.b16 %v6357, %v6338
    %v7859 = vpack.c.b16 %v6358, %v6339
    %v7860 = vpack.c.b16 %v6378, %v6359
    %v7861 = vpack.c.b16 %v6379, %v6360
    %v7862 = vpack.c.b16 %v6380, %v6361
    %v7863 = vpack.c.b16 %v6381, %v6362
    %v7864 = vpack.c.b16 %v6382, %v6363
    %v7865 = vpack.c.b16 %v6383, %v6364
    %v7866 = vpack.c.b16 %v6384, %v6365
    %v7867 = vpack.c.b16 %v6385, %v6366
    %v7868 = vpack.c.b16 %v6386, %v6367
    %v7869 = vpack.c.b16 %v6387, %v6368
    %v7870 = vpack.c.b16 %v6388, %v6369
    %v7871 = vpack.c.b16 %v6389, %v6370
    %v7872 = vpack.c.b16 %v6390, %v6371
    %v7873 = vpack.c.b16 %v6391, %v6372
    %v7874 = vpack.c.b16 %v6392, %v6373
    %v7875 = vpack.c.b16 %v6393, %v6374
    %v7876 = vpack.c.b16 %v6394, %v6375
    %v7877 = vpack.c.b16 %v6395, %v6376
    %v7878 = vpack.c.b16 %v6396, %v6377
    %v7879 = vpack.c.b16 %v6416, %v6397
    %v7880 = vpack.c.b16 %v6417, %v6398
    %v7881 = vpack.c.b16 %v6418, %v6399
    %v7882 = vpack.c.b16 %v6419, %v6400
    %v7883 = vpack.c.b16 %v6420, %v6401
    %v7884 = vpack.c.b16 %v6421, %v6402
    %v7885 = vpack.c.b16 %v6422, %v6403
    %v7886 = vpack.c.b16 %v6423, %v6404
    %v7887 = vpack.c.b16 %v6424, %v6405
    %v7888 = vpack.c.b16 %v6425, %v6406
    %v7889 = vpack.c.b16 %v6426, %v6407
    %v7890 = vpack.c.b16 %v6427, %v6408
    %v7891 = vpack.c.b16 %v6428, %v6409
    %v7892 = vpack.c.b16 %v6429, %v6410
    %v7893 = vpack.c.b16 %v6430, %v6411
    %v7894 = vpack.c.b16 %v6431, %v6412
    %v7895 = vpack.c.b16 %v6432, %v6413
    %v7896 = vpack.c.b16 %v6433, %v6414
    %v7897 = vpack.c.b16 %v6434, %v6415
    %v7898 = vpack.c.b16 %v6454, %v6435
    %v7899 = vpack.c.b16 %v6455, %v6436
    %v7900 = vpack.c.b16 %v6456, %v6437
    %v7901 = vpack.c.b16 %v6457, %v6438
    %v7902 = vpack.c.b16 %v6458, %v6439
    %v7903 = vpack.c.b16 %v6459, %v6440
    %v7904 = vpack.c.b16 %v6460, %v6441
    %v7905 = vpack.c.b16 %v6461, %v6442
    %v7906 = vpack.c.b16 %v6462, %v6443
    %v7907 = vpack.c.b16 %v6463, %v6444
    %v7908 = vpack.c.b16 %v6464, %v6445
    %v7909 = vpack.c.b16 %v6465, %v6446
    %v7910 = vpack.c.b16 %v6466, %v6447
    %v7911 = vpack.c.b16 %v6467, %v6448
    %v7912 = vpack.c.b16 %v6468, %v6449
    %v7913 = vpack.c.b16 %v6469, %v6450
    %v7914 = vpack.c.b16 %v6470, %v6451
    %v7915 = vpack.c.b16 %v6471, %v6452
    %v7916 = vpack.c.b16 %v6472, %v6453
    %v7917 = vpack.c.b16 %v6492, %v6473
    %v7918 = vpack.c.b16 %v6493, %v6474
    %v7919 = vpack.c.b16 %v6494, %v6475
    %v7920 = vpack.c.b16 %v6495, %v6476
    %v7921 = vpack.c.b16 %v6496, %v6477
    %v7922 = vpack.c.b16 %v6497, %v6478
    %v7923 = vpack.c.b16 %v6498, %v6479
    %v7924 = vpack.c.b16 %v6499, %v6480
    %v7925 = vpack.c.b16 %v6500, %v6481
    %v7926 = vpack.c.b16 %v6501, %v6482
    %v7927 = vpack.c.b16 %v6502, %v6483
    %v7928 = vpack.c.b16 %v6503, %v6484
    %v7929 = vpack.c.b16 %v6504, %v6485
    %v7930 = vpack.c.b16 %v6505, %v6486
    %v7931 = vpack.c.b16 %v6506, %v6487
    %v7932 = vpack.c.b16 %v6507, %v6488
    %v7933 = vpack.c.b16 %v6508, %v6489
    %v7934 = vpack.c.b16 %v6509, %v6490
    %v7935 = vpack.c.b16 %v6510, %v6491
    %v7936 = vpack.c.b16 %v6530, %v6511
    %v7937 = vpack.c.b16 %v6531, %v6512
    %v7938 = vpack.c.b16 %v6532, %v6513
    %v7939 = vpack.c.b16 %v6533, %v6514
    %v7940 = vpack.c.b16 %v6534, %v6515
    %v7941 = vpack.c.b16 %v6535, %v6516
    %v7942 = vpack.c.b16 %v6536, %v6517
    %v7943 = vpack.c.b16 %v6537, %v6518
    %v7944 = vpack.c.b16 %v6538, %v6519
    %v7945 = vpack.c.b16 %v6539, %v6520
    %v7946 = vpack.c.b16 %v6540, %v6521
    %v7947 = vpack.c.b16 %v6541, %v6522
    %v7948 = vpack.c.b16 %v6542, %v6523
    %v7949 = vpack.c.b16 %v6543, %v6524
    %v7950 = vpack.c.b16 %v6544, %v6525
    %v7951 = vpack.c.b16 %v6545, %v6526
    %v7952 = vpack.c.b16 %v6546, %v6527
    %v7953 = vpack.c.b16 %v6547, %v6528
    %v7954 = vpack.c.b16 %v6548, %v6529
    %v7955 = vpack.c.b16 %v6568, %v6549
    %v7956 = vpack.c.b16 %v6569, %v6550
    %v7957 = vpack.c.b16 %v6570, %v6551
    %v7958 = vpack.c.b16 %v6571, %v6552
    %v7959 = vpack.c.b16 %v6572, %v6553
    %v7960 = vpack.c.b16 %v6573, %v6554
    %v7961 = vpack.c.b16 %v6574, %v6555
    %v7962 = vpack.c.b16 %v6575, %v6556
    %v7963 = vpack.c.b16 %v6576, %v6557
    %v7964 = vpack.c.b16 %v6577, %v6558
    %v7965 = vpack.c.b16 %v6578, %v6559
    %v7966 = vpack.c.b16 %v6579, %v6560
    %v7967 = vpack.c.b16 %v6580, %v6561
    %v7968 = vpack.c.b16 %v6581, %v6562
    %v7969 = vpack.c.b16 %v6582, %v6563
    %v7970 = vpack.c.b16 %v6583, %v6564
    %v7971 = vpack.c.b16 %v6584, %v6565
    %v7972 = vpack.c.b16 %v6585, %v6566
    %v7973 = vpack.c.b16 %v6586, %v6567
    %v7974 = vpack.c.b16 %v6606, %v6587
    %v7975 = vpack.c.b16 %v6607, %v6588
    %v7976 = vpack.c.b16 %v6608, %v6589
    %v7977 = vpack.c.b16 %v6609, %v6590
    %v7978 = vpack.c.b16 %v6610, %v6591
    %v7979 = vpack.c.b16 %v6611, %v6592
    %v7980 = vpack.c.b16 %v6612, %v6593
    %v7981 = vpack.c.b16 %v6613, %v6594
    %v7982 = vpack.c.b16 %v6614, %v6595
    %v7983 = vpack.c.b16 %v6615, %v6596
    %v7984 = vpack.c.b16 %v6616, %v6597
    %v7985 = vpack.c.b16 %v6617, %v6598
    %v7986 = vpack.c.b16 %v6618, %v6599
    %v7987 = vpack.c.b16 %v6619, %v6600
    %v7988 = vpack.c.b16 %v6620, %v6601
    %v7989 = vpack.c.b16 %v6621, %v6602
    %v7990 = vpack.c.b16 %v6622, %v6603
    %v7991 = vpack.c.b16 %v6623, %v6604
    %v7992 = vpack.c.b16 %v6624, %v6605
    %v7993 = vpack.c.b16 %v6644, %v6625
    %v7994 = vpack.c.b16 %v6645, %v6626
    %v7995 = vpack.c.b16 %v6646, %v6627
    %v7996 = vpack.c.b16 %v6647, %v6628
    %v7997 = vpack.c.b16 %v6648, %v6629
    %v7998 = vpack.c.b16 %v6649, %v6630
    %v7999 = vpack.c.b16 %v6650, %v6631
    %v8000 = vpack.c.b16 %v6651, %v6632
    %v8001 = vpack.c.b16 %v6652, %v6633
    %v8002 = vpack.c.b16 %v6653, %v6634
    %v8003 = vpack.c.b16 %v6654, %v6635
    %v8004 = vpack.c.b16 %v6655, %v6636
    %v8005 = vpack.c.b16 %v6656, %v6637
    %v8006 = vpack.c.b16 %v6657, %v6638
    %v8007 = vpack.c.b16 %v6658, %v6639
    %v8008 = vpack.c.b16 %v6659, %v6640
    %v8009 = vpack.c.b16 %v6660, %v6641
    %v8010 = vpack.c.b16 %v6661, %v6642
    %v8011 = vpack.c.b16 %v6662, %v6643
    %v8012 = vpack.c.b16 %v6682, %v6663
    %v8013 = vpack.c.b16 %v6683, %v6664
    %v8014 = vpack.c.b16 %v6684, %v6665
    %v8015 = vpack.c.b16 %v6685, %v6666
    %v8016 = vpack.c.b16 %v6686, %v6667
    %v8017 = vpack.c.b16 %v6687, %v6668
    %v8018 = vpack.c.b16 %v6688, %v6669
    %v8019 = vpack.c.b16 %v6689, %v6670
    %v8020 = vpack.c.b16 %v6690, %v6671
    %v8021 = vpack.c.b16 %v6691, %v6672
    %v8022 = vpack.c.b16 %v6692, %v6673
    %v8023 = vpack.c.b16 %v6693, %v6674
    %v8024 = vpack.c.b16 %v6694, %v6675
    %v8025 = vpack.c.b16 %v6695, %v6676
    %v8026 = vpack.c.b16 %v6696, %v6677
    %v8027 = vpack.c.b16 %v6697, %v6678
    %v8028 = vpack.c.b16 %v6698, %v6679
    %v8029 = vpack.c.b16 %v6699, %v6680
    %v8030 = vpack.c.b16 %v6700, %v6681
    %v8031 = vpack.c.b16 %v6720, %v6701
    %v8032 = vpack.c.b16 %v6721, %v6702
    %v8033 = vpack.c.b16 %v6722, %v6703
    %v8034 = vpack.c.b16 %v6723, %v6704
    %v8035 = vpack.c.b16 %v6724, %v6705
    %v8036 = vpack.c.b16 %v6725, %v6706
    %v8037 = vpack.c.b16 %v6726, %v6707
    %v8038 = vpack.c.b16 %v6727, %v6708
    %v8039 = vpack.c.b16 %v6728, %v6709
    %v8040 = vpack.c.b16 %v6729, %v6710
    %v8041 = vpack.c.b16 %v6730, %v6711
    %v8042 = vpack.c.b16 %v6731, %v6712
    %v8043 = vpack.c.b16 %v6732, %v6713
    %v8044 = vpack.c.b16 %v6733, %v6714
    %v8045 = vpack.c.b16 %v6734, %v6715
    %v8046 = vpack.c.b16 %v6735, %v6716
    %v8047 = vpack.c.b16 %v6736, %v6717
    %v8048 = vpack.c.b16 %v6737, %v6718
    %v8049 = vpack.c.b16 %v6738, %v6719
    %v8050 = vpack.c.b16 %v6758, %v6739
    %v8051 = vpack.c.b16 %v6759, %v6740
    %v8052 = vpack.c.b16 %v6760, %v6741
    %v8053 = vpack.c.b16 %v6761, %v6742
    %v8054 = vpack.c.b16 %v6762, %v6743
    %v8055 = vpack.c.b16 %v6763, %v6744
    %v8056 = vpack.c.b16 %v6764, %v6745
    %v8057 = vpack.c.b16 %v6765, %v6746
    %v8058 = vpack.c.b16 %v6766, %v6747
    %v8059 = vpack.c.b16 %v6767, %v6748
    %v8060 = vpack.c.b16 %v6768, %v6749
    %v8061 = vpack.c.b16 %v6769, %v6750
    %v8062 = vpack.c.b16 %v6770, %v6751
    %v8063 = vpack.c.b16 %v6771, %v6752
    %v8064 = vpack.c.b16 %v6772, %v6753
    %v8065 = vpack.c.b16 %v6773, %v6754
    %v8066 = vpack.c.b16 %v6774, %v6755
    %v8067 = vpack.c.b16 %v6775, %v6756
    %v8068 = vpack.c.b16 %v6776, %v6757
    %v8069 = vpack.c.b16 %v6796, %v6777
    %v8070 = vpack.c.b16 %v6797, %v6778
    %v8071 = vpack.c.b16 %v6798, %v6779
    %v8072 = vpack.c.b16 %v6799, %v6780
    %v8073 = vpack.c.b16 %v6800, %v6781
    %v8074 = vpack.c.b16 %v6801, %v6782
    %v8075 = vpack.c.b16 %v6802, %v6783
    %v8076 = vpack.c.b16 %v6803, %v6784
    %v8077 = vpack.c.b16 %v6804, %v6785
    %v8078 = vpack.c.b16 %v6805, %v6786
    %v8079 = vpack.c.b16 %v6806, %v6787
    %v8080 = vpack.c.b16 %v6807, %v6788
    %v8081 = vpack.c.b16 %v6808, %v6789
    %v8082 = vpack.c.b16 %v6809, %v6790
    %v8083 = vpack.c.b16 %v6810, %v6791
    %v8084 = vpack.c.b16 %v6811, %v6792
    %v8085 = vpack.c.b16 %v6812, %v6793
    %v8086 = vpack.c.b16 %v6813, %v6794
    %v8087 = vpack.c.b16 %v6814, %v6795
    %v8088 = vpack.c.b16 %v6834, %v6815
    %v8089 = vpack.c.b16 %v6835, %v6816
    %v8090 = vpack.c.b16 %v6836, %v6817
    %v8091 = vpack.c.b16 %v6837, %v6818
    %v8092 = vpack.c.b16 %v6838, %v6819
    %v8093 = vpack.c.b16 %v6839, %v6820
    %v8094 = vpack.c.b16 %v6840, %v6821
    %v8095 = vpack.c.b16 %v6841, %v6822
    %v8096 = vpack.c.b16 %v6842, %v6823
    %v8097 = vpack.c.b16 %v6843, %v6824
    %v8098 = vpack.c.b16 %v6844, %v6825
    %v8099 = vpack.c.b16 %v6845, %v6826
    %v8100 = vpack.c.b16 %v6846, %v6827
    %v8101 = vpack.c.b16 %v6847, %v6828
    %v8102 = vpack.c.b16 %v6848, %v6829
    %v8103 = vpack.c.b16 %v6849, %v6830
    %v8104 = vpack.c.b16 %v6850, %v6831
    %v8105 = vpack.c.b16 %v6851, %v6832
    %v8106 = vpack.c.b16 %v6852, %v6833
    %v8107 = vpack.c.b16 %v6872, %v6853
    %v8108 = vpack.c.b16 %v6873, %v6854
    %v8109 = vpack.c.b16 %v6874, %v6855
    %v8110 = vpack.c.b16 %v6875, %v6856
    %v8111 = vpack.c.b16 %v6876, %v6857
    %v8112 = vpack.c.b16 %v6877, %v6858
    %v8113 = vpack.c.b16 %v6878, %v6859
    %v8114 = vpack.c.b16 %v6879, %v6860
    %v8115 = vpack.c.b16 %v6880, %v6861
    %v8116 = vpack.c.b16 %v6881, %v6862
    %v8117 = vpack.c.b16 %v6882, %v6863
    %v8118 = vpack.c.b16 %v6883, %v6864
    %v8119 = vpack.c.b16 %v6884, %v6865
    %v8120 = vpack.c.b16 %v6885, %v6866
    %v8121 = vpack.c.b16 %v6886, %v6867
    %v8122 = vpack.c.b16 %v6887, %v6868
    %v8123 = vpack.c.b16 %v6888, %v6869
    %v8124 = vpack.c.b16 %v6889, %v6870
    %v8125 = vpack.c.b16 %v6890, %v6871
    %v8126 = vpack.c.b16 %v6910, %v6891
    %v8127 = vpack.c.b16 %v6911, %v6892
    %v8128 = vpack.c.b16 %v6912, %v6893
    %v8129 = vpack.c.b16 %v6913, %v6894
    %v8130 = vpack.c.b16 %v6914, %v6895
    %v8131 = vpack.c.b16 %v6915, %v6896
    %v8132 = vpack.c.b16 %v6916, %v6897
    %v8133 = vpack.c.b16 %v6917, %v6898
    %v8134 = vpack.c.b16 %v6918, %v6899
    %v8135 = vpack.c.b16 %v6919, %v6900
    %v8136 = vpack.c.b16 %v6920, %v6901
    %v8137 = vpack.c.b16 %v6921, %v6902
    %v8138 = vpack.c.b16 %v6922, %v6903
    %v8139 = vpack.c.b16 %v6923, %v6904
    %v8140 = vpack.c.b16 %v6924, %v6905
    %v8141 = vpack.c.b16 %v6925, %v6906
    %v8142 = vpack.c.b16 %v6926, %v6907
    %v8143 = vpack.c.b16 %v6927, %v6908
    %v8144 = vpack.c.b16 %v6928, %v6909
    %v8145 = vpack.c.b16 %v6948, %v6929
    %v8146 = vpack.c.b16 %v6949, %v6930
    %v8147 = vpack.c.b16 %v6950, %v6931
    %v8148 = vpack.c.b16 %v6951, %v6932
    %v8149 = vpack.c.b16 %v6952, %v6933
    %v8150 = vpack.c.b16 %v6953, %v6934
    %v8151 = vpack.c.b16 %v6954, %v6935
    %v8152 = vpack.c.b16 %v6955, %v6936
    %v8153 = vpack.c.b16 %v6956, %v6937
    %v8154 = vpack.c.b16 %v6957, %v6938
    %v8155 = vpack.c.b16 %v6958, %v6939
    %v8156 = vpack.c.b16 %v6959, %v6940
    %v8157 = vpack.c.b16 %v6960, %v6941
    %v8158 = vpack.c.b16 %v6961, %v6942
    %v8159 = vpack.c.b16 %v6962, %v6943
    %v8160 = vpack.c.b16 %v6963, %v6944
    %v8161 = vpack.c.b16 %v6964, %v6945
    %v8162 = vpack.c.b16 %v6965, %v6946
    %v8163 = vpack.c.b16 %v6966, %v6947
    %v8164 = vpack.c.b16 %v6986, %v6967
    %v8165 = vpack.c.b16 %v6987, %v6968
    %v8166 = vpack.c.b16 %v6988, %v6969
    %v8167 = vpack.c.b16 %v6989, %v6970
    %v8168 = vpack.c.b16 %v6990, %v6971
    %v8169 = vpack.c.b16 %v6991, %v6972
    %v8170 = vpack.c.b16 %v6992, %v6973
    %v8171 = vpack.c.b16 %v6993, %v6974
    %v8172 = vpack.c.b16 %v6994, %v6975
    %v8173 = vpack.c.b16 %v6995, %v6976
    %v8174 = vpack.c.b16 %v6996, %v6977
    %v8175 = vpack.c.b16 %v6997, %v6978
    %v8176 = vpack.c.b16 %v6998, %v6979
    %v8177 = vpack.c.b16 %v6999, %v6980
    %v8178 = vpack.c.b16 %v7000, %v6981
    %v8179 = vpack.c.b16 %v7001, %v6982
    %v8180 = vpack.c.b16 %v7002, %v6983
    %v8181 = vpack.c.b16 %v7003, %v6984
    %v8182 = vpack.c.b16 %v7004, %v6985
    %v8183 = vpack.c.b16 %v7024, %v7005
    %v8184 = vpack.c.b16 %v7025, %v7006
    %v8185 = vpack.c.b16 %v7026, %v7007
    %v8186 = vpack.c.b16 %v7027, %v7008
    %v8187 = vpack.c.b16 %v7028, %v7009
    %v8188 = vpack.c.b16 %v7029, %v7010
    %v8189 = vpack.c.b16 %v7030, %v7011
    %v8190 = vpack.c.b16 %v7031, %v7012
    %v8191 = vpack.c.b16 %v7032, %v7013
    %v8192 = vpack.c.b16 %v7033, %v7014
    %v8193 = vpack.c.b16 %v7034, %v7015
    %v8194 = vpack.c.b16 %v7035, %v7016
    %v8195 = vpack.c.b16 %v7036, %v7017
    %v8196 = vpack.c.b16 %v7037, %v7018
    %v8197 = vpack.c.b16 %v7038, %v7019
    %v8198 = vpack.c.b16 %v7039, %v7020
    %v8199 = vpack.c.b16 %v7040, %v7021
    %v8200 = vpack.c.b16 %v7041, %v7022
    %v8201 = vpack.c.b16 %v7042, %v7023
    %v8202 = vpack.c.b16 %v7062, %v7043
    %v8203 = vpack.c.b16 %v7063, %v7044
    %v8204 = vpack.c.b16 %v7064, %v7045
    %v8205 = vpack.c.b16 %v7065, %v7046
    %v8206 = vpack.c.b16 %v7066, %v7047
    %v8207 = vpack.c.b16 %v7067, %v7048
    %v8208 = vpack.c.b16 %v7068, %v7049
    %v8209 = vpack.c.b16 %v7069, %v7050
    %v8210 = vpack.c.b16 %v7070, %v7051
    %v8211 = vpack.c.b16 %v7071, %v7052
    %v8212 = vpack.c.b16 %v7072, %v7053
    %v8213 = vpack.c.b16 %v7073, %v7054
    %v8214 = vpack.c.b16 %v7074, %v7055
    %v8215 = vpack.c.b16 %v7075, %v7056
    %v8216 = vpack.c.b16 %v7076, %v7057
    %v8217 = vpack.c.b16 %v7077, %v7058
    %v8218 = vpack.c.b16 %v7078, %v7059
    %v8219 = vpack.c.b16 %v7079, %v7060
    %v8220 = vpack.c.b16 %v7080, %v7061
    %v8221 = vpack.c.b16 %v7100, %v7081
    %v8222 = vpack.c.b16 %v7101, %v7082
    %v8223 = vpack.c.b16 %v7102, %v7083
    %v8224 = vpack.c.b16 %v7103, %v7084
    %v8225 = vpack.c.b16 %v7104, %v7085
    %v8226 = vpack.c.b16 %v7105, %v7086
    %v8227 = vpack.c.b16 %v7106, %v7087
    %v8228 = vpack.c.b16 %v7107, %v7088
    %v8229 = vpack.c.b16 %v7108, %v7089
    %v8230 = vpack.c.b16 %v7109, %v7090
    %v8231 = vpack.c.b16 %v7110, %v7091
    %v8232 = vpack.c.b16 %v7111, %v7092
    %v8233 = vpack.c.b16 %v7112, %v7093
    %v8234 = vpack.c.b16 %v7113, %v7094
    %v8235 = vpack.c.b16 %v7114, %v7095
    %v8236 = vpack.c.b16 %v7115, %v7096
    %v8237 = vpack.c.b16 %v7116, %v7097
    %v8238 = vpack.c.b16 %v7117, %v7098
    %v8239 = vpack.c.b16 %v7118, %v7099
    %v8240 = vpack.c.b16 %v7138, %v7119
    %v8241 = vpack.c.b16 %v7139, %v7120
    %v8242 = vpack.c.b16 %v7140, %v7121
    %v8243 = vpack.c.b16 %v7141, %v7122
    %v8244 = vpack.c.b16 %v7142, %v7123
    %v8245 = vpack.c.b16 %v7143, %v7124
    %v8246 = vpack.c.b16 %v7144, %v7125
    %v8247 = vpack.c.b16 %v7145, %v7126
    %v8248 = vpack.c.b16 %v7146, %v7127
    %v8249 = vpack.c.b16 %v7147, %v7128
    %v8250 = vpack.c.b16 %v7148, %v7129
    %v8251 = vpack.c.b16 %v7149, %v7130
    %v8252 = vpack.c.b16 %v7150, %v7131
    %v8253 = vpack.c.b16 %v7151, %v7132
    %v8254 = vpack.c.b16 %v7152, %v7133
    %v8255 = vpack.c.b16 %v7153, %v7134
    %v8256 = vpack.c.b16 %v7154, %v7135
    %v8257 = vpack.c.b16 %v7155, %v7136
    %v8258 = vpack.c.b16 %v7156, %v7137
    %v8259 = vpack.c.b16 %v7176, %v7157
    %v8260 = vpack.c.b16 %v7177, %v7158
    %v8261 = vpack.c.b16 %v7178, %v7159
    %v8262 = vpack.c.b16 %v7179, %v7160
    %v8263 = vpack.c.b16 %v7180, %v7161
    %v8264 = vpack.c.b16 %v7181, %v7162
    %v8265 = vpack.c.b16 %v7182, %v7163
    %v8266 = vpack.c.b16 %v7183, %v7164
    %v8267 = vpack.c.b16 %v7184, %v7165
    %v8268 = vpack.c.b16 %v7185, %v7166
    %v8269 = vpack.c.b16 %v7186, %v7167
    %v8270 = vpack.c.b16 %v7187, %v7168
    %v8271 = vpack.c.b16 %v7188, %v7169
    %v8272 = vpack.c.b16 %v7189, %v7170
    %v8273 = vpack.c.b16 %v7190, %v7171
    %v8274 = vpack.c.b16 %v7191, %v7172
    %v8275 = vpack.c.b16 %v7192, %v7173
    %v8276 = vpack.c.b16 %v7193, %v7174
    %v8277 = vpack.c.b16 %v7194, %v7175
    %v8278 = vpack.c.b16 %v7214, %v7195
    %v8279 = vpack.c.b16 %v7215, %v7196
    %v8280 = vpack.c.b16 %v7216, %v7197
    %v8281 = vpack.c.b16 %v7217, %v7198
    %v8282 = vpack.c.b16 %v7218, %v7199
    %v8283 = vpack.c.b16 %v7219, %v7200
    %v8284 = vpack.c.b16 %v7220, %v7201
    %v8285 = vpack.c.b16 %v7221, %v7202
    %v8286 = vpack.c.b16 %v7222, %v7203
    %v8287 = vpack.c.b16 %v7223, %v7204
    %v8288 = vpack.c.b16 %v7224, %v7205
    %v8289 = vpack.c.b16 %v7225, %v7206
    %v8290 = vpack.c.b16 %v7226, %v7207
    %v8291 = vpack.c.b16 %v7227, %v7208
    %v8292 = vpack.c.b16 %v7228, %v7209
    %v8293 = vpack.c.b16 %v7229, %v7210
    %v8294 = vpack.c.b16 %v7230, %v7211
    %v8295 = vpack.c.b16 %v7231, %v7212
    %v8296 = vpack.c.b16 %v7232, %v7213
    %v8297 = vpack.c.b16 %v7252, %v7233
    %v8298 = vpack.c.b16 %v7253, %v7234
    %v8299 = vpack.c.b16 %v7254, %v7235
    %v8300 = vpack.c.b16 %v7255, %v7236
    %v8301 = vpack.c.b16 %v7256, %v7237
    %v8302 = vpack.c.b16 %v7257, %v7238
    %v8303 = vpack.c.b16 %v7258, %v7239
    %v8304 = vpack.c.b16 %v7259, %v7240
    %v8305 = vpack.c.b16 %v7260, %v7241
    %v8306 = vpack.c.b16 %v7261, %v7242
    %v8307 = vpack.c.b16 %v7262, %v7243
    %v8308 = vpack.c.b16 %v7263, %v7244
    %v8309 = vpack.c.b16 %v7264, %v7245
    %v8310 = vpack.c.b16 %v7265, %v7246
    %v8311 = vpack.c.b16 %v7266, %v7247
    %v8312 = vpack.c.b16 %v7267, %v7248
    %v8313 = vpack.c.b16 %v7268, %v7249
    %v8314 = vpack.c.b16 %v7269, %v7250
    %v8315 = vpack.c.b16 %v7270, %v7251
    %v8316 = vpack.c.b16 %v7290, %v7271
    %v8317 = vpack.c.b16 %v7291, %v7272
    %v8318 = vpack.c.b16 %v7292, %v7273
    %v8319 = vpack.c.b16 %v7293, %v7274
    %v8320 = vpack.c.b16 %v7294, %v7275
    %v8321 = vpack.c.b16 %v7295, %v7276
    %v8322 = vpack.c.b16 %v7296, %v7277
    %v8323 = vpack.c.b16 %v7297, %v7278
    %v8324 = vpack.c.b16 %v7298, %v7279
    %v8325 = vpack.c.b16 %v7299, %v7280
    %v8326 = vpack.c.b16 %v7300, %v7281
    %v8327 = vpack.c.b16 %v7301, %v7282
    %v8328 = vpack.c.b16 %v7302, %v7283
    %v8329 = vpack.c.b16 %v7303, %v7284
    %v8330 = vpack.c.b16 %v7304, %v7285
    %v8331 = vpack.c.b16 %v7305, %v7286
    %v8332 = vpack.c.b16 %v7306, %v7287
    %v8333 = vpack.c.b16 %v7307, %v7288
    %v8334 = vpack.c.b16 %v7308, %v7289
    %v8335 = vpack.c.b16 %v7328, %v7309
    %v8336 = vpack.c.b16 %v7329, %v7310
    %v8337 = vpack.c.b16 %v7330, %v7311
    %v8338 = vpack.c.b16 %v7331, %v7312
    %v8339 = vpack.c.b16 %v7332, %v7313
    %v8340 = vpack.c.b16 %v7333, %v7314
    %v8341 = vpack.c.b16 %v7334, %v7315
    %v8342 = vpack.c.b16 %v7335, %v7316
    %v8343 = vpack.c.b16 %v7336, %v7317
    %v8344 = vpack.c.b16 %v7337, %v7318
    %v8345 = vpack.c.b16 %v7338, %v7319
    %v8346 = vpack.c.b16 %v7339, %v7320
    %v8347 = vpack.c.b16 %v7340, %v7321
    %v8348 = vpack.c.b16 %v7341, %v7322
    %v8349 = vpack.c.b16 %v7342, %v7323
    %v8350 = vpack.c.b16 %v7343, %v7324
    %v8351 = vpack.c.b16 %v7344, %v7325
    %v8352 = vpack.c.b16 %v7345, %v7326
    %v8353 = vpack.c.b16 %v7346, %v7327
    %v8354 = vpack.c.b16 %v7366, %v7347
    %v8355 = vpack.c.b16 %v7367, %v7348
    %v8356 = vpack.c.b16 %v7368, %v7349
    %v8357 = vpack.c.b16 %v7369, %v7350
    %v8358 = vpack.c.b16 %v7370, %v7351
    %v8359 = vpack.c.b16 %v7371, %v7352
    %v8360 = vpack.c.b16 %v7372, %v7353
    %v8361 = vpack.c.b16 %v7373, %v7354
    %v8362 = vpack.c.b16 %v7374, %v7355
    %v8363 = vpack.c.b16 %v7375, %v7356
    %v8364 = vpack.c.b16 %v7376, %v7357
    %v8365 = vpack.c.b16 %v7377, %v7358
    %v8366 = vpack.c.b16 %v7378, %v7359
    %v8367 = vpack.c.b16 %v7379, %v7360
    %v8368 = vpack.c.b16 %v7380, %v7361
    %v8369 = vpack.c.b16 %v7381, %v7362
    %v8370 = vpack.c.b16 %v7382, %v7363
    %v8371 = vpack.c.b16 %v7383, %v7364
    %v8372 = vpack.c.b16 %v7384, %v7365
    %v8373 = vpack.c.b16 %v7404, %v7385
    %v8374 = vpack.c.b16 %v7405, %v7386
    %v8375 = vpack.c.b16 %v7406, %v7387
    %v8376 = vpack.c.b16 %v7407, %v7388
    %v8377 = vpack.c.b16 %v7408, %v7389
    %v8378 = vpack.c.b16 %v7409, %v7390
    %v8379 = vpack.c.b16 %v7410, %v7391
    %v8380 = vpack.c.b16 %v7411, %v7392
    %v8381 = vpack.c.b16 %v7412, %v7393
    %v8382 = vpack.c.b16 %v7413, %v7394
    %v8383 = vpack.c.b16 %v7414, %v7395
    %v8384 = vpack.c.b16 %v7415, %v7396
    %v8385 = vpack.c.b16 %v7416, %v7397
    %v8386 = vpack.c.b16 %v7417, %v7398
    %v8387 = vpack.c.b16 %v7418, %v7399
    %v8388 = vpack.c.b16 %v7419, %v7400
    %v8389 = vpack.c.b16 %v7420, %v7401
    %v8390 = vpack.c.b16 %v7421, %v7402
    %v8391 = vpack.c.b16 %v7422, %v7403
    %v8392 = vpack.c.b16 %v7442, %v7423
    %v8393 = vpack.c.b16 %v7443, %v7424
    %v8394 = vpack.c.b16 %v7444, %v7425
    %v8395 = vpack.c.b16 %v7445, %v7426
    %v8396 = vpack.c.b16 %v7446, %v7427
    %v8397 = vpack.c.b16 %v7447, %v7428
    %v8398 = vpack.c.b16 %v7448, %v7429
    %v8399 = vpack.c.b16 %v7449, %v7430
    %v8400 = vpack.c.b16 %v7450, %v7431
    %v8401 = vpack.c.b16 %v7451, %v7432
    %v8402 = vpack.c.b16 %v7452, %v7433
    %v8403 = vpack.c.b16 %v7453, %v7434
    %v8404 = vpack.c.b16 %v7454, %v7435
    %v8405 = vpack.c.b16 %v7455, %v7436
    %v8406 = vpack.c.b16 %v7456, %v7437
    %v8407 = vpack.c.b16 %v7457, %v7438
    %v8408 = vpack.c.b16 %v7458, %v7439
    %v8409 = vpack.c.b16 %v7459, %v7440
    %v8410 = vpack.c.b16 %v7460, %v7441
    %v8411 = vpack.c.b16 %v7480, %v7461
    %v8412 = vpack.c.b16 %v7481, %v7462
    %v8413 = vpack.c.b16 %v7482, %v7463
    %v8414 = vpack.c.b16 %v7483, %v7464
    %v8415 = vpack.c.b16 %v7484, %v7465
    %v8416 = vpack.c.b16 %v7485, %v7466
    %v8417 = vpack.c.b16 %v7486, %v7467
    %v8418 = vpack.c.b16 %v7487, %v7468
    %v8419 = vpack.c.b16 %v7488, %v7469
    %v8420 = vpack.c.b16 %v7489, %v7470
    %v8421 = vpack.c.b16 %v7490, %v7471
    %v8422 = vpack.c.b16 %v7491, %v7472
    %v8423 = vpack.c.b16 %v7492, %v7473
    %v8424 = vpack.c.b16 %v7493, %v7474
    %v8425 = vpack.c.b16 %v7494, %v7475
    %v8426 = vpack.c.b16 %v7495, %v7476
    %v8427 = vpack.c.b16 %v7496, %v7477
    %v8428 = vpack.c.b16 %v7497, %v7478
    %v8429 = vpack.c.b16 %v7498, %v7479
    %v9362 = vsel %vm162, %v3676, 0
    %9364 = vmatpush.bf16.msra.mxu0 %v7632
    %9365 = vmatpush.bf16.msra.mxu0 %v7613
    %9366 = vmatpush.bf16.msra.mxu0 %v7594
    %9367 = vmatpush.bf16.msra.mxu0 %v7575
    %9368 = vmatpush.bf16.msra.mxu0 %v7556
    %9369 = vmatpush.bf16.msra.mxu0 %v7537
    %9370 = vmatpush.bf16.msra.mxu0 %v7518
    %9371 = vmatpush.bf16.msra.mxu0 %v7499
    %9372 = vmatmul.bf16.gmra.mxu0 %v3670
    %v9373 = vpop.f32.mrf.mxu0
    %v9374 = vadd.f32 0.0, %v9373
    %v9375 = vpop.f32.mrf.mxu0
    %9376 = vdwg.mxu0
    %9377 = vmatpush.bf16.msra.mxu0 %v7784
    %9378 = vmatpush.bf16.msra.mxu0 %v7765
    %9379 = vmatpush.bf16.msra.mxu0 %v7746
    %9380 = vmatpush.bf16.msra.mxu0 %v7727
    %9381 = vmatpush.bf16.msra.mxu0 %v7708
    %9382 = vmatpush.bf16.msra.mxu0 %v7689
    %9383 = vmatpush.bf16.msra.mxu0 %v7670
    %9384 = vmatpush.bf16.msra.mxu0 %v7651
    %9385 = vmatmul.bf16.gmra.mxu0 %v3671
    %v9386 = vpop.f32.mrf.mxu0
    %v9387 = vadd.f32 %v9374, %v9386
    %v9388 = vpop.f32.mrf.mxu0
    %9389 = vdwg.mxu0
    %9390 = vmatpush.bf16.msra.mxu0 %v7936
    %9391 = vmatpush.bf16.msra.mxu0 %v7917
    %9392 = vmatpush.bf16.msra.mxu0 %v7898
    %9393 = vmatpush.bf16.msra.mxu0 %v7879
    %9394 = vmatpush.bf16.msra.mxu0 %v7860
    %9395 = vmatpush.bf16.msra.mxu0 %v7841
    %9396 = vmatpush.bf16.msra.mxu0 %v7822
    %9397 = vmatpush.bf16.msra.mxu0 %v7803
    %9398 = vmatmul.bf16.gmra.mxu0 %v3672
    %v9399 = vpop.f32.mrf.mxu0
    %v9400 = vadd.f32 %v9387, %v9399
    %v9401 = vpop.f32.mrf.mxu0
    %9402 = vdwg.mxu0
    %9403 = vmatpush.bf16.msra.mxu0 %v8088
    %9404 = vmatpush.bf16.msra.mxu0 %v8069
    %9405 = vmatpush.bf16.msra.mxu0 %v8050
    %9406 = vmatpush.bf16.msra.mxu0 %v8031
    %9407 = vmatpush.bf16.msra.mxu0 %v8012
    %9408 = vmatpush.bf16.msra.mxu0 %v7993
    %9409 = vmatpush.bf16.msra.mxu0 %v7974
    %9410 = vmatpush.bf16.msra.mxu0 %v7955
    %9411 = vmatmul.bf16.gmra.mxu0 %v3673
    %v9412 = vpop.f32.mrf.mxu0
    %v9413 = vadd.f32 %v9400, %v9412
    %v9414 = vpop.f32.mrf.mxu0
    %9415 = vdwg.mxu0
    %9416 = vmatpush.bf16.msra.mxu0 %v8240
    %9417 = vmatpush.bf16.msra.mxu0 %v8221
    %9418 = vmatpush.bf16.msra.mxu0 %v8202
    %9419 = vmatpush.bf16.msra.mxu0 %v8183
    %9420 = vmatpush.bf16.msra.mxu0 %v8164
    %9421 = vmatpush.bf16.msra.mxu0 %v8145
    %9422 = vmatpush.bf16.msra.mxu0 %v8126
    %9423 = vmatpush.bf16.msra.mxu0 %v8107
    %9424 = vmatmul.bf16.gmra.mxu0 %v3674
    %v9425 = vpop.f32.mrf.mxu0
    %v9426 = vadd.f32 %v9413, %v9425
    %v9427 = vpop.f32.mrf.mxu0
    %9428 = vdwg.mxu0
    %9429 = vmatpush.bf16.msra.mxu0 %v8392
    %9430 = vmatpush.bf16.msra.mxu0 %v8373
    %9431 = vmatpush.bf16.msra.mxu0 %v8354
    %9432 = vmatpush.bf16.msra.mxu0 %v8335
    %9433 = vmatpush.bf16.msra.mxu0 %v8316
    %9434 = vmatpush.bf16.msra.mxu0 %v8297
    %9435 = vmatpush.bf16.msra.mxu0 %v8278
    %9436 = vmatpush.bf16.msra.mxu0 %v8259
    %9437 = vmatmul.bf16.gmra.mxu0 %v3675
    %v9438 = vpop.f32.mrf.mxu0
    %v9439 = vadd.f32 %v9426, %v9438
    %v9440 = vpop.f32.mrf.mxu0
    %9441 = vdwg.mxu0
    %9442 = vmatpush.bf16.msra.mxu0 0
    %9443 = vmatpush.bf16.msra.mxu0 0
    %9444 = vmatpush.bf16.msra.mxu0 0
    %9445 = vmatpush.bf16.msra.mxu0 0
    %9446 = vmatpush.bf16.msra.mxu0 0
    %9447 = vmatpush.bf16.msra.mxu0 0
    %9448 = vmatpush.bf16.msra.mxu0 0
    %9449 = vmatpush.bf16.msra.mxu0 %v8411
    %9450 = vmatmul.bf16.gmra.mxu0 %v9362
    %v9451 = vpop.f32.mrf.mxu0
    %v9452 = vadd.f32 %v9439, %v9451
    %v9453 = vpop.f32.mrf.mxu0
    %9454 = vdwg.mxu0
    %9455 = vmatpush.bf16.msra.mxu0 %v7633
    %9456 = vmatpush.bf16.msra.mxu0 %v7614
    %9457 = vmatpush.bf16.msra.mxu0 %v7595
    %9458 = vmatpush.bf16.msra.mxu0 %v7576
    %9459 = vmatpush.bf16.msra.mxu0 %v7557
    %9460 = vmatpush.bf16.msra.mxu0 %v7538
    %9461 = vmatpush.bf16.msra.mxu0 %v7519
    %9462 = vmatpush.bf16.msra.mxu0 %v7500
    %9463 = vmatmul.bf16.gmra.mxu0 %v3670
    %v9464 = vpop.f32.mrf.mxu0
    %v9465 = vadd.f32 0.0, %v9464
    %v9466 = vpop.f32.mrf.mxu0
    %9467 = vdwg.mxu0
    %9468 = vmatpush.bf16.msra.mxu0 %v7785
    %9469 = vmatpush.bf16.msra.mxu0 %v7766
    %9470 = vmatpush.bf16.msra.mxu0 %v7747
    %9471 = vmatpush.bf16.msra.mxu0 %v7728
    %9472 = vmatpush.bf16.msra.mxu0 %v7709
    %9473 = vmatpush.bf16.msra.mxu0 %v7690
    %9474 = vmatpush.bf16.msra.mxu0 %v7671
    %9475 = vmatpush.bf16.msra.mxu0 %v7652
    %9476 = vmatmul.bf16.gmra.mxu0 %v3671
    %v9477 = vpop.f32.mrf.mxu0
    %v9478 = vadd.f32 %v9465, %v9477
    %v9479 = vpop.f32.mrf.mxu0
    %9480 = vdwg.mxu0
    %9481 = vmatpush.bf16.msra.mxu0 %v7937
    %9482 = vmatpush.bf16.msra.mxu0 %v7918
    %9483 = vmatpush.bf16.msra.mxu0 %v7899
    %9484 = vmatpush.bf16.msra.mxu0 %v7880
    %9485 = vmatpush.bf16.msra.mxu0 %v7861
    %9486 = vmatpush.bf16.msra.mxu0 %v7842
    %9487 = vmatpush.bf16.msra.mxu0 %v7823
    %9488 = vmatpush.bf16.msra.mxu0 %v7804
    %9489 = vmatmul.bf16.gmra.mxu0 %v3672
    %v9490 = vpop.f32.mrf.mxu0
    %v9491 = vadd.f32 %v9478, %v9490
    %v9492 = vpop.f32.mrf.mxu0
    %9493 = vdwg.mxu0
    %9494 = vmatpush.bf16.msra.mxu0 %v8089
    %9495 = vmatpush.bf16.msra.mxu0 %v8070
    %9496 = vmatpush.bf16.msra.mxu0 %v8051
    %9497 = vmatpush.bf16.msra.mxu0 %v8032
    %9498 = vmatpush.bf16.msra.mxu0 %v8013
    %9499 = vmatpush.bf16.msra.mxu0 %v7994
    %9500 = vmatpush.bf16.msra.mxu0 %v7975
    %9501 = vmatpush.bf16.msra.mxu0 %v7956
    %9502 = vmatmul.bf16.gmra.mxu0 %v3673
    %v9503 = vpop.f32.mrf.mxu0
    %v9504 = vadd.f32 %v9491, %v9503
    %v9505 = vpop.f32.mrf.mxu0
    %9506 = vdwg.mxu0
    %9507 = vmatpush.bf16.msra.mxu0 %v8241
    %9508 = vmatpush.bf16.msra.mxu0 %v8222
    %9509 = vmatpush.bf16.msra.mxu0 %v8203
    %9510 = vmatpush.bf16.msra.mxu0 %v8184
    %9511 = vmatpush.bf16.msra.mxu0 %v8165
    %9512 = vmatpush.bf16.msra.mxu0 %v8146
    %9513 = vmatpush.bf16.msra.mxu0 %v8127
    %9514 = vmatpush.bf16.msra.mxu0 %v8108
    %9515 = vmatmul.bf16.gmra.mxu0 %v3674
    %v9516 = vpop.f32.mrf.mxu0
    %v9517 = vadd.f32 %v9504, %v9516
    %v9518 = vpop.f32.mrf.mxu0
    %9519 = vdwg.mxu0
    %9520 = vmatpush.bf16.msra.mxu0 %v8393
    %9521 = vmatpush.bf16.msra.mxu0 %v8374
    %9522 = vmatpush.bf16.msra.mxu0 %v8355
    %9523 = vmatpush.bf16.msra.mxu0 %v8336
    %9524 = vmatpush.bf16.msra.mxu0 %v8317
    %9525 = vmatpush.bf16.msra.mxu0 %v8298
    %9526 = vmatpush.bf16.msra.mxu0 %v8279
    %9527 = vmatpush.bf16.msra.mxu0 %v8260
    %9528 = vmatmul.bf16.gmra.mxu0 %v3675
    %v9529 = vpop.f32.mrf.mxu0
    %v9530 = vadd.f32 %v9517, %v9529
    %v9531 = vpop.f32.mrf.mxu0
    %9532 = vdwg.mxu0
    %9533 = vmatpush.bf16.msra.mxu0 0
    %9534 = vmatpush.bf16.msra.mxu0 0
    %9535 = vmatpush.bf16.msra.mxu0 0
    %9536 = vmatpush.bf16.msra.mxu0 0
    %9537 = vmatpush.bf16.msra.mxu0 0
    %9538 = vmatpush.bf16.msra.mxu0 0
    %9539 = vmatpush.bf16.msra.mxu0 0
    %9540 = vmatpush.bf16.msra.mxu0 %v8412
    %9541 = vmatmul.bf16.gmra.mxu0 %v9362
    %v9542 = vpop.f32.mrf.mxu0
    %v9543 = vadd.f32 %v9530, %v9542
    %v9544 = vpop.f32.mrf.mxu0
    %9545 = vdwg.mxu0
    %9546 = vmatpush.bf16.msra.mxu0 %v7634
    %9547 = vmatpush.bf16.msra.mxu0 %v7615
    %9548 = vmatpush.bf16.msra.mxu0 %v7596
    %9549 = vmatpush.bf16.msra.mxu0 %v7577
    %9550 = vmatpush.bf16.msra.mxu0 %v7558
    %9551 = vmatpush.bf16.msra.mxu0 %v7539
    %9552 = vmatpush.bf16.msra.mxu0 %v7520
    %9553 = vmatpush.bf16.msra.mxu0 %v7501
    %9554 = vmatmul.bf16.gmra.mxu0 %v3670
    %v9555 = vpop.f32.mrf.mxu0
    %v9556 = vadd.f32 0.0, %v9555
    %v9557 = vpop.f32.mrf.mxu0
    %9558 = vdwg.mxu0
    %9559 = vmatpush.bf16.msra.mxu0 %v7786
    %9560 = vmatpush.bf16.msra.mxu0 %v7767
    %9561 = vmatpush.bf16.msra.mxu0 %v7748
    %9562 = vmatpush.bf16.msra.mxu0 %v7729
    %9563 = vmatpush.bf16.msra.mxu0 %v7710
    %9564 = vmatpush.bf16.msra.mxu0 %v7691
    %9565 = vmatpush.bf16.msra.mxu0 %v7672
    %9566 = vmatpush.bf16.msra.mxu0 %v7653
    %9567 = vmatmul.bf16.gmra.mxu0 %v3671
    %v9568 = vpop.f32.mrf.mxu0
    %v9569 = vadd.f32 %v9556, %v9568
    %v9570 = vpop.f32.mrf.mxu0
    %9571 = vdwg.mxu0
    %9572 = vmatpush.bf16.msra.mxu0 %v7938
    %9573 = vmatpush.bf16.msra.mxu0 %v7919
    %9574 = vmatpush.bf16.msra.mxu0 %v7900
    %9575 = vmatpush.bf16.msra.mxu0 %v7881
    %9576 = vmatpush.bf16.msra.mxu0 %v7862
    %9577 = vmatpush.bf16.msra.mxu0 %v7843
    %9578 = vmatpush.bf16.msra.mxu0 %v7824
    %9579 = vmatpush.bf16.msra.mxu0 %v7805
    %9580 = vmatmul.bf16.gmra.mxu0 %v3672
    %v9581 = vpop.f32.mrf.mxu0
    %v9582 = vadd.f32 %v9569, %v9581
    %v9583 = vpop.f32.mrf.mxu0
    %9584 = vdwg.mxu0
    %9585 = vmatpush.bf16.msra.mxu0 %v8090
    %9586 = vmatpush.bf16.msra.mxu0 %v8071
    %9587 = vmatpush.bf16.msra.mxu0 %v8052
    %9588 = vmatpush.bf16.msra.mxu0 %v8033
    %9589 = vmatpush.bf16.msra.mxu0 %v8014
    %9590 = vmatpush.bf16.msra.mxu0 %v7995
    %9591 = vmatpush.bf16.msra.mxu0 %v7976
    %9592 = vmatpush.bf16.msra.mxu0 %v7957
    %9593 = vmatmul.bf16.gmra.mxu0 %v3673
    %v9594 = vpop.f32.mrf.mxu0
    %v9595 = vadd.f32 %v9582, %v9594
    %v9596 = vpop.f32.mrf.mxu0
    %9597 = vdwg.mxu0
    %9598 = vmatpush.bf16.msra.mxu0 %v8242
    %9599 = vmatpush.bf16.msra.mxu0 %v8223
    %9600 = vmatpush.bf16.msra.mxu0 %v8204
    %9601 = vmatpush.bf16.msra.mxu0 %v8185
    %9602 = vmatpush.bf16.msra.mxu0 %v8166
    %9603 = vmatpush.bf16.msra.mxu0 %v8147
    %9604 = vmatpush.bf16.msra.mxu0 %v8128
    %9605 = vmatpush.bf16.msra.mxu0 %v8109
    %9606 = vmatmul.bf16.gmra.mxu0 %v3674
    %v9607 = vpop.f32.mrf.mxu0
    %v9608 = vadd.f32 %v9595, %v9607
    %v9609 = vpop.f32.mrf.mxu0
    %9610 = vdwg.mxu0
    %9611 = vmatpush.bf16.msra.mxu0 %v8394
    %9612 = vmatpush.bf16.msra.mxu0 %v8375
    %9613 = vmatpush.bf16.msra.mxu0 %v8356
    %9614 = vmatpush.bf16.msra.mxu0 %v8337
    %9615 = vmatpush.bf16.msra.mxu0 %v8318
    %9616 = vmatpush.bf16.msra.mxu0 %v8299
    %9617 = vmatpush.bf16.msra.mxu0 %v8280
    %9618 = vmatpush.bf16.msra.mxu0 %v8261
    %9619 = vmatmul.bf16.gmra.mxu0 %v3675
    %v9620 = vpop.f32.mrf.mxu0
    %v9621 = vadd.f32 %v9608, %v9620
    %v9622 = vpop.f32.mrf.mxu0
    %9623 = vdwg.mxu0
    %9624 = vmatpush.bf16.msra.mxu0 0
    %9625 = vmatpush.bf16.msra.mxu0 0
    %9626 = vmatpush.bf16.msra.mxu0 0
    %9627 = vmatpush.bf16.msra.mxu0 0
    %9628 = vmatpush.bf16.msra.mxu0 0
    %9629 = vmatpush.bf16.msra.mxu0 0
    %9630 = vmatpush.bf16.msra.mxu0 0
    %9631 = vmatpush.bf16.msra.mxu0 %v8413
    %9632 = vmatmul.bf16.gmra.mxu0 %v9362
    %v9633 = vpop.f32.mrf.mxu0
    %v9634 = vadd.f32 %v9621, %v9633
    %v9635 = vpop.f32.mrf.mxu0
    %9636 = vdwg.mxu0
    %9637 = vmatpush.bf16.msra.mxu0 %v7635
    %9638 = vmatpush.bf16.msra.mxu0 %v7616
    %9639 = vmatpush.bf16.msra.mxu0 %v7597
    %9640 = vmatpush.bf16.msra.mxu0 %v7578
    %9641 = vmatpush.bf16.msra.mxu0 %v7559
    %9642 = vmatpush.bf16.msra.mxu0 %v7540
    %9643 = vmatpush.bf16.msra.mxu0 %v7521
    %9644 = vmatpush.bf16.msra.mxu0 %v7502
    %9645 = vmatmul.bf16.gmra.mxu0 %v3670
    %v9646 = vpop.f32.mrf.mxu0
    %v9647 = vadd.f32 0.0, %v9646
    %v9648 = vpop.f32.mrf.mxu0
    %9649 = vdwg.mxu0
    %9650 = vmatpush.bf16.msra.mxu0 %v7787
    %9651 = vmatpush.bf16.msra.mxu0 %v7768
    %9652 = vmatpush.bf16.msra.mxu0 %v7749
    %9653 = vmatpush.bf16.msra.mxu0 %v7730
    %9654 = vmatpush.bf16.msra.mxu0 %v7711
    %9655 = vmatpush.bf16.msra.mxu0 %v7692
    %9656 = vmatpush.bf16.msra.mxu0 %v7673
    %9657 = vmatpush.bf16.msra.mxu0 %v7654
    %9658 = vmatmul.bf16.gmra.mxu0 %v3671
    %v9659 = vpop.f32.mrf.mxu0
    %v9660 = vadd.f32 %v9647, %v9659
    %v9661 = vpop.f32.mrf.mxu0
    %9662 = vdwg.mxu0
    %9663 = vmatpush.bf16.msra.mxu0 %v7939
    %9664 = vmatpush.bf16.msra.mxu0 %v7920
    %9665 = vmatpush.bf16.msra.mxu0 %v7901
    %9666 = vmatpush.bf16.msra.mxu0 %v7882
    %9667 = vmatpush.bf16.msra.mxu0 %v7863
    %9668 = vmatpush.bf16.msra.mxu0 %v7844
    %9669 = vmatpush.bf16.msra.mxu0 %v7825
    %9670 = vmatpush.bf16.msra.mxu0 %v7806
    %9671 = vmatmul.bf16.gmra.mxu0 %v3672
    %v9672 = vpop.f32.mrf.mxu0
    %v9673 = vadd.f32 %v9660, %v9672
    %v9674 = vpop.f32.mrf.mxu0
    %9675 = vdwg.mxu0
    %9676 = vmatpush.bf16.msra.mxu0 %v8091
    %9677 = vmatpush.bf16.msra.mxu0 %v8072
    %9678 = vmatpush.bf16.msra.mxu0 %v8053
    %9679 = vmatpush.bf16.msra.mxu0 %v8034
    %9680 = vmatpush.bf16.msra.mxu0 %v8015
    %9681 = vmatpush.bf16.msra.mxu0 %v7996
    %9682 = vmatpush.bf16.msra.mxu0 %v7977
    %9683 = vmatpush.bf16.msra.mxu0 %v7958
    %9684 = vmatmul.bf16.gmra.mxu0 %v3673
    %v9685 = vpop.f32.mrf.mxu0
    %v9686 = vadd.f32 %v9673, %v9685
    %v9687 = vpop.f32.mrf.mxu0
    %9688 = vdwg.mxu0
    %9689 = vmatpush.bf16.msra.mxu0 %v8243
    %9690 = vmatpush.bf16.msra.mxu0 %v8224
    %9691 = vmatpush.bf16.msra.mxu0 %v8205
    %9692 = vmatpush.bf16.msra.mxu0 %v8186
    %9693 = vmatpush.bf16.msra.mxu0 %v8167
    %9694 = vmatpush.bf16.msra.mxu0 %v8148
    %9695 = vmatpush.bf16.msra.mxu0 %v8129
    %9696 = vmatpush.bf16.msra.mxu0 %v8110
    %9697 = vmatmul.bf16.gmra.mxu0 %v3674
    %v9698 = vpop.f32.mrf.mxu0
    %v9699 = vadd.f32 %v9686, %v9698
    %v9700 = vpop.f32.mrf.mxu0
    %9701 = vdwg.mxu0
    %9702 = vmatpush.bf16.msra.mxu0 %v8395
    %9703 = vmatpush.bf16.msra.mxu0 %v8376
    %9704 = vmatpush.bf16.msra.mxu0 %v8357
    %9705 = vmatpush.bf16.msra.mxu0 %v8338
    %9706 = vmatpush.bf16.msra.mxu0 %v8319
    %9707 = vmatpush.bf16.msra.mxu0 %v8300
    %9708 = vmatpush.bf16.msra.mxu0 %v8281
    %9709 = vmatpush.bf16.msra.mxu0 %v8262
    %9710 = vmatmul.bf16.gmra.mxu0 %v3675
    %v9711 = vpop.f32.mrf.mxu0
    %v9712 = vadd.f32 %v9699, %v9711
    %v9713 = vpop.f32.mrf.mxu0
    %9714 = vdwg.mxu0
    %9715 = vmatpush.bf16.msra.mxu0 0
    %9716 = vmatpush.bf16.msra.mxu0 0
    %9717 = vmatpush.bf16.msra.mxu0 0
    %9718 = vmatpush.bf16.msra.mxu0 0
    %9719 = vmatpush.bf16.msra.mxu0 0
    %9720 = vmatpush.bf16.msra.mxu0 0
    %9721 = vmatpush.bf16.msra.mxu0 0
    %9722 = vmatpush.bf16.msra.mxu0 %v8414
    %9723 = vmatmul.bf16.gmra.mxu0 %v9362
    %v9724 = vpop.f32.mrf.mxu0
    %v9725 = vadd.f32 %v9712, %v9724
    %v9726 = vpop.f32.mrf.mxu0
    %9727 = vdwg.mxu0
    %9728 = vmatpush.bf16.msra.mxu0 %v7636
    %9729 = vmatpush.bf16.msra.mxu0 %v7617
    %9730 = vmatpush.bf16.msra.mxu0 %v7598
    %9731 = vmatpush.bf16.msra.mxu0 %v7579
    %9732 = vmatpush.bf16.msra.mxu0 %v7560
    %9733 = vmatpush.bf16.msra.mxu0 %v7541
    %9734 = vmatpush.bf16.msra.mxu0 %v7522
    %9735 = vmatpush.bf16.msra.mxu0 %v7503
    %9736 = vmatmul.bf16.gmra.mxu0 %v3670
    %v9737 = vpop.f32.mrf.mxu0
    %v9738 = vadd.f32 0.0, %v9737
    %v9739 = vpop.f32.mrf.mxu0
    %9740 = vdwg.mxu0
    %9741 = vmatpush.bf16.msra.mxu0 %v7788
    %9742 = vmatpush.bf16.msra.mxu0 %v7769
    %9743 = vmatpush.bf16.msra.mxu0 %v7750
    %9744 = vmatpush.bf16.msra.mxu0 %v7731
    %9745 = vmatpush.bf16.msra.mxu0 %v7712
    %9746 = vmatpush.bf16.msra.mxu0 %v7693
    %9747 = vmatpush.bf16.msra.mxu0 %v7674
    %9748 = vmatpush.bf16.msra.mxu0 %v7655
    %9749 = vmatmul.bf16.gmra.mxu0 %v3671
    %v9750 = vpop.f32.mrf.mxu0
    %v9751 = vadd.f32 %v9738, %v9750
    %v9752 = vpop.f32.mrf.mxu0
    %9753 = vdwg.mxu0
    %9754 = vmatpush.bf16.msra.mxu0 %v7940
    %9755 = vmatpush.bf16.msra.mxu0 %v7921
    %9756 = vmatpush.bf16.msra.mxu0 %v7902
    %9757 = vmatpush.bf16.msra.mxu0 %v7883
    %9758 = vmatpush.bf16.msra.mxu0 %v7864
    %9759 = vmatpush.bf16.msra.mxu0 %v7845
    %9760 = vmatpush.bf16.msra.mxu0 %v7826
    %9761 = vmatpush.bf16.msra.mxu0 %v7807
    %9762 = vmatmul.bf16.gmra.mxu0 %v3672
    %v9763 = vpop.f32.mrf.mxu0
    %v9764 = vadd.f32 %v9751, %v9763
    %v9765 = vpop.f32.mrf.mxu0
    %9766 = vdwg.mxu0
    %9767 = vmatpush.bf16.msra.mxu0 %v8092
    %9768 = vmatpush.bf16.msra.mxu0 %v8073
    %9769 = vmatpush.bf16.msra.mxu0 %v8054
    %9770 = vmatpush.bf16.msra.mxu0 %v8035
    %9771 = vmatpush.bf16.msra.mxu0 %v8016
    %9772 = vmatpush.bf16.msra.mxu0 %v7997
    %9773 = vmatpush.bf16.msra.mxu0 %v7978
    %9774 = vmatpush.bf16.msra.mxu0 %v7959
    %9775 = vmatmul.bf16.gmra.mxu0 %v3673
    %v9776 = vpop.f32.mrf.mxu0
    %v9777 = vadd.f32 %v9764, %v9776
    %v9778 = vpop.f32.mrf.mxu0
    %9779 = vdwg.mxu0
    %9780 = vmatpush.bf16.msra.mxu0 %v8244
    %9781 = vmatpush.bf16.msra.mxu0 %v8225
    %9782 = vmatpush.bf16.msra.mxu0 %v8206
    %9783 = vmatpush.bf16.msra.mxu0 %v8187
    %9784 = vmatpush.bf16.msra.mxu0 %v8168
    %9785 = vmatpush.bf16.msra.mxu0 %v8149
    %9786 = vmatpush.bf16.msra.mxu0 %v8130
    %9787 = vmatpush.bf16.msra.mxu0 %v8111
    %9788 = vmatmul.bf16.gmra.mxu0 %v3674
    %v9789 = vpop.f32.mrf.mxu0
    %v9790 = vadd.f32 %v9777, %v9789
    %v9791 = vpop.f32.mrf.mxu0
    %9792 = vdwg.mxu0
    %9793 = vmatpush.bf16.msra.mxu0 %v8396
    %9794 = vmatpush.bf16.msra.mxu0 %v8377
    %9795 = vmatpush.bf16.msra.mxu0 %v8358
    %9796 = vmatpush.bf16.msra.mxu0 %v8339
    %9797 = vmatpush.bf16.msra.mxu0 %v8320
    %9798 = vmatpush.bf16.msra.mxu0 %v8301
    %9799 = vmatpush.bf16.msra.mxu0 %v8282
    %9800 = vmatpush.bf16.msra.mxu0 %v8263
    %9801 = vmatmul.bf16.gmra.mxu0 %v3675
    %v9802 = vpop.f32.mrf.mxu0
    %v9803 = vadd.f32 %v9790, %v9802
    %v9804 = vpop.f32.mrf.mxu0
    %9805 = vdwg.mxu0
    %9806 = vmatpush.bf16.msra.mxu0 0
    %9807 = vmatpush.bf16.msra.mxu0 0
    %9808 = vmatpush.bf16.msra.mxu0 0
    %9809 = vmatpush.bf16.msra.mxu0 0
    %9810 = vmatpush.bf16.msra.mxu0 0
    %9811 = vmatpush.bf16.msra.mxu0 0
    %9812 = vmatpush.bf16.msra.mxu0 0
    %9813 = vmatpush.bf16.msra.mxu0 %v8415
    %9814 = vmatmul.bf16.gmra.mxu0 %v9362
    %v9815 = vpop.f32.mrf.mxu0
    %v9816 = vadd.f32 %v9803, %v9815
    %v9817 = vpop.f32.mrf.mxu0
    %9818 = vdwg.mxu0
    %9819 = vmatpush.bf16.msra.mxu0 %v7637
    %9820 = vmatpush.bf16.msra.mxu0 %v7618
    %9821 = vmatpush.bf16.msra.mxu0 %v7599
    %9822 = vmatpush.bf16.msra.mxu0 %v7580
    %9823 = vmatpush.bf16.msra.mxu0 %v7561
    %9824 = vmatpush.bf16.msra.mxu0 %v7542
    %9825 = vmatpush.bf16.msra.mxu0 %v7523
    %9826 = vmatpush.bf16.msra.mxu0 %v7504
    %9827 = vmatmul.bf16.gmra.mxu0 %v3670
    %v9828 = vpop.f32.mrf.mxu0
    %v9829 = vadd.f32 0.0, %v9828
    %v9830 = vpop.f32.mrf.mxu0
    %9831 = vdwg.mxu0
    %9832 = vmatpush.bf16.msra.mxu0 %v7789
    %9833 = vmatpush.bf16.msra.mxu0 %v7770
    %9834 = vmatpush.bf16.msra.mxu0 %v7751
    %9835 = vmatpush.bf16.msra.mxu0 %v7732
    %9836 = vmatpush.bf16.msra.mxu0 %v7713
    %9837 = vmatpush.bf16.msra.mxu0 %v7694
    %9838 = vmatpush.bf16.msra.mxu0 %v7675
    %9839 = vmatpush.bf16.msra.mxu0 %v7656
    %9840 = vmatmul.bf16.gmra.mxu0 %v3671
    %v9841 = vpop.f32.mrf.mxu0
    %v9842 = vadd.f32 %v9829, %v9841
    %v9843 = vpop.f32.mrf.mxu0
    %9844 = vdwg.mxu0
    %9845 = vmatpush.bf16.msra.mxu0 %v7941
    %9846 = vmatpush.bf16.msra.mxu0 %v7922
    %9847 = vmatpush.bf16.msra.mxu0 %v7903
    %9848 = vmatpush.bf16.msra.mxu0 %v7884
    %9849 = vmatpush.bf16.msra.mxu0 %v7865
    %9850 = vmatpush.bf16.msra.mxu0 %v7846
    %9851 = vmatpush.bf16.msra.mxu0 %v7827
    %9852 = vmatpush.bf16.msra.mxu0 %v7808
    %9853 = vmatmul.bf16.gmra.mxu0 %v3672
    %v9854 = vpop.f32.mrf.mxu0
    %v9855 = vadd.f32 %v9842, %v9854
    %v9856 = vpop.f32.mrf.mxu0
    %9857 = vdwg.mxu0
    %9858 = vmatpush.bf16.msra.mxu0 %v8093
    %9859 = vmatpush.bf16.msra.mxu0 %v8074
    %9860 = vmatpush.bf16.msra.mxu0 %v8055
    %9861 = vmatpush.bf16.msra.mxu0 %v8036
    %9862 = vmatpush.bf16.msra.mxu0 %v8017
    %9863 = vmatpush.bf16.msra.mxu0 %v7998
    %9864 = vmatpush.bf16.msra.mxu0 %v7979
    %9865 = vmatpush.bf16.msra.mxu0 %v7960
    %9866 = vmatmul.bf16.gmra.mxu0 %v3673
    %v9867 = vpop.f32.mrf.mxu0
    %v9868 = vadd.f32 %v9855, %v9867
    %v9869 = vpop.f32.mrf.mxu0
    %9870 = vdwg.mxu0
    %9871 = vmatpush.bf16.msra.mxu0 %v8245
    %9872 = vmatpush.bf16.msra.mxu0 %v8226
    %9873 = vmatpush.bf16.msra.mxu0 %v8207
    %9874 = vmatpush.bf16.msra.mxu0 %v8188
    %9875 = vmatpush.bf16.msra.mxu0 %v8169
    %9876 = vmatpush.bf16.msra.mxu0 %v8150
    %9877 = vmatpush.bf16.msra.mxu0 %v8131
    %9878 = vmatpush.bf16.msra.mxu0 %v8112
    %9879 = vmatmul.bf16.gmra.mxu0 %v3674
    %v9880 = vpop.f32.mrf.mxu0
    %v9881 = vadd.f32 %v9868, %v9880
    %v9882 = vpop.f32.mrf.mxu0
    %9883 = vdwg.mxu0
    %9884 = vmatpush.bf16.msra.mxu0 %v8397
    %9885 = vmatpush.bf16.msra.mxu0 %v8378
    %9886 = vmatpush.bf16.msra.mxu0 %v8359
    %9887 = vmatpush.bf16.msra.mxu0 %v8340
    %9888 = vmatpush.bf16.msra.mxu0 %v8321
    %9889 = vmatpush.bf16.msra.mxu0 %v8302
    %9890 = vmatpush.bf16.msra.mxu0 %v8283
    %9891 = vmatpush.bf16.msra.mxu0 %v8264
    %9892 = vmatmul.bf16.gmra.mxu0 %v3675
    %v9893 = vpop.f32.mrf.mxu0
    %v9894 = vadd.f32 %v9881, %v9893
    %v9895 = vpop.f32.mrf.mxu0
    %9896 = vdwg.mxu0
    %9897 = vmatpush.bf16.msra.mxu0 0
    %9898 = vmatpush.bf16.msra.mxu0 0
    %9899 = vmatpush.bf16.msra.mxu0 0
    %9900 = vmatpush.bf16.msra.mxu0 0
    %9901 = vmatpush.bf16.msra.mxu0 0
    %9902 = vmatpush.bf16.msra.mxu0 0
    %9903 = vmatpush.bf16.msra.mxu0 0
    %9904 = vmatpush.bf16.msra.mxu0 %v8416
    %9905 = vmatmul.bf16.gmra.mxu0 %v9362
    %v9906 = vpop.f32.mrf.mxu0
    %v9907 = vadd.f32 %v9894, %v9906
    %v9908 = vpop.f32.mrf.mxu0
    %9909 = vdwg.mxu0
    %9910 = vmatpush.bf16.msra.mxu0 %v7638
    %9911 = vmatpush.bf16.msra.mxu0 %v7619
    %9912 = vmatpush.bf16.msra.mxu0 %v7600
    %9913 = vmatpush.bf16.msra.mxu0 %v7581
    %9914 = vmatpush.bf16.msra.mxu0 %v7562
    %9915 = vmatpush.bf16.msra.mxu0 %v7543
    %9916 = vmatpush.bf16.msra.mxu0 %v7524
    %9917 = vmatpush.bf16.msra.mxu0 %v7505
    %9918 = vmatmul.bf16.gmra.mxu0 %v3670
    %v9919 = vpop.f32.mrf.mxu0
    %v9920 = vadd.f32 0.0, %v9919
    %v9921 = vpop.f32.mrf.mxu0
    %9922 = vdwg.mxu0
    %9923 = vmatpush.bf16.msra.mxu0 %v7790
    %9924 = vmatpush.bf16.msra.mxu0 %v7771
    %9925 = vmatpush.bf16.msra.mxu0 %v7752
    %9926 = vmatpush.bf16.msra.mxu0 %v7733
    %9927 = vmatpush.bf16.msra.mxu0 %v7714
    %9928 = vmatpush.bf16.msra.mxu0 %v7695
    %9929 = vmatpush.bf16.msra.mxu0 %v7676
    %9930 = vmatpush.bf16.msra.mxu0 %v7657
    %9931 = vmatmul.bf16.gmra.mxu0 %v3671
    %v9932 = vpop.f32.mrf.mxu0
    %v9933 = vadd.f32 %v9920, %v9932
    %v9934 = vpop.f32.mrf.mxu0
    %9935 = vdwg.mxu0
    %9936 = vmatpush.bf16.msra.mxu0 %v7942
    %9937 = vmatpush.bf16.msra.mxu0 %v7923
    %9938 = vmatpush.bf16.msra.mxu0 %v7904
    %9939 = vmatpush.bf16.msra.mxu0 %v7885
    %9940 = vmatpush.bf16.msra.mxu0 %v7866
    %9941 = vmatpush.bf16.msra.mxu0 %v7847
    %9942 = vmatpush.bf16.msra.mxu0 %v7828
    %9943 = vmatpush.bf16.msra.mxu0 %v7809
    %9944 = vmatmul.bf16.gmra.mxu0 %v3672
    %v9945 = vpop.f32.mrf.mxu0
    %v9946 = vadd.f32 %v9933, %v9945
    %v9947 = vpop.f32.mrf.mxu0
    %9948 = vdwg.mxu0
    %9949 = vmatpush.bf16.msra.mxu0 %v8094
    %9950 = vmatpush.bf16.msra.mxu0 %v8075
    %9951 = vmatpush.bf16.msra.mxu0 %v8056
    %9952 = vmatpush.bf16.msra.mxu0 %v8037
    %9953 = vmatpush.bf16.msra.mxu0 %v8018
    %9954 = vmatpush.bf16.msra.mxu0 %v7999
    %9955 = vmatpush.bf16.msra.mxu0 %v7980
    %9956 = vmatpush.bf16.msra.mxu0 %v7961
    %9957 = vmatmul.bf16.gmra.mxu0 %v3673
    %v9958 = vpop.f32.mrf.mxu0
    %v9959 = vadd.f32 %v9946, %v9958
    %v9960 = vpop.f32.mrf.mxu0
    %9961 = vdwg.mxu0
    %9962 = vmatpush.bf16.msra.mxu0 %v8246
    %9963 = vmatpush.bf16.msra.mxu0 %v8227
    %9964 = vmatpush.bf16.msra.mxu0 %v8208
    %9965 = vmatpush.bf16.msra.mxu0 %v8189
    %9966 = vmatpush.bf16.msra.mxu0 %v8170
    %9967 = vmatpush.bf16.msra.mxu0 %v8151
    %9968 = vmatpush.bf16.msra.mxu0 %v8132
    %9969 = vmatpush.bf16.msra.mxu0 %v8113
    %9970 = vmatmul.bf16.gmra.mxu0 %v3674
    %v9971 = vpop.f32.mrf.mxu0
    %v9972 = vadd.f32 %v9959, %v9971
    %v9973 = vpop.f32.mrf.mxu0
    %9974 = vdwg.mxu0
    %9975 = vmatpush.bf16.msra.mxu0 %v8398
    %9976 = vmatpush.bf16.msra.mxu0 %v8379
    %9977 = vmatpush.bf16.msra.mxu0 %v8360
    %9978 = vmatpush.bf16.msra.mxu0 %v8341
    %9979 = vmatpush.bf16.msra.mxu0 %v8322
    %9980 = vmatpush.bf16.msra.mxu0 %v8303
    %9981 = vmatpush.bf16.msra.mxu0 %v8284
    %9982 = vmatpush.bf16.msra.mxu0 %v8265
    %9983 = vmatmul.bf16.gmra.mxu0 %v3675
    %v9984 = vpop.f32.mrf.mxu0
    %v9985 = vadd.f32 %v9972, %v9984
    %v9986 = vpop.f32.mrf.mxu0
    %9987 = vdwg.mxu0
    %9988 = vmatpush.bf16.msra.mxu0 0
    %9989 = vmatpush.bf16.msra.mxu0 0
    %9990 = vmatpush.bf16.msra.mxu0 0
    %9991 = vmatpush.bf16.msra.mxu0 0
    %9992 = vmatpush.bf16.msra.mxu0 0
    %9993 = vmatpush.bf16.msra.mxu0 0
    %9994 = vmatpush.bf16.msra.mxu0 0
    %9995 = vmatpush.bf16.msra.mxu0 %v8417
    %9996 = vmatmul.bf16.gmra.mxu0 %v9362
    %v9997 = vpop.f32.mrf.mxu0
    %v9998 = vadd.f32 %v9985, %v9997
    %v9999 = vpop.f32.mrf.mxu0
    %10000 = vdwg.mxu0
    %10001 = vmatpush.bf16.msra.mxu0 %v7639
    %10002 = vmatpush.bf16.msra.mxu0 %v7620
    %10003 = vmatpush.bf16.msra.mxu0 %v7601
    %10004 = vmatpush.bf16.msra.mxu0 %v7582
    %10005 = vmatpush.bf16.msra.mxu0 %v7563
    %10006 = vmatpush.bf16.msra.mxu0 %v7544
    %10007 = vmatpush.bf16.msra.mxu0 %v7525
    %10008 = vmatpush.bf16.msra.mxu0 %v7506
    %10009 = vmatmul.bf16.gmra.mxu0 %v3670
    %v10010 = vpop.f32.mrf.mxu0
    %v10011 = vadd.f32 0.0, %v10010
    %v10012 = vpop.f32.mrf.mxu0
    %10013 = vdwg.mxu0
    %10014 = vmatpush.bf16.msra.mxu0 %v7791
    %10015 = vmatpush.bf16.msra.mxu0 %v7772
    %10016 = vmatpush.bf16.msra.mxu0 %v7753
    %10017 = vmatpush.bf16.msra.mxu0 %v7734
    %10018 = vmatpush.bf16.msra.mxu0 %v7715
    %10019 = vmatpush.bf16.msra.mxu0 %v7696
    %10020 = vmatpush.bf16.msra.mxu0 %v7677
    %10021 = vmatpush.bf16.msra.mxu0 %v7658
    %10022 = vmatmul.bf16.gmra.mxu0 %v3671
    %v10023 = vpop.f32.mrf.mxu0
    %v10024 = vadd.f32 %v10011, %v10023
    %v10025 = vpop.f32.mrf.mxu0
    %10026 = vdwg.mxu0
    %10027 = vmatpush.bf16.msra.mxu0 %v7943
    %10028 = vmatpush.bf16.msra.mxu0 %v7924
    %10029 = vmatpush.bf16.msra.mxu0 %v7905
    %10030 = vmatpush.bf16.msra.mxu0 %v7886
    %10031 = vmatpush.bf16.msra.mxu0 %v7867
    %10032 = vmatpush.bf16.msra.mxu0 %v7848
    %10033 = vmatpush.bf16.msra.mxu0 %v7829
    %10034 = vmatpush.bf16.msra.mxu0 %v7810
    %10035 = vmatmul.bf16.gmra.mxu0 %v3672
    %v10036 = vpop.f32.mrf.mxu0
    %v10037 = vadd.f32 %v10024, %v10036
    %v10038 = vpop.f32.mrf.mxu0
    %10039 = vdwg.mxu0
    %10040 = vmatpush.bf16.msra.mxu0 %v8095
    %10041 = vmatpush.bf16.msra.mxu0 %v8076
    %10042 = vmatpush.bf16.msra.mxu0 %v8057
    %10043 = vmatpush.bf16.msra.mxu0 %v8038
    %10044 = vmatpush.bf16.msra.mxu0 %v8019
    %10045 = vmatpush.bf16.msra.mxu0 %v8000
    %10046 = vmatpush.bf16.msra.mxu0 %v7981
    %10047 = vmatpush.bf16.msra.mxu0 %v7962
    %10048 = vmatmul.bf16.gmra.mxu0 %v3673
    %v10049 = vpop.f32.mrf.mxu0
    %v10050 = vadd.f32 %v10037, %v10049
    %v10051 = vpop.f32.mrf.mxu0
    %10052 = vdwg.mxu0
    %10053 = vmatpush.bf16.msra.mxu0 %v8247
    %10054 = vmatpush.bf16.msra.mxu0 %v8228
    %10055 = vmatpush.bf16.msra.mxu0 %v8209
    %10056 = vmatpush.bf16.msra.mxu0 %v8190
    %10057 = vmatpush.bf16.msra.mxu0 %v8171
    %10058 = vmatpush.bf16.msra.mxu0 %v8152
    %10059 = vmatpush.bf16.msra.mxu0 %v8133
    %10060 = vmatpush.bf16.msra.mxu0 %v8114
    %10061 = vmatmul.bf16.gmra.mxu0 %v3674
    %v10062 = vpop.f32.mrf.mxu0
    %v10063 = vadd.f32 %v10050, %v10062
    %v10064 = vpop.f32.mrf.mxu0
    %10065 = vdwg.mxu0
    %10066 = vmatpush.bf16.msra.mxu0 %v8399
    %10067 = vmatpush.bf16.msra.mxu0 %v8380
    %10068 = vmatpush.bf16.msra.mxu0 %v8361
    %10069 = vmatpush.bf16.msra.mxu0 %v8342
    %10070 = vmatpush.bf16.msra.mxu0 %v8323
    %10071 = vmatpush.bf16.msra.mxu0 %v8304
    %10072 = vmatpush.bf16.msra.mxu0 %v8285
    %10073 = vmatpush.bf16.msra.mxu0 %v8266
    %10074 = vmatmul.bf16.gmra.mxu0 %v3675
    %v10075 = vpop.f32.mrf.mxu0
    %v10076 = vadd.f32 %v10063, %v10075
    %v10077 = vpop.f32.mrf.mxu0
    %10078 = vdwg.mxu0
    %10079 = vmatpush.bf16.msra.mxu0 0
    %10080 = vmatpush.bf16.msra.mxu0 0
    %10081 = vmatpush.bf16.msra.mxu0 0
    %10082 = vmatpush.bf16.msra.mxu0 0
    %10083 = vmatpush.bf16.msra.mxu0 0
    %10084 = vmatpush.bf16.msra.mxu0 0
    %10085 = vmatpush.bf16.msra.mxu0 0
    %10086 = vmatpush.bf16.msra.mxu0 %v8418
    %10087 = vmatmul.bf16.gmra.mxu0 %v9362
    %v10088 = vpop.f32.mrf.mxu0
    %v10089 = vadd.f32 %v10076, %v10088
    %v10090 = vpop.f32.mrf.mxu0
    %10091 = vdwg.mxu0
    %10092 = vmatpush.bf16.msra.mxu0 %v7640
    %10093 = vmatpush.bf16.msra.mxu0 %v7621
    %10094 = vmatpush.bf16.msra.mxu0 %v7602
    %10095 = vmatpush.bf16.msra.mxu0 %v7583
    %10096 = vmatpush.bf16.msra.mxu0 %v7564
    %10097 = vmatpush.bf16.msra.mxu0 %v7545
    %10098 = vmatpush.bf16.msra.mxu0 %v7526
    %10099 = vmatpush.bf16.msra.mxu0 %v7507
    %10100 = vmatmul.bf16.gmra.mxu0 %v3670
    %v10101 = vpop.f32.mrf.mxu0
    %v10102 = vadd.f32 0.0, %v10101
    %v10103 = vpop.f32.mrf.mxu0
    %10104 = vdwg.mxu0
    %10105 = vmatpush.bf16.msra.mxu0 %v7792
    %10106 = vmatpush.bf16.msra.mxu0 %v7773
    %10107 = vmatpush.bf16.msra.mxu0 %v7754
    %10108 = vmatpush.bf16.msra.mxu0 %v7735
    %10109 = vmatpush.bf16.msra.mxu0 %v7716
    %10110 = vmatpush.bf16.msra.mxu0 %v7697
    %10111 = vmatpush.bf16.msra.mxu0 %v7678
    %10112 = vmatpush.bf16.msra.mxu0 %v7659
    %10113 = vmatmul.bf16.gmra.mxu0 %v3671
    %v10114 = vpop.f32.mrf.mxu0
    %v10115 = vadd.f32 %v10102, %v10114
    %v10116 = vpop.f32.mrf.mxu0
    %10117 = vdwg.mxu0
    %10118 = vmatpush.bf16.msra.mxu0 %v7944
    %10119 = vmatpush.bf16.msra.mxu0 %v7925
    %10120 = vmatpush.bf16.msra.mxu0 %v7906
    %10121 = vmatpush.bf16.msra.mxu0 %v7887
    %10122 = vmatpush.bf16.msra.mxu0 %v7868
    %10123 = vmatpush.bf16.msra.mxu0 %v7849
    %10124 = vmatpush.bf16.msra.mxu0 %v7830
    %10125 = vmatpush.bf16.msra.mxu0 %v7811
    %10126 = vmatmul.bf16.gmra.mxu0 %v3672
    %v10127 = vpop.f32.mrf.mxu0
    %v10128 = vadd.f32 %v10115, %v10127
    %v10129 = vpop.f32.mrf.mxu0
    %10130 = vdwg.mxu0
    %10131 = vmatpush.bf16.msra.mxu0 %v8096
    %10132 = vmatpush.bf16.msra.mxu0 %v8077
    %10133 = vmatpush.bf16.msra.mxu0 %v8058
    %10134 = vmatpush.bf16.msra.mxu0 %v8039
    %10135 = vmatpush.bf16.msra.mxu0 %v8020
    %10136 = vmatpush.bf16.msra.mxu0 %v8001
    %10137 = vmatpush.bf16.msra.mxu0 %v7982
    %10138 = vmatpush.bf16.msra.mxu0 %v7963
    %10139 = vmatmul.bf16.gmra.mxu0 %v3673
    %v10140 = vpop.f32.mrf.mxu0
    %v10141 = vadd.f32 %v10128, %v10140
    %v10142 = vpop.f32.mrf.mxu0
    %10143 = vdwg.mxu0
    %10144 = vmatpush.bf16.msra.mxu0 %v8248
    %10145 = vmatpush.bf16.msra.mxu0 %v8229
    %10146 = vmatpush.bf16.msra.mxu0 %v8210
    %10147 = vmatpush.bf16.msra.mxu0 %v8191
    %10148 = vmatpush.bf16.msra.mxu0 %v8172
    %10149 = vmatpush.bf16.msra.mxu0 %v8153
    %10150 = vmatpush.bf16.msra.mxu0 %v8134
    %10151 = vmatpush.bf16.msra.mxu0 %v8115
    %10152 = vmatmul.bf16.gmra.mxu0 %v3674
    %v10153 = vpop.f32.mrf.mxu0
    %v10154 = vadd.f32 %v10141, %v10153
    %v10155 = vpop.f32.mrf.mxu0
    %10156 = vdwg.mxu0
    %10157 = vmatpush.bf16.msra.mxu0 %v8400
    %10158 = vmatpush.bf16.msra.mxu0 %v8381
    %10159 = vmatpush.bf16.msra.mxu0 %v8362
    %10160 = vmatpush.bf16.msra.mxu0 %v8343
    %10161 = vmatpush.bf16.msra.mxu0 %v8324
    %10162 = vmatpush.bf16.msra.mxu0 %v8305
    %10163 = vmatpush.bf16.msra.mxu0 %v8286
    %10164 = vmatpush.bf16.msra.mxu0 %v8267
    %10165 = vmatmul.bf16.gmra.mxu0 %v3675
    %v10166 = vpop.f32.mrf.mxu0
    %v10167 = vadd.f32 %v10154, %v10166
    %v10168 = vpop.f32.mrf.mxu0
    %10169 = vdwg.mxu0
    %10170 = vmatpush.bf16.msra.mxu0 0
    %10171 = vmatpush.bf16.msra.mxu0 0
    %10172 = vmatpush.bf16.msra.mxu0 0
    %10173 = vmatpush.bf16.msra.mxu0 0
    %10174 = vmatpush.bf16.msra.mxu0 0
    %10175 = vmatpush.bf16.msra.mxu0 0
    %10176 = vmatpush.bf16.msra.mxu0 0
    %10177 = vmatpush.bf16.msra.mxu0 %v8419
    %10178 = vmatmul.bf16.gmra.mxu0 %v9362
    %v10179 = vpop.f32.mrf.mxu0
    %v10180 = vadd.f32 %v10167, %v10179
    %v10181 = vpop.f32.mrf.mxu0
    %10182 = vdwg.mxu0
    %10183 = vmatpush.bf16.msra.mxu0 %v7641
    %10184 = vmatpush.bf16.msra.mxu0 %v7622
    %10185 = vmatpush.bf16.msra.mxu0 %v7603
    %10186 = vmatpush.bf16.msra.mxu0 %v7584
    %10187 = vmatpush.bf16.msra.mxu0 %v7565
    %10188 = vmatpush.bf16.msra.mxu0 %v7546
    %10189 = vmatpush.bf16.msra.mxu0 %v7527
    %10190 = vmatpush.bf16.msra.mxu0 %v7508
    %10191 = vmatmul.bf16.gmra.mxu0 %v3670
    %v10192 = vpop.f32.mrf.mxu0
    %v10193 = vadd.f32 0.0, %v10192
    %v10194 = vpop.f32.mrf.mxu0
    %10195 = vdwg.mxu0
    %10196 = vmatpush.bf16.msra.mxu0 %v7793
    %10197 = vmatpush.bf16.msra.mxu0 %v7774
    %10198 = vmatpush.bf16.msra.mxu0 %v7755
    %10199 = vmatpush.bf16.msra.mxu0 %v7736
    %10200 = vmatpush.bf16.msra.mxu0 %v7717
    %10201 = vmatpush.bf16.msra.mxu0 %v7698
    %10202 = vmatpush.bf16.msra.mxu0 %v7679
    %10203 = vmatpush.bf16.msra.mxu0 %v7660
    %10204 = vmatmul.bf16.gmra.mxu0 %v3671
    %v10205 = vpop.f32.mrf.mxu0
    %v10206 = vadd.f32 %v10193, %v10205
    %v10207 = vpop.f32.mrf.mxu0
    %10208 = vdwg.mxu0
    %10209 = vmatpush.bf16.msra.mxu0 %v7945
    %10210 = vmatpush.bf16.msra.mxu0 %v7926
    %10211 = vmatpush.bf16.msra.mxu0 %v7907
    %10212 = vmatpush.bf16.msra.mxu0 %v7888
    %10213 = vmatpush.bf16.msra.mxu0 %v7869
    %10214 = vmatpush.bf16.msra.mxu0 %v7850
    %10215 = vmatpush.bf16.msra.mxu0 %v7831
    %10216 = vmatpush.bf16.msra.mxu0 %v7812
    %10217 = vmatmul.bf16.gmra.mxu0 %v3672
    %v10218 = vpop.f32.mrf.mxu0
    %v10219 = vadd.f32 %v10206, %v10218
    %v10220 = vpop.f32.mrf.mxu0
    %10221 = vdwg.mxu0
    %10222 = vmatpush.bf16.msra.mxu0 %v8097
    %10223 = vmatpush.bf16.msra.mxu0 %v8078
    %10224 = vmatpush.bf16.msra.mxu0 %v8059
    %10225 = vmatpush.bf16.msra.mxu0 %v8040
    %10226 = vmatpush.bf16.msra.mxu0 %v8021
    %10227 = vmatpush.bf16.msra.mxu0 %v8002
    %10228 = vmatpush.bf16.msra.mxu0 %v7983
    %10229 = vmatpush.bf16.msra.mxu0 %v7964
    %10230 = vmatmul.bf16.gmra.mxu0 %v3673
    %v10231 = vpop.f32.mrf.mxu0
    %v10232 = vadd.f32 %v10219, %v10231
    %v10233 = vpop.f32.mrf.mxu0
    %10234 = vdwg.mxu0
    %10235 = vmatpush.bf16.msra.mxu0 %v8249
    %10236 = vmatpush.bf16.msra.mxu0 %v8230
    %10237 = vmatpush.bf16.msra.mxu0 %v8211
    %10238 = vmatpush.bf16.msra.mxu0 %v8192
    %10239 = vmatpush.bf16.msra.mxu0 %v8173
    %10240 = vmatpush.bf16.msra.mxu0 %v8154
    %10241 = vmatpush.bf16.msra.mxu0 %v8135
    %10242 = vmatpush.bf16.msra.mxu0 %v8116
    %10243 = vmatmul.bf16.gmra.mxu0 %v3674
    %v10244 = vpop.f32.mrf.mxu0
    %v10245 = vadd.f32 %v10232, %v10244
    %v10246 = vpop.f32.mrf.mxu0
    %10247 = vdwg.mxu0
    %10248 = vmatpush.bf16.msra.mxu0 %v8401
    %10249 = vmatpush.bf16.msra.mxu0 %v8382
    %10250 = vmatpush.bf16.msra.mxu0 %v8363
    %10251 = vmatpush.bf16.msra.mxu0 %v8344
    %10252 = vmatpush.bf16.msra.mxu0 %v8325
    %10253 = vmatpush.bf16.msra.mxu0 %v8306
    %10254 = vmatpush.bf16.msra.mxu0 %v8287
    %10255 = vmatpush.bf16.msra.mxu0 %v8268
    %10256 = vmatmul.bf16.gmra.mxu0 %v3675
    %v10257 = vpop.f32.mrf.mxu0
    %v10258 = vadd.f32 %v10245, %v10257
    %v10259 = vpop.f32.mrf.mxu0
    %10260 = vdwg.mxu0
    %10261 = vmatpush.bf16.msra.mxu0 0
    %10262 = vmatpush.bf16.msra.mxu0 0
    %10263 = vmatpush.bf16.msra.mxu0 0
    %10264 = vmatpush.bf16.msra.mxu0 0
    %10265 = vmatpush.bf16.msra.mxu0 0
    %10266 = vmatpush.bf16.msra.mxu0 0
    %10267 = vmatpush.bf16.msra.mxu0 0
    %10268 = vmatpush.bf16.msra.mxu0 %v8420
    %10269 = vmatmul.bf16.gmra.mxu0 %v9362
    %v10270 = vpop.f32.mrf.mxu0
    %v10271 = vadd.f32 %v10258, %v10270
    %v10272 = vpop.f32.mrf.mxu0
    %10273 = vdwg.mxu0
    %10274 = vmatpush.bf16.msra.mxu0 %v7642
    %10275 = vmatpush.bf16.msra.mxu0 %v7623
    %10276 = vmatpush.bf16.msra.mxu0 %v7604
    %10277 = vmatpush.bf16.msra.mxu0 %v7585
    %10278 = vmatpush.bf16.msra.mxu0 %v7566
    %10279 = vmatpush.bf16.msra.mxu0 %v7547
    %10280 = vmatpush.bf16.msra.mxu0 %v7528
    %10281 = vmatpush.bf16.msra.mxu0 %v7509
    %10282 = vmatmul.bf16.gmra.mxu0 %v3670
    %v10283 = vpop.f32.mrf.mxu0
    %v10284 = vadd.f32 0.0, %v10283
    %v10285 = vpop.f32.mrf.mxu0
    %10286 = vdwg.mxu0
    %10287 = vmatpush.bf16.msra.mxu0 %v7794
    %10288 = vmatpush.bf16.msra.mxu0 %v7775
    %10289 = vmatpush.bf16.msra.mxu0 %v7756
    %10290 = vmatpush.bf16.msra.mxu0 %v7737
    %10291 = vmatpush.bf16.msra.mxu0 %v7718
    %10292 = vmatpush.bf16.msra.mxu0 %v7699
    %10293 = vmatpush.bf16.msra.mxu0 %v7680
    %10294 = vmatpush.bf16.msra.mxu0 %v7661
    %10295 = vmatmul.bf16.gmra.mxu0 %v3671
    %v10296 = vpop.f32.mrf.mxu0
    %v10297 = vadd.f32 %v10284, %v10296
    %v10298 = vpop.f32.mrf.mxu0
    %10299 = vdwg.mxu0
    %10300 = vmatpush.bf16.msra.mxu0 %v7946
    %10301 = vmatpush.bf16.msra.mxu0 %v7927
    %10302 = vmatpush.bf16.msra.mxu0 %v7908
    %10303 = vmatpush.bf16.msra.mxu0 %v7889
    %10304 = vmatpush.bf16.msra.mxu0 %v7870
    %10305 = vmatpush.bf16.msra.mxu0 %v7851
    %10306 = vmatpush.bf16.msra.mxu0 %v7832
    %10307 = vmatpush.bf16.msra.mxu0 %v7813
    %10308 = vmatmul.bf16.gmra.mxu0 %v3672
    %v10309 = vpop.f32.mrf.mxu0
    %v10310 = vadd.f32 %v10297, %v10309
    %v10311 = vpop.f32.mrf.mxu0
    %10312 = vdwg.mxu0
    %10313 = vmatpush.bf16.msra.mxu0 %v8098
    %10314 = vmatpush.bf16.msra.mxu0 %v8079
    %10315 = vmatpush.bf16.msra.mxu0 %v8060
    %10316 = vmatpush.bf16.msra.mxu0 %v8041
    %10317 = vmatpush.bf16.msra.mxu0 %v8022
    %10318 = vmatpush.bf16.msra.mxu0 %v8003
    %10319 = vmatpush.bf16.msra.mxu0 %v7984
    %10320 = vmatpush.bf16.msra.mxu0 %v7965
    %10321 = vmatmul.bf16.gmra.mxu0 %v3673
    %v10322 = vpop.f32.mrf.mxu0
    %v10323 = vadd.f32 %v10310, %v10322
    %v10324 = vpop.f32.mrf.mxu0
    %10325 = vdwg.mxu0
    %10326 = vmatpush.bf16.msra.mxu0 %v8250
    %10327 = vmatpush.bf16.msra.mxu0 %v8231
    %10328 = vmatpush.bf16.msra.mxu0 %v8212
    %10329 = vmatpush.bf16.msra.mxu0 %v8193
    %10330 = vmatpush.bf16.msra.mxu0 %v8174
    %10331 = vmatpush.bf16.msra.mxu0 %v8155
    %10332 = vmatpush.bf16.msra.mxu0 %v8136
    %10333 = vmatpush.bf16.msra.mxu0 %v8117
    %10334 = vmatmul.bf16.gmra.mxu0 %v3674
    %v10335 = vpop.f32.mrf.mxu0
    %v10336 = vadd.f32 %v10323, %v10335
    %v10337 = vpop.f32.mrf.mxu0
    %10338 = vdwg.mxu0
    %10339 = vmatpush.bf16.msra.mxu0 %v8402
    %10340 = vmatpush.bf16.msra.mxu0 %v8383
    %10341 = vmatpush.bf16.msra.mxu0 %v8364
    %10342 = vmatpush.bf16.msra.mxu0 %v8345
    %10343 = vmatpush.bf16.msra.mxu0 %v8326
    %10344 = vmatpush.bf16.msra.mxu0 %v8307
    %10345 = vmatpush.bf16.msra.mxu0 %v8288
    %10346 = vmatpush.bf16.msra.mxu0 %v8269
    %10347 = vmatmul.bf16.gmra.mxu0 %v3675
    %v10348 = vpop.f32.mrf.mxu0
    %v10349 = vadd.f32 %v10336, %v10348
    %v10350 = vpop.f32.mrf.mxu0
    %10351 = vdwg.mxu0
    %10352 = vmatpush.bf16.msra.mxu0 0
    %10353 = vmatpush.bf16.msra.mxu0 0
    %10354 = vmatpush.bf16.msra.mxu0 0
    %10355 = vmatpush.bf16.msra.mxu0 0
    %10356 = vmatpush.bf16.msra.mxu0 0
    %10357 = vmatpush.bf16.msra.mxu0 0
    %10358 = vmatpush.bf16.msra.mxu0 0
    %10359 = vmatpush.bf16.msra.mxu0 %v8421
    %10360 = vmatmul.bf16.gmra.mxu0 %v9362
    %v10361 = vpop.f32.mrf.mxu0
    %v10362 = vadd.f32 %v10349, %v10361
    %v10363 = vpop.f32.mrf.mxu0
    %10364 = vdwg.mxu0
    %10365 = vmatpush.bf16.msra.mxu0 %v7643
    %10366 = vmatpush.bf16.msra.mxu0 %v7624
    %10367 = vmatpush.bf16.msra.mxu0 %v7605
    %10368 = vmatpush.bf16.msra.mxu0 %v7586
    %10369 = vmatpush.bf16.msra.mxu0 %v7567
    %10370 = vmatpush.bf16.msra.mxu0 %v7548
    %10371 = vmatpush.bf16.msra.mxu0 %v7529
    %10372 = vmatpush.bf16.msra.mxu0 %v7510
    %10373 = vmatmul.bf16.gmra.mxu0 %v3670
    %v10374 = vpop.f32.mrf.mxu0
    %v10375 = vadd.f32 0.0, %v10374
    %v10376 = vpop.f32.mrf.mxu0
    %10377 = vdwg.mxu0
    %10378 = vmatpush.bf16.msra.mxu0 %v7795
    %10379 = vmatpush.bf16.msra.mxu0 %v7776
    %10380 = vmatpush.bf16.msra.mxu0 %v7757
    %10381 = vmatpush.bf16.msra.mxu0 %v7738
    %10382 = vmatpush.bf16.msra.mxu0 %v7719
    %10383 = vmatpush.bf16.msra.mxu0 %v7700
    %10384 = vmatpush.bf16.msra.mxu0 %v7681
    %10385 = vmatpush.bf16.msra.mxu0 %v7662
    %10386 = vmatmul.bf16.gmra.mxu0 %v3671
    %v10387 = vpop.f32.mrf.mxu0
    %v10388 = vadd.f32 %v10375, %v10387
    %v10389 = vpop.f32.mrf.mxu0
    %10390 = vdwg.mxu0
    %10391 = vmatpush.bf16.msra.mxu0 %v7947
    %10392 = vmatpush.bf16.msra.mxu0 %v7928
    %10393 = vmatpush.bf16.msra.mxu0 %v7909
    %10394 = vmatpush.bf16.msra.mxu0 %v7890
    %10395 = vmatpush.bf16.msra.mxu0 %v7871
    %10396 = vmatpush.bf16.msra.mxu0 %v7852
    %10397 = vmatpush.bf16.msra.mxu0 %v7833
    %10398 = vmatpush.bf16.msra.mxu0 %v7814
    %10399 = vmatmul.bf16.gmra.mxu0 %v3672
    %v10400 = vpop.f32.mrf.mxu0
    %v10401 = vadd.f32 %v10388, %v10400
    %v10402 = vpop.f32.mrf.mxu0
    %10403 = vdwg.mxu0
    %10404 = vmatpush.bf16.msra.mxu0 %v8099
    %10405 = vmatpush.bf16.msra.mxu0 %v8080
    %10406 = vmatpush.bf16.msra.mxu0 %v8061
    %10407 = vmatpush.bf16.msra.mxu0 %v8042
    %10408 = vmatpush.bf16.msra.mxu0 %v8023
    %10409 = vmatpush.bf16.msra.mxu0 %v8004
    %10410 = vmatpush.bf16.msra.mxu0 %v7985
    %10411 = vmatpush.bf16.msra.mxu0 %v7966
    %10412 = vmatmul.bf16.gmra.mxu0 %v3673
    %v10413 = vpop.f32.mrf.mxu0
    %v10414 = vadd.f32 %v10401, %v10413
    %v10415 = vpop.f32.mrf.mxu0
    %10416 = vdwg.mxu0
    %10417 = vmatpush.bf16.msra.mxu0 %v8251
    %10418 = vmatpush.bf16.msra.mxu0 %v8232
    %10419 = vmatpush.bf16.msra.mxu0 %v8213
    %10420 = vmatpush.bf16.msra.mxu0 %v8194
    %10421 = vmatpush.bf16.msra.mxu0 %v8175
    %10422 = vmatpush.bf16.msra.mxu0 %v8156
    %10423 = vmatpush.bf16.msra.mxu0 %v8137
    %10424 = vmatpush.bf16.msra.mxu0 %v8118
    %10425 = vmatmul.bf16.gmra.mxu0 %v3674
    %v10426 = vpop.f32.mrf.mxu0
    %v10427 = vadd.f32 %v10414, %v10426
    %v10428 = vpop.f32.mrf.mxu0
    %10429 = vdwg.mxu0
    %10430 = vmatpush.bf16.msra.mxu0 %v8403
    %10431 = vmatpush.bf16.msra.mxu0 %v8384
    %10432 = vmatpush.bf16.msra.mxu0 %v8365
    %10433 = vmatpush.bf16.msra.mxu0 %v8346
    %10434 = vmatpush.bf16.msra.mxu0 %v8327
    %10435 = vmatpush.bf16.msra.mxu0 %v8308
    %10436 = vmatpush.bf16.msra.mxu0 %v8289
    %10437 = vmatpush.bf16.msra.mxu0 %v8270
    %10438 = vmatmul.bf16.gmra.mxu0 %v3675
    %v10439 = vpop.f32.mrf.mxu0
    %v10440 = vadd.f32 %v10427, %v10439
    %v10441 = vpop.f32.mrf.mxu0
    %10442 = vdwg.mxu0
    %10443 = vmatpush.bf16.msra.mxu0 0
    %10444 = vmatpush.bf16.msra.mxu0 0
    %10445 = vmatpush.bf16.msra.mxu0 0
    %10446 = vmatpush.bf16.msra.mxu0 0
    %10447 = vmatpush.bf16.msra.mxu0 0
    %10448 = vmatpush.bf16.msra.mxu0 0
    %10449 = vmatpush.bf16.msra.mxu0 0
    %10450 = vmatpush.bf16.msra.mxu0 %v8422
    %10451 = vmatmul.bf16.gmra.mxu0 %v9362
    %v10452 = vpop.f32.mrf.mxu0
    %v10453 = vadd.f32 %v10440, %v10452
    %v10454 = vpop.f32.mrf.mxu0
    %10455 = vdwg.mxu0
    %10456 = vmatpush.bf16.msra.mxu0 %v7644
    %10457 = vmatpush.bf16.msra.mxu0 %v7625
    %10458 = vmatpush.bf16.msra.mxu0 %v7606
    %10459 = vmatpush.bf16.msra.mxu0 %v7587
    %10460 = vmatpush.bf16.msra.mxu0 %v7568
    %10461 = vmatpush.bf16.msra.mxu0 %v7549
    %10462 = vmatpush.bf16.msra.mxu0 %v7530
    %10463 = vmatpush.bf16.msra.mxu0 %v7511
    %10464 = vmatmul.bf16.gmra.mxu0 %v3670
    %v10465 = vpop.f32.mrf.mxu0
    %v10466 = vadd.f32 0.0, %v10465
    %v10467 = vpop.f32.mrf.mxu0
    %10468 = vdwg.mxu0
    %10469 = vmatpush.bf16.msra.mxu0 %v7796
    %10470 = vmatpush.bf16.msra.mxu0 %v7777
    %10471 = vmatpush.bf16.msra.mxu0 %v7758
    %10472 = vmatpush.bf16.msra.mxu0 %v7739
    %10473 = vmatpush.bf16.msra.mxu0 %v7720
    %10474 = vmatpush.bf16.msra.mxu0 %v7701
    %10475 = vmatpush.bf16.msra.mxu0 %v7682
    %10476 = vmatpush.bf16.msra.mxu0 %v7663
    %10477 = vmatmul.bf16.gmra.mxu0 %v3671
    %v10478 = vpop.f32.mrf.mxu0
    %v10479 = vadd.f32 %v10466, %v10478
    %v10480 = vpop.f32.mrf.mxu0
    %10481 = vdwg.mxu0
    %10482 = vmatpush.bf16.msra.mxu0 %v7948
    %10483 = vmatpush.bf16.msra.mxu0 %v7929
    %10484 = vmatpush.bf16.msra.mxu0 %v7910
    %10485 = vmatpush.bf16.msra.mxu0 %v7891
    %10486 = vmatpush.bf16.msra.mxu0 %v7872
    %10487 = vmatpush.bf16.msra.mxu0 %v7853
    %10488 = vmatpush.bf16.msra.mxu0 %v7834
    %10489 = vmatpush.bf16.msra.mxu0 %v7815
    %10490 = vmatmul.bf16.gmra.mxu0 %v3672
    %v10491 = vpop.f32.mrf.mxu0
    %v10492 = vadd.f32 %v10479, %v10491
    %v10493 = vpop.f32.mrf.mxu0
    %10494 = vdwg.mxu0
    %10495 = vmatpush.bf16.msra.mxu0 %v8100
    %10496 = vmatpush.bf16.msra.mxu0 %v8081
    %10497 = vmatpush.bf16.msra.mxu0 %v8062
    %10498 = vmatpush.bf16.msra.mxu0 %v8043
    %10499 = vmatpush.bf16.msra.mxu0 %v8024
    %10500 = vmatpush.bf16.msra.mxu0 %v8005
    %10501 = vmatpush.bf16.msra.mxu0 %v7986
    %10502 = vmatpush.bf16.msra.mxu0 %v7967
    %10503 = vmatmul.bf16.gmra.mxu0 %v3673
    %v10504 = vpop.f32.mrf.mxu0
    %v10505 = vadd.f32 %v10492, %v10504
    %v10506 = vpop.f32.mrf.mxu0
    %10507 = vdwg.mxu0
    %10508 = vmatpush.bf16.msra.mxu0 %v8252
    %10509 = vmatpush.bf16.msra.mxu0 %v8233
    %10510 = vmatpush.bf16.msra.mxu0 %v8214
    %10511 = vmatpush.bf16.msra.mxu0 %v8195
    %10512 = vmatpush.bf16.msra.mxu0 %v8176
    %10513 = vmatpush.bf16.msra.mxu0 %v8157
    %10514 = vmatpush.bf16.msra.mxu0 %v8138
    %10515 = vmatpush.bf16.msra.mxu0 %v8119
    %10516 = vmatmul.bf16.gmra.mxu0 %v3674
    %v10517 = vpop.f32.mrf.mxu0
    %v10518 = vadd.f32 %v10505, %v10517
    %v10519 = vpop.f32.mrf.mxu0
    %10520 = vdwg.mxu0
    %10521 = vmatpush.bf16.msra.mxu0 %v8404
    %10522 = vmatpush.bf16.msra.mxu0 %v8385
    %10523 = vmatpush.bf16.msra.mxu0 %v8366
    %10524 = vmatpush.bf16.msra.mxu0 %v8347
    %10525 = vmatpush.bf16.msra.mxu0 %v8328
    %10526 = vmatpush.bf16.msra.mxu0 %v8309
    %10527 = vmatpush.bf16.msra.mxu0 %v8290
    %10528 = vmatpush.bf16.msra.mxu0 %v8271
    %10529 = vmatmul.bf16.gmra.mxu0 %v3675
    %v10530 = vpop.f32.mrf.mxu0
    %v10531 = vadd.f32 %v10518, %v10530
    %v10532 = vpop.f32.mrf.mxu0
    %10533 = vdwg.mxu0
    %10534 = vmatpush.bf16.msra.mxu0 0
    %10535 = vmatpush.bf16.msra.mxu0 0
    %10536 = vmatpush.bf16.msra.mxu0 0
    %10537 = vmatpush.bf16.msra.mxu0 0
    %10538 = vmatpush.bf16.msra.mxu0 0
    %10539 = vmatpush.bf16.msra.mxu0 0
    %10540 = vmatpush.bf16.msra.mxu0 0
    %10541 = vmatpush.bf16.msra.mxu0 %v8423
    %10542 = vmatmul.bf16.gmra.mxu0 %v9362
    %v10543 = vpop.f32.mrf.mxu0
    %v10544 = vadd.f32 %v10531, %v10543
    %v10545 = vpop.f32.mrf.mxu0
    %10546 = vdwg.mxu0
    %10547 = vmatpush.bf16.msra.mxu0 %v7645
    %10548 = vmatpush.bf16.msra.mxu0 %v7626
    %10549 = vmatpush.bf16.msra.mxu0 %v7607
    %10550 = vmatpush.bf16.msra.mxu0 %v7588
    %10551 = vmatpush.bf16.msra.mxu0 %v7569
    %10552 = vmatpush.bf16.msra.mxu0 %v7550
    %10553 = vmatpush.bf16.msra.mxu0 %v7531
    %10554 = vmatpush.bf16.msra.mxu0 %v7512
    %10555 = vmatmul.bf16.gmra.mxu0 %v3670
    %v10556 = vpop.f32.mrf.mxu0
    %v10557 = vadd.f32 0.0, %v10556
    %v10558 = vpop.f32.mrf.mxu0
    %10559 = vdwg.mxu0
    %10560 = vmatpush.bf16.msra.mxu0 %v7797
    %10561 = vmatpush.bf16.msra.mxu0 %v7778
    %10562 = vmatpush.bf16.msra.mxu0 %v7759
    %10563 = vmatpush.bf16.msra.mxu0 %v7740
    %10564 = vmatpush.bf16.msra.mxu0 %v7721
    %10565 = vmatpush.bf16.msra.mxu0 %v7702
    %10566 = vmatpush.bf16.msra.mxu0 %v7683
    %10567 = vmatpush.bf16.msra.mxu0 %v7664
    %10568 = vmatmul.bf16.gmra.mxu0 %v3671
    %v10569 = vpop.f32.mrf.mxu0
    %v10570 = vadd.f32 %v10557, %v10569
    %v10571 = vpop.f32.mrf.mxu0
    %10572 = vdwg.mxu0
    %10573 = vmatpush.bf16.msra.mxu0 %v7949
    %10574 = vmatpush.bf16.msra.mxu0 %v7930
    %10575 = vmatpush.bf16.msra.mxu0 %v7911
    %10576 = vmatpush.bf16.msra.mxu0 %v7892
    %10577 = vmatpush.bf16.msra.mxu0 %v7873
    %10578 = vmatpush.bf16.msra.mxu0 %v7854
    %10579 = vmatpush.bf16.msra.mxu0 %v7835
    %10580 = vmatpush.bf16.msra.mxu0 %v7816
    %10581 = vmatmul.bf16.gmra.mxu0 %v3672
    %v10582 = vpop.f32.mrf.mxu0
    %v10583 = vadd.f32 %v10570, %v10582
    %v10584 = vpop.f32.mrf.mxu0
    %10585 = vdwg.mxu0
    %10586 = vmatpush.bf16.msra.mxu0 %v8101
    %10587 = vmatpush.bf16.msra.mxu0 %v8082
    %10588 = vmatpush.bf16.msra.mxu0 %v8063
    %10589 = vmatpush.bf16.msra.mxu0 %v8044
    %10590 = vmatpush.bf16.msra.mxu0 %v8025
    %10591 = vmatpush.bf16.msra.mxu0 %v8006
    %10592 = vmatpush.bf16.msra.mxu0 %v7987
    %10593 = vmatpush.bf16.msra.mxu0 %v7968
    %10594 = vmatmul.bf16.gmra.mxu0 %v3673
    %v10595 = vpop.f32.mrf.mxu0
    %v10596 = vadd.f32 %v10583, %v10595
    %v10597 = vpop.f32.mrf.mxu0
    %10598 = vdwg.mxu0
    %10599 = vmatpush.bf16.msra.mxu0 %v8253
    %10600 = vmatpush.bf16.msra.mxu0 %v8234
    %10601 = vmatpush.bf16.msra.mxu0 %v8215
    %10602 = vmatpush.bf16.msra.mxu0 %v8196
    %10603 = vmatpush.bf16.msra.mxu0 %v8177
    %10604 = vmatpush.bf16.msra.mxu0 %v8158
    %10605 = vmatpush.bf16.msra.mxu0 %v8139
    %10606 = vmatpush.bf16.msra.mxu0 %v8120
    %10607 = vmatmul.bf16.gmra.mxu0 %v3674
    %v10608 = vpop.f32.mrf.mxu0
    %v10609 = vadd.f32 %v10596, %v10608
    %v10610 = vpop.f32.mrf.mxu0
    %10611 = vdwg.mxu0
    %10612 = vmatpush.bf16.msra.mxu0 %v8405
    %10613 = vmatpush.bf16.msra.mxu0 %v8386
    %10614 = vmatpush.bf16.msra.mxu0 %v8367
    %10615 = vmatpush.bf16.msra.mxu0 %v8348
    %10616 = vmatpush.bf16.msra.mxu0 %v8329
    %10617 = vmatpush.bf16.msra.mxu0 %v8310
    %10618 = vmatpush.bf16.msra.mxu0 %v8291
    %10619 = vmatpush.bf16.msra.mxu0 %v8272
    %10620 = vmatmul.bf16.gmra.mxu0 %v3675
    %v10621 = vpop.f32.mrf.mxu0
    %v10622 = vadd.f32 %v10609, %v10621
    %v10623 = vpop.f32.mrf.mxu0
    %10624 = vdwg.mxu0
    %10625 = vmatpush.bf16.msra.mxu0 0
    %10626 = vmatpush.bf16.msra.mxu0 0
    %10627 = vmatpush.bf16.msra.mxu0 0
    %10628 = vmatpush.bf16.msra.mxu0 0
    %10629 = vmatpush.bf16.msra.mxu0 0
    %10630 = vmatpush.bf16.msra.mxu0 0
    %10631 = vmatpush.bf16.msra.mxu0 0
    %10632 = vmatpush.bf16.msra.mxu0 %v8424
    %10633 = vmatmul.bf16.gmra.mxu0 %v9362
    %v10634 = vpop.f32.mrf.mxu0
    %v10635 = vadd.f32 %v10622, %v10634
    %v10636 = vpop.f32.mrf.mxu0
    %10637 = vdwg.mxu0
    %10638 = vmatpush.bf16.msra.mxu0 %v7646
    %10639 = vmatpush.bf16.msra.mxu0 %v7627
    %10640 = vmatpush.bf16.msra.mxu0 %v7608
    %10641 = vmatpush.bf16.msra.mxu0 %v7589
    %10642 = vmatpush.bf16.msra.mxu0 %v7570
    %10643 = vmatpush.bf16.msra.mxu0 %v7551
    %10644 = vmatpush.bf16.msra.mxu0 %v7532
    %10645 = vmatpush.bf16.msra.mxu0 %v7513
    %10646 = vmatmul.bf16.gmra.mxu0 %v3670
    %v10647 = vpop.f32.mrf.mxu0
    %v10648 = vadd.f32 0.0, %v10647
    %v10649 = vpop.f32.mrf.mxu0
    %10650 = vdwg.mxu0
    %10651 = vmatpush.bf16.msra.mxu0 %v7798
    %10652 = vmatpush.bf16.msra.mxu0 %v7779
    %10653 = vmatpush.bf16.msra.mxu0 %v7760
    %10654 = vmatpush.bf16.msra.mxu0 %v7741
    %10655 = vmatpush.bf16.msra.mxu0 %v7722
    %10656 = vmatpush.bf16.msra.mxu0 %v7703
    %10657 = vmatpush.bf16.msra.mxu0 %v7684
    %10658 = vmatpush.bf16.msra.mxu0 %v7665
    %10659 = vmatmul.bf16.gmra.mxu0 %v3671
    %v10660 = vpop.f32.mrf.mxu0
    %v10661 = vadd.f32 %v10648, %v10660
    %v10662 = vpop.f32.mrf.mxu0
    %10663 = vdwg.mxu0
    %10664 = vmatpush.bf16.msra.mxu0 %v7950
    %10665 = vmatpush.bf16.msra.mxu0 %v7931
    %10666 = vmatpush.bf16.msra.mxu0 %v7912
    %10667 = vmatpush.bf16.msra.mxu0 %v7893
    %10668 = vmatpush.bf16.msra.mxu0 %v7874
    %10669 = vmatpush.bf16.msra.mxu0 %v7855
    %10670 = vmatpush.bf16.msra.mxu0 %v7836
    %10671 = vmatpush.bf16.msra.mxu0 %v7817
    %10672 = vmatmul.bf16.gmra.mxu0 %v3672
    %v10673 = vpop.f32.mrf.mxu0
    %v10674 = vadd.f32 %v10661, %v10673
    %v10675 = vpop.f32.mrf.mxu0
    %10676 = vdwg.mxu0
    %10677 = vmatpush.bf16.msra.mxu0 %v8102
    %10678 = vmatpush.bf16.msra.mxu0 %v8083
    %10679 = vmatpush.bf16.msra.mxu0 %v8064
    %10680 = vmatpush.bf16.msra.mxu0 %v8045
    %10681 = vmatpush.bf16.msra.mxu0 %v8026
    %10682 = vmatpush.bf16.msra.mxu0 %v8007
    %10683 = vmatpush.bf16.msra.mxu0 %v7988
    %10684 = vmatpush.bf16.msra.mxu0 %v7969
    %10685 = vmatmul.bf16.gmra.mxu0 %v3673
    %v10686 = vpop.f32.mrf.mxu0
    %v10687 = vadd.f32 %v10674, %v10686
    %v10688 = vpop.f32.mrf.mxu0
    %10689 = vdwg.mxu0
    %10690 = vmatpush.bf16.msra.mxu0 %v8254
    %10691 = vmatpush.bf16.msra.mxu0 %v8235
    %10692 = vmatpush.bf16.msra.mxu0 %v8216
    %10693 = vmatpush.bf16.msra.mxu0 %v8197
    %10694 = vmatpush.bf16.msra.mxu0 %v8178
    %10695 = vmatpush.bf16.msra.mxu0 %v8159
    %10696 = vmatpush.bf16.msra.mxu0 %v8140
    %10697 = vmatpush.bf16.msra.mxu0 %v8121
    %10698 = vmatmul.bf16.gmra.mxu0 %v3674
    %v10699 = vpop.f32.mrf.mxu0
    %v10700 = vadd.f32 %v10687, %v10699
    %v10701 = vpop.f32.mrf.mxu0
    %10702 = vdwg.mxu0
    %10703 = vmatpush.bf16.msra.mxu0 %v8406
    %10704 = vmatpush.bf16.msra.mxu0 %v8387
    %10705 = vmatpush.bf16.msra.mxu0 %v8368
    %10706 = vmatpush.bf16.msra.mxu0 %v8349
    %10707 = vmatpush.bf16.msra.mxu0 %v8330
    %10708 = vmatpush.bf16.msra.mxu0 %v8311
    %10709 = vmatpush.bf16.msra.mxu0 %v8292
    %10710 = vmatpush.bf16.msra.mxu0 %v8273
    %10711 = vmatmul.bf16.gmra.mxu0 %v3675
    %v10712 = vpop.f32.mrf.mxu0
    %v10713 = vadd.f32 %v10700, %v10712
    %v10714 = vpop.f32.mrf.mxu0
    %10715 = vdwg.mxu0
    %10716 = vmatpush.bf16.msra.mxu0 0
    %10717 = vmatpush.bf16.msra.mxu0 0
    %10718 = vmatpush.bf16.msra.mxu0 0
    %10719 = vmatpush.bf16.msra.mxu0 0
    %10720 = vmatpush.bf16.msra.mxu0 0
    %10721 = vmatpush.bf16.msra.mxu0 0
    %10722 = vmatpush.bf16.msra.mxu0 0
    %10723 = vmatpush.bf16.msra.mxu0 %v8425
    %10724 = vmatmul.bf16.gmra.mxu0 %v9362
    %v10725 = vpop.f32.mrf.mxu0
    %v10726 = vadd.f32 %v10713, %v10725
    %v10727 = vpop.f32.mrf.mxu0
    %10728 = vdwg.mxu0
    %10729 = vmatpush.bf16.msra.mxu0 %v7647
    %10730 = vmatpush.bf16.msra.mxu0 %v7628
    %10731 = vmatpush.bf16.msra.mxu0 %v7609
    %10732 = vmatpush.bf16.msra.mxu0 %v7590
    %10733 = vmatpush.bf16.msra.mxu0 %v7571
    %10734 = vmatpush.bf16.msra.mxu0 %v7552
    %10735 = vmatpush.bf16.msra.mxu0 %v7533
    %10736 = vmatpush.bf16.msra.mxu0 %v7514
    %10737 = vmatmul.bf16.gmra.mxu0 %v3670
    %v10738 = vpop.f32.mrf.mxu0
    %v10739 = vadd.f32 0.0, %v10738
    %v10740 = vpop.f32.mrf.mxu0
    %10741 = vdwg.mxu0
    %10742 = vmatpush.bf16.msra.mxu0 %v7799
    %10743 = vmatpush.bf16.msra.mxu0 %v7780
    %10744 = vmatpush.bf16.msra.mxu0 %v7761
    %10745 = vmatpush.bf16.msra.mxu0 %v7742
    %10746 = vmatpush.bf16.msra.mxu0 %v7723
    %10747 = vmatpush.bf16.msra.mxu0 %v7704
    %10748 = vmatpush.bf16.msra.mxu0 %v7685
    %10749 = vmatpush.bf16.msra.mxu0 %v7666
    %10750 = vmatmul.bf16.gmra.mxu0 %v3671
    %v10751 = vpop.f32.mrf.mxu0
    %v10752 = vadd.f32 %v10739, %v10751
    %v10753 = vpop.f32.mrf.mxu0
    %10754 = vdwg.mxu0
    %10755 = vmatpush.bf16.msra.mxu0 %v7951
    %10756 = vmatpush.bf16.msra.mxu0 %v7932
    %10757 = vmatpush.bf16.msra.mxu0 %v7913
    %10758 = vmatpush.bf16.msra.mxu0 %v7894
    %10759 = vmatpush.bf16.msra.mxu0 %v7875
    %10760 = vmatpush.bf16.msra.mxu0 %v7856
    %10761 = vmatpush.bf16.msra.mxu0 %v7837
    %10762 = vmatpush.bf16.msra.mxu0 %v7818
    %10763 = vmatmul.bf16.gmra.mxu0 %v3672
    %v10764 = vpop.f32.mrf.mxu0
    %v10765 = vadd.f32 %v10752, %v10764
    %v10766 = vpop.f32.mrf.mxu0
    %10767 = vdwg.mxu0
    %10768 = vmatpush.bf16.msra.mxu0 %v8103
    %10769 = vmatpush.bf16.msra.mxu0 %v8084
    %10770 = vmatpush.bf16.msra.mxu0 %v8065
    %10771 = vmatpush.bf16.msra.mxu0 %v8046
    %10772 = vmatpush.bf16.msra.mxu0 %v8027
    %10773 = vmatpush.bf16.msra.mxu0 %v8008
    %10774 = vmatpush.bf16.msra.mxu0 %v7989
    %10775 = vmatpush.bf16.msra.mxu0 %v7970
    %10776 = vmatmul.bf16.gmra.mxu0 %v3673
    %v10777 = vpop.f32.mrf.mxu0
    %v10778 = vadd.f32 %v10765, %v10777
    %v10779 = vpop.f32.mrf.mxu0
    %10780 = vdwg.mxu0
    %10781 = vmatpush.bf16.msra.mxu0 %v8255
    %10782 = vmatpush.bf16.msra.mxu0 %v8236
    %10783 = vmatpush.bf16.msra.mxu0 %v8217
    %10784 = vmatpush.bf16.msra.mxu0 %v8198
    %10785 = vmatpush.bf16.msra.mxu0 %v8179
    %10786 = vmatpush.bf16.msra.mxu0 %v8160
    %10787 = vmatpush.bf16.msra.mxu0 %v8141
    %10788 = vmatpush.bf16.msra.mxu0 %v8122
    %10789 = vmatmul.bf16.gmra.mxu0 %v3674
    %v10790 = vpop.f32.mrf.mxu0
    %v10791 = vadd.f32 %v10778, %v10790
    %v10792 = vpop.f32.mrf.mxu0
    %10793 = vdwg.mxu0
    %10794 = vmatpush.bf16.msra.mxu0 %v8407
    %10795 = vmatpush.bf16.msra.mxu0 %v8388
    %10796 = vmatpush.bf16.msra.mxu0 %v8369
    %10797 = vmatpush.bf16.msra.mxu0 %v8350
    %10798 = vmatpush.bf16.msra.mxu0 %v8331
    %10799 = vmatpush.bf16.msra.mxu0 %v8312
    %10800 = vmatpush.bf16.msra.mxu0 %v8293
    %10801 = vmatpush.bf16.msra.mxu0 %v8274
    %10802 = vmatmul.bf16.gmra.mxu0 %v3675
    %v10803 = vpop.f32.mrf.mxu0
    %v10804 = vadd.f32 %v10791, %v10803
    %v10805 = vpop.f32.mrf.mxu0
    %10806 = vdwg.mxu0
    %10807 = vmatpush.bf16.msra.mxu0 0
    %10808 = vmatpush.bf16.msra.mxu0 0
    %10809 = vmatpush.bf16.msra.mxu0 0
    %10810 = vmatpush.bf16.msra.mxu0 0
    %10811 = vmatpush.bf16.msra.mxu0 0
    %10812 = vmatpush.bf16.msra.mxu0 0
    %10813 = vmatpush.bf16.msra.mxu0 0
    %10814 = vmatpush.bf16.msra.mxu0 %v8426
    %10815 = vmatmul.bf16.gmra.mxu0 %v9362
    %v10816 = vpop.f32.mrf.mxu0
    %v10817 = vadd.f32 %v10804, %v10816
    %v10818 = vpop.f32.mrf.mxu0
    %10819 = vdwg.mxu0
    %10820 = vmatpush.bf16.msra.mxu0 %v7648
    %10821 = vmatpush.bf16.msra.mxu0 %v7629
    %10822 = vmatpush.bf16.msra.mxu0 %v7610
    %10823 = vmatpush.bf16.msra.mxu0 %v7591
    %10824 = vmatpush.bf16.msra.mxu0 %v7572
    %10825 = vmatpush.bf16.msra.mxu0 %v7553
    %10826 = vmatpush.bf16.msra.mxu0 %v7534
    %10827 = vmatpush.bf16.msra.mxu0 %v7515
    %10828 = vmatmul.bf16.gmra.mxu0 %v3670
    %v10829 = vpop.f32.mrf.mxu0
    %v10830 = vadd.f32 0.0, %v10829
    %v10831 = vpop.f32.mrf.mxu0
    %10832 = vdwg.mxu0
    %10833 = vmatpush.bf16.msra.mxu0 %v7800
    %10834 = vmatpush.bf16.msra.mxu0 %v7781
    %10835 = vmatpush.bf16.msra.mxu0 %v7762
    %10836 = vmatpush.bf16.msra.mxu0 %v7743
    %10837 = vmatpush.bf16.msra.mxu0 %v7724
    %10838 = vmatpush.bf16.msra.mxu0 %v7705
    %10839 = vmatpush.bf16.msra.mxu0 %v7686
    %10840 = vmatpush.bf16.msra.mxu0 %v7667
    %10841 = vmatmul.bf16.gmra.mxu0 %v3671
    %v10842 = vpop.f32.mrf.mxu0
    %v10843 = vadd.f32 %v10830, %v10842
    %v10844 = vpop.f32.mrf.mxu0
    %10845 = vdwg.mxu0
    %10846 = vmatpush.bf16.msra.mxu0 %v7952
    %10847 = vmatpush.bf16.msra.mxu0 %v7933
    %10848 = vmatpush.bf16.msra.mxu0 %v7914
    %10849 = vmatpush.bf16.msra.mxu0 %v7895
    %10850 = vmatpush.bf16.msra.mxu0 %v7876
    %10851 = vmatpush.bf16.msra.mxu0 %v7857
    %10852 = vmatpush.bf16.msra.mxu0 %v7838
    %10853 = vmatpush.bf16.msra.mxu0 %v7819
    %10854 = vmatmul.bf16.gmra.mxu0 %v3672
    %v10855 = vpop.f32.mrf.mxu0
    %v10856 = vadd.f32 %v10843, %v10855
    %v10857 = vpop.f32.mrf.mxu0
    %10858 = vdwg.mxu0
    %10859 = vmatpush.bf16.msra.mxu0 %v8104
    %10860 = vmatpush.bf16.msra.mxu0 %v8085
    %10861 = vmatpush.bf16.msra.mxu0 %v8066
    %10862 = vmatpush.bf16.msra.mxu0 %v8047
    %10863 = vmatpush.bf16.msra.mxu0 %v8028
    %10864 = vmatpush.bf16.msra.mxu0 %v8009
    %10865 = vmatpush.bf16.msra.mxu0 %v7990
    %10866 = vmatpush.bf16.msra.mxu0 %v7971
    %10867 = vmatmul.bf16.gmra.mxu0 %v3673
    %v10868 = vpop.f32.mrf.mxu0
    %v10869 = vadd.f32 %v10856, %v10868
    %v10870 = vpop.f32.mrf.mxu0
    %10871 = vdwg.mxu0
    %10872 = vmatpush.bf16.msra.mxu0 %v8256
    %10873 = vmatpush.bf16.msra.mxu0 %v8237
    %10874 = vmatpush.bf16.msra.mxu0 %v8218
    %10875 = vmatpush.bf16.msra.mxu0 %v8199
    %10876 = vmatpush.bf16.msra.mxu0 %v8180
    %10877 = vmatpush.bf16.msra.mxu0 %v8161
    %10878 = vmatpush.bf16.msra.mxu0 %v8142
    %10879 = vmatpush.bf16.msra.mxu0 %v8123
    %10880 = vmatmul.bf16.gmra.mxu0 %v3674
    %v10881 = vpop.f32.mrf.mxu0
    %v10882 = vadd.f32 %v10869, %v10881
    %v10883 = vpop.f32.mrf.mxu0
    %10884 = vdwg.mxu0
    %10885 = vmatpush.bf16.msra.mxu0 %v8408
    %10886 = vmatpush.bf16.msra.mxu0 %v8389
    %10887 = vmatpush.bf16.msra.mxu0 %v8370
    %10888 = vmatpush.bf16.msra.mxu0 %v8351
    %10889 = vmatpush.bf16.msra.mxu0 %v8332
    %10890 = vmatpush.bf16.msra.mxu0 %v8313
    %10891 = vmatpush.bf16.msra.mxu0 %v8294
    %10892 = vmatpush.bf16.msra.mxu0 %v8275
    %10893 = vmatmul.bf16.gmra.mxu0 %v3675
    %v10894 = vpop.f32.mrf.mxu0
    %v10895 = vadd.f32 %v10882, %v10894
    %v10896 = vpop.f32.mrf.mxu0
    %10897 = vdwg.mxu0
    %10898 = vmatpush.bf16.msra.mxu0 0
    %10899 = vmatpush.bf16.msra.mxu0 0
    %10900 = vmatpush.bf16.msra.mxu0 0
    %10901 = vmatpush.bf16.msra.mxu0 0
    %10902 = vmatpush.bf16.msra.mxu0 0
    %10903 = vmatpush.bf16.msra.mxu0 0
    %10904 = vmatpush.bf16.msra.mxu0 0
    %10905 = vmatpush.bf16.msra.mxu0 %v8427
    %10906 = vmatmul.bf16.gmra.mxu0 %v9362
    %v10907 = vpop.f32.mrf.mxu0
    %v10908 = vadd.f32 %v10895, %v10907
    %v10909 = vpop.f32.mrf.mxu0
    %10910 = vdwg.mxu0
    %10911 = vmatpush.bf16.msra.mxu0 %v7649
    %10912 = vmatpush.bf16.msra.mxu0 %v7630
    %10913 = vmatpush.bf16.msra.mxu0 %v7611
    %10914 = vmatpush.bf16.msra.mxu0 %v7592
    %10915 = vmatpush.bf16.msra.mxu0 %v7573
    %10916 = vmatpush.bf16.msra.mxu0 %v7554
    %10917 = vmatpush.bf16.msra.mxu0 %v7535
    %10918 = vmatpush.bf16.msra.mxu0 %v7516
    %10919 = vmatmul.bf16.gmra.mxu0 %v3670
    %v10920 = vpop.f32.mrf.mxu0
    %v10921 = vadd.f32 0.0, %v10920
    %v10922 = vpop.f32.mrf.mxu0
    %10923 = vdwg.mxu0
    %10924 = vmatpush.bf16.msra.mxu0 %v7801
    %10925 = vmatpush.bf16.msra.mxu0 %v7782
    %10926 = vmatpush.bf16.msra.mxu0 %v7763
    %10927 = vmatpush.bf16.msra.mxu0 %v7744
    %10928 = vmatpush.bf16.msra.mxu0 %v7725
    %10929 = vmatpush.bf16.msra.mxu0 %v7706
    %10930 = vmatpush.bf16.msra.mxu0 %v7687
    %10931 = vmatpush.bf16.msra.mxu0 %v7668
    %10932 = vmatmul.bf16.gmra.mxu0 %v3671
    %v10933 = vpop.f32.mrf.mxu0
    %v10934 = vadd.f32 %v10921, %v10933
    %v10935 = vpop.f32.mrf.mxu0
    %10936 = vdwg.mxu0
    %10937 = vmatpush.bf16.msra.mxu0 %v7953
    %10938 = vmatpush.bf16.msra.mxu0 %v7934
    %10939 = vmatpush.bf16.msra.mxu0 %v7915
    %10940 = vmatpush.bf16.msra.mxu0 %v7896
    %10941 = vmatpush.bf16.msra.mxu0 %v7877
    %10942 = vmatpush.bf16.msra.mxu0 %v7858
    %10943 = vmatpush.bf16.msra.mxu0 %v7839
    %10944 = vmatpush.bf16.msra.mxu0 %v7820
    %10945 = vmatmul.bf16.gmra.mxu0 %v3672
    %v10946 = vpop.f32.mrf.mxu0
    %v10947 = vadd.f32 %v10934, %v10946
    %v10948 = vpop.f32.mrf.mxu0
    %10949 = vdwg.mxu0
    %10950 = vmatpush.bf16.msra.mxu0 %v8105
    %10951 = vmatpush.bf16.msra.mxu0 %v8086
    %10952 = vmatpush.bf16.msra.mxu0 %v8067
    %10953 = vmatpush.bf16.msra.mxu0 %v8048
    %10954 = vmatpush.bf16.msra.mxu0 %v8029
    %10955 = vmatpush.bf16.msra.mxu0 %v8010
    %10956 = vmatpush.bf16.msra.mxu0 %v7991
    %10957 = vmatpush.bf16.msra.mxu0 %v7972
    %10958 = vmatmul.bf16.gmra.mxu0 %v3673
    %v10959 = vpop.f32.mrf.mxu0
    %v10960 = vadd.f32 %v10947, %v10959
    %v10961 = vpop.f32.mrf.mxu0
    %10962 = vdwg.mxu0
    %10963 = vmatpush.bf16.msra.mxu0 %v8257
    %10964 = vmatpush.bf16.msra.mxu0 %v8238
    %10965 = vmatpush.bf16.msra.mxu0 %v8219
    %10966 = vmatpush.bf16.msra.mxu0 %v8200
    %10967 = vmatpush.bf16.msra.mxu0 %v8181
    %10968 = vmatpush.bf16.msra.mxu0 %v8162
    %10969 = vmatpush.bf16.msra.mxu0 %v8143
    %10970 = vmatpush.bf16.msra.mxu0 %v8124
    %10971 = vmatmul.bf16.gmra.mxu0 %v3674
    %v10972 = vpop.f32.mrf.mxu0
    %v10973 = vadd.f32 %v10960, %v10972
    %v10974 = vpop.f32.mrf.mxu0
    %10975 = vdwg.mxu0
    %10976 = vmatpush.bf16.msra.mxu0 %v8409
    %10977 = vmatpush.bf16.msra.mxu0 %v8390
    %10978 = vmatpush.bf16.msra.mxu0 %v8371
    %10979 = vmatpush.bf16.msra.mxu0 %v8352
    %10980 = vmatpush.bf16.msra.mxu0 %v8333
    %10981 = vmatpush.bf16.msra.mxu0 %v8314
    %10982 = vmatpush.bf16.msra.mxu0 %v8295
    %10983 = vmatpush.bf16.msra.mxu0 %v8276
    %10984 = vmatmul.bf16.gmra.mxu0 %v3675
    %v10985 = vpop.f32.mrf.mxu0
    %v10986 = vadd.f32 %v10973, %v10985
    %v10987 = vpop.f32.mrf.mxu0
    %10988 = vdwg.mxu0
    %10989 = vmatpush.bf16.msra.mxu0 0
    %10990 = vmatpush.bf16.msra.mxu0 0
    %10991 = vmatpush.bf16.msra.mxu0 0
    %10992 = vmatpush.bf16.msra.mxu0 0
    %10993 = vmatpush.bf16.msra.mxu0 0
    %10994 = vmatpush.bf16.msra.mxu0 0
    %10995 = vmatpush.bf16.msra.mxu0 0
    %10996 = vmatpush.bf16.msra.mxu0 %v8428
    %10997 = vmatmul.bf16.gmra.mxu0 %v9362
    %v10998 = vpop.f32.mrf.mxu0
    %v10999 = vadd.f32 %v10986, %v10998
    %v11000 = vpop.f32.mrf.mxu0
    %11001 = vdwg.mxu0
    %11002 = vmatpush.bf16.msra.mxu0 %v7650
    %11003 = vmatpush.bf16.msra.mxu0 %v7631
    %11004 = vmatpush.bf16.msra.mxu0 %v7612
    %11005 = vmatpush.bf16.msra.mxu0 %v7593
    %11006 = vmatpush.bf16.msra.mxu0 %v7574
    %11007 = vmatpush.bf16.msra.mxu0 %v7555
    %11008 = vmatpush.bf16.msra.mxu0 %v7536
    %11009 = vmatpush.bf16.msra.mxu0 %v7517
    %11010 = vmatmul.bf16.gmra.mxu0 %v3670
    %v11011 = vpop.f32.mrf.mxu0
    %v11012 = vadd.f32 0.0, %v11011
    %v11013 = vpop.f32.mrf.mxu0
    %11014 = vdwg.mxu0
    %11015 = vmatpush.bf16.msra.mxu0 %v7802
    %11016 = vmatpush.bf16.msra.mxu0 %v7783
    %11017 = vmatpush.bf16.msra.mxu0 %v7764
    %11018 = vmatpush.bf16.msra.mxu0 %v7745
    %11019 = vmatpush.bf16.msra.mxu0 %v7726
    %11020 = vmatpush.bf16.msra.mxu0 %v7707
    %11021 = vmatpush.bf16.msra.mxu0 %v7688
    %11022 = vmatpush.bf16.msra.mxu0 %v7669
    %11023 = vmatmul.bf16.gmra.mxu0 %v3671
    %v11024 = vpop.f32.mrf.mxu0
    %v11025 = vadd.f32 %v11012, %v11024
    %v11026 = vpop.f32.mrf.mxu0
    %11027 = vdwg.mxu0
    %11028 = vmatpush.bf16.msra.mxu0 %v7954
    %11029 = vmatpush.bf16.msra.mxu0 %v7935
    %11030 = vmatpush.bf16.msra.mxu0 %v7916
    %11031 = vmatpush.bf16.msra.mxu0 %v7897
    %11032 = vmatpush.bf16.msra.mxu0 %v7878
    %11033 = vmatpush.bf16.msra.mxu0 %v7859
    %11034 = vmatpush.bf16.msra.mxu0 %v7840
    %11035 = vmatpush.bf16.msra.mxu0 %v7821
    %11036 = vmatmul.bf16.gmra.mxu0 %v3672
    %v11037 = vpop.f32.mrf.mxu0
    %v11038 = vadd.f32 %v11025, %v11037
    %v11039 = vpop.f32.mrf.mxu0
    %11040 = vdwg.mxu0
    %11041 = vmatpush.bf16.msra.mxu0 %v8106
    %11042 = vmatpush.bf16.msra.mxu0 %v8087
    %11043 = vmatpush.bf16.msra.mxu0 %v8068
    %11044 = vmatpush.bf16.msra.mxu0 %v8049
    %11045 = vmatpush.bf16.msra.mxu0 %v8030
    %11046 = vmatpush.bf16.msra.mxu0 %v8011
    %11047 = vmatpush.bf16.msra.mxu0 %v7992
    %11048 = vmatpush.bf16.msra.mxu0 %v7973
    %11049 = vmatmul.bf16.gmra.mxu0 %v3673
    %v11050 = vpop.f32.mrf.mxu0
    %v11051 = vadd.f32 %v11038, %v11050
    %v11052 = vpop.f32.mrf.mxu0
    %11053 = vdwg.mxu0
    %11054 = vmatpush.bf16.msra.mxu0 %v8258
    %11055 = vmatpush.bf16.msra.mxu0 %v8239
    %11056 = vmatpush.bf16.msra.mxu0 %v8220
    %11057 = vmatpush.bf16.msra.mxu0 %v8201
    %11058 = vmatpush.bf16.msra.mxu0 %v8182
    %11059 = vmatpush.bf16.msra.mxu0 %v8163
    %11060 = vmatpush.bf16.msra.mxu0 %v8144
    %11061 = vmatpush.bf16.msra.mxu0 %v8125
    %11062 = vmatmul.bf16.gmra.mxu0 %v3674
    %v11063 = vpop.f32.mrf.mxu0
    %v11064 = vadd.f32 %v11051, %v11063
    %v11065 = vpop.f32.mrf.mxu0
    %11066 = vdwg.mxu0
    %11067 = vmatpush.bf16.msra.mxu0 %v8410
    %11068 = vmatpush.bf16.msra.mxu0 %v8391
    %11069 = vmatpush.bf16.msra.mxu0 %v8372
    %11070 = vmatpush.bf16.msra.mxu0 %v8353
    %11071 = vmatpush.bf16.msra.mxu0 %v8334
    %11072 = vmatpush.bf16.msra.mxu0 %v8315
    %11073 = vmatpush.bf16.msra.mxu0 %v8296
    %11074 = vmatpush.bf16.msra.mxu0 %v8277
    %11075 = vmatmul.bf16.gmra.mxu0 %v3675
    %v11076 = vpop.f32.mrf.mxu0
    %v11077 = vadd.f32 %v11064, %v11076
    %v11078 = vpop.f32.mrf.mxu0
    %11079 = vdwg.mxu0
    %11080 = vmatpush.bf16.msra.mxu0 0
    %11081 = vmatpush.bf16.msra.mxu0 0
    %11082 = vmatpush.bf16.msra.mxu0 0
    %11083 = vmatpush.bf16.msra.mxu0 0
    %11084 = vmatpush.bf16.msra.mxu0 0
    %11085 = vmatpush.bf16.msra.mxu0 0
    %11086 = vmatpush.bf16.msra.mxu0 0
    %11087 = vmatpush.bf16.msra.mxu0 %v8429
    %11088 = vmatmul.bf16.gmra.mxu0 %v9362
    %v11089 = vpop.f32.mrf.mxu0
    %v11090 = vadd.f32 %v11077, %v11089
    %v11091 = vpop.f32.mrf.mxu0
    %11092 = vdwg.mxu0
    %v11093 = vld [vmem:[%s11] sm:$0xff]
    %v11094 = vld [vmem:[%s11 + $0x8] sm:$0xff]
    %v11095 = vld [vmem:[%s11 + $0x10] sm:$0xff]
    %v11096 = vld [vmem:[%s11 + $0x18] sm:$0xff]
    %v11097 = vld [vmem:[%s11 + $0x20] sm:$0xff]
    %v11098 = vld [vmem:[%s11 + $0x28] sm:$0xff]
    %v11099 = vld [vmem:[%s11 + $0x30] sm:$0xff]
    %v11100 = vld [vmem:[%s11 + $0x38] sm:$0xff]
    %v11101 = vld [vmem:[%s11 + $0x40] sm:$0xff]
    %v11102 = vld [vmem:[%s11 + $0x48] sm:$0xff]
    %v11103 = vld [vmem:[%s11 + $0x50] sm:$0xff]
    %v11104 = vld [vmem:[%s11 + $0x58] sm:$0xff]
    %v11105 = vld [vmem:[%s11 + $0x60] sm:$0xff]
    %v11106 = vld [vmem:[%s11 + $0x68] sm:$0xff]
    %v11107 = vld [vmem:[%s11 + $0x70] sm:$0xff]
    %v11108 = vld [vmem:[%s11 + $0x78] sm:$0xff]
    %v11109 = vld [vmem:[%s11 + $0x80] sm:$0xff]
    %v11110 = vld [vmem:[%s11 + $0x88] sm:$0xff]
    %v11111 = vld [vmem:[%s11 + $0x90] sm:$0xff]
    %v11112 = vld [vmem:[%s11 + $0x98] sm:$0xff]
    %v11113 = vld [vmem:[%s11 + $0xa0] sm:$0xff]
    %v11114 = vld [vmem:[%s11 + $0xa8] sm:$0xff]
    %v11115 = vld [vmem:[%s11 + $0xb0] sm:$0xff]
    %v11116 = vld [vmem:[%s11 + $0xb8] sm:$0xff]
    %v11117 = vld [vmem:[%s11 + $0xc0] sm:$0xff]
    %v11118 = vld [vmem:[%s11 + $0xc8] sm:$0xff]
    %v11119 = vld [vmem:[%s11 + $0xd0] sm:$0xff]
    %v11120 = vld [vmem:[%s11 + $0xd8] sm:$0xff]
    %v11121 = vld [vmem:[%s11 + $0xe0] sm:$0xff]
    %v11122 = vld [vmem:[%s11 + $0xe8] sm:$0xff]
    %v11123 = vld [vmem:[%s11 + $0xf0] sm:$0xff]
    %v11124 = vld [vmem:[%s11 + $0xf8] sm:$0xff]
    %v11125 = vld [vmem:[%s11 + $0x100] sm:$0xff]
    %v11126 = vld [vmem:[%s11 + $0x108] sm:$0xff]
    %v11127 = vld [vmem:[%s11 + $0x110] sm:$0xff]
    %v11128 = vld [vmem:[%s11 + $0x118] sm:$0xff]
    %v11129 = vld [vmem:[%s11 + $0x120] sm:$0xff]
    %v11130 = vld [vmem:[%s11 + $0x128] sm:$0xff]
    %v11131 = vld [vmem:[%s11 + $0x130] sm:$0xff]
    %v11132 = vld [vmem:[%s11 + $0x138] sm:$0xff]
    %v11133 = vld [vmem:[%s11 + $0x140] sm:$0xff]
    %v11134 = vld [vmem:[%s11 + $0x148] sm:$0xff]
    %v11135 = vld [vmem:[%s11 + $0x150] sm:$0xff]
    %v11136 = vld [vmem:[%s11 + $0x158] sm:$0xff]
    %v11137 = vld [vmem:[%s11 + $0x160] sm:$0xff]
    %v11138 = vld [vmem:[%s11 + $0x168] sm:$0xff]
    %v11139 = vld [vmem:[%s11 + $0x170] sm:$0xff]
    %v11140 = vld [vmem:[%s11 + $0x178] sm:$0xff]
    %v11141 = vld [vmem:[%s11 + $0x180] sm:$0xff]
    %v11142 = vld [vmem:[%s11 + $0x188] sm:$0xff]
    %v11143 = vld [vmem:[%s11 + $0x190] sm:$0xff]
    %v11144 = vld [vmem:[%s11 + $0x198] sm:$0xff]
    %v11145 = vld [vmem:[%s11 + $0x1a0] sm:$0xff]
    %v11146 = vld [vmem:[%s11 + $0x1a8] sm:$0xff]
    %v11147 = vld [vmem:[%s11 + $0x1b0] sm:$0xff]
    %v11148 = vld [vmem:[%s11 + $0x1b8] sm:$0xff]
    %v11149 = vld [vmem:[%s11 + $0x1c0] sm:$0xff]
    %v11150 = vld [vmem:[%s11 + $0x1c8] sm:$0xff]
    %v11151 = vld [vmem:[%s11 + $0x1d0] sm:$0xff]
    %v11152 = vld [vmem:[%s11 + $0x1d8] sm:$0xff]
    %v11153 = vld [vmem:[%s11 + $0x1e0] sm:$0xff]
    %v11154 = vld [vmem:[%s11 + $0x1e8] sm:$0xff]
    %v11155 = vld [vmem:[%s11 + $0x1f0] sm:$0xff]
    %v11156 = vld [vmem:[%s11 + $0x1f8] sm:$0xff]
    %v11157 = vld [vmem:[%s11 + $0x200] sm:$0xff]
    %v11158 = vld [vmem:[%s11 + $0x208] sm:$0xff]
    %v11159 = vld [vmem:[%s11 + $0x210] sm:$0xff]
    %v11160 = vld [vmem:[%s11 + $0x218] sm:$0xff]
    %v11161 = vld [vmem:[%s11 + $0x220] sm:$0xff]
    %v11162 = vld [vmem:[%s11 + $0x228] sm:$0xff]
    %v11163 = vld [vmem:[%s11 + $0x230] sm:$0xff]
    %v11164 = vld [vmem:[%s11 + $0x238] sm:$0xff]
    %v11165 = vld [vmem:[%s11 + $0x240] sm:$0xff]
    %v11166 = vld [vmem:[%s11 + $0x248] sm:$0xff]
    %v11167 = vld [vmem:[%s11 + $0x250] sm:$0xff]
    %v11168 = vld [vmem:[%s11 + $0x258] sm:$0xff]
    %v11169 = vld [vmem:[%s11 + $0x260] sm:$0xff]
    %v11170 = vld [vmem:[%s11 + $0x268] sm:$0xff]
    %v11171 = vld [vmem:[%s11 + $0x270] sm:$0xff]
    %v11172 = vld [vmem:[%s11 + $0x278] sm:$0xff]
    %v11173 = vld [vmem:[%s11 + $0x280] sm:$0xff]
    %v11174 = vld [vmem:[%s11 + $0x288] sm:$0xff]
    %v11175 = vld [vmem:[%s11 + $0x290] sm:$0xff]
    %v11176 = vld [vmem:[%s11 + $0x298] sm:$0xff]
    %v11177 = vld [vmem:[%s11 + $0x2a0] sm:$0xff]
    %v11178 = vld [vmem:[%s11 + $0x2a8] sm:$0xff]
    %v11179 = vld [vmem:[%s11 + $0x2b0] sm:$0xff]
    %v11180 = vld [vmem:[%s11 + $0x2b8] sm:$0xff]
    %v11181 = vld [vmem:[%s11 + $0x2c0] sm:$0xff]
    %v11182 = vld [vmem:[%s11 + $0x2c8] sm:$0xff]
    %v11183 = vld [vmem:[%s11 + $0x2d0] sm:$0xff]
    %v11184 = vld [vmem:[%s11 + $0x2d8] sm:$0xff]
    %v11185 = vld [vmem:[%s11 + $0x2e0] sm:$0xff]
    %v11186 = vld [vmem:[%s11 + $0x2e8] sm:$0xff]
    %v11187 = vld [vmem:[%s11 + $0x2f0] sm:$0xff]
    %v11188 = vld [vmem:[%s11 + $0x2f8] sm:$0xff]
    %v11189 = vld [vmem:[%s11 + $0x300] sm:$0xff]
    %v11190 = vld [vmem:[%s11 + $0x308] sm:$0xff]
    %v11191 = vld [vmem:[%s11 + $0x310] sm:$0xff]
    %v11192 = vld [vmem:[%s11 + $0x318] sm:$0xff]
    %v11193 = vld [vmem:[%s11 + $0x320] sm:$0xff]
    %v11194 = vld [vmem:[%s11 + $0x328] sm:$0xff]
    %v11195 = vld [vmem:[%s11 + $0x330] sm:$0xff]
    %v11196 = vld [vmem:[%s11 + $0x338] sm:$0xff]
    %v11197 = vld [vmem:[%s11 + $0x340] sm:$0xff]
    %v11198 = vld [vmem:[%s11 + $0x348] sm:$0xff]
    %v11199 = vld [vmem:[%s11 + $0x350] sm:$0xff]
    %v11200 = vld [vmem:[%s11 + $0x358] sm:$0xff]
    %v11201 = vld [vmem:[%s11 + $0x360] sm:$0xff]
    %v11202 = vld [vmem:[%s11 + $0x368] sm:$0xff]
    %v11203 = vld [vmem:[%s11 + $0x370] sm:$0xff]
    %v11204 = vld [vmem:[%s11 + $0x378] sm:$0xff]
    %v11205 = vld [vmem:[%s11 + $0x380] sm:$0xff]
    %v11206 = vld [vmem:[%s11 + $0x388] sm:$0xff]
    %v11207 = vld [vmem:[%s11 + $0x390] sm:$0xff]
    %v11208 = vld [vmem:[%s11 + $0x398] sm:$0xff]
    %v11209 = vld [vmem:[%s11 + $0x3a0] sm:$0xff]
    %v11210 = vld [vmem:[%s11 + $0x3a8] sm:$0xff]
    %v11211 = vld [vmem:[%s11 + $0x3b0] sm:$0xff]
    %v11212 = vld [vmem:[%s11 + $0x3b8] sm:$0xff]
    %v11213 = vld [vmem:[%s11 + $0x3c0] sm:$0xff]
    %v11214 = vld [vmem:[%s11 + $0x3c8] sm:$0xff]
    %v11215 = vld [vmem:[%s11 + $0x3d0] sm:$0xff]
    %v11216 = vld [vmem:[%s11 + $0x3d8] sm:$0xff]
    %v11217 = vld [vmem:[%s11 + $0x3e0] sm:$0xff]
    %v11218 = vld [vmem:[%s11 + $0x3e8] sm:$0xff]
    %v11219 = vld [vmem:[%s11 + $0x3f0] sm:$0xff]
    %v11220 = vld [vmem:[%s11 + $0x3f8] sm:$0xff]
    %v11221 = vld [vmem:[%s11 + $0x400] sm:$0xff]
    %v11222 = vld [vmem:[%s11 + $0x408] sm:$0xff]
    %v11223 = vld [vmem:[%s11 + $0x410] sm:$0xff]
    %v11224 = vld [vmem:[%s11 + $0x418] sm:$0xff]
    %v11225 = vld [vmem:[%s11 + $0x420] sm:$0xff]
    %v11226 = vld [vmem:[%s11 + $0x428] sm:$0xff]
    %v11227 = vld [vmem:[%s11 + $0x430] sm:$0xff]
    %v11228 = vld [vmem:[%s11 + $0x438] sm:$0xff]
    %v11229 = vld [vmem:[%s11 + $0x440] sm:$0xff]
    %v11230 = vld [vmem:[%s11 + $0x448] sm:$0xff]
    %v11231 = vld [vmem:[%s11 + $0x450] sm:$0xff]
    %v11232 = vld [vmem:[%s11 + $0x458] sm:$0xff]
    %v11233 = vld [vmem:[%s11 + $0x460] sm:$0xff]
    %v11234 = vld [vmem:[%s11 + $0x468] sm:$0xff]
    %v11235 = vld [vmem:[%s11 + $0x470] sm:$0xff]
    %v11236 = vld [vmem:[%s11 + $0x478] sm:$0xff]
    %v11237 = vld [vmem:[%s11 + $0x480] sm:$0xff]
    %v11238 = vld [vmem:[%s11 + $0x488] sm:$0xff]
    %v11239 = vld [vmem:[%s11 + $0x490] sm:$0xff]
    %v11240 = vld [vmem:[%s11 + $0x498] sm:$0xff]
    %v11241 = vld [vmem:[%s11 + $0x4a0] sm:$0xff]
    %v11242 = vld [vmem:[%s11 + $0x4a8] sm:$0xff]
    %v11243 = vld [vmem:[%s11 + $0x4b0] sm:$0xff]
    %v11244 = vld [vmem:[%s11 + $0x4b8] sm:$0xff]
    %v11245 = vld [vmem:[%s11 + $0x4c0] sm:$0xff]
    %v11246 = vld [vmem:[%s11 + $0x4c8] sm:$0xff]
    %v11247 = vld [vmem:[%s11 + $0x4d0] sm:$0xff]
    %v11248 = vld [vmem:[%s11 + $0x4d8] sm:$0xff]
    %v11249 = vld [vmem:[%s11 + $0x4e0] sm:$0xff]
    %v11250 = vld [vmem:[%s11 + $0x4e8] sm:$0xff]
    %v11251 = vld [vmem:[%s11 + $0x4f0] sm:$0xff]
    %v11252 = vld [vmem:[%s11 + $0x4f8] sm:$0xff]
    %v11253 = vld [vmem:[%s11 + $0x500] sm:$0xff]
    %v11254 = vld [vmem:[%s11 + $0x508] sm:$0xff]
    %v11255 = vld [vmem:[%s11 + $0x510] sm:$0xff]
    %v11256 = vld [vmem:[%s11 + $0x518] sm:$0xff]
    %v11257 = vld [vmem:[%s11 + $0x520] sm:$0xff]
    %v11258 = vld [vmem:[%s11 + $0x528] sm:$0xff]
    %v11259 = vld [vmem:[%s11 + $0x530] sm:$0xff]
    %v11260 = vld [vmem:[%s11 + $0x538] sm:$0xff]
    %v11261 = vld [vmem:[%s11 + $0x540] sm:$0xff]
    %v11262 = vld [vmem:[%s11 + $0x548] sm:$0xff]
    %v11263 = vld [vmem:[%s11 + $0x550] sm:$0xff]
    %v11264 = vld [vmem:[%s11 + $0x558] sm:$0xff]
    %v11265 = vld [vmem:[%s11 + $0x560] sm:$0xff]
    %v11266 = vld [vmem:[%s11 + $0x568] sm:$0xff]
    %v11267 = vld [vmem:[%s11 + $0x570] sm:$0xff]
    %v11268 = vld [vmem:[%s11 + $0x578] sm:$0xff]
    %v11269 = vld [vmem:[%s11 + $0x580] sm:$0xff]
    %v11270 = vld [vmem:[%s11 + $0x588] sm:$0xff]
    %v11271 = vld [vmem:[%s11 + $0x590] sm:$0xff]
    %v11272 = vld [vmem:[%s11 + $0x598] sm:$0xff]
    %v11273 = vld [vmem:[%s11 + $0x5a0] sm:$0xff]
    %v11274 = vld [vmem:[%s11 + $0x5a8] sm:$0xff]
    %v11275 = vld [vmem:[%s11 + $0x5b0] sm:$0xff]
    %v11276 = vld [vmem:[%s11 + $0x5b8] sm:$0xff]
    %v11277 = vld [vmem:[%s11 + $0x5c0] sm:$0xff]
    %v11278 = vld [vmem:[%s11 + $0x5c8] sm:$0xff]
    %v11279 = vld [vmem:[%s11 + $0x5d0] sm:$0xff]
    %v11280 = vld [vmem:[%s11 + $0x5d8] sm:$0xff]
    %v11281 = vld [vmem:[%s11 + $0x5e0] sm:$0xff]
    %v11282 = vld [vmem:[%s11 + $0x5e8] sm:$0xff]
    %v11283 = vld [vmem:[%s11 + $0x5f0] sm:$0xff]
    %v11284 = vld [vmem:[%s11 + $0x5f8] sm:$0xff]
    %v11285 = vld [vmem:[%s11 + $0x600] sm:$0xff]
    %v11286 = vld [vmem:[%s11 + $0x608] sm:$0xff]
    %v11287 = vld [vmem:[%s11 + $0x610] sm:$0xff]
    %v11288 = vld [vmem:[%s11 + $0x618] sm:$0xff]
    %v11289 = vld [vmem:[%s11 + $0x620] sm:$0xff]
    %v11290 = vld [vmem:[%s11 + $0x628] sm:$0xff]
    %v11291 = vld [vmem:[%s11 + $0x630] sm:$0xff]
    %v11292 = vld [vmem:[%s11 + $0x638] sm:$0xff]
    %v11293 = vld [vmem:[%s11 + $0x640] sm:$0xff]
    %v11294 = vld [vmem:[%s11 + $0x648] sm:$0xff]
    %v11295 = vld [vmem:[%s11 + $0x650] sm:$0xff]
    %v11296 = vld [vmem:[%s11 + $0x658] sm:$0xff]
    %v11297 = vld [vmem:[%s11 + $0x660] sm:$0xff]
    %v11298 = vld [vmem:[%s11 + $0x668] sm:$0xff]
    %v11299 = vld [vmem:[%s11 + $0x670] sm:$0xff]
    %v11300 = vld [vmem:[%s11 + $0x678] sm:$0xff]
    %v11301 = vld [vmem:[%s11 + $0x680] sm:$0xff]
    %v11302 = vld [vmem:[%s11 + $0x688] sm:$0xff]
    %v11303 = vld [vmem:[%s11 + $0x690] sm:$0xff]
    %v11304 = vld [vmem:[%s11 + $0x698] sm:$0xff]
    %v11305 = vld [vmem:[%s11 + $0x6a0] sm:$0xff]
    %v11306 = vld [vmem:[%s11 + $0x6a8] sm:$0xff]
    %v11307 = vld [vmem:[%s11 + $0x6b0] sm:$0xff]
    %v11308 = vld [vmem:[%s11 + $0x6b8] sm:$0xff]
    %v11309 = vld [vmem:[%s11 + $0x6c0] sm:$0xff]
    %v11310 = vld [vmem:[%s11 + $0x6c8] sm:$0xff]
    %v11311 = vld [vmem:[%s11 + $0x6d0] sm:$0xff]
    %v11312 = vld [vmem:[%s11 + $0x6d8] sm:$0xff]
    %v11313 = vld [vmem:[%s11 + $0x6e0] sm:$0xff]
    %v11314 = vld [vmem:[%s11 + $0x6e8] sm:$0xff]
    %v11315 = vld [vmem:[%s11 + $0x6f0] sm:$0xff]
    %v11316 = vld [vmem:[%s11 + $0x6f8] sm:$0xff]
    %v11317 = vld [vmem:[%s11 + $0x700] sm:$0xff]
    %v11318 = vld [vmem:[%s11 + $0x708] sm:$0xff]
    %v11319 = vld [vmem:[%s11 + $0x710] sm:$0xff]
    %v11320 = vld [vmem:[%s11 + $0x718] sm:$0xff]
    %v11321 = vld [vmem:[%s11 + $0x720] sm:$0xff]
    %v11322 = vld [vmem:[%s11 + $0x728] sm:$0xff]
    %v11323 = vld [vmem:[%s11 + $0x730] sm:$0xff]
    %v11324 = vld [vmem:[%s11 + $0x738] sm:$0xff]
    %v11325 = vld [vmem:[%s11 + $0x740] sm:$0xff]
    %v11326 = vld [vmem:[%s11 + $0x748] sm:$0xff]
    %v11327 = vld [vmem:[%s11 + $0x750] sm:$0xff]
    %v11328 = vld [vmem:[%s11 + $0x758] sm:$0xff]
    %v11329 = vld [vmem:[%s11 + $0x760] sm:$0xff]
    %v11330 = vld [vmem:[%s11 + $0x768] sm:$0xff]
    %v11331 = vld [vmem:[%s11 + $0x770] sm:$0xff]
    %v11332 = vld [vmem:[%s11 + $0x778] sm:$0xff]
    %v11333 = vld [vmem:[%s11 + $0x780] sm:$0xff]
    %v11334 = vld [vmem:[%s11 + $0x788] sm:$0xff]
    %v11335 = vld [vmem:[%s11 + $0x790] sm:$0xff]
    %v11336 = vld [vmem:[%s11 + $0x798] sm:$0xff]
    %v11337 = vld [vmem:[%s11 + $0x7a0] sm:$0xff]
    %v11338 = vld [vmem:[%s11 + $0x7a8] sm:$0xff]
    %v11339 = vld [vmem:[%s11 + $0x7b0] sm:$0xff]
    %v11340 = vld [vmem:[%s11 + $0x7b8] sm:$0xff]
    %v11341 = vld [vmem:[%s11 + $0x7c0] sm:$0xff]
    %v11342 = vld [vmem:[%s11 + $0x7c8] sm:$0xff]
    %v11343 = vld [vmem:[%s11 + $0x7d0] sm:$0xff]
    %v11344 = vld [vmem:[%s11 + $0x7d8] sm:$0xff]
    %v11345 = vld [vmem:[%s11 + $0x7e0] sm:$0xff]
    %v11346 = vld [vmem:[%s11 + $0x7e8] sm:$0xff]
    %v11347 = vld [vmem:[%s11 + $0x7f0] sm:$0xff]
    %v11348 = vld [vmem:[%s11 + $0x7f8] sm:$0xff]
    %v11349 = vld [vmem:[%s11 + $0x800] sm:$0xff]
    %v11350 = vld [vmem:[%s11 + $0x808] sm:$0xff]
    %v11351 = vld [vmem:[%s11 + $0x810] sm:$0xff]
    %v11352 = vld [vmem:[%s11 + $0x818] sm:$0xff]
    %v11353 = vld [vmem:[%s11 + $0x820] sm:$0xff]
    %v11354 = vld [vmem:[%s11 + $0x828] sm:$0xff]
    %v11355 = vld [vmem:[%s11 + $0x830] sm:$0xff]
    %v11356 = vld [vmem:[%s11 + $0x838] sm:$0xff]
    %v11357 = vld [vmem:[%s11 + $0x840] sm:$0xff]
    %v11358 = vld [vmem:[%s11 + $0x848] sm:$0xff]
    %v11359 = vld [vmem:[%s11 + $0x850] sm:$0xff]
    %v11360 = vld [vmem:[%s11 + $0x858] sm:$0xff]
    %v11361 = vld [vmem:[%s11 + $0x860] sm:$0xff]
    %v11362 = vld [vmem:[%s11 + $0x868] sm:$0xff]
    %v11363 = vld [vmem:[%s11 + $0x870] sm:$0xff]
    %v11364 = vld [vmem:[%s11 + $0x878] sm:$0xff]
    %v11365 = vld [vmem:[%s11 + $0x880] sm:$0xff]
    %v11366 = vld [vmem:[%s11 + $0x888] sm:$0xff]
    %v11367 = vld [vmem:[%s11 + $0x890] sm:$0xff]
    %v11368 = vld [vmem:[%s11 + $0x898] sm:$0xff]
    %v11369 = vld [vmem:[%s11 + $0x8a0] sm:$0xff]
    %v11370 = vld [vmem:[%s11 + $0x8a8] sm:$0xff]
    %v11371 = vld [vmem:[%s11 + $0x8b0] sm:$0xff]
    %v11372 = vld [vmem:[%s11 + $0x8b8] sm:$0xff]
    %v11373 = vld [vmem:[%s11 + $0x8c0] sm:$0xff]
    %v11374 = vld [vmem:[%s11 + $0x8c8] sm:$0xff]
    %v11375 = vld [vmem:[%s11 + $0x8d0] sm:$0xff]
    %v11376 = vld [vmem:[%s11 + $0x8d8] sm:$0xff]
    %v11377 = vld [vmem:[%s11 + $0x8e0] sm:$0xff]
    %v11378 = vld [vmem:[%s11 + $0x8e8] sm:$0xff]
    %v11379 = vld [vmem:[%s11 + $0x8f0] sm:$0xff]
    %v11380 = vld [vmem:[%s11 + $0x8f8] sm:$0xff]
    %v11381 = vld [vmem:[%s11 + $0x900] sm:$0xff]
    %v11382 = vld [vmem:[%s11 + $0x908] sm:$0xff]
    %v11383 = vld [vmem:[%s11 + $0x910] sm:$0xff]
    %v11384 = vld [vmem:[%s11 + $0x918] sm:$0xff]
    %v11385 = vld [vmem:[%s11 + $0x920] sm:$0xff]
    %v11386 = vld [vmem:[%s11 + $0x928] sm:$0xff]
    %vm11387 = vcmask 392192
    %v11389 = vsel %vm11387, %v11090, 0
    %11391 = vmatpush.msra.mxu0 %v11108
    %11392 = vmatpush.msra.mxu0 %v11107
    %11393 = vmatpush.msra.mxu0 %v11106
    %11394 = vmatpush.msra.mxu0 %v11105
    %11395 = vmatpush.msra.mxu0 %v11104
    %11396 = vmatpush.msra.mxu0 %v11103
    %11397 = vmatpush.msra.mxu0 %v11102
    %11398 = vmatpush.msra.mxu0 %v11101
    %11399 = vmatpush.msra.mxu0 %v11100
    %11400 = vmatpush.msra.mxu0 %v11099
    %11401 = vmatpush.msra.mxu0 %v11098
    %11402 = vmatpush.msra.mxu0 %v11097
    %11403 = vmatpush.msra.mxu0 %v11096
    %11404 = vmatpush.msra.mxu0 %v11095
    %11405 = vmatpush.msra.mxu0 %v11094
    %11406 = vmatpush.msra.mxu0 %v11093
    %11407 = vmatmul.f32.gmra.mxu0 %v9452
    %v11408 = vpop.f32.mrf.mxu0
    %v11409 = vadd.f32 0.0, %v11408
    %11410 = vdwg.mxu0
    %11411 = vmatpush.msra.mxu0 %v11124
    %11412 = vmatpush.msra.mxu0 %v11123
    %11413 = vmatpush.msra.mxu0 %v11122
    %11414 = vmatpush.msra.mxu0 %v11121
    %11415 = vmatpush.msra.mxu0 %v11120
    %11416 = vmatpush.msra.mxu0 %v11119
    %11417 = vmatpush.msra.mxu0 %v11118
    %11418 = vmatpush.msra.mxu0 %v11117
    %11419 = vmatpush.msra.mxu0 %v11116
    %11420 = vmatpush.msra.mxu0 %v11115
    %11421 = vmatpush.msra.mxu0 %v11114
    %11422 = vmatpush.msra.mxu0 %v11113
    %11423 = vmatpush.msra.mxu0 %v11112
    %11424 = vmatpush.msra.mxu0 %v11111
    %11425 = vmatpush.msra.mxu0 %v11110
    %11426 = vmatpush.msra.mxu0 %v11109
    %11427 = vmatmul.f32.gmra.mxu0 %v9543
    %v11428 = vpop.f32.mrf.mxu0
    %v11429 = vadd.f32 %v11409, %v11428
    %11430 = vdwg.mxu0
    %11431 = vmatpush.msra.mxu0 %v11140
    %11432 = vmatpush.msra.mxu0 %v11139
    %11433 = vmatpush.msra.mxu0 %v11138
    %11434 = vmatpush.msra.mxu0 %v11137
    %11435 = vmatpush.msra.mxu0 %v11136
    %11436 = vmatpush.msra.mxu0 %v11135
    %11437 = vmatpush.msra.mxu0 %v11134
    %11438 = vmatpush.msra.mxu0 %v11133
    %11439 = vmatpush.msra.mxu0 %v11132
    %11440 = vmatpush.msra.mxu0 %v11131
    %11441 = vmatpush.msra.mxu0 %v11130
    %11442 = vmatpush.msra.mxu0 %v11129
    %11443 = vmatpush.msra.mxu0 %v11128
    %11444 = vmatpush.msra.mxu0 %v11127
    %11445 = vmatpush.msra.mxu0 %v11126
    %11446 = vmatpush.msra.mxu0 %v11125
    %11447 = vmatmul.f32.gmra.mxu0 %v9634
    %v11448 = vpop.f32.mrf.mxu0
    %v11449 = vadd.f32 %v11429, %v11448
    %11450 = vdwg.mxu0
    %11451 = vmatpush.msra.mxu0 %v11156
    %11452 = vmatpush.msra.mxu0 %v11155
    %11453 = vmatpush.msra.mxu0 %v11154
    %11454 = vmatpush.msra.mxu0 %v11153
    %11455 = vmatpush.msra.mxu0 %v11152
    %11456 = vmatpush.msra.mxu0 %v11151
    %11457 = vmatpush.msra.mxu0 %v11150
    %11458 = vmatpush.msra.mxu0 %v11149
    %11459 = vmatpush.msra.mxu0 %v11148
    %11460 = vmatpush.msra.mxu0 %v11147
    %11461 = vmatpush.msra.mxu0 %v11146
    %11462 = vmatpush.msra.mxu0 %v11145
    %11463 = vmatpush.msra.mxu0 %v11144
    %11464 = vmatpush.msra.mxu0 %v11143
    %11465 = vmatpush.msra.mxu0 %v11142
    %11466 = vmatpush.msra.mxu0 %v11141
    %11467 = vmatmul.f32.gmra.mxu0 %v9725
    %v11468 = vpop.f32.mrf.mxu0
    %v11469 = vadd.f32 %v11449, %v11468
    %11470 = vdwg.mxu0
    %11471 = vmatpush.msra.mxu0 %v11172
    %11472 = vmatpush.msra.mxu0 %v11171
    %11473 = vmatpush.msra.mxu0 %v11170
    %11474 = vmatpush.msra.mxu0 %v11169
    %11475 = vmatpush.msra.mxu0 %v11168
    %11476 = vmatpush.msra.mxu0 %v11167
    %11477 = vmatpush.msra.mxu0 %v11166
    %11478 = vmatpush.msra.mxu0 %v11165
    %11479 = vmatpush.msra.mxu0 %v11164
    %11480 = vmatpush.msra.mxu0 %v11163
    %11481 = vmatpush.msra.mxu0 %v11162
    %11482 = vmatpush.msra.mxu0 %v11161
    %11483 = vmatpush.msra.mxu0 %v11160
    %11484 = vmatpush.msra.mxu0 %v11159
    %11485 = vmatpush.msra.mxu0 %v11158
    %11486 = vmatpush.msra.mxu0 %v11157
    %11487 = vmatmul.f32.gmra.mxu0 %v9816
    %v11488 = vpop.f32.mrf.mxu0
    %v11489 = vadd.f32 %v11469, %v11488
    %11490 = vdwg.mxu0
    %11491 = vmatpush.msra.mxu0 %v11188
    %11492 = vmatpush.msra.mxu0 %v11187
    %11493 = vmatpush.msra.mxu0 %v11186
    %11494 = vmatpush.msra.mxu0 %v11185
    %11495 = vmatpush.msra.mxu0 %v11184
    %11496 = vmatpush.msra.mxu0 %v11183
    %11497 = vmatpush.msra.mxu0 %v11182
    %11498 = vmatpush.msra.mxu0 %v11181
    %11499 = vmatpush.msra.mxu0 %v11180
    %11500 = vmatpush.msra.mxu0 %v11179
    %11501 = vmatpush.msra.mxu0 %v11178
    %11502 = vmatpush.msra.mxu0 %v11177
    %11503 = vmatpush.msra.mxu0 %v11176
    %11504 = vmatpush.msra.mxu0 %v11175
    %11505 = vmatpush.msra.mxu0 %v11174
    %11506 = vmatpush.msra.mxu0 %v11173
    %11507 = vmatmul.f32.gmra.mxu0 %v9907
    %v11508 = vpop.f32.mrf.mxu0
    %v11509 = vadd.f32 %v11489, %v11508
    %11510 = vdwg.mxu0
    %11511 = vmatpush.msra.mxu0 %v11204
    %11512 = vmatpush.msra.mxu0 %v11203
    %11513 = vmatpush.msra.mxu0 %v11202
    %11514 = vmatpush.msra.mxu0 %v11201
    %11515 = vmatpush.msra.mxu0 %v11200
    %11516 = vmatpush.msra.mxu0 %v11199
    %11517 = vmatpush.msra.mxu0 %v11198
    %11518 = vmatpush.msra.mxu0 %v11197
    %11519 = vmatpush.msra.mxu0 %v11196
    %11520 = vmatpush.msra.mxu0 %v11195
    %11521 = vmatpush.msra.mxu0 %v11194
    %11522 = vmatpush.msra.mxu0 %v11193
    %11523 = vmatpush.msra.mxu0 %v11192
    %11524 = vmatpush.msra.mxu0 %v11191
    %11525 = vmatpush.msra.mxu0 %v11190
    %11526 = vmatpush.msra.mxu0 %v11189
    %11527 = vmatmul.f32.gmra.mxu0 %v9998
    %v11528 = vpop.f32.mrf.mxu0
    %v11529 = vadd.f32 %v11509, %v11528
    %11530 = vdwg.mxu0
    %11531 = vmatpush.msra.mxu0 %v11220
    %11532 = vmatpush.msra.mxu0 %v11219
    %11533 = vmatpush.msra.mxu0 %v11218
    %11534 = vmatpush.msra.mxu0 %v11217
    %11535 = vmatpush.msra.mxu0 %v11216
    %11536 = vmatpush.msra.mxu0 %v11215
    %11537 = vmatpush.msra.mxu0 %v11214
    %11538 = vmatpush.msra.mxu0 %v11213
    %11539 = vmatpush.msra.mxu0 %v11212
    %11540 = vmatpush.msra.mxu0 %v11211
    %11541 = vmatpush.msra.mxu0 %v11210
    %11542 = vmatpush.msra.mxu0 %v11209
    %11543 = vmatpush.msra.mxu0 %v11208
    %11544 = vmatpush.msra.mxu0 %v11207
    %11545 = vmatpush.msra.mxu0 %v11206
    %11546 = vmatpush.msra.mxu0 %v11205
    %11547 = vmatmul.f32.gmra.mxu0 %v10089
    %v11548 = vpop.f32.mrf.mxu0
    %v11549 = vadd.f32 %v11529, %v11548
    %11550 = vdwg.mxu0
    %11551 = vmatpush.msra.mxu0 %v11236
    %11552 = vmatpush.msra.mxu0 %v11235
    %11553 = vmatpush.msra.mxu0 %v11234
    %11554 = vmatpush.msra.mxu0 %v11233
    %11555 = vmatpush.msra.mxu0 %v11232
    %11556 = vmatpush.msra.mxu0 %v11231
    %11557 = vmatpush.msra.mxu0 %v11230
    %11558 = vmatpush.msra.mxu0 %v11229
    %11559 = vmatpush.msra.mxu0 %v11228
    %11560 = vmatpush.msra.mxu0 %v11227
    %11561 = vmatpush.msra.mxu0 %v11226
    %11562 = vmatpush.msra.mxu0 %v11225
    %11563 = vmatpush.msra.mxu0 %v11224
    %11564 = vmatpush.msra.mxu0 %v11223
    %11565 = vmatpush.msra.mxu0 %v11222
    %11566 = vmatpush.msra.mxu0 %v11221
    %11567 = vmatmul.f32.gmra.mxu0 %v10180
    %v11568 = vpop.f32.mrf.mxu0
    %v11569 = vadd.f32 %v11549, %v11568
    %11570 = vdwg.mxu0
    %11571 = vmatpush.msra.mxu0 %v11252
    %11572 = vmatpush.msra.mxu0 %v11251
    %11573 = vmatpush.msra.mxu0 %v11250
    %11574 = vmatpush.msra.mxu0 %v11249
    %11575 = vmatpush.msra.mxu0 %v11248
    %11576 = vmatpush.msra.mxu0 %v11247
    %11577 = vmatpush.msra.mxu0 %v11246
    %11578 = vmatpush.msra.mxu0 %v11245
    %11579 = vmatpush.msra.mxu0 %v11244
    %11580 = vmatpush.msra.mxu0 %v11243
    %11581 = vmatpush.msra.mxu0 %v11242
    %11582 = vmatpush.msra.mxu0 %v11241
    %11583 = vmatpush.msra.mxu0 %v11240
    %11584 = vmatpush.msra.mxu0 %v11239
    %11585 = vmatpush.msra.mxu0 %v11238
    %11586 = vmatpush.msra.mxu0 %v11237
    %11587 = vmatmul.f32.gmra.mxu0 %v10271
    %v11588 = vpop.f32.mrf.mxu0
    %v11589 = vadd.f32 %v11569, %v11588
    %11590 = vdwg.mxu0
    %11591 = vmatpush.msra.mxu0 %v11268
    %11592 = vmatpush.msra.mxu0 %v11267
    %11593 = vmatpush.msra.mxu0 %v11266
    %11594 = vmatpush.msra.mxu0 %v11265
    %11595 = vmatpush.msra.mxu0 %v11264
    %11596 = vmatpush.msra.mxu0 %v11263
    %11597 = vmatpush.msra.mxu0 %v11262
    %11598 = vmatpush.msra.mxu0 %v11261
    %11599 = vmatpush.msra.mxu0 %v11260
    %11600 = vmatpush.msra.mxu0 %v11259
    %11601 = vmatpush.msra.mxu0 %v11258
    %11602 = vmatpush.msra.mxu0 %v11257
    %11603 = vmatpush.msra.mxu0 %v11256
    %11604 = vmatpush.msra.mxu0 %v11255
    %11605 = vmatpush.msra.mxu0 %v11254
    %11606 = vmatpush.msra.mxu0 %v11253
    %11607 = vmatmul.f32.gmra.mxu0 %v10362
    %v11608 = vpop.f32.mrf.mxu0
    %v11609 = vadd.f32 %v11589, %v11608
    %11610 = vdwg.mxu0
    %11611 = vmatpush.msra.mxu0 %v11284
    %11612 = vmatpush.msra.mxu0 %v11283
    %11613 = vmatpush.msra.mxu0 %v11282
    %11614 = vmatpush.msra.mxu0 %v11281
    %11615 = vmatpush.msra.mxu0 %v11280
    %11616 = vmatpush.msra.mxu0 %v11279
    %11617 = vmatpush.msra.mxu0 %v11278
    %11618 = vmatpush.msra.mxu0 %v11277
    %11619 = vmatpush.msra.mxu0 %v11276
    %11620 = vmatpush.msra.mxu0 %v11275
    %11621 = vmatpush.msra.mxu0 %v11274
    %11622 = vmatpush.msra.mxu0 %v11273
    %11623 = vmatpush.msra.mxu0 %v11272
    %11624 = vmatpush.msra.mxu0 %v11271
    %11625 = vmatpush.msra.mxu0 %v11270
    %11626 = vmatpush.msra.mxu0 %v11269
    %11627 = vmatmul.f32.gmra.mxu0 %v10453
    %v11628 = vpop.f32.mrf.mxu0
    %v11629 = vadd.f32 %v11609, %v11628
    %11630 = vdwg.mxu0
    %11631 = vmatpush.msra.mxu0 %v11300
    %11632 = vmatpush.msra.mxu0 %v11299
    %11633 = vmatpush.msra.mxu0 %v11298
    %11634 = vmatpush.msra.mxu0 %v11297
    %11635 = vmatpush.msra.mxu0 %v11296
    %11636 = vmatpush.msra.mxu0 %v11295
    %11637 = vmatpush.msra.mxu0 %v11294
    %11638 = vmatpush.msra.mxu0 %v11293
    %11639 = vmatpush.msra.mxu0 %v11292
    %11640 = vmatpush.msra.mxu0 %v11291
    %11641 = vmatpush.msra.mxu0 %v11290
    %11642 = vmatpush.msra.mxu0 %v11289
    %11643 = vmatpush.msra.mxu0 %v11288
    %11644 = vmatpush.msra.mxu0 %v11287
    %11645 = vmatpush.msra.mxu0 %v11286
    %11646 = vmatpush.msra.mxu0 %v11285
    %11647 = vmatmul.f32.gmra.mxu0 %v10544
    %v11648 = vpop.f32.mrf.mxu0
    %v11649 = vadd.f32 %v11629, %v11648
    %11650 = vdwg.mxu0
    %11651 = vmatpush.msra.mxu0 %v11316
    %11652 = vmatpush.msra.mxu0 %v11315
    %11653 = vmatpush.msra.mxu0 %v11314
    %11654 = vmatpush.msra.mxu0 %v11313
    %11655 = vmatpush.msra.mxu0 %v11312
    %11656 = vmatpush.msra.mxu0 %v11311
    %11657 = vmatpush.msra.mxu0 %v11310
    %11658 = vmatpush.msra.mxu0 %v11309
    %11659 = vmatpush.msra.mxu0 %v11308
    %11660 = vmatpush.msra.mxu0 %v11307
    %11661 = vmatpush.msra.mxu0 %v11306
    %11662 = vmatpush.msra.mxu0 %v11305
    %11663 = vmatpush.msra.mxu0 %v11304
    %11664 = vmatpush.msra.mxu0 %v11303
    %11665 = vmatpush.msra.mxu0 %v11302
    %11666 = vmatpush.msra.mxu0 %v11301
    %11667 = vmatmul.f32.gmra.mxu0 %v10635
    %v11668 = vpop.f32.mrf.mxu0
    %v11669 = vadd.f32 %v11649, %v11668
    %11670 = vdwg.mxu0
    %11671 = vmatpush.msra.mxu0 %v11332
    %11672 = vmatpush.msra.mxu0 %v11331
    %11673 = vmatpush.msra.mxu0 %v11330
    %11674 = vmatpush.msra.mxu0 %v11329
    %11675 = vmatpush.msra.mxu0 %v11328
    %11676 = vmatpush.msra.mxu0 %v11327
    %11677 = vmatpush.msra.mxu0 %v11326
    %11678 = vmatpush.msra.mxu0 %v11325
    %11679 = vmatpush.msra.mxu0 %v11324
    %11680 = vmatpush.msra.mxu0 %v11323
    %11681 = vmatpush.msra.mxu0 %v11322
    %11682 = vmatpush.msra.mxu0 %v11321
    %11683 = vmatpush.msra.mxu0 %v11320
    %11684 = vmatpush.msra.mxu0 %v11319
    %11685 = vmatpush.msra.mxu0 %v11318
    %11686 = vmatpush.msra.mxu0 %v11317
    %11687 = vmatmul.f32.gmra.mxu0 %v10726
    %v11688 = vpop.f32.mrf.mxu0
    %v11689 = vadd.f32 %v11669, %v11688
    %11690 = vdwg.mxu0
    %11691 = vmatpush.msra.mxu0 %v11348
    %11692 = vmatpush.msra.mxu0 %v11347
    %11693 = vmatpush.msra.mxu0 %v11346
    %11694 = vmatpush.msra.mxu0 %v11345
    %11695 = vmatpush.msra.mxu0 %v11344
    %11696 = vmatpush.msra.mxu0 %v11343
    %11697 = vmatpush.msra.mxu0 %v11342
    %11698 = vmatpush.msra.mxu0 %v11341
    %11699 = vmatpush.msra.mxu0 %v11340
    %11700 = vmatpush.msra.mxu0 %v11339
    %11701 = vmatpush.msra.mxu0 %v11338
    %11702 = vmatpush.msra.mxu0 %v11337
    %11703 = vmatpush.msra.mxu0 %v11336
    %11704 = vmatpush.msra.mxu0 %v11335
    %11705 = vmatpush.msra.mxu0 %v11334
    %11706 = vmatpush.msra.mxu0 %v11333
    %11707 = vmatmul.f32.gmra.mxu0 %v10817
    %v11708 = vpop.f32.mrf.mxu0
    %v11709 = vadd.f32 %v11689, %v11708
    %11710 = vdwg.mxu0
    %11711 = vmatpush.msra.mxu0 %v11364
    %11712 = vmatpush.msra.mxu0 %v11363
    %11713 = vmatpush.msra.mxu0 %v11362
    %11714 = vmatpush.msra.mxu0 %v11361
    %11715 = vmatpush.msra.mxu0 %v11360
    %11716 = vmatpush.msra.mxu0 %v11359
    %11717 = vmatpush.msra.mxu0 %v11358
    %11718 = vmatpush.msra.mxu0 %v11357
    %11719 = vmatpush.msra.mxu0 %v11356
    %11720 = vmatpush.msra.mxu0 %v11355
    %11721 = vmatpush.msra.mxu0 %v11354
    %11722 = vmatpush.msra.mxu0 %v11353
    %11723 = vmatpush.msra.mxu0 %v11352
    %11724 = vmatpush.msra.mxu0 %v11351
    %11725 = vmatpush.msra.mxu0 %v11350
    %11726 = vmatpush.msra.mxu0 %v11349
    %11727 = vmatmul.f32.gmra.mxu0 %v10908
    %v11728 = vpop.f32.mrf.mxu0
    %v11729 = vadd.f32 %v11709, %v11728
    %11730 = vdwg.mxu0
    %11731 = vmatpush.msra.mxu0 %v11380
    %11732 = vmatpush.msra.mxu0 %v11379
    %11733 = vmatpush.msra.mxu0 %v11378
    %11734 = vmatpush.msra.mxu0 %v11377
    %11735 = vmatpush.msra.mxu0 %v11376
    %11736 = vmatpush.msra.mxu0 %v11375
    %11737 = vmatpush.msra.mxu0 %v11374
    %11738 = vmatpush.msra.mxu0 %v11373
    %11739 = vmatpush.msra.mxu0 %v11372
    %11740 = vmatpush.msra.mxu0 %v11371
    %11741 = vmatpush.msra.mxu0 %v11370
    %11742 = vmatpush.msra.mxu0 %v11369
    %11743 = vmatpush.msra.mxu0 %v11368
    %11744 = vmatpush.msra.mxu0 %v11367
    %11745 = vmatpush.msra.mxu0 %v11366
    %11746 = vmatpush.msra.mxu0 %v11365
    %11747 = vmatmul.f32.gmra.mxu0 %v10999
    %v11748 = vpop.f32.mrf.mxu0
    %v11749 = vadd.f32 %v11729, %v11748
    %11750 = vdwg.mxu0
    %11751 = vmatpush.msra.mxu0 0.0
    %11752 = vmatpush.msra.mxu0 0.0
    %11753 = vmatpush.msra.mxu0 0.0
    %11754 = vmatpush.msra.mxu0 0.0
    %11755 = vmatpush.msra.mxu0 0.0
    %11756 = vmatpush.msra.mxu0 0.0
    %11757 = vmatpush.msra.mxu0 0.0
    %11758 = vmatpush.msra.mxu0 0.0
    %11759 = vmatpush.msra.mxu0 0.0
    %11760 = vmatpush.msra.mxu0 0.0
    %11761 = vmatpush.msra.mxu0 %v11386
    %11762 = vmatpush.msra.mxu0 %v11385
    %11763 = vmatpush.msra.mxu0 %v11384
    %11764 = vmatpush.msra.mxu0 %v11383
    %11765 = vmatpush.msra.mxu0 %v11382
    %11766 = vmatpush.msra.mxu0 %v11381
    %11767 = vmatmul.f32.gmra.mxu0 %v11389
    %v11768 = vpop.f32.mrf.mxu0
    %v11769 = vadd.f32 %v11749, %v11768
    %11770 = vdwg.mxu0
    %v11771 = vmul.f32 %v9452, %v9452
    %v11772 = vmul.f32 %v9543, %v9543
    %v11773 = vmul.f32 %v9634, %v9634
    %v11774 = vmul.f32 %v9725, %v9725
    %v11775 = vmul.f32 %v9816, %v9816
    %v11776 = vmul.f32 %v9907, %v9907
    %v11777 = vmul.f32 %v9998, %v9998
    %v11778 = vmul.f32 %v10089, %v10089
    %v11779 = vmul.f32 %v10180, %v10180
    %v11780 = vmul.f32 %v10271, %v10271
    %v11781 = vmul.f32 %v10362, %v10362
    %v11782 = vmul.f32 %v10453, %v10453
    %v11783 = vmul.f32 %v10544, %v10544
    %v11784 = vmul.f32 %v10635, %v10635
    %v11785 = vmul.f32 %v10726, %v10726
    %v11786 = vmul.f32 %v10817, %v10817
    %v11787 = vmul.f32 %v10908, %v10908
    %v11788 = vmul.f32 %v10999, %v10999
    %v11789 = vmul.f32 %v11090, %v11090
    %v11791 = vsel %vm11387, %v11789, 0
    %11793 = vmatpush.msra.mxu0 %v11108
    %11794 = vmatpush.msra.mxu0 %v11107
    %11795 = vmatpush.msra.mxu0 %v11106
    %11796 = vmatpush.msra.mxu0 %v11105
    %11797 = vmatpush.msra.mxu0 %v11104
    %11798 = vmatpush.msra.mxu0 %v11103
    %11799 = vmatpush.msra.mxu0 %v11102
    %11800 = vmatpush.msra.mxu0 %v11101
    %11801 = vmatpush.msra.mxu0 %v11100
    %11802 = vmatpush.msra.mxu0 %v11099
    %11803 = vmatpush.msra.mxu0 %v11098
    %11804 = vmatpush.msra.mxu0 %v11097
    %11805 = vmatpush.msra.mxu0 %v11096
    %11806 = vmatpush.msra.mxu0 %v11095
    %11807 = vmatpush.msra.mxu0 %v11094
    %11808 = vmatpush.msra.mxu0 %v11093
    %11809 = vmatmul.f32.gmra.mxu0 %v11771
    %v11810 = vpop.f32.mrf.mxu0
    %v11811 = vadd.f32 0.0, %v11810
    %11812 = vdwg.mxu0
    %11813 = vmatpush.msra.mxu0 %v11124
    %11814 = vmatpush.msra.mxu0 %v11123
    %11815 = vmatpush.msra.mxu0 %v11122
    %11816 = vmatpush.msra.mxu0 %v11121
    %11817 = vmatpush.msra.mxu0 %v11120
    %11818 = vmatpush.msra.mxu0 %v11119
    %11819 = vmatpush.msra.mxu0 %v11118
    %11820 = vmatpush.msra.mxu0 %v11117
    %11821 = vmatpush.msra.mxu0 %v11116
    %11822 = vmatpush.msra.mxu0 %v11115
    %11823 = vmatpush.msra.mxu0 %v11114
    %11824 = vmatpush.msra.mxu0 %v11113
    %11825 = vmatpush.msra.mxu0 %v11112
    %11826 = vmatpush.msra.mxu0 %v11111
    %11827 = vmatpush.msra.mxu0 %v11110
    %11828 = vmatpush.msra.mxu0 %v11109
    %11829 = vmatmul.f32.gmra.mxu0 %v11772
    %v11830 = vpop.f32.mrf.mxu0
    %v11831 = vadd.f32 %v11811, %v11830
    %11832 = vdwg.mxu0
    %11833 = vmatpush.msra.mxu0 %v11140
    %11834 = vmatpush.msra.mxu0 %v11139
    %11835 = vmatpush.msra.mxu0 %v11138
    %11836 = vmatpush.msra.mxu0 %v11137
    %11837 = vmatpush.msra.mxu0 %v11136
    %11838 = vmatpush.msra.mxu0 %v11135
    %11839 = vmatpush.msra.mxu0 %v11134
    %11840 = vmatpush.msra.mxu0 %v11133
    %11841 = vmatpush.msra.mxu0 %v11132
    %11842 = vmatpush.msra.mxu0 %v11131
    %11843 = vmatpush.msra.mxu0 %v11130
    %11844 = vmatpush.msra.mxu0 %v11129
    %11845 = vmatpush.msra.mxu0 %v11128
    %11846 = vmatpush.msra.mxu0 %v11127
    %11847 = vmatpush.msra.mxu0 %v11126
    %11848 = vmatpush.msra.mxu0 %v11125
    %11849 = vmatmul.f32.gmra.mxu0 %v11773
    %v11850 = vpop.f32.mrf.mxu0
    %v11851 = vadd.f32 %v11831, %v11850
    %11852 = vdwg.mxu0
    %11853 = vmatpush.msra.mxu0 %v11156
    %11854 = vmatpush.msra.mxu0 %v11155
    %11855 = vmatpush.msra.mxu0 %v11154
    %11856 = vmatpush.msra.mxu0 %v11153
    %11857 = vmatpush.msra.mxu0 %v11152
    %11858 = vmatpush.msra.mxu0 %v11151
    %11859 = vmatpush.msra.mxu0 %v11150
    %11860 = vmatpush.msra.mxu0 %v11149
    %11861 = vmatpush.msra.mxu0 %v11148
    %11862 = vmatpush.msra.mxu0 %v11147
    %11863 = vmatpush.msra.mxu0 %v11146
    %11864 = vmatpush.msra.mxu0 %v11145
    %11865 = vmatpush.msra.mxu0 %v11144
    %11866 = vmatpush.msra.mxu0 %v11143
    %11867 = vmatpush.msra.mxu0 %v11142
    %11868 = vmatpush.msra.mxu0 %v11141
    %11869 = vmatmul.f32.gmra.mxu0 %v11774
    %v11870 = vpop.f32.mrf.mxu0
    %v11871 = vadd.f32 %v11851, %v11870
    %11872 = vdwg.mxu0
    %11873 = vmatpush.msra.mxu0 %v11172
    %11874 = vmatpush.msra.mxu0 %v11171
    %11875 = vmatpush.msra.mxu0 %v11170
    %11876 = vmatpush.msra.mxu0 %v11169
    %11877 = vmatpush.msra.mxu0 %v11168
    %11878 = vmatpush.msra.mxu0 %v11167
    %11879 = vmatpush.msra.mxu0 %v11166
    %11880 = vmatpush.msra.mxu0 %v11165
    %11881 = vmatpush.msra.mxu0 %v11164
    %11882 = vmatpush.msra.mxu0 %v11163
    %11883 = vmatpush.msra.mxu0 %v11162
    %11884 = vmatpush.msra.mxu0 %v11161
    %11885 = vmatpush.msra.mxu0 %v11160
    %11886 = vmatpush.msra.mxu0 %v11159
    %11887 = vmatpush.msra.mxu0 %v11158
    %11888 = vmatpush.msra.mxu0 %v11157
    %11889 = vmatmul.f32.gmra.mxu0 %v11775
    %v11890 = vpop.f32.mrf.mxu0
    %v11891 = vadd.f32 %v11871, %v11890
    %11892 = vdwg.mxu0
    %11893 = vmatpush.msra.mxu0 %v11188
    %11894 = vmatpush.msra.mxu0 %v11187
    %11895 = vmatpush.msra.mxu0 %v11186
    %11896 = vmatpush.msra.mxu0 %v11185
    %11897 = vmatpush.msra.mxu0 %v11184
    %11898 = vmatpush.msra.mxu0 %v11183
    %11899 = vmatpush.msra.mxu0 %v11182
    %11900 = vmatpush.msra.mxu0 %v11181
    %11901 = vmatpush.msra.mxu0 %v11180
    %11902 = vmatpush.msra.mxu0 %v11179
    %11903 = vmatpush.msra.mxu0 %v11178
    %11904 = vmatpush.msra.mxu0 %v11177
    %11905 = vmatpush.msra.mxu0 %v11176
    %11906 = vmatpush.msra.mxu0 %v11175
    %11907 = vmatpush.msra.mxu0 %v11174
    %11908 = vmatpush.msra.mxu0 %v11173
    %11909 = vmatmul.f32.gmra.mxu0 %v11776
    %v11910 = vpop.f32.mrf.mxu0
    %v11911 = vadd.f32 %v11891, %v11910
    %11912 = vdwg.mxu0
    %11913 = vmatpush.msra.mxu0 %v11204
    %11914 = vmatpush.msra.mxu0 %v11203
    %11915 = vmatpush.msra.mxu0 %v11202
    %11916 = vmatpush.msra.mxu0 %v11201
    %11917 = vmatpush.msra.mxu0 %v11200
    %11918 = vmatpush.msra.mxu0 %v11199
    %11919 = vmatpush.msra.mxu0 %v11198
    %11920 = vmatpush.msra.mxu0 %v11197
    %11921 = vmatpush.msra.mxu0 %v11196
    %11922 = vmatpush.msra.mxu0 %v11195
    %11923 = vmatpush.msra.mxu0 %v11194
    %11924 = vmatpush.msra.mxu0 %v11193
    %11925 = vmatpush.msra.mxu0 %v11192
    %11926 = vmatpush.msra.mxu0 %v11191
    %11927 = vmatpush.msra.mxu0 %v11190
    %11928 = vmatpush.msra.mxu0 %v11189
    %11929 = vmatmul.f32.gmra.mxu0 %v11777
    %v11930 = vpop.f32.mrf.mxu0
    %v11931 = vadd.f32 %v11911, %v11930
    %11932 = vdwg.mxu0
    %11933 = vmatpush.msra.mxu0 %v11220
    %11934 = vmatpush.msra.mxu0 %v11219
    %11935 = vmatpush.msra.mxu0 %v11218
    %11936 = vmatpush.msra.mxu0 %v11217
    %11937 = vmatpush.msra.mxu0 %v11216
    %11938 = vmatpush.msra.mxu0 %v11215
    %11939 = vmatpush.msra.mxu0 %v11214
    %11940 = vmatpush.msra.mxu0 %v11213
    %11941 = vmatpush.msra.mxu0 %v11212
    %11942 = vmatpush.msra.mxu0 %v11211
    %11943 = vmatpush.msra.mxu0 %v11210
    %11944 = vmatpush.msra.mxu0 %v11209
    %11945 = vmatpush.msra.mxu0 %v11208
    %11946 = vmatpush.msra.mxu0 %v11207
    %11947 = vmatpush.msra.mxu0 %v11206
    %11948 = vmatpush.msra.mxu0 %v11205
    %11949 = vmatmul.f32.gmra.mxu0 %v11778
    %v11950 = vpop.f32.mrf.mxu0
    %v11951 = vadd.f32 %v11931, %v11950
    %11952 = vdwg.mxu0
    %11953 = vmatpush.msra.mxu0 %v11236
    %11954 = vmatpush.msra.mxu0 %v11235
    %11955 = vmatpush.msra.mxu0 %v11234
    %11956 = vmatpush.msra.mxu0 %v11233
    %11957 = vmatpush.msra.mxu0 %v11232
    %11958 = vmatpush.msra.mxu0 %v11231
    %11959 = vmatpush.msra.mxu0 %v11230
    %11960 = vmatpush.msra.mxu0 %v11229
    %11961 = vmatpush.msra.mxu0 %v11228
    %11962 = vmatpush.msra.mxu0 %v11227
    %11963 = vmatpush.msra.mxu0 %v11226
    %11964 = vmatpush.msra.mxu0 %v11225
    %11965 = vmatpush.msra.mxu0 %v11224
    %11966 = vmatpush.msra.mxu0 %v11223
    %11967 = vmatpush.msra.mxu0 %v11222
    %11968 = vmatpush.msra.mxu0 %v11221
    %11969 = vmatmul.f32.gmra.mxu0 %v11779
    %v11970 = vpop.f32.mrf.mxu0
    %v11971 = vadd.f32 %v11951, %v11970
    %11972 = vdwg.mxu0
    %11973 = vmatpush.msra.mxu0 %v11252
    %11974 = vmatpush.msra.mxu0 %v11251
    %11975 = vmatpush.msra.mxu0 %v11250
    %11976 = vmatpush.msra.mxu0 %v11249
    %11977 = vmatpush.msra.mxu0 %v11248
    %11978 = vmatpush.msra.mxu0 %v11247
    %11979 = vmatpush.msra.mxu0 %v11246
    %11980 = vmatpush.msra.mxu0 %v11245
    %11981 = vmatpush.msra.mxu0 %v11244
    %11982 = vmatpush.msra.mxu0 %v11243
    %11983 = vmatpush.msra.mxu0 %v11242
    %11984 = vmatpush.msra.mxu0 %v11241
    %11985 = vmatpush.msra.mxu0 %v11240
    %11986 = vmatpush.msra.mxu0 %v11239
    %11987 = vmatpush.msra.mxu0 %v11238
    %11988 = vmatpush.msra.mxu0 %v11237
    %11989 = vmatmul.f32.gmra.mxu0 %v11780
    %v11990 = vpop.f32.mrf.mxu0
    %v11991 = vadd.f32 %v11971, %v11990
    %11992 = vdwg.mxu0
    %11993 = vmatpush.msra.mxu0 %v11268
    %11994 = vmatpush.msra.mxu0 %v11267
    %11995 = vmatpush.msra.mxu0 %v11266
    %11996 = vmatpush.msra.mxu0 %v11265
    %11997 = vmatpush.msra.mxu0 %v11264
    %11998 = vmatpush.msra.mxu0 %v11263
    %11999 = vmatpush.msra.mxu0 %v11262
    %12000 = vmatpush.msra.mxu0 %v11261
    %12001 = vmatpush.msra.mxu0 %v11260
    %12002 = vmatpush.msra.mxu0 %v11259
    %12003 = vmatpush.msra.mxu0 %v11258
    %12004 = vmatpush.msra.mxu0 %v11257
    %12005 = vmatpush.msra.mxu0 %v11256
    %12006 = vmatpush.msra.mxu0 %v11255
    %12007 = vmatpush.msra.mxu0 %v11254
    %12008 = vmatpush.msra.mxu0 %v11253
    %12009 = vmatmul.f32.gmra.mxu0 %v11781
    %v12010 = vpop.f32.mrf.mxu0
    %v12011 = vadd.f32 %v11991, %v12010
    %12012 = vdwg.mxu0
    %12013 = vmatpush.msra.mxu0 %v11284
    %12014 = vmatpush.msra.mxu0 %v11283
    %12015 = vmatpush.msra.mxu0 %v11282
    %12016 = vmatpush.msra.mxu0 %v11281
    %12017 = vmatpush.msra.mxu0 %v11280
    %12018 = vmatpush.msra.mxu0 %v11279
    %12019 = vmatpush.msra.mxu0 %v11278
    %12020 = vmatpush.msra.mxu0 %v11277
    %12021 = vmatpush.msra.mxu0 %v11276
    %12022 = vmatpush.msra.mxu0 %v11275
    %12023 = vmatpush.msra.mxu0 %v11274
    %12024 = vmatpush.msra.mxu0 %v11273
    %12025 = vmatpush.msra.mxu0 %v11272
    %12026 = vmatpush.msra.mxu0 %v11271
    %12027 = vmatpush.msra.mxu0 %v11270
    %12028 = vmatpush.msra.mxu0 %v11269
    %12029 = vmatmul.f32.gmra.mxu0 %v11782
    %v12030 = vpop.f32.mrf.mxu0
    %v12031 = vadd.f32 %v12011, %v12030
    %12032 = vdwg.mxu0
    %12033 = vmatpush.msra.mxu0 %v11300
    %12034 = vmatpush.msra.mxu0 %v11299
    %12035 = vmatpush.msra.mxu0 %v11298
    %12036 = vmatpush.msra.mxu0 %v11297
    %12037 = vmatpush.msra.mxu0 %v11296
    %12038 = vmatpush.msra.mxu0 %v11295
    %12039 = vmatpush.msra.mxu0 %v11294
    %12040 = vmatpush.msra.mxu0 %v11293
    %12041 = vmatpush.msra.mxu0 %v11292
    %12042 = vmatpush.msra.mxu0 %v11291
    %12043 = vmatpush.msra.mxu0 %v11290
    %12044 = vmatpush.msra.mxu0 %v11289
    %12045 = vmatpush.msra.mxu0 %v11288
    %12046 = vmatpush.msra.mxu0 %v11287
    %12047 = vmatpush.msra.mxu0 %v11286
    %12048 = vmatpush.msra.mxu0 %v11285
    %12049 = vmatmul.f32.gmra.mxu0 %v11783
    %v12050 = vpop.f32.mrf.mxu0
    %v12051 = vadd.f32 %v12031, %v12050
    %12052 = vdwg.mxu0
    %12053 = vmatpush.msra.mxu0 %v11316
    %12054 = vmatpush.msra.mxu0 %v11315
    %12055 = vmatpush.msra.mxu0 %v11314
    %12056 = vmatpush.msra.mxu0 %v11313
    %12057 = vmatpush.msra.mxu0 %v11312
    %12058 = vmatpush.msra.mxu0 %v11311
    %12059 = vmatpush.msra.mxu0 %v11310
    %12060 = vmatpush.msra.mxu0 %v11309
    %12061 = vmatpush.msra.mxu0 %v11308
    %12062 = vmatpush.msra.mxu0 %v11307
    %12063 = vmatpush.msra.mxu0 %v11306
    %12064 = vmatpush.msra.mxu0 %v11305
    %12065 = vmatpush.msra.mxu0 %v11304
    %12066 = vmatpush.msra.mxu0 %v11303
    %12067 = vmatpush.msra.mxu0 %v11302
    %12068 = vmatpush.msra.mxu0 %v11301
    %12069 = vmatmul.f32.gmra.mxu0 %v11784
    %v12070 = vpop.f32.mrf.mxu0
    %v12071 = vadd.f32 %v12051, %v12070
    %12072 = vdwg.mxu0
    %12073 = vmatpush.msra.mxu0 %v11332
    %12074 = vmatpush.msra.mxu0 %v11331
    %12075 = vmatpush.msra.mxu0 %v11330
    %12076 = vmatpush.msra.mxu0 %v11329
    %12077 = vmatpush.msra.mxu0 %v11328
    %12078 = vmatpush.msra.mxu0 %v11327
    %12079 = vmatpush.msra.mxu0 %v11326
    %12080 = vmatpush.msra.mxu0 %v11325
    %12081 = vmatpush.msra.mxu0 %v11324
    %12082 = vmatpush.msra.mxu0 %v11323
    %12083 = vmatpush.msra.mxu0 %v11322
    %12084 = vmatpush.msra.mxu0 %v11321
    %12085 = vmatpush.msra.mxu0 %v11320
    %12086 = vmatpush.msra.mxu0 %v11319
    %12087 = vmatpush.msra.mxu0 %v11318
    %12088 = vmatpush.msra.mxu0 %v11317
    %12089 = vmatmul.f32.gmra.mxu0 %v11785
    %v12090 = vpop.f32.mrf.mxu0
    %v12091 = vadd.f32 %v12071, %v12090
    %12092 = vdwg.mxu0
    %12093 = vmatpush.msra.mxu0 %v11348
    %12094 = vmatpush.msra.mxu0 %v11347
    %12095 = vmatpush.msra.mxu0 %v11346
    %12096 = vmatpush.msra.mxu0 %v11345
    %12097 = vmatpush.msra.mxu0 %v11344
    %12098 = vmatpush.msra.mxu0 %v11343
    %12099 = vmatpush.msra.mxu0 %v11342
    %12100 = vmatpush.msra.mxu0 %v11341
    %12101 = vmatpush.msra.mxu0 %v11340
    %12102 = vmatpush.msra.mxu0 %v11339
    %12103 = vmatpush.msra.mxu0 %v11338
    %12104 = vmatpush.msra.mxu0 %v11337
    %12105 = vmatpush.msra.mxu0 %v11336
    %12106 = vmatpush.msra.mxu0 %v11335
    %12107 = vmatpush.msra.mxu0 %v11334
    %12108 = vmatpush.msra.mxu0 %v11333
    %12109 = vmatmul.f32.gmra.mxu0 %v11786
    %v12110 = vpop.f32.mrf.mxu0
    %v12111 = vadd.f32 %v12091, %v12110
    %12112 = vdwg.mxu0
    %12113 = vmatpush.msra.mxu0 %v11364
    %12114 = vmatpush.msra.mxu0 %v11363
    %12115 = vmatpush.msra.mxu0 %v11362
    %12116 = vmatpush.msra.mxu0 %v11361
    %12117 = vmatpush.msra.mxu0 %v11360
    %12118 = vmatpush.msra.mxu0 %v11359
    %12119 = vmatpush.msra.mxu0 %v11358
    %12120 = vmatpush.msra.mxu0 %v11357
    %12121 = vmatpush.msra.mxu0 %v11356
    %12122 = vmatpush.msra.mxu0 %v11355
    %12123 = vmatpush.msra.mxu0 %v11354
    %12124 = vmatpush.msra.mxu0 %v11353
    %12125 = vmatpush.msra.mxu0 %v11352
    %12126 = vmatpush.msra.mxu0 %v11351
    %12127 = vmatpush.msra.mxu0 %v11350
    %12128 = vmatpush.msra.mxu0 %v11349
    %12129 = vmatmul.f32.gmra.mxu0 %v11787
    %v12130 = vpop.f32.mrf.mxu0
    %v12131 = vadd.f32 %v12111, %v12130
    %12132 = vdwg.mxu0
    %12133 = vmatpush.msra.mxu0 %v11380
    %12134 = vmatpush.msra.mxu0 %v11379
    %12135 = vmatpush.msra.mxu0 %v11378
    %12136 = vmatpush.msra.mxu0 %v11377
    %12137 = vmatpush.msra.mxu0 %v11376
    %12138 = vmatpush.msra.mxu0 %v11375
    %12139 = vmatpush.msra.mxu0 %v11374
    %12140 = vmatpush.msra.mxu0 %v11373
    %12141 = vmatpush.msra.mxu0 %v11372
    %12142 = vmatpush.msra.mxu0 %v11371
    %12143 = vmatpush.msra.mxu0 %v11370
    %12144 = vmatpush.msra.mxu0 %v11369
    %12145 = vmatpush.msra.mxu0 %v11368
    %12146 = vmatpush.msra.mxu0 %v11367
    %12147 = vmatpush.msra.mxu0 %v11366
    %12148 = vmatpush.msra.mxu0 %v11365
    %12149 = vmatmul.f32.gmra.mxu0 %v11788
    %v12150 = vpop.f32.mrf.mxu0
    %v12151 = vadd.f32 %v12131, %v12150
    %12152 = vdwg.mxu0
    %12153 = vmatpush.msra.mxu0 0.0
    %12154 = vmatpush.msra.mxu0 0.0
    %12155 = vmatpush.msra.mxu0 0.0
    %12156 = vmatpush.msra.mxu0 0.0
    %12157 = vmatpush.msra.mxu0 0.0
    %12158 = vmatpush.msra.mxu0 0.0
    %12159 = vmatpush.msra.mxu0 0.0
    %12160 = vmatpush.msra.mxu0 0.0
    %12161 = vmatpush.msra.mxu0 0.0
    %12162 = vmatpush.msra.mxu0 0.0
    %12163 = vmatpush.msra.mxu0 %v11386
    %12164 = vmatpush.msra.mxu0 %v11385
    %12165 = vmatpush.msra.mxu0 %v11384
    %12166 = vmatpush.msra.mxu0 %v11383
    %12167 = vmatpush.msra.mxu0 %v11382
    %12168 = vmatpush.msra.mxu0 %v11381
    %12169 = vmatmul.f32.gmra.mxu0 %v11791
    %v12170 = vpop.f32.mrf.mxu0
    %v12171 = vadd.f32 %v12151, %v12170
    %12172 = vdwg.mxu0
    %vm12173 = vcmask 17408
    %v12174 = vsel %vm12173, %v11769, 0.0
    %v12175 = vrot.slane %v12174, 4
    %v12176 = vadd.f32 %v12174, %v12175
    %v12177 = vrot.slane %v12176, 2
    %v12178 = vadd.f32 %v12176, %v12177
    %v12179 = vrot.slane %v12178, 1
    %v12180 = vadd.f32 %v12178, %v12179
    %v12181 = vsel %vm12173, %v12171, 0.0
    %v12182 = vrot.slane %v12181, 4
    %v12183 = vadd.f32 %v12181, %v12182
    %v12184 = vrot.slane %v12183, 2
    %v12185 = vadd.f32 %v12183, %v12184
    %v12186 = vrot.slane %v12185, 1
    %v12187 = vadd.f32 %v12185, %v12186
    %v12188 = vmul.f32 %v12180, 0.0006377551
    %v12189 = vmul.f32 %v12187, 0.0006377551
    %v12190 = vmul.f32 %v12188, %v12188
    %v12191 = vsub.f32 %v12189, %v12190
    %v12192 = vadd.f32 %v12191, 1e-05
    %v12193 = vrsqrt.pop %v12192
    %v12194 = vmul.f32 %v12193, %v12192
    %v12195 = vmul.f32 %v12194, %v12193
    %v12196 = vmul.f32 0.5, %v12195
    %v12197 = vsub.f32 1.5, %v12196
    %v12198 = vmul.f32 %v12193, %v12197
    %vm12199 = vweird.f32 %v12192
    %vm12200 = vweird.f32 %v12193
    %vm12201 = vmor %vm12199, %vm12200
    %v12202 = vsel %vm12201, %v12193, %v12198
    %v12203 = vld [vmem:[#allocation12] sm:$0x77]
    %v12204 = vld [vmem:[#allocation12 + $0x8] sm:$0x77]
    %v12205 = vld [vmem:[#allocation12 + $0x10] sm:$0x77]
    %v12206 = vld [vmem:[#allocation12 + $0x18] sm:$0x77]
    %v12207 = vld [vmem:[#allocation12 + $0x20] sm:$0x77]
    %v12208 = vld [vmem:[#allocation12 + $0x28] sm:$0x77]
    %v12209 = vld [vmem:[#allocation12 + $0x30] sm:$0x77]
    %v12210 = vld [vmem:[#allocation12 + $0x38] sm:$0x77]
    %v12211 = vld [vmem:[#allocation12 + $0x40] sm:$0x77]
    %v12212 = vld [vmem:[#allocation12 + $0x48] sm:$0x7]
    %12223 = vst [vmem:[#allocation1] ss:$2 sm:$0xff] %v12203
    %s12224 = scalar_lea.vmem [#allocation1], 16
    %12225 = vst [vmem:[%s12224] ss:$2 sm:$0xff] %v12204
    %s12226 = scalar_lea.vmem [#allocation1], 32
    %12227 = vst [vmem:[%s12226] ss:$2 sm:$0xff] %v12205
    %s12228 = scalar_lea.vmem [#allocation1], 48
    %12229 = vst [vmem:[%s12228] ss:$2 sm:$0xff] %v12206
    %v12230 = vld.sshfl [vmem:[#allocation1] sm:$0xff pattern:$0x75316420]
    %v12231 = vld.sshfl [vmem:[#allocation1 + $0x8] sm:$0xff pattern:$0x75316420]
    %v12232 = vld.sshfl [vmem:[#allocation1 + $0x10] sm:$0xff pattern:$0x75316420]
    %v12233 = vld.sshfl [vmem:[#allocation1 + $0x18] sm:$0xff pattern:$0x75316420]
    %v12234 = vld.sshfl [vmem:[#allocation1 + $0x20] sm:$0xff pattern:$0x75316420]
    %v12235 = vld.sshfl [vmem:[#allocation1 + $0x28] sm:$0xff pattern:$0x75316420]
    %v12236 = vld.sshfl [vmem:[#allocation1 + $0x30] sm:$0xff pattern:$0x75316420]
    %v12237 = vld.sshfl [vmem:[#allocation1 + $0x38] sm:$0xff pattern:$0x75316420]
    %12238 = vst [vmem:[#allocation1] ss:$2 sm:$0xff] %v12207
    %12239 = vst [vmem:[%s12224] ss:$2 sm:$0xff] %v12208
    %12240 = vst [vmem:[%s12226] ss:$2 sm:$0xff] %v12209
    %12241 = vst [vmem:[%s12228] ss:$2 sm:$0xff] %v12210
    %v12242 = vld.sshfl [vmem:[#allocation1] sm:$0xff pattern:$0x75316420]
    %v12243 = vld.sshfl [vmem:[#allocation1 + $0x8] sm:$0xff pattern:$0x75316420]
    %v12244 = vld.sshfl [vmem:[#allocation1 + $0x10] sm:$0xff pattern:$0x75316420]
    %v12245 = vld.sshfl [vmem:[#allocation1 + $0x18] sm:$0xff pattern:$0x75316420]
    %v12246 = vld.sshfl [vmem:[#allocation1 + $0x20] sm:$0xff pattern:$0x75316420]
    %v12247 = vld.sshfl [vmem:[#allocation1 + $0x28] sm:$0xff pattern:$0x75316420]
    %v12248 = vld.sshfl [vmem:[#allocation1 + $0x30] sm:$0xff pattern:$0x75316420]
    %v12249 = vld.sshfl [vmem:[#allocation1 + $0x38] sm:$0xff pattern:$0x75316420]
    %12250 = vst [vmem:[#allocation1] ss:$2 sm:$0xff] %v12211
    %12251 = vst [vmem:[%s12224] ss:$2 sm:$0xff] %v12212
    %v12252 = vld.sshfl [vmem:[#allocation1] sm:$0xff pattern:$0x75316420]
    %v12253 = vld.sshfl [vmem:[#allocation1 + $0x8] sm:$0xff pattern:$0x75316420]
    %v12254 = vld.sshfl [vmem:[#allocation1 + $0x10] sm:$0xff pattern:$0x75316420]
    %vm12255 = vcmask 23552
    %v12257 = vsel %vm12255, %v12188, 0
    %vm12259 = vcmask 1042432
    %v12260 = vsel %vm12259, %v12230, 0
    %v12262 = vsel %vm12259, %v12231, 0
    %v12264 = vsel %vm12259, %v12232, 0
    %v12266 = vsel %vm12259, %v12233, 0
    %v12268 = vsel %vm12259, %v12234, 0
    %v12270 = vsel %vm12259, %v12235, 0
    %v12272 = vsel %vm12259, %v12236, 0
    %v12274 = vsel %vm12259, %v12237, 0
    %v12276 = vsel %vm12259, %v12242, 0
    %v12278 = vsel %vm12259, %v12243, 0
    %v12280 = vsel %vm12259, %v12244, 0
    %v12282 = vsel %vm12259, %v12245, 0
    %v12284 = vsel %vm12259, %v12246, 0
    %v12286 = vsel %vm12259, %v12247, 0
    %v12288 = vsel %vm12259, %v12248, 0
    %v12290 = vsel %vm12259, %v12249, 0
    %v12292 = vsel %vm12259, %v12252, 0
    %v12294 = vsel %vm12259, %v12253, 0
    %v12296 = vsel %vm12259, %v12254, 0
    %12298 = vmatpush.msra.mxu0 0.0
    %12299 = vmatpush.msra.mxu0 0.0
    %12300 = vmatpush.msra.mxu0 0.0
    %12301 = vmatpush.msra.mxu0 0.0
    %12302 = vmatpush.msra.mxu0 0.0
    %12303 = vmatpush.msra.mxu0 0.0
    %12304 = vmatpush.msra.mxu0 0.0
    %12305 = vmatpush.msra.mxu0 0.0
    %12306 = vmatpush.msra.mxu0 0.0
    %12307 = vmatpush.msra.mxu0 0.0
    %12308 = vmatpush.msra.mxu0 0.0
    %12309 = vmatpush.msra.mxu0 0.0
    %12310 = vmatpush.msra.mxu0 0.0
    %12311 = vmatpush.msra.mxu0 0.0
    %12312 = vmatpush.msra.mxu0 0.0
    %12313 = vmatpush.msra.mxu0 %v12260
    %12314 = vmatmul.f32.gmra.mxu0 %v12257
    %v12315 = vpop.f32.mrf.mxu0
    %v12316 = vadd.f32 0.0, %v12315
    %12317 = vdwg.mxu0
    %12318 = vmatpush.msra.mxu0 0.0
    %12319 = vmatpush.msra.mxu0 0.0
    %12320 = vmatpush.msra.mxu0 0.0
    %12321 = vmatpush.msra.mxu0 0.0
    %12322 = vmatpush.msra.mxu0 0.0
    %12323 = vmatpush.msra.mxu0 0.0
    %12324 = vmatpush.msra.mxu0 0.0
    %12325 = vmatpush.msra.mxu0 0.0
    %12326 = vmatpush.msra.mxu0 0.0
    %12327 = vmatpush.msra.mxu0 0.0
    %12328 = vmatpush.msra.mxu0 0.0
    %12329 = vmatpush.msra.mxu0 0.0
    %12330 = vmatpush.msra.mxu0 0.0
    %12331 = vmatpush.msra.mxu0 0.0
    %12332 = vmatpush.msra.mxu0 0.0
    %12333 = vmatpush.msra.mxu0 %v12262
    %12334 = vmatmul.f32.gmra.mxu0 %v12257
    %v12335 = vpop.f32.mrf.mxu0
    %v12336 = vadd.f32 0.0, %v12335
    %12337 = vdwg.mxu0
    %12338 = vmatpush.msra.mxu0 0.0
    %12339 = vmatpush.msra.mxu0 0.0
    %12340 = vmatpush.msra.mxu0 0.0
    %12341 = vmatpush.msra.mxu0 0.0
    %12342 = vmatpush.msra.mxu0 0.0
    %12343 = vmatpush.msra.mxu0 0.0
    %12344 = vmatpush.msra.mxu0 0.0
    %12345 = vmatpush.msra.mxu0 0.0
    %12346 = vmatpush.msra.mxu0 0.0
    %12347 = vmatpush.msra.mxu0 0.0
    %12348 = vmatpush.msra.mxu0 0.0
    %12349 = vmatpush.msra.mxu0 0.0
    %12350 = vmatpush.msra.mxu0 0.0
    %12351 = vmatpush.msra.mxu0 0.0
    %12352 = vmatpush.msra.mxu0 0.0
    %12353 = vmatpush.msra.mxu0 %v12264
    %12354 = vmatmul.f32.gmra.mxu0 %v12257
    %v12355 = vpop.f32.mrf.mxu0
    %v12356 = vadd.f32 0.0, %v12355
    %12357 = vdwg.mxu0
    %12358 = vmatpush.msra.mxu0 0.0
    %12359 = vmatpush.msra.mxu0 0.0
    %12360 = vmatpush.msra.mxu0 0.0
    %12361 = vmatpush.msra.mxu0 0.0
    %12362 = vmatpush.msra.mxu0 0.0
    %12363 = vmatpush.msra.mxu0 0.0
    %12364 = vmatpush.msra.mxu0 0.0
    %12365 = vmatpush.msra.mxu0 0.0
    %12366 = vmatpush.msra.mxu0 0.0
    %12367 = vmatpush.msra.mxu0 0.0
    %12368 = vmatpush.msra.mxu0 0.0
    %12369 = vmatpush.msra.mxu0 0.0
    %12370 = vmatpush.msra.mxu0 0.0
    %12371 = vmatpush.msra.mxu0 0.0
    %12372 = vmatpush.msra.mxu0 0.0
    %12373 = vmatpush.msra.mxu0 %v12266
    %12374 = vmatmul.f32.gmra.mxu0 %v12257
    %v12375 = vpop.f32.mrf.mxu0
    %v12376 = vadd.f32 0.0, %v12375
    %12377 = vdwg.mxu0
    %12378 = vmatpush.msra.mxu0 0.0
    %12379 = vmatpush.msra.mxu0 0.0
    %12380 = vmatpush.msra.mxu0 0.0
    %12381 = vmatpush.msra.mxu0 0.0
    %12382 = vmatpush.msra.mxu0 0.0
    %12383 = vmatpush.msra.mxu0 0.0
    %12384 = vmatpush.msra.mxu0 0.0
    %12385 = vmatpush.msra.mxu0 0.0
    %12386 = vmatpush.msra.mxu0 0.0
    %12387 = vmatpush.msra.mxu0 0.0
    %12388 = vmatpush.msra.mxu0 0.0
    %12389 = vmatpush.msra.mxu0 0.0
    %12390 = vmatpush.msra.mxu0 0.0
    %12391 = vmatpush.msra.mxu0 0.0
    %12392 = vmatpush.msra.mxu0 0.0
    %12393 = vmatpush.msra.mxu0 %v12268
    %12394 = vmatmul.f32.gmra.mxu0 %v12257
    %v12395 = vpop.f32.mrf.mxu0
    %v12396 = vadd.f32 0.0, %v12395
    %12397 = vdwg.mxu0
    %12398 = vmatpush.msra.mxu0 0.0
    %12399 = vmatpush.msra.mxu0 0.0
    %12400 = vmatpush.msra.mxu0 0.0
    %12401 = vmatpush.msra.mxu0 0.0
    %12402 = vmatpush.msra.mxu0 0.0
    %12403 = vmatpush.msra.mxu0 0.0
    %12404 = vmatpush.msra.mxu0 0.0
    %12405 = vmatpush.msra.mxu0 0.0
    %12406 = vmatpush.msra.mxu0 0.0
    %12407 = vmatpush.msra.mxu0 0.0
    %12408 = vmatpush.msra.mxu0 0.0
    %12409 = vmatpush.msra.mxu0 0.0
    %12410 = vmatpush.msra.mxu0 0.0
    %12411 = vmatpush.msra.mxu0 0.0
    %12412 = vmatpush.msra.mxu0 0.0
    %12413 = vmatpush.msra.mxu0 %v12270
    %12414 = vmatmul.f32.gmra.mxu0 %v12257
    %v12415 = vpop.f32.mrf.mxu0
    %v12416 = vadd.f32 0.0, %v12415
    %12417 = vdwg.mxu0
    %12418 = vmatpush.msra.mxu0 0.0
    %12419 = vmatpush.msra.mxu0 0.0
    %12420 = vmatpush.msra.mxu0 0.0
    %12421 = vmatpush.msra.mxu0 0.0
    %12422 = vmatpush.msra.mxu0 0.0
    %12423 = vmatpush.msra.mxu0 0.0
    %12424 = vmatpush.msra.mxu0 0.0
    %12425 = vmatpush.msra.mxu0 0.0
    %12426 = vmatpush.msra.mxu0 0.0
    %12427 = vmatpush.msra.mxu0 0.0
    %12428 = vmatpush.msra.mxu0 0.0
    %12429 = vmatpush.msra.mxu0 0.0
    %12430 = vmatpush.msra.mxu0 0.0
    %12431 = vmatpush.msra.mxu0 0.0
    %12432 = vmatpush.msra.mxu0 0.0
    %12433 = vmatpush.msra.mxu0 %v12272
    %12434 = vmatmul.f32.gmra.mxu0 %v12257
    %v12435 = vpop.f32.mrf.mxu0
    %v12436 = vadd.f32 0.0, %v12435
    %12437 = vdwg.mxu0
    %12438 = vmatpush.msra.mxu0 0.0
    %12439 = vmatpush.msra.mxu0 0.0
    %12440 = vmatpush.msra.mxu0 0.0
    %12441 = vmatpush.msra.mxu0 0.0
    %12442 = vmatpush.msra.mxu0 0.0
    %12443 = vmatpush.msra.mxu0 0.0
    %12444 = vmatpush.msra.mxu0 0.0
    %12445 = vmatpush.msra.mxu0 0.0
    %12446 = vmatpush.msra.mxu0 0.0
    %12447 = vmatpush.msra.mxu0 0.0
    %12448 = vmatpush.msra.mxu0 0.0
    %12449 = vmatpush.msra.mxu0 0.0
    %12450 = vmatpush.msra.mxu0 0.0
    %12451 = vmatpush.msra.mxu0 0.0
    %12452 = vmatpush.msra.mxu0 0.0
    %12453 = vmatpush.msra.mxu0 %v12274
    %12454 = vmatmul.f32.gmra.mxu0 %v12257
    %v12455 = vpop.f32.mrf.mxu0
    %v12456 = vadd.f32 0.0, %v12455
    %12457 = vdwg.mxu0
    %12458 = vmatpush.msra.mxu0 0.0
    %12459 = vmatpush.msra.mxu0 0.0
    %12460 = vmatpush.msra.mxu0 0.0
    %12461 = vmatpush.msra.mxu0 0.0
    %12462 = vmatpush.msra.mxu0 0.0
    %12463 = vmatpush.msra.mxu0 0.0
    %12464 = vmatpush.msra.mxu0 0.0
    %12465 = vmatpush.msra.mxu0 0.0
    %12466 = vmatpush.msra.mxu0 0.0
    %12467 = vmatpush.msra.mxu0 0.0
    %12468 = vmatpush.msra.mxu0 0.0
    %12469 = vmatpush.msra.mxu0 0.0
    %12470 = vmatpush.msra.mxu0 0.0
    %12471 = vmatpush.msra.mxu0 0.0
    %12472 = vmatpush.msra.mxu0 0.0
    %12473 = vmatpush.msra.mxu0 %v12276
    %12474 = vmatmul.f32.gmra.mxu0 %v12257
    %v12475 = vpop.f32.mrf.mxu0
    %v12476 = vadd.f32 0.0, %v12475
    %12477 = vdwg.mxu0
    %12478 = vmatpush.msra.mxu0 0.0
    %12479 = vmatpush.msra.mxu0 0.0
    %12480 = vmatpush.msra.mxu0 0.0
    %12481 = vmatpush.msra.mxu0 0.0
    %12482 = vmatpush.msra.mxu0 0.0
    %12483 = vmatpush.msra.mxu0 0.0
    %12484 = vmatpush.msra.mxu0 0.0
    %12485 = vmatpush.msra.mxu0 0.0
    %12486 = vmatpush.msra.mxu0 0.0
    %12487 = vmatpush.msra.mxu0 0.0
    %12488 = vmatpush.msra.mxu0 0.0
    %12489 = vmatpush.msra.mxu0 0.0
    %12490 = vmatpush.msra.mxu0 0.0
    %12491 = vmatpush.msra.mxu0 0.0
    %12492 = vmatpush.msra.mxu0 0.0
    %12493 = vmatpush.msra.mxu0 %v12278
    %12494 = vmatmul.f32.gmra.mxu0 %v12257
    %v12495 = vpop.f32.mrf.mxu0
    %v12496 = vadd.f32 0.0, %v12495
    %12497 = vdwg.mxu0
    %12498 = vmatpush.msra.mxu0 0.0
    %12499 = vmatpush.msra.mxu0 0.0
    %12500 = vmatpush.msra.mxu0 0.0
    %12501 = vmatpush.msra.mxu0 0.0
    %12502 = vmatpush.msra.mxu0 0.0
    %12503 = vmatpush.msra.mxu0 0.0
    %12504 = vmatpush.msra.mxu0 0.0
    %12505 = vmatpush.msra.mxu0 0.0
    %12506 = vmatpush.msra.mxu0 0.0
    %12507 = vmatpush.msra.mxu0 0.0
    %12508 = vmatpush.msra.mxu0 0.0
    %12509 = vmatpush.msra.mxu0 0.0
    %12510 = vmatpush.msra.mxu0 0.0
    %12511 = vmatpush.msra.mxu0 0.0
    %12512 = vmatpush.msra.mxu0 0.0
    %12513 = vmatpush.msra.mxu0 %v12280
    %12514 = vmatmul.f32.gmra.mxu0 %v12257
    %v12515 = vpop.f32.mrf.mxu0
    %v12516 = vadd.f32 0.0, %v12515
    %12517 = vdwg.mxu0
    %12518 = vmatpush.msra.mxu0 0.0
    %12519 = vmatpush.msra.mxu0 0.0
    %12520 = vmatpush.msra.mxu0 0.0
    %12521 = vmatpush.msra.mxu0 0.0
    %12522 = vmatpush.msra.mxu0 0.0
    %12523 = vmatpush.msra.mxu0 0.0
    %12524 = vmatpush.msra.mxu0 0.0
    %12525 = vmatpush.msra.mxu0 0.0
    %12526 = vmatpush.msra.mxu0 0.0
    %12527 = vmatpush.msra.mxu0 0.0
    %12528 = vmatpush.msra.mxu0 0.0
    %12529 = vmatpush.msra.mxu0 0.0
    %12530 = vmatpush.msra.mxu0 0.0
    %12531 = vmatpush.msra.mxu0 0.0
    %12532 = vmatpush.msra.mxu0 0.0
    %12533 = vmatpush.msra.mxu0 %v12282
    %12534 = vmatmul.f32.gmra.mxu0 %v12257
    %v12535 = vpop.f32.mrf.mxu0
    %v12536 = vadd.f32 0.0, %v12535
    %12537 = vdwg.mxu0
    %12538 = vmatpush.msra.mxu0 0.0
    %12539 = vmatpush.msra.mxu0 0.0
    %12540 = vmatpush.msra.mxu0 0.0
    %12541 = vmatpush.msra.mxu0 0.0
    %12542 = vmatpush.msra.mxu0 0.0
    %12543 = vmatpush.msra.mxu0 0.0
    %12544 = vmatpush.msra.mxu0 0.0
    %12545 = vmatpush.msra.mxu0 0.0
    %12546 = vmatpush.msra.mxu0 0.0
    %12547 = vmatpush.msra.mxu0 0.0
    %12548 = vmatpush.msra.mxu0 0.0
    %12549 = vmatpush.msra.mxu0 0.0
    %12550 = vmatpush.msra.mxu0 0.0
    %12551 = vmatpush.msra.mxu0 0.0
    %12552 = vmatpush.msra.mxu0 0.0
    %12553 = vmatpush.msra.mxu0 %v12284
    %12554 = vmatmul.f32.gmra.mxu0 %v12257
    %v12555 = vpop.f32.mrf.mxu0
    %v12556 = vadd.f32 0.0, %v12555
    %12557 = vdwg.mxu0
    %12558 = vmatpush.msra.mxu0 0.0
    %12559 = vmatpush.msra.mxu0 0.0
    %12560 = vmatpush.msra.mxu0 0.0
    %12561 = vmatpush.msra.mxu0 0.0
    %12562 = vmatpush.msra.mxu0 0.0
    %12563 = vmatpush.msra.mxu0 0.0
    %12564 = vmatpush.msra.mxu0 0.0
    %12565 = vmatpush.msra.mxu0 0.0
    %12566 = vmatpush.msra.mxu0 0.0
    %12567 = vmatpush.msra.mxu0 0.0
    %12568 = vmatpush.msra.mxu0 0.0
    %12569 = vmatpush.msra.mxu0 0.0
    %12570 = vmatpush.msra.mxu0 0.0
    %12571 = vmatpush.msra.mxu0 0.0
    %12572 = vmatpush.msra.mxu0 0.0
    %12573 = vmatpush.msra.mxu0 %v12286
    %12574 = vmatmul.f32.gmra.mxu0 %v12257
    %v12575 = vpop.f32.mrf.mxu0
    %v12576 = vadd.f32 0.0, %v12575
    %12577 = vdwg.mxu0
    %12578 = vmatpush.msra.mxu0 0.0
    %12579 = vmatpush.msra.mxu0 0.0
    %12580 = vmatpush.msra.mxu0 0.0
    %12581 = vmatpush.msra.mxu0 0.0
    %12582 = vmatpush.msra.mxu0 0.0
    %12583 = vmatpush.msra.mxu0 0.0
    %12584 = vmatpush.msra.mxu0 0.0
    %12585 = vmatpush.msra.mxu0 0.0
    %12586 = vmatpush.msra.mxu0 0.0
    %12587 = vmatpush.msra.mxu0 0.0
    %12588 = vmatpush.msra.mxu0 0.0
    %12589 = vmatpush.msra.mxu0 0.0
    %12590 = vmatpush.msra.mxu0 0.0
    %12591 = vmatpush.msra.mxu0 0.0
    %12592 = vmatpush.msra.mxu0 0.0
    %12593 = vmatpush.msra.mxu0 %v12288
    %12594 = vmatmul.f32.gmra.mxu0 %v12257
    %v12595 = vpop.f32.mrf.mxu0
    %v12596 = vadd.f32 0.0, %v12595
    %12597 = vdwg.mxu0
    %12598 = vmatpush.msra.mxu0 0.0
    %12599 = vmatpush.msra.mxu0 0.0
    %12600 = vmatpush.msra.mxu0 0.0
    %12601 = vmatpush.msra.mxu0 0.0
    %12602 = vmatpush.msra.mxu0 0.0
    %12603 = vmatpush.msra.mxu0 0.0
    %12604 = vmatpush.msra.mxu0 0.0
    %12605 = vmatpush.msra.mxu0 0.0
    %12606 = vmatpush.msra.mxu0 0.0
    %12607 = vmatpush.msra.mxu0 0.0
    %12608 = vmatpush.msra.mxu0 0.0
    %12609 = vmatpush.msra.mxu0 0.0
    %12610 = vmatpush.msra.mxu0 0.0
    %12611 = vmatpush.msra.mxu0 0.0
    %12612 = vmatpush.msra.mxu0 0.0
    %12613 = vmatpush.msra.mxu0 %v12290
    %12614 = vmatmul.f32.gmra.mxu0 %v12257
    %v12615 = vpop.f32.mrf.mxu0
    %v12616 = vadd.f32 0.0, %v12615
    %12617 = vdwg.mxu0
    %12618 = vmatpush.msra.mxu0 0.0
    %12619 = vmatpush.msra.mxu0 0.0
    %12620 = vmatpush.msra.mxu0 0.0
    %12621 = vmatpush.msra.mxu0 0.0
    %12622 = vmatpush.msra.mxu0 0.0
    %12623 = vmatpush.msra.mxu0 0.0
    %12624 = vmatpush.msra.mxu0 0.0
    %12625 = vmatpush.msra.mxu0 0.0
    %12626 = vmatpush.msra.mxu0 0.0
    %12627 = vmatpush.msra.mxu0 0.0
    %12628 = vmatpush.msra.mxu0 0.0
    %12629 = vmatpush.msra.mxu0 0.0
    %12630 = vmatpush.msra.mxu0 0.0
    %12631 = vmatpush.msra.mxu0 0.0
    %12632 = vmatpush.msra.mxu0 0.0
    %12633 = vmatpush.msra.mxu0 %v12292
    %12634 = vmatmul.f32.gmra.mxu0 %v12257
    %v12635 = vpop.f32.mrf.mxu0
    %v12636 = vadd.f32 0.0, %v12635
    %12637 = vdwg.mxu0
    %12638 = vmatpush.msra.mxu0 0.0
    %12639 = vmatpush.msra.mxu0 0.0
    %12640 = vmatpush.msra.mxu0 0.0
    %12641 = vmatpush.msra.mxu0 0.0
    %12642 = vmatpush.msra.mxu0 0.0
    %12643 = vmatpush.msra.mxu0 0.0
    %12644 = vmatpush.msra.mxu0 0.0
    %12645 = vmatpush.msra.mxu0 0.0
    %12646 = vmatpush.msra.mxu0 0.0
    %12647 = vmatpush.msra.mxu0 0.0
    %12648 = vmatpush.msra.mxu0 0.0
    %12649 = vmatpush.msra.mxu0 0.0
    %12650 = vmatpush.msra.mxu0 0.0
    %12651 = vmatpush.msra.mxu0 0.0
    %12652 = vmatpush.msra.mxu0 0.0
    %12653 = vmatpush.msra.mxu0 %v12294
    %12654 = vmatmul.f32.gmra.mxu0 %v12257
    %v12655 = vpop.f32.mrf.mxu0
    %v12656 = vadd.f32 0.0, %v12655
    %12657 = vdwg.mxu0
    %12658 = vmatpush.msra.mxu0 0.0
    %12659 = vmatpush.msra.mxu0 0.0
    %12660 = vmatpush.msra.mxu0 0.0
    %12661 = vmatpush.msra.mxu0 0.0
    %12662 = vmatpush.msra.mxu0 0.0
    %12663 = vmatpush.msra.mxu0 0.0
    %12664 = vmatpush.msra.mxu0 0.0
    %12665 = vmatpush.msra.mxu0 0.0
    %12666 = vmatpush.msra.mxu0 0.0
    %12667 = vmatpush.msra.mxu0 0.0
    %12668 = vmatpush.msra.mxu0 0.0
    %12669 = vmatpush.msra.mxu0 0.0
    %12670 = vmatpush.msra.mxu0 0.0
    %12671 = vmatpush.msra.mxu0 0.0
    %12672 = vmatpush.msra.mxu0 0.0
    %12673 = vmatpush.msra.mxu0 %v12296
    %12674 = vmatmul.f32.gmra.mxu0 %v12257
    %v12675 = vpop.f32.mrf.mxu0
    %v12676 = vadd.f32 0.0, %v12675
    %12677 = vdwg.mxu0
    %12678 = vst [vmem:[#allocation1] ss:$2 sm:$0xff] %v12203
    %s12679 = scalar_lea.vmem [#allocation1], 16
    %12680 = vst [vmem:[%s12679] ss:$2 sm:$0xff] %v12204
    %s12681 = scalar_lea.vmem [#allocation1], 32
    %12682 = vst [vmem:[%s12681] ss:$2 sm:$0xff] %v12205
    %s12683 = scalar_lea.vmem [#allocation1], 48
    %12684 = vst [vmem:[%s12683] ss:$2 sm:$0xff] %v12206
    %v12685 = vld.sshfl [vmem:[#allocation1] sm:$0xff pattern:$0x75316420]
    %v12686 = vld.sshfl [vmem:[#allocation1 + $0x8] sm:$0xff pattern:$0x75316420]
    %v12687 = vld.sshfl [vmem:[#allocation1 + $0x10] sm:$0xff pattern:$0x75316420]
    %v12688 = vld.sshfl [vmem:[#allocation1 + $0x18] sm:$0xff pattern:$0x75316420]
    %v12689 = vld.sshfl [vmem:[#allocation1 + $0x20] sm:$0xff pattern:$0x75316420]
    %v12690 = vld.sshfl [vmem:[#allocation1 + $0x28] sm:$0xff pattern:$0x75316420]
    %v12691 = vld.sshfl [vmem:[#allocation1 + $0x30] sm:$0xff pattern:$0x75316420]
    %v12692 = vld.sshfl [vmem:[#allocation1 + $0x38] sm:$0xff pattern:$0x75316420]
    %12693 = vst [vmem:[#allocation1] ss:$2 sm:$0xff] %v12207
    %12694 = vst [vmem:[%s12679] ss:$2 sm:$0xff] %v12208
    %12695 = vst [vmem:[%s12681] ss:$2 sm:$0xff] %v12209
    %12696 = vst [vmem:[%s12683] ss:$2 sm:$0xff] %v12210
    %v12697 = vld.sshfl [vmem:[#allocation1] sm:$0xff pattern:$0x75316420]
    %v12698 = vld.sshfl [vmem:[#allocation1 + $0x8] sm:$0xff pattern:$0x75316420]
    %v12699 = vld.sshfl [vmem:[#allocation1 + $0x10] sm:$0xff pattern:$0x75316420]
    %v12700 = vld.sshfl [vmem:[#allocation1 + $0x18] sm:$0xff pattern:$0x75316420]
    %v12701 = vld.sshfl [vmem:[#allocation1 + $0x20] sm:$0xff pattern:$0x75316420]
    %v12702 = vld.sshfl [vmem:[#allocation1 + $0x28] sm:$0xff pattern:$0x75316420]
    %v12703 = vld.sshfl [vmem:[#allocation1 + $0x30] sm:$0xff pattern:$0x75316420]
    %v12704 = vld.sshfl [vmem:[#allocation1 + $0x38] sm:$0xff pattern:$0x75316420]
    %12705 = vst [vmem:[#allocation1] ss:$2 sm:$0xff] %v12211
    %12706 = vst [vmem:[%s12679] ss:$2 sm:$0xff] %v12212
    %v12707 = vld.sshfl [vmem:[#allocation1] sm:$0xff pattern:$0x75316420]
    %v12708 = vld.sshfl [vmem:[#allocation1 + $0x8] sm:$0xff pattern:$0x75316420]
    %v12709 = vld.sshfl [vmem:[#allocation1 + $0x10] sm:$0xff pattern:$0x75316420]
    %v12711 = vsel %vm12255, %v12202, 0
    %v12713 = vsel %vm12259, %v12685, 0
    %v12715 = vsel %vm12259, %v12686, 0
    %v12717 = vsel %vm12259, %v12687, 0
    %v12719 = vsel %vm12259, %v12688, 0
    %v12721 = vsel %vm12259, %v12689, 0
    %v12723 = vsel %vm12259, %v12690, 0
    %v12725 = vsel %vm12259, %v12691, 0
    %v12727 = vsel %vm12259, %v12692, 0
    %v12729 = vsel %vm12259, %v12697, 0
    %v12731 = vsel %vm12259, %v12698, 0
    %v12733 = vsel %vm12259, %v12699, 0
    %v12735 = vsel %vm12259, %v12700, 0
    %v12737 = vsel %vm12259, %v12701, 0
    %v12739 = vsel %vm12259, %v12702, 0
    %v12741 = vsel %vm12259, %v12703, 0
    %v12743 = vsel %vm12259, %v12704, 0
    %v12745 = vsel %vm12259, %v12707, 0
    %v12747 = vsel %vm12259, %v12708, 0
    %v12749 = vsel %vm12259, %v12709, 0
    %12751 = vmatpush.msra.mxu0 0.0
    %12752 = vmatpush.msra.mxu0 0.0
    %12753 = vmatpush.msra.mxu0 0.0
    %12754 = vmatpush.msra.mxu0 0.0
    %12755 = vmatpush.msra.mxu0 0.0
    %12756 = vmatpush.msra.mxu0 0.0
    %12757 = vmatpush.msra.mxu0 0.0
    %12758 = vmatpush.msra.mxu0 0.0
    %12759 = vmatpush.msra.mxu0 0.0
    %12760 = vmatpush.msra.mxu0 0.0
    %12761 = vmatpush.msra.mxu0 0.0
    %12762 = vmatpush.msra.mxu0 0.0
    %12763 = vmatpush.msra.mxu0 0.0
    %12764 = vmatpush.msra.mxu0 0.0
    %12765 = vmatpush.msra.mxu0 0.0
    %12766 = vmatpush.msra.mxu0 %v12713
    %12767 = vmatmul.f32.gmra.mxu0 %v12711
    %v12768 = vpop.f32.mrf.mxu0
    %v12769 = vadd.f32 0.0, %v12768
    %12770 = vdwg.mxu0
    %12771 = vmatpush.msra.mxu0 0.0
    %12772 = vmatpush.msra.mxu0 0.0
    %12773 = vmatpush.msra.mxu0 0.0
    %12774 = vmatpush.msra.mxu0 0.0
    %12775 = vmatpush.msra.mxu0 0.0
    %12776 = vmatpush.msra.mxu0 0.0
    %12777 = vmatpush.msra.mxu0 0.0
    %12778 = vmatpush.msra.mxu0 0.0
    %12779 = vmatpush.msra.mxu0 0.0
    %12780 = vmatpush.msra.mxu0 0.0
    %12781 = vmatpush.msra.mxu0 0.0
    %12782 = vmatpush.msra.mxu0 0.0
    %12783 = vmatpush.msra.mxu0 0.0
    %12784 = vmatpush.msra.mxu0 0.0
    %12785 = vmatpush.msra.mxu0 0.0
    %12786 = vmatpush.msra.mxu0 %v12715
    %12787 = vmatmul.f32.gmra.mxu0 %v12711
    %v12788 = vpop.f32.mrf.mxu0
    %v12789 = vadd.f32 0.0, %v12788
    %12790 = vdwg.mxu0
    %12791 = vmatpush.msra.mxu0 0.0
    %12792 = vmatpush.msra.mxu0 0.0
    %12793 = vmatpush.msra.mxu0 0.0
    %12794 = vmatpush.msra.mxu0 0.0
    %12795 = vmatpush.msra.mxu0 0.0
    %12796 = vmatpush.msra.mxu0 0.0
    %12797 = vmatpush.msra.mxu0 0.0
    %12798 = vmatpush.msra.mxu0 0.0
    %12799 = vmatpush.msra.mxu0 0.0
    %12800 = vmatpush.msra.mxu0 0.0
    %12801 = vmatpush.msra.mxu0 0.0
    %12802 = vmatpush.msra.mxu0 0.0
    %12803 = vmatpush.msra.mxu0 0.0
    %12804 = vmatpush.msra.mxu0 0.0
    %12805 = vmatpush.msra.mxu0 0.0
    %12806 = vmatpush.msra.mxu0 %v12717
    %12807 = vmatmul.f32.gmra.mxu0 %v12711
    %v12808 = vpop.f32.mrf.mxu0
    %v12809 = vadd.f32 0.0, %v12808
    %12810 = vdwg.mxu0
    %12811 = vmatpush.msra.mxu0 0.0
    %12812 = vmatpush.msra.mxu0 0.0
    %12813 = vmatpush.msra.mxu0 0.0
    %12814 = vmatpush.msra.mxu0 0.0
    %12815 = vmatpush.msra.mxu0 0.0
    %12816 = vmatpush.msra.mxu0 0.0
    %12817 = vmatpush.msra.mxu0 0.0
    %12818 = vmatpush.msra.mxu0 0.0
    %12819 = vmatpush.msra.mxu0 0.0
    %12820 = vmatpush.msra.mxu0 0.0
    %12821 = vmatpush.msra.mxu0 0.0
    %12822 = vmatpush.msra.mxu0 0.0
    %12823 = vmatpush.msra.mxu0 0.0
    %12824 = vmatpush.msra.mxu0 0.0
    %12825 = vmatpush.msra.mxu0 0.0
    %12826 = vmatpush.msra.mxu0 %v12719
    %12827 = vmatmul.f32.gmra.mxu0 %v12711
    %v12828 = vpop.f32.mrf.mxu0
    %v12829 = vadd.f32 0.0, %v12828
    %12830 = vdwg.mxu0
    %12831 = vmatpush.msra.mxu0 0.0
    %12832 = vmatpush.msra.mxu0 0.0
    %12833 = vmatpush.msra.mxu0 0.0
    %12834 = vmatpush.msra.mxu0 0.0
    %12835 = vmatpush.msra.mxu0 0.0
    %12836 = vmatpush.msra.mxu0 0.0
    %12837 = vmatpush.msra.mxu0 0.0
    %12838 = vmatpush.msra.mxu0 0.0
    %12839 = vmatpush.msra.mxu0 0.0
    %12840 = vmatpush.msra.mxu0 0.0
    %12841 = vmatpush.msra.mxu0 0.0
    %12842 = vmatpush.msra.mxu0 0.0
    %12843 = vmatpush.msra.mxu0 0.0
    %12844 = vmatpush.msra.mxu0 0.0
    %12845 = vmatpush.msra.mxu0 0.0
    %12846 = vmatpush.msra.mxu0 %v12721
    %12847 = vmatmul.f32.gmra.mxu0 %v12711
    %v12848 = vpop.f32.mrf.mxu0
    %v12849 = vadd.f32 0.0, %v12848
    %12850 = vdwg.mxu0
    %12851 = vmatpush.msra.mxu0 0.0
    %12852 = vmatpush.msra.mxu0 0.0
    %12853 = vmatpush.msra.mxu0 0.0
    %12854 = vmatpush.msra.mxu0 0.0
    %12855 = vmatpush.msra.mxu0 0.0
    %12856 = vmatpush.msra.mxu0 0.0
    %12857 = vmatpush.msra.mxu0 0.0
    %12858 = vmatpush.msra.mxu0 0.0
    %12859 = vmatpush.msra.mxu0 0.0
    %12860 = vmatpush.msra.mxu0 0.0
    %12861 = vmatpush.msra.mxu0 0.0
    %12862 = vmatpush.msra.mxu0 0.0
    %12863 = vmatpush.msra.mxu0 0.0
    %12864 = vmatpush.msra.mxu0 0.0
    %12865 = vmatpush.msra.mxu0 0.0
    %12866 = vmatpush.msra.mxu0 %v12723
    %12867 = vmatmul.f32.gmra.mxu0 %v12711
    %v12868 = vpop.f32.mrf.mxu0
    %v12869 = vadd.f32 0.0, %v12868
    %12870 = vdwg.mxu0
    %12871 = vmatpush.msra.mxu0 0.0
    %12872 = vmatpush.msra.mxu0 0.0
    %12873 = vmatpush.msra.mxu0 0.0
    %12874 = vmatpush.msra.mxu0 0.0
    %12875 = vmatpush.msra.mxu0 0.0
    %12876 = vmatpush.msra.mxu0 0.0
    %12877 = vmatpush.msra.mxu0 0.0
    %12878 = vmatpush.msra.mxu0 0.0
    %12879 = vmatpush.msra.mxu0 0.0
    %12880 = vmatpush.msra.mxu0 0.0
    %12881 = vmatpush.msra.mxu0 0.0
    %12882 = vmatpush.msra.mxu0 0.0
    %12883 = vmatpush.msra.mxu0 0.0
    %12884 = vmatpush.msra.mxu0 0.0
    %12885 = vmatpush.msra.mxu0 0.0
    %12886 = vmatpush.msra.mxu0 %v12725
    %12887 = vmatmul.f32.gmra.mxu0 %v12711
    %v12888 = vpop.f32.mrf.mxu0
    %v12889 = vadd.f32 0.0, %v12888
    %12890 = vdwg.mxu0
    %12891 = vmatpush.msra.mxu0 0.0
    %12892 = vmatpush.msra.mxu0 0.0
    %12893 = vmatpush.msra.mxu0 0.0
    %12894 = vmatpush.msra.mxu0 0.0
    %12895 = vmatpush.msra.mxu0 0.0
    %12896 = vmatpush.msra.mxu0 0.0
    %12897 = vmatpush.msra.mxu0 0.0
    %12898 = vmatpush.msra.mxu0 0.0
    %12899 = vmatpush.msra.mxu0 0.0
    %12900 = vmatpush.msra.mxu0 0.0
    %12901 = vmatpush.msra.mxu0 0.0
    %12902 = vmatpush.msra.mxu0 0.0
    %12903 = vmatpush.msra.mxu0 0.0
    %12904 = vmatpush.msra.mxu0 0.0
    %12905 = vmatpush.msra.mxu0 0.0
    %12906 = vmatpush.msra.mxu0 %v12727
    %12907 = vmatmul.f32.gmra.mxu0 %v12711
    %v12908 = vpop.f32.mrf.mxu0
    %v12909 = vadd.f32 0.0, %v12908
    %12910 = vdwg.mxu0
    %12911 = vmatpush.msra.mxu0 0.0
    %12912 = vmatpush.msra.mxu0 0.0
    %12913 = vmatpush.msra.mxu0 0.0
    %12914 = vmatpush.msra.mxu0 0.0
    %12915 = vmatpush.msra.mxu0 0.0
    %12916 = vmatpush.msra.mxu0 0.0
    %12917 = vmatpush.msra.mxu0 0.0
    %12918 = vmatpush.msra.mxu0 0.0
    %12919 = vmatpush.msra.mxu0 0.0
    %12920 = vmatpush.msra.mxu0 0.0
    %12921 = vmatpush.msra.mxu0 0.0
    %12922 = vmatpush.msra.mxu0 0.0
    %12923 = vmatpush.msra.mxu0 0.0
    %12924 = vmatpush.msra.mxu0 0.0
    %12925 = vmatpush.msra.mxu0 0.0
    %12926 = vmatpush.msra.mxu0 %v12729
    %12927 = vmatmul.f32.gmra.mxu0 %v12711
    %v12928 = vpop.f32.mrf.mxu0
    %v12929 = vadd.f32 0.0, %v12928
    %12930 = vdwg.mxu0
    %12931 = vmatpush.msra.mxu0 0.0
    %12932 = vmatpush.msra.mxu0 0.0
    %12933 = vmatpush.msra.mxu0 0.0
    %12934 = vmatpush.msra.mxu0 0.0
    %12935 = vmatpush.msra.mxu0 0.0
    %12936 = vmatpush.msra.mxu0 0.0
    %12937 = vmatpush.msra.mxu0 0.0
    %12938 = vmatpush.msra.mxu0 0.0
    %12939 = vmatpush.msra.mxu0 0.0
    %12940 = vmatpush.msra.mxu0 0.0
    %12941 = vmatpush.msra.mxu0 0.0
    %12942 = vmatpush.msra.mxu0 0.0
    %12943 = vmatpush.msra.mxu0 0.0
    %12944 = vmatpush.msra.mxu0 0.0
    %12945 = vmatpush.msra.mxu0 0.0
    %12946 = vmatpush.msra.mxu0 %v12731
    %12947 = vmatmul.f32.gmra.mxu0 %v12711
    %v12948 = vpop.f32.mrf.mxu0
    %v12949 = vadd.f32 0.0, %v12948
    %12950 = vdwg.mxu0
    %12951 = vmatpush.msra.mxu0 0.0
    %12952 = vmatpush.msra.mxu0 0.0
    %12953 = vmatpush.msra.mxu0 0.0
    %12954 = vmatpush.msra.mxu0 0.0
    %12955 = vmatpush.msra.mxu0 0.0
    %12956 = vmatpush.msra.mxu0 0.0
    %12957 = vmatpush.msra.mxu0 0.0
    %12958 = vmatpush.msra.mxu0 0.0
    %12959 = vmatpush.msra.mxu0 0.0
    %12960 = vmatpush.msra.mxu0 0.0
    %12961 = vmatpush.msra.mxu0 0.0
    %12962 = vmatpush.msra.mxu0 0.0
    %12963 = vmatpush.msra.mxu0 0.0
    %12964 = vmatpush.msra.mxu0 0.0
    %12965 = vmatpush.msra.mxu0 0.0
    %12966 = vmatpush.msra.mxu0 %v12733
    %12967 = vmatmul.f32.gmra.mxu0 %v12711
    %v12968 = vpop.f32.mrf.mxu0
    %v12969 = vadd.f32 0.0, %v12968
    %12970 = vdwg.mxu0
    %12971 = vmatpush.msra.mxu0 0.0
    %12972 = vmatpush.msra.mxu0 0.0
    %12973 = vmatpush.msra.mxu0 0.0
    %12974 = vmatpush.msra.mxu0 0.0
    %12975 = vmatpush.msra.mxu0 0.0
    %12976 = vmatpush.msra.mxu0 0.0
    %12977 = vmatpush.msra.mxu0 0.0
    %12978 = vmatpush.msra.mxu0 0.0
    %12979 = vmatpush.msra.mxu0 0.0
    %12980 = vmatpush.msra.mxu0 0.0
    %12981 = vmatpush.msra.mxu0 0.0
    %12982 = vmatpush.msra.mxu0 0.0
    %12983 = vmatpush.msra.mxu0 0.0
    %12984 = vmatpush.msra.mxu0 0.0
    %12985 = vmatpush.msra.mxu0 0.0
    %12986 = vmatpush.msra.mxu0 %v12735
    %12987 = vmatmul.f32.gmra.mxu0 %v12711
    %v12988 = vpop.f32.mrf.mxu0
    %v12989 = vadd.f32 0.0, %v12988
    %12990 = vdwg.mxu0
    %12991 = vmatpush.msra.mxu0 0.0
    %12992 = vmatpush.msra.mxu0 0.0
    %12993 = vmatpush.msra.mxu0 0.0
    %12994 = vmatpush.msra.mxu0 0.0
    %12995 = vmatpush.msra.mxu0 0.0
    %12996 = vmatpush.msra.mxu0 0.0
    %12997 = vmatpush.msra.mxu0 0.0
    %12998 = vmatpush.msra.mxu0 0.0
    %12999 = vmatpush.msra.mxu0 0.0
    %13000 = vmatpush.msra.mxu0 0.0
    %13001 = vmatpush.msra.mxu0 0.0
    %13002 = vmatpush.msra.mxu0 0.0
    %13003 = vmatpush.msra.mxu0 0.0
    %13004 = vmatpush.msra.mxu0 0.0
    %13005 = vmatpush.msra.mxu0 0.0
    %13006 = vmatpush.msra.mxu0 %v12737
    %13007 = vmatmul.f32.gmra.mxu0 %v12711
    %v13008 = vpop.f32.mrf.mxu0
    %v13009 = vadd.f32 0.0, %v13008
    %13010 = vdwg.mxu0
    %13011 = vmatpush.msra.mxu0 0.0
    %13012 = vmatpush.msra.mxu0 0.0
    %13013 = vmatpush.msra.mxu0 0.0
    %13014 = vmatpush.msra.mxu0 0.0
    %13015 = vmatpush.msra.mxu0 0.0
    %13016 = vmatpush.msra.mxu0 0.0
    %13017 = vmatpush.msra.mxu0 0.0
    %13018 = vmatpush.msra.mxu0 0.0
    %13019 = vmatpush.msra.mxu0 0.0
    %13020 = vmatpush.msra.mxu0 0.0
    %13021 = vmatpush.msra.mxu0 0.0
    %13022 = vmatpush.msra.mxu0 0.0
    %13023 = vmatpush.msra.mxu0 0.0
    %13024 = vmatpush.msra.mxu0 0.0
    %13025 = vmatpush.msra.mxu0 0.0
    %13026 = vmatpush.msra.mxu0 %v12739
    %13027 = vmatmul.f32.gmra.mxu0 %v12711
    %v13028 = vpop.f32.mrf.mxu0
    %v13029 = vadd.f32 0.0, %v13028
    %13030 = vdwg.mxu0
    %13031 = vmatpush.msra.mxu0 0.0
    %13032 = vmatpush.msra.mxu0 0.0
    %13033 = vmatpush.msra.mxu0 0.0
    %13034 = vmatpush.msra.mxu0 0.0
    %13035 = vmatpush.msra.mxu0 0.0
    %13036 = vmatpush.msra.mxu0 0.0
    %13037 = vmatpush.msra.mxu0 0.0
    %13038 = vmatpush.msra.mxu0 0.0
    %13039 = vmatpush.msra.mxu0 0.0
    %13040 = vmatpush.msra.mxu0 0.0
    %13041 = vmatpush.msra.mxu0 0.0
    %13042 = vmatpush.msra.mxu0 0.0
    %13043 = vmatpush.msra.mxu0 0.0
    %13044 = vmatpush.msra.mxu0 0.0
    %13045 = vmatpush.msra.mxu0 0.0
    %13046 = vmatpush.msra.mxu0 %v12741
    %13047 = vmatmul.f32.gmra.mxu0 %v12711
    %v13048 = vpop.f32.mrf.mxu0
    %v13049 = vadd.f32 0.0, %v13048
    %13050 = vdwg.mxu0
    %13051 = vmatpush.msra.mxu0 0.0
    %13052 = vmatpush.msra.mxu0 0.0
    %13053 = vmatpush.msra.mxu0 0.0
    %13054 = vmatpush.msra.mxu0 0.0
    %13055 = vmatpush.msra.mxu0 0.0
    %13056 = vmatpush.msra.mxu0 0.0
    %13057 = vmatpush.msra.mxu0 0.0
    %13058 = vmatpush.msra.mxu0 0.0
    %13059 = vmatpush.msra.mxu0 0.0
    %13060 = vmatpush.msra.mxu0 0.0
    %13061 = vmatpush.msra.mxu0 0.0
    %13062 = vmatpush.msra.mxu0 0.0
    %13063 = vmatpush.msra.mxu0 0.0
    %13064 = vmatpush.msra.mxu0 0.0
    %13065 = vmatpush.msra.mxu0 0.0
    %13066 = vmatpush.msra.mxu0 %v12743
    %13067 = vmatmul.f32.gmra.mxu0 %v12711
    %v13068 = vpop.f32.mrf.mxu0
    %v13069 = vadd.f32 0.0, %v13068
    %13070 = vdwg.mxu0
    %13071 = vmatpush.msra.mxu0 0.0
    %13072 = vmatpush.msra.mxu0 0.0
    %13073 = vmatpush.msra.mxu0 0.0
    %13074 = vmatpush.msra.mxu0 0.0
    %13075 = vmatpush.msra.mxu0 0.0
    %13076 = vmatpush.msra.mxu0 0.0
    %13077 = vmatpush.msra.mxu0 0.0
    %13078 = vmatpush.msra.mxu0 0.0
    %13079 = vmatpush.msra.mxu0 0.0
    %13080 = vmatpush.msra.mxu0 0.0
    %13081 = vmatpush.msra.mxu0 0.0
    %13082 = vmatpush.msra.mxu0 0.0
    %13083 = vmatpush.msra.mxu0 0.0
    %13084 = vmatpush.msra.mxu0 0.0
    %13085 = vmatpush.msra.mxu0 0.0
    %13086 = vmatpush.msra.mxu0 %v12745
    %13087 = vmatmul.f32.gmra.mxu0 %v12711
    %v13088 = vpop.f32.mrf.mxu0
    %v13089 = vadd.f32 0.0, %v13088
    %13090 = vdwg.mxu0
    %13091 = vmatpush.msra.mxu0 0.0
    %13092 = vmatpush.msra.mxu0 0.0
    %13093 = vmatpush.msra.mxu0 0.0
    %13094 = vmatpush.msra.mxu0 0.0
    %13095 = vmatpush.msra.mxu0 0.0
    %13096 = vmatpush.msra.mxu0 0.0
    %13097 = vmatpush.msra.mxu0 0.0
    %13098 = vmatpush.msra.mxu0 0.0
    %13099 = vmatpush.msra.mxu0 0.0
    %13100 = vmatpush.msra.mxu0 0.0
    %13101 = vmatpush.msra.mxu0 0.0
    %13102 = vmatpush.msra.mxu0 0.0
    %13103 = vmatpush.msra.mxu0 0.0
    %13104 = vmatpush.msra.mxu0 0.0
    %13105 = vmatpush.msra.mxu0 0.0
    %13106 = vmatpush.msra.mxu0 %v12747
    %13107 = vmatmul.f32.gmra.mxu0 %v12711
    %v13108 = vpop.f32.mrf.mxu0
    %v13109 = vadd.f32 0.0, %v13108
    %13110 = vdwg.mxu0
    %13111 = vmatpush.msra.mxu0 0.0
    %13112 = vmatpush.msra.mxu0 0.0
    %13113 = vmatpush.msra.mxu0 0.0
    %13114 = vmatpush.msra.mxu0 0.0
    %13115 = vmatpush.msra.mxu0 0.0
    %13116 = vmatpush.msra.mxu0 0.0
    %13117 = vmatpush.msra.mxu0 0.0
    %13118 = vmatpush.msra.mxu0 0.0
    %13119 = vmatpush.msra.mxu0 0.0
    %13120 = vmatpush.msra.mxu0 0.0
    %13121 = vmatpush.msra.mxu0 0.0
    %13122 = vmatpush.msra.mxu0 0.0
    %13123 = vmatpush.msra.mxu0 0.0
    %13124 = vmatpush.msra.mxu0 0.0
    %13125 = vmatpush.msra.mxu0 0.0
    %13126 = vmatpush.msra.mxu0 %v12749
    %13127 = vmatmul.f32.gmra.mxu0 %v12711
    %v13128 = vpop.f32.mrf.mxu0
    %v13129 = vadd.f32 0.0, %v13128
    %13130 = vdwg.mxu0
    %v13131 = vperm.slane %v12316, 0
    %v13132 = vperm.slane %v12336, 0
    %v13133 = vperm.slane %v12356, 0
    %v13134 = vperm.slane %v12376, 0
    %v13135 = vperm.slane %v12396, 0
    %v13136 = vperm.slane %v12416, 0
    %v13137 = vperm.slane %v12436, 0
    %v13138 = vperm.slane %v12456, 0
    %v13139 = vperm.slane %v12476, 0
    %v13140 = vperm.slane %v12496, 0
    %v13141 = vperm.slane %v12516, 0
    %v13142 = vperm.slane %v12536, 0
    %v13143 = vperm.slane %v12556, 0
    %v13144 = vperm.slane %v12576, 0
    %v13145 = vperm.slane %v12596, 0
    %v13146 = vperm.slane %v12616, 0
    %v13147 = vperm.slane %v12636, 0
    %v13148 = vperm.slane %v12656, 0
    %v13149 = vperm.slane %v12676, 0
    %v13150 = vsub.f32 %v9452, %v13131
    %v13151 = vsub.f32 %v9543, %v13132
    %v13152 = vsub.f32 %v9634, %v13133
    %v13153 = vsub.f32 %v9725, %v13134
    %v13154 = vsub.f32 %v9816, %v13135
    %v13155 = vsub.f32 %v9907, %v13136
    %v13156 = vsub.f32 %v9998, %v13137
    %v13157 = vsub.f32 %v10089, %v13138
    %v13158 = vsub.f32 %v10180, %v13139
    %v13159 = vsub.f32 %v10271, %v13140
    %v13160 = vsub.f32 %v10362, %v13141
    %v13161 = vsub.f32 %v10453, %v13142
    %v13162 = vsub.f32 %v10544, %v13143
    %v13163 = vsub.f32 %v10635, %v13144
    %v13164 = vsub.f32 %v10726, %v13145
    %v13165 = vsub.f32 %v10817, %v13146
    %v13166 = vsub.f32 %v10908, %v13147
    %v13167 = vsub.f32 %v10999, %v13148
    %v13168 = vsub.f32 %v11090, %v13149
    %v13169 = vperm.slane %v12769, 0
    %v13170 = vperm.slane %v12789, 0
    %v13171 = vperm.slane %v12809, 0
    %v13172 = vperm.slane %v12829, 0
    %v13173 = vperm.slane %v12849, 0
    %v13174 = vperm.slane %v12869, 0
    %v13175 = vperm.slane %v12889, 0
    %v13176 = vperm.slane %v12909, 0
    %v13177 = vperm.slane %v12929, 0
    %v13178 = vperm.slane %v12949, 0
    %v13179 = vperm.slane %v12969, 0
    %v13180 = vperm.slane %v12989, 0
    %v13181 = vperm.slane %v13009, 0
    %v13182 = vperm.slane %v13029, 0
    %v13183 = vperm.slane %v13049, 0
    %v13184 = vperm.slane %v13069, 0
    %v13185 = vperm.slane %v13089, 0
    %v13186 = vperm.slane %v13109, 0
    %v13187 = vperm.slane %v13129, 0
    %v13188 = vmul.f32 %v13150, %v13169
    %v13189 = vmul.f32 %v13151, %v13170
    %v13190 = vmul.f32 %v13152, %v13171
    %v13191 = vmul.f32 %v13153, %v13172
    %v13192 = vmul.f32 %v13154, %v13173
    %v13193 = vmul.f32 %v13155, %v13174
    %v13194 = vmul.f32 %v13156, %v13175
    %v13195 = vmul.f32 %v13157, %v13176
    %v13196 = vmul.f32 %v13158, %v13177
    %v13197 = vmul.f32 %v13159, %v13178
    %v13198 = vmul.f32 %v13160, %v13179
    %v13199 = vmul.f32 %v13161, %v13180
    %v13200 = vmul.f32 %v13162, %v13181
    %v13201 = vmul.f32 %v13163, %v13182
    %v13202 = vmul.f32 %v13164, %v13183
    %v13203 = vmul.f32 %v13165, %v13184
    %v13204 = vmul.f32 %v13166, %v13185
    %v13205 = vmul.f32 %v13167, %v13186
    %v13206 = vmul.f32 %v13168, %v13187
    %vm13207 = vcmp.gt.f32.partialorder %v13188, 0.0
    %vm13208 = vcmp.gt.f32.partialorder %v13189, 0.0
    %vm13209 = vcmp.gt.f32.partialorder %v13190, 0.0
    %vm13210 = vcmp.gt.f32.partialorder %v13191, 0.0
    %vm13211 = vcmp.gt.f32.partialorder %v13192, 0.0
    %vm13212 = vcmp.gt.f32.partialorder %v13193, 0.0
    %vm13213 = vcmp.gt.f32.partialorder %v13194, 0.0
    %vm13214 = vcmp.gt.f32.partialorder %v13195, 0.0
    %vm13215 = vcmp.gt.f32.partialorder %v13196, 0.0
    %vm13216 = vcmp.gt.f32.partialorder %v13197, 0.0
    %vm13217 = vcmp.gt.f32.partialorder %v13198, 0.0
    %vm13218 = vcmp.gt.f32.partialorder %v13199, 0.0
    %vm13219 = vcmp.gt.f32.partialorder %v13200, 0.0
    %vm13220 = vcmp.gt.f32.partialorder %v13201, 0.0
    %vm13221 = vcmp.gt.f32.partialorder %v13202, 0.0
    %vm13222 = vcmp.gt.f32.partialorder %v13203, 0.0
    %vm13223 = vcmp.gt.f32.partialorder %v13204, 0.0
    %vm13224 = vcmp.gt.f32.partialorder %v13205, 0.0
    %vm13225 = vcmp.gt.f32.partialorder %v13206, 0.0
    %v13226 = vmul.f32 %v13188, 0.2
    %v13227 = vmul.f32 %v13189, 0.2
    %v13228 = vmul.f32 %v13190, 0.2
    %v13229 = vmul.f32 %v13191, 0.2
    %v13230 = vmul.f32 %v13192, 0.2
    %v13231 = vmul.f32 %v13193, 0.2
    %v13232 = vmul.f32 %v13194, 0.2
    %v13233 = vmul.f32 %v13195, 0.2
    %v13234 = vmul.f32 %v13196, 0.2
    %v13235 = vmul.f32 %v13197, 0.2
    %v13236 = vmul.f32 %v13198, 0.2
    %v13237 = vmul.f32 %v13199, 0.2
    %v13238 = vmul.f32 %v13200, 0.2
    %v13239 = vmul.f32 %v13201, 0.2
    %v13240 = vmul.f32 %v13202, 0.2
    %v13241 = vmul.f32 %v13203, 0.2
    %v13242 = vmul.f32 %v13204, 0.2
    %v13243 = vmul.f32 %v13205, 0.2
    %v13244 = vmul.f32 %v13206, 0.2
    %v13245 = vsel %vm13207, %v13188, %v13226
    %v13246 = vsel %vm13208, %v13189, %v13227
    %v13247 = vsel %vm13209, %v13190, %v13228
    %v13248 = vsel %vm13210, %v13191, %v13229
    %v13249 = vsel %vm13211, %v13192, %v13230
    %v13250 = vsel %vm13212, %v13193, %v13231
    %v13251 = vsel %vm13213, %v13194, %v13232
    %v13252 = vsel %vm13214, %v13195, %v13233
    %v13253 = vsel %vm13215, %v13196, %v13234
    %v13254 = vsel %vm13216, %v13197, %v13235
    %v13255 = vsel %vm13217, %v13198, %v13236
    %v13256 = vsel %vm13218, %v13199, %v13237
    %v13257 = vsel %vm13219, %v13200, %v13238
    %v13258 = vsel %vm13220, %v13201, %v13239
    %v13259 = vsel %vm13221, %v13202, %v13240
    %v13260 = vsel %vm13222, %v13203, %v13241
    %v13261 = vsel %vm13223, %v13204, %v13242
    %v13262 = vsel %vm13224, %v13205, %v13243
    %v13263 = vsel %vm13225, %v13206, %v13244
    %v13264 = vtanh.pop %v13245
    %v13265 = vtanh.pop %v13246
    %v13266 = vtanh.pop %v13247
    %v13267 = vtanh.pop %v13248
    %v13268 = vtanh.pop %v13249
    %v13269 = vtanh.pop %v13250
    %v13270 = vtanh.pop %v13251
    %v13271 = vtanh.pop %v13252
    %v13272 = vtanh.pop %v13253
    %v13273 = vtanh.pop %v13254
    %v13274 = vtanh.pop %v13255
    %v13275 = vtanh.pop %v13256
    %v13276 = vtanh.pop %v13257
    %v13277 = vtanh.pop %v13258
    %v13278 = vtanh.pop %v13259
    %v13279 = vtanh.pop %v13260
    %v13280 = vtanh.pop %v13261
    %v13281 = vtanh.pop %v13262
    %v13282 = vtanh.pop %v13263
    %v13302 = vrot.slane %v13265, 6
    %v13303 = vrot.slane %v13266, 4
    %v13304 = vrot.slane %v13267, 2
    %v13305 = vrot.slane %v13269, 6
    %v13306 = vrot.slane %v13270, 4
    %v13307 = vrot.slane %v13271, 2
    %v13308 = vrot.slane %v13273, 6
    %v13309 = vrot.slane %v13274, 4
    %v13310 = vrot.slane %v13275, 2
    %v13311 = vrot.slane %v13277, 6
    %v13312 = vrot.slane %v13278, 4
    %v13313 = vrot.slane %v13279, 2
    %v13314 = vrot.slane %v13281, 6
    %v13315 = vrot.slane %v13282, 4
    %vm13316 = vcmask 1041408
    %v13317 = vsel %vm13316, %v13264, %v13302
    %vm13318 = vcmask 1045508
    %v13319 = vsel %vm13318, %v13303, %v13304
    %v13320 = vsel %vm2463, %v13317, %v13319
    %v13321 = vsel %vm13316, %v13268, %v13305
    %v13322 = vsel %vm13318, %v13306, %v13307
    %v13323 = vsel %vm2463, %v13321, %v13322
    %v13324 = vsel %vm13316, %v13272, %v13308
    %v13325 = vsel %vm13318, %v13309, %v13310
    %v13326 = vsel %vm2463, %v13324, %v13325
    %v13327 = vsel %vm13316, %v13276, %v13311
    %v13328 = vsel %vm13318, %v13312, %v13313
    %v13329 = vsel %vm2463, %v13327, %v13328
    %v13330 = vsel %vm13316, %v13280, %v13314
    %v13331 = vsel %vm2463, %v13330, %v13315
    %13337 = vst [vmem:[%s13] sm:$0xff] %v13320
    %13338 = vst [vmem:[%s13 + $0x8] sm:$0xff] %v13323
    %13339 = vst [vmem:[%s13 + $0x10] sm:$0xff] %v13326
    %13340 = vst [vmem:[%s13 + $0x18] sm:$0xff] %v13329
    %vm13341 = vcmask 1043458
    %vm13342 = vmor %vm13341, %vm13316
    %vm13343 = vcmask 390148
    %vm13344 = vmor %vm13343, %vm13342
    %13345 = vst.msk [vmem:[%s13 + $0x20] sm:$0x3f] %vm13344, %v13331
    // Predicated region
    $region82: #{generator_forward.1} parent=1 // pred_check
      _
    $region83: #{generator_forward.1} parent=1 // pred_check_branch
      %13347 = sbr.rel (0) target = $region85
    $region84: #{generator_forward.1} parent=1 // pred_region
      _
    $region85: #{generator_forward.1} parent=1 // pred_fallthru
      _
    // Predicated region
    $region86: #{generator_forward.1} parent=1 // pred_check
      _
    $region87: #{generator_forward.1} parent=1 // pred_check_branch
      %13349 = sbr.rel (0) target = $region89
    $region88: #{generator_forward.1} parent=1 // pred_region
      _
    $region89: #{generator_forward.1} parent=1 // pred_fallthru
      _
    %13350 = vsyncpa [#allocation3], 1
    %13351 = vsyncpa [#allocation5], 1
    %13352 = vsyncpa [#allocation8], 1
    %13353 = vsyncpa [#allocation11], 1

</llo_original>
